<compile_context>
chip_gen: v5e
topology: v5e:2x2
jax: 0.10.0
libtpu: 0.0.40
codegen_flags: <defaults>
</compile_context>

<pallas_src>
import functools

import jax
import jax.numpy as jnp
from jax.experimental import pallas as pl
from jax.experimental.pallas import tpu as pltpu

DIM_IN = 1280     # EfficientNet-b0 _fc.in_features
FEAT_DIM = 128
STEM_C = 32       # EfficientNet-b0 stem conv output channels
VMEM_LIMIT = 48 * 1024 * 1024   # <= v7x's 64 MiB physical VMEM per TensorCore
MAX_TH = 1568                   # spatial-row tile cap (cols + f32 temps ~ 8 MiB)


def _round_up(x, m):
  return (x + m - 1) // m * m


def _pick_spatial_tile(hw, cap=MAX_TH):
  """Largest multiple-of-8 tile <= cap that divides hw (no padding, few steps).
  Falls back to padding only when no such divisor exists."""
  best = 0
  for th in range(8, min(cap, hw) + 1, 8):
    if hw % th == 0:
      best = th
  if best:
    return best, hw
  th = min(cap, _round_up(hw, 8))
  return th, _round_up(hw, th)


def _elementwise_dtype():
  """bf16 swish on chips with bf16 VPU/EUP (v6e/v7x); f32 elsewhere (v5e...)."""
  try:
    kind = jax.devices()[0].device_kind.lower()
  except Exception:  # pragma: no cover - conservative fallback
    kind = ""
  if "v6" in kind or "v7" in kind or "tpu7" in kind:
    return jnp.bfloat16
  return jnp.float32


# ----------------------------------------------------------------------------
# Fused encoder kernel: stem conv (as matmul) + swish + 1x1 head conv + swish
#                       + global-average-pool partial sums.
# Grid: (B, HW_pad // TH); batch axis parallel, spatial-tile axis is a reduction.
# ----------------------------------------------------------------------------
def _encoder_fused_kernel(cols_ref, stem_w_ref, stem_b_ref, hc_w_ref, hc_b_ref,
                          o_ref, acc_ref, *, inv_hw, ew_dtype):
  t = pl.program_id(1)

  @pl.when(t == 0)
  def _():
    acc_ref[...] = jnp.zeros_like(acc_ref)

  # Stem 3x3 s2 conv as matmul (bf16 MXU, f32 accumulate), fused-BN bias, swish.
  h = jnp.dot(cols_ref[...], stem_w_ref[...],
              preferred_element_type=jnp.float32)          # (TH, 32) f32
  h = (h + stem_b_ref[...]).astype(ew_dtype)
  h = h * jax.nn.sigmoid(h)

  # TODO(synk): MBConv blocks of EfficientNet-b0 omitted between stem and head conv.

  # Final 1x1 head conv to 1280 channels (bf16 MXU, f32 accumulate), bias, swish.
  h2 = jnp.dot(h.astype(jnp.bfloat16), hc_w_ref[...],
               preferred_element_type=jnp.float32)         # (TH, 1280) f32
  h2 = (h2 + hc_b_ref[...]).astype(ew_dtype)
  h2 = h2 * jax.nn.sigmoid(h2)

  # Partial pooling sum for this tile (f32 accumulation).  No per-tile masking:
  # padded rows (if any) are corrected once, outside the kernel.
  acc_ref[...] += jnp.sum(h2.astype(jnp.float32), axis=0, keepdims=True)

  @pl.when(t == pl.num_programs(1) - 1)
  def _():
    o_ref[...] = (acc_ref[...] * inv_hw).astype(o_ref.dtype)


def encoder_fused(cols, stem_w, stem_b, hc_w, hc_b, *, hw, th):
  """cols: (B, HW_pad, K) bf16 patch rows; returns pooled features (B, 1280) bf16."""
  B, hw_pad, K = cols.shape
  n_t = hw_pad // th
  kern = functools.partial(_encoder_fused_kernel, inv_hw=1.0 / hw,
                           ew_dtype=_elementwise_dtype())
  out = pl.pallas_call(
      kern,
      out_shape=jax.ShapeDtypeStruct((B, 1, DIM_IN), jnp.bfloat16),
      grid=(B, n_t),
      in_specs=[
          pl.BlockSpec((None, th, K), lambda b, t: (b, t, 0)),     # streamed patches
          pl.BlockSpec((K, STEM_C), lambda b, t: (0, 0)),          # resident weights
          pl.BlockSpec((1, STEM_C), lambda b, t: (0, 0)),
          pl.BlockSpec((STEM_C, DIM_IN), lambda b, t: (0, 0)),
          pl.BlockSpec((1, DIM_IN), lambda b, t: (0, 0)),
      ],
      out_specs=pl.BlockSpec((None, 1, DIM_IN), lambda b, t: (b, 0, 0)),
      scratch_shapes=[pltpu.VMEM((1, DIM_IN), jnp.float32)],
      compiler_params=pltpu.CompilerParams(
          dimension_semantics=("parallel", "arbitrary"),
          vmem_limit_bytes=VMEM_LIMIT,
      ),
  )(cols, stem_w, stem_b, hc_w, hc_b)
  return out.reshape(B, DIM_IN)


# ----------------------------------------------------------------------------
# Projection head: Linear -> ReLU -> Linear -> L2 normalize (F.normalize, dim=1)
# ----------------------------------------------------------------------------
def _mlp_head_norm_kernel(f_ref, w1_ref, b1_ref, w2_ref, b2_ref, o_ref):
  h = jnp.dot(f_ref[...], w1_ref[...], preferred_element_type=jnp.float32)
  h = jnp.maximum(h + b1_ref[...], 0.0)
  z = jnp.dot(h.astype(jnp.bfloat16), w2_ref[...],
              preferred_element_type=jnp.float32)
  z = z + b2_ref[...]
  # F.normalize(dim=1, eps=1e-12): divide by max(||z||, eps) == mul by rsqrt(max(sumsq, eps^2))
  sumsq = jnp.sum(z * z, axis=1, keepdims=True)
  o_ref[...] = z * jax.lax.rsqrt(jnp.maximum(sumsq, 1e-24))


def mlp_head_norm(f, w1, b1, w2, b2, *, tb=256):
  B, D = f.shape
  F_ = w2.shape[1]
  # Always tile the batch: pad to a multiple of tb and slice afterwards so
  # arbitrary SupCon batch sizes stay pipelined and VMEM-bounded.
  tb = min(tb, _round_up(B, 8))
  b_pad = _round_up(B, tb)
  if b_pad != B:
    f = jnp.pad(f, ((0, b_pad - B), (0, 0)))
  out = pl.pallas_call(
      _mlp_head_norm_kernel,
      out_shape=jax.ShapeDtypeStruct((b_pad, F_), jnp.float32),
      grid=(b_pad // tb,),
      in_specs=[
          pl.BlockSpec((tb, D), lambda i: (i, 0)),
          pl.BlockSpec((D, D), lambda i: (0, 0)),
          pl.BlockSpec((1, D), lambda i: (0, 0)),
          pl.BlockSpec((D, F_), lambda i: (0, 0)),
          pl.BlockSpec((1, F_), lambda i: (0, 0)),
      ],
      out_specs=pl.BlockSpec((tb, F_), lambda i: (i, 0)),
      compiler_params=pltpu.CompilerParams(
          dimension_semantics=("parallel",),
          vmem_limit_bytes=VMEM_LIMIT,
      ),
  )(f, w1, b1, w2, b2)
  return out[:B] if b_pad != B else out


# ----------------------------------------------------------------------------
# Glue: im2col (XLA patch extraction), parameter init, forward
# ----------------------------------------------------------------------------
def im2col_nchw(x, k=3, stride=2, pad=1):
  """(B, C, H, W) -> (B, Ho*Wo, C*k*k) patch rows via XLA patch extraction."""
  patches = jax.lax.conv_general_dilated_patches(
      x, filter_shape=(k, k), window_strides=(stride, stride),
      padding=((pad, pad), (pad, pad)))                 # (B, C*k*k, Ho, Wo)
  B, ckk, Ho, Wo = patches.shape
  cols = patches.reshape(B, ckk, Ho * Wo).transpose(0, 2, 1)
  return cols, Ho, Wo


def init_params(key):
  ks = jax.random.split(key, 8)
  p = {}
  # Stem conv (3x3 s2) with BN folded -> weight + bias, swish after.
  p["stem_w"] = (0.1 * jax.random.normal(ks[0], (3 * 3 * 3, STEM_C), jnp.float32)
                 ).astype(jnp.bfloat16)
  p["stem_b"] = 0.01 * jax.random.normal(ks[1], (1, STEM_C), jnp.float32)
  # Final 1x1 head conv to DIM_IN channels (BN folded), swish after.
  p["hc_w"] = (0.1 * jax.random.normal(ks[2], (STEM_C, DIM_IN), jnp.float32)
               ).astype(jnp.bfloat16)
  p["hc_b"] = 0.01 * jax.random.normal(ks[3], (1, DIM_IN), jnp.float32)
  # MLP projection head (stored as (in, out) so kernels do x @ W).
  p["w1"] = (0.02 * jax.random.normal(ks[4], (DIM_IN, DIM_IN), jnp.float32)
             ).astype(jnp.bfloat16)
  p["b1"] = 0.01 * jax.random.normal(ks[5], (1, DIM_IN), jnp.float32)
  p["w2"] = (0.02 * jax.random.normal(ks[6], (DIM_IN, FEAT_DIM), jnp.float32)
             ).astype(jnp.bfloat16)
  p["b2"] = 0.01 * jax.random.normal(ks[7], (1, FEAT_DIM), jnp.float32)
  return p


@jax.jit
def supcon_effnet_forward(x, params):
  # --- encoder (approximate EfficientNet-b0 trunk), fused into one kernel ---
  cols, Ho, Wo = im2col_nchw(x.astype(jnp.bfloat16), k=3, stride=2, pad=1)  # (B, HW, 27) bf16
  hw = Ho * Wo
  th, hw_pad = _pick_spatial_tile(hw)                     # prefer th | hw (no padding)
  if hw_pad != hw:
    cols = jnp.pad(cols, ((0, 0), (0, hw_pad - hw), (0, 0)))
  pooled = encoder_fused(cols, params["stem_w"], params["stem_b"],
                         params["hc_w"], params["hc_b"],
                         hw=hw, th=th)                    # (B, 1280) bf16
  if hw_pad != hw:
    # Subtract the constant contribution of the all-zero padded patch rows
    # once (pure XLA on a (1,1280) vector) instead of masking every tile.
    sb = params["stem_b"]
    ps = sb * jax.nn.sigmoid(sb)                          # (1, 32) f32
    pr = jnp.dot(ps, params["hc_w"].astype(jnp.float32)) + params["hc_b"]
    pr = pr * jax.nn.sigmoid(pr)                          # (1, 1280) f32
    pooled = (pooled.astype(jnp.float32)
              - (float(hw_pad - hw) / hw) * pr).astype(jnp.bfloat16)
  # --- projection head + F.normalize(dim=1) ---
  feat = mlp_head_norm(pooled, params["w1"], params["b1"],
                       params["w2"], params["b2"])        # (B, 128) f32, unit norm
  return feat


if __name__ == "__main__":
  key = jax.random.PRNGKey(0)
  kx, kp = jax.random.split(key)
  x = jax.random.normal(kx, (2, 3, 16, 16), jnp.float32)  # NCHW, like PyTorch
  params = init_params(kp)

  out = supcon_effnet_forward(x, params)
  out = jax.block_until_ready(out)

  assert out.shape == (2, FEAT_DIM), out.shape
  norms = jnp.linalg.norm(out, axis=1)
  assert bool(jnp.all(jnp.isfinite(out)))
  assert bool(jnp.all(jnp.abs(norms - 1.0) < 1e-4)), norms
  print("KERNEL_OK")
</pallas_src>

<mosaic_0001>
module attributes {stable_mosaic.version = 11 : i64} {
  func.func @_encoder_fused_kernel(%arg0: i32, %arg1: i32, %arg2: memref<1x64x27xbf16, #tpu.memory_space<vmem>>, %arg3: memref<27x32xbf16, #tpu.memory_space<vmem>>, %arg4: memref<1x32xf32, #tpu.memory_space<vmem>>, %arg5: memref<32x1280xbf16, #tpu.memory_space<vmem>>, %arg6: memref<1x1280xf32, #tpu.memory_space<vmem>>, %arg7: memref<1x1x1280xbf16, #tpu.memory_space<vmem>>, %arg8: memref<1x1280xf32, #tpu.memory_space<vmem>>) attributes {dimension_semantics = [#tpu.dimension_semantics<parallel>, #tpu.dimension_semantics<arbitrary>], iteration_bounds = array<i64: 2, 1>, scalar_prefetch = 0 : i64, scratch_operands = 1 : i64, tpu.core_type = #tpu.core_type<tc>, window_params = [{transform_indices = @transform_0, window_bounds = array<i64: 1, 64, 27>}, {pipeline_mode = #tpu.pipeline_mode<synchronous>, transform_indices = @transform_1, window_bounds = array<i64: 27, 32>}, {pipeline_mode = #tpu.pipeline_mode<synchronous>, transform_indices = @transform_2, window_bounds = array<i64: 1, 32>}, {pipeline_mode = #tpu.pipeline_mode<synchronous>, transform_indices = @transform_3, window_bounds = array<i64: 32, 1280>}, {pipeline_mode = #tpu.pipeline_mode<synchronous>, transform_indices = @transform_4, window_bounds = array<i64: 1, 1280>}, {transform_indices = @transform_5, window_bounds = array<i64: 1, 1, 1280>}]} {
    %c0_i32 = arith.constant 0 : i32
    %0 = arith.cmpi eq, %arg1, %c0_i32 : i32
    %1 = arith.extui %0 : i1 to i32
    %c0_i32_0 = arith.constant 0 : i32
    %2 = arith.cmpi ne, %1, %c0_i32_0 : i32
    scf.if %2 {
      %cst_21 = arith.constant 0.000000e+00 : f32
      %36 = vector.broadcast %cst_21 : f32 to vector<1x1280xf32>
      %c0_22 = arith.constant 0 : index
      %c0_23 = arith.constant 0 : index
      %37 = vector.load %arg8[%c0_22, %c0_23] : memref<1x1280xf32, #tpu.memory_space<vmem>>, vector<1x1280xf32>
      tpu.vector_store %arg8[%c0_22, %c0_23], %36 {strides = array<i32>} : memref<1x1280xf32, #tpu.memory_space<vmem>>, vector<1x1280xf32>,
    } else {
    }
    %c0 = arith.constant 0 : index
    %c0_1 = arith.constant 0 : index
    %c0_2 = arith.constant 0 : index
    %3 = vector.load %arg2[%c0, %c0_1, %c0_2] : memref<1x64x27xbf16, #tpu.memory_space<vmem>>, vector<1x64x27xbf16>
    %4 = vector.shape_cast %3 : vector<1x64x27xbf16> to vector<64x27xbf16>
    %c0_3 = arith.constant 0 : index
    %c0_4 = arith.constant 0 : index
    %5 = vector.load %arg3[%c0_3, %c0_4] : memref<27x32xbf16, #tpu.memory_space<vmem>>, vector<27x32xbf16>
    %cst = arith.constant dense<0.000000e+00> : vector<64x32xf32>
    %6 = tpu.matmul %4, %5, %cst {dimension_numbers = #tpu.dot_dimension_numbers<[1], [0], [0], [1], [0, 0, 1, 1], [], []>} : vector<64x27xbf16>, vector<27x32xbf16>, vector<64x32xf32> -> vector<64x32xf32>
    %c0_5 = arith.constant 0 : index
    %c0_6 = arith.constant 0 : index
    %7 = vector.load %arg4[%c0_5, %c0_6] : memref<1x32xf32, #tpu.memory_space<vmem>>, vector<1x32xf32>
    %8 = vector.broadcast %7 : vector<1x32xf32> to vector<64x32xf32>
    %9 = arith.addf %6, %8 : vector<64x32xf32>
    %10 = arith.negf %9 : vector<64x32xf32>
    %11 = math.exp %10 : vector<64x32xf32>
    %cst_7 = arith.constant 1.000000e+00 : f32
    %12 = vector.broadcast %cst_7 : f32 to vector<64x32xf32>
    %13 = arith.addf %12, %11 : vector<64x32xf32>
    %14 = arith.divf %12, %13 : vector<64x32xf32>
    %15 = arith.mulf %9, %14 : vector<64x32xf32>
    %16 = arith.truncf %15 : vector<64x32xf32> to vector<64x32xbf16>
    %c0_8 = arith.constant 0 : index
    %c0_9 = arith.constant 0 : index
    %17 = vector.load %arg5[%c0_8, %c0_9] : memref<32x1280xbf16, #tpu.memory_space<vmem>>, vector<32x1280xbf16>
    %cst_10 = arith.constant dense<0.000000e+00> : vector<64x1280xf32>
    %18 = tpu.matmul %16, %17, %cst_10 {dimension_numbers = #tpu.dot_dimension_numbers<[1], [0], [0], [1], [0, 0, 1, 1], [], []>} : vector<64x32xbf16>, vector<32x1280xbf16>, vector<64x1280xf32> -> vector<64x1280xf32>
    %c0_11 = arith.constant 0 : index
    %c0_12 = arith.constant 0 : index
    %19 = vector.load %arg6[%c0_11, %c0_12] : memref<1x1280xf32, #tpu.memory_space<vmem>>, vector<1x1280xf32>
    %20 = vector.broadcast %19 : vector<1x1280xf32> to vector<64x1280xf32>
    %21 = arith.addf %18, %20 : vector<64x1280xf32>
    %22 = arith.negf %21 : vector<64x1280xf32>
    %23 = math.exp %22 : vector<64x1280xf32>
    %cst_13 = arith.constant 1.000000e+00 : f32
    %24 = vector.broadcast %cst_13 : f32 to vector<64x1280xf32>
    %25 = arith.addf %24, %23 : vector<64x1280xf32>
    %26 = arith.divf %24, %25 : vector<64x1280xf32>
    %27 = arith.mulf %21, %26 : vector<64x1280xf32>
    %c0_14 = arith.constant 0 : index
    %c0_15 = arith.constant 0 : index
    %28 = vector.load %arg8[%c0_14, %c0_15] : memref<1x1280xf32, #tpu.memory_space<vmem>>, vector<1x1280xf32>
    %cst_16 = arith.constant dense<0.000000e+00> : vector<1280xf32>
    %29 = vector.multi_reduction <add>, %27, %cst_16 [0] : vector<64x1280xf32> to vector<1280xf32>
    %30 = vector.shape_cast %29 : vector<1280xf32> to vector<1x1280xf32>
    %31 = arith.addf %28, %30 : vector<1x1280xf32>
    %c0_17 = arith.constant 0 : index
    %c0_18 = arith.constant 0 : index
    %32 = vector.load %arg8[%c0_17, %c0_18] : memref<1x1280xf32, #tpu.memory_space<vmem>>, vector<1x1280xf32>
    tpu.vector_store %arg8[%c0_17, %c0_18], %31 {strides = array<i32>} : memref<1x1280xf32, #tpu.memory_space<vmem>>, vector<1x1280xf32>,
    %c0_i32_19 = arith.constant 0 : i32
    %33 = arith.cmpi eq, %arg1, %c0_i32_19 : i32
    %34 = arith.extui %33 : i1 to i32
    %c0_i32_20 = arith.constant 0 : i32
    %35 = arith.cmpi ne, %34, %c0_i32_20 : i32
    scf.if %35 {
      %c0_21 = arith.constant 0 : index
      %c0_22 = arith.constant 0 : index
      %36 = vector.load %arg8[%c0_21, %c0_22] : memref<1x1280xf32, #tpu.memory_space<vmem>>, vector<1x1280xf32>
      %cst_23 = arith.constant 1.562500e-02 : f32
      %37 = vector.broadcast %cst_23 : f32 to vector<1x1280xf32>
      %38 = arith.mulf %36, %37 : vector<1x1280xf32>
      %39 = arith.truncf %38 : vector<1x1280xf32> to vector<1x1280xbf16>
      %c0_24 = arith.constant 0 : index
      %c0_25 = arith.constant 0 : index
      %c0_26 = arith.constant 0 : index
      %40 = vector.load %arg7[%c0_24, %c0_25, %c0_26] : memref<1x1x1280xbf16, #tpu.memory_space<vmem>>, vector<1x1x1280xbf16>
      %41 = vector.shape_cast %40 : vector<1x1x1280xbf16> to vector<1x1280xbf16>
      %42 = vector.shape_cast %39 : vector<1x1280xbf16> to vector<1x1x1280xbf16>
      tpu.vector_store %arg7[%c0_24, %c0_25, %c0_26], %42 {strides = array<i32>} : memref<1x1x1280xbf16, #tpu.memory_space<vmem>>, vector<1x1x1280xbf16>,
    } else {
    }
    return
  }
  func.func @transform_0(%arg0: i32, %arg1: i32) -> (i32, i32, i32) {
    %c0_i32 = arith.constant 0 : i32
    %c0_i32_0 = arith.constant 0 : i32
    return %arg0, %arg1, %c0_i32 : i32, i32, i32
  }
  func.func @transform_1(%arg0: i32, %arg1: i32) -> (i32, i32) {
    %c0_i32 = arith.constant 0 : i32
    %c0_i32_0 = arith.constant 0 : i32
    %c0_i32_1 = arith.constant 0 : i32
    return %c0_i32, %c0_i32_0 : i32, i32
  }
  func.func @transform_2(%arg0: i32, %arg1: i32) -> (i32, i32) {
    %c0_i32 = arith.constant 0 : i32
    %c0_i32_0 = arith.constant 0 : i32
    %c0_i32_1 = arith.constant 0 : i32
    return %c0_i32, %c0_i32_0 : i32, i32
  }
  func.func @transform_3(%arg0: i32, %arg1: i32) -> (i32, i32) {
    %c0_i32 = arith.constant 0 : i32
    %c0_i32_0 = arith.constant 0 : i32
    %c0_i32_1 = arith.constant 0 : i32
    return %c0_i32, %c0_i32_0 : i32, i32
  }
  func.func @transform_4(%arg0: i32, %arg1: i32) -> (i32, i32) {
    %c0_i32 = arith.constant 0 : i32
    %c0_i32_0 = arith.constant 0 : i32
    %c0_i32_1 = arith.constant 0 : i32
    return %c0_i32, %c0_i32_0 : i32, i32
  }
  func.func @transform_5(%arg0: i32, %arg1: i32) -> (i32, i32, i32) {
    %c0_i32 = arith.constant 0 : i32
    %c0_i32_0 = arith.constant 0 : i32
    %c0_i32_1 = arith.constant 0 : i32
    return %arg0, %c0_i32, %c0_i32_0 : i32, i32, i32
  }
}

module attributes {stable_mosaic.version = 11 : i64} {
  func.func @_mlp_head_norm_kernel(%arg0: i32, %arg1: memref<8x1280xbf16, #tpu.memory_space<vmem>>, %arg2: memref<1280x1280xbf16, #tpu.memory_space<vmem>>, %arg3: memref<1x1280xf32, #tpu.memory_space<vmem>>, %arg4: memref<1280x128xbf16, #tpu.memory_space<vmem>>, %arg5: memref<1x128xf32, #tpu.memory_space<vmem>>, %arg6: memref<8x128xf32, #tpu.memory_space<vmem>>) attributes {dimension_semantics = [#tpu.dimension_semantics<parallel>], iteration_bounds = array<i64: 1>, scalar_prefetch = 0 : i64, scratch_operands = 0 : i64, tpu.core_type = #tpu.core_type<tc>, window_params = [{transform_indices = @transform_0, window_bounds = array<i64: 8, 1280>}, {pipeline_mode = #tpu.pipeline_mode<synchronous>, transform_indices = @transform_1, window_bounds = array<i64: 1280, 1280>}, {pipeline_mode = #tpu.pipeline_mode<synchronous>, transform_indices = @transform_2, window_bounds = array<i64: 1, 1280>}, {pipeline_mode = #tpu.pipeline_mode<synchronous>, transform_indices = @transform_3, window_bounds = array<i64: 1280, 128>}, {pipeline_mode = #tpu.pipeline_mode<synchronous>, transform_indices = @transform_4, window_bounds = array<i64: 1, 128>}, {transform_indices = @transform_5, window_bounds = array<i64: 8, 128>}]} {
    %c0 = arith.constant 0 : index
    %c0_0 = arith.constant 0 : index
    %0 = vector.load %arg1[%c0, %c0_0] : memref<8x1280xbf16, #tpu.memory_space<vmem>>, vector<8x1280xbf16>
    %c0_1 = arith.constant 0 : index
    %c0_2 = arith.constant 0 : index
    %1 = vector.load %arg2[%c0_1, %c0_2] : memref<1280x1280xbf16, #tpu.memory_space<vmem>>, vector<1280x1280xbf16>
    %cst = arith.constant dense<0.000000e+00> : vector<8x1280xf32>
    %2 = tpu.matmul %0, %1, %cst {dimension_numbers = #tpu.dot_dimension_numbers<[1], [0], [0], [1], [0, 0, 1, 1], [], []>} : vector<8x1280xbf16>, vector<1280x1280xbf16>, vector<8x1280xf32> -> vector<8x1280xf32>
    %c0_3 = arith.constant 0 : index
    %c0_4 = arith.constant 0 : index
    %3 = vector.load %arg3[%c0_3, %c0_4] : memref<1x1280xf32, #tpu.memory_space<vmem>>, vector<1x1280xf32>
    %4 = vector.broadcast %3 : vector<1x1280xf32> to vector<8x1280xf32>
    %5 = arith.addf %2, %4 : vector<8x1280xf32>
    %cst_5 = arith.constant 0.000000e+00 : f32
    %6 = vector.broadcast %cst_5 : f32 to vector<8x1280xf32>
    %7 = arith.maximumf %5, %6 : vector<8x1280xf32>
    %8 = arith.truncf %7 : vector<8x1280xf32> to vector<8x1280xbf16>
    %c0_6 = arith.constant 0 : index
    %c0_7 = arith.constant 0 : index
    %9 = vector.load %arg4[%c0_6, %c0_7] : memref<1280x128xbf16, #tpu.memory_space<vmem>>, vector<1280x128xbf16>
    %cst_8 = arith.constant dense<0.000000e+00> : vector<8x128xf32>
    %10 = tpu.matmul %8, %9, %cst_8 {dimension_numbers = #tpu.dot_dimension_numbers<[1], [0], [0], [1], [0, 0, 1, 1], [], []>} : vector<8x1280xbf16>, vector<1280x128xbf16>, vector<8x128xf32> -> vector<8x128xf32>
    %c0_9 = arith.constant 0 : index
    %c0_10 = arith.constant 0 : index
    %11 = vector.load %arg5[%c0_9, %c0_10] : memref<1x128xf32, #tpu.memory_space<vmem>>, vector<1x128xf32>
    %12 = vector.broadcast %11 : vector<1x128xf32> to vector<8x128xf32>
    %13 = arith.addf %10, %12 : vector<8x128xf32>
    %14 = arith.mulf %13, %13 : vector<8x128xf32>
    %cst_11 = arith.constant dense<0.000000e+00> : vector<8xf32>
    %15 = vector.multi_reduction <add>, %14, %cst_11 [1] : vector<8x128xf32> to vector<8xf32>
    %16 = vector.shape_cast %15 : vector<8xf32> to vector<8x1xf32>
    %cst_12 = arith.constant 1.000000e-24 : f32
    %17 = vector.broadcast %cst_12 : f32 to vector<8x1xf32>
    %18 = arith.maximumf %16, %17 : vector<8x1xf32>
    %19 = math.rsqrt %18 : vector<8x1xf32>
    %20 = vector.broadcast %19 : vector<8x1xf32> to vector<8x128xf32>
    %21 = arith.mulf %13, %20 : vector<8x128xf32>
    %c0_13 = arith.constant 0 : index
    %c0_14 = arith.constant 0 : index
    %22 = vector.load %arg6[%c0_13, %c0_14] : memref<8x128xf32, #tpu.memory_space<vmem>>, vector<8x128xf32>
    tpu.vector_store %arg6[%c0_13, %c0_14], %21 {strides = array<i32>} : memref<8x128xf32, #tpu.memory_space<vmem>>, vector<8x128xf32>,
    return
  }
  func.func @transform_0(%arg0: i32) -> (i32, i32) {
    %c0_i32 = arith.constant 0 : i32
    %c0_i32_0 = arith.constant 0 : i32
    return %arg0, %c0_i32 : i32, i32
  }
  func.func @transform_1(%arg0: i32) -> (i32, i32) {
    %c0_i32 = arith.constant 0 : i32
    %c0_i32_0 = arith.constant 0 : i32
    %c0_i32_1 = arith.constant 0 : i32
    return %c0_i32, %c0_i32_0 : i32, i32
  }
  func.func @transform_2(%arg0: i32) -> (i32, i32) {
    %c0_i32 = arith.constant 0 : i32
    %c0_i32_0 = arith.constant 0 : i32
    %c0_i32_1 = arith.constant 0 : i32
    return %c0_i32, %c0_i32_0 : i32, i32
  }
  func.func @transform_3(%arg0: i32) -> (i32, i32) {
    %c0_i32 = arith.constant 0 : i32
    %c0_i32_0 = arith.constant 0 : i32
    %c0_i32_1 = arith.constant 0 : i32
    return %c0_i32, %c0_i32_0 : i32, i32
  }
  func.func @transform_4(%arg0: i32) -> (i32, i32) {
    %c0_i32 = arith.constant 0 : i32
    %c0_i32_0 = arith.constant 0 : i32
    %c0_i32_1 = arith.constant 0 : i32
    return %c0_i32, %c0_i32_0 : i32, i32
  }
  func.func @transform_5(%arg0: i32) -> (i32, i32) {
    %c0_i32 = arith.constant 0 : i32
    %c0_i32_0 = arith.constant 0 : i32
    return %arg0, %c0_i32 : i32, i32
  }
}

</mosaic_0001>

<llo_original>
// kernel: supcon_effnet_forward.2
$region0: #{supcon_effnet_forward.2}
  #allocation0 [shape = 'u32[]', space=smem, size = 0x4, offset = 0x4, fixed_abs, tag = 'smem constant byte address 0x4 - core index']
  #allocation1 [shape = 'u32[72,128]{1,0:T(1,128)}', space=vmem, size = 0x9000, scoped, tag = 'internal scratch']
  #allocation2 [shape = 'f32[1,1280]{1,0:T(1,128)}', space=vmem, size = 0x1400, scoped, tag = 'scratch operand']
  %s0 = inlined_call_operand.vmem [shape: bf16[2,64,27], index: 0, kind: input, shape index: {}]
  %s1 = inlined_call_operand.hbm [shape: bf16[27,32], index: 1, kind: input, shape index: {}]
  %s2 = inlined_call_operand.hbm [shape: f32[1,32], index: 2, kind: input, shape index: {}]
  %s3 = inlined_call_operand.hbm [shape: bf16[32,1280], index: 3, kind: input, shape index: {}]
  %s4 = inlined_call_operand.hbm [shape: f32[1,1280], index: 4, kind: input, shape index: {}]
  %s5 = inlined_call_operand.vmem [shape: bf16[2,1,1280], index: 5, kind: output, shape index: {}]
  %s6 = sld [smem:[#allocation0]]
  $region77: #{supcon_effnet_forward.2} parent=0
    _
  %s8 = ssub.s32 1, %s6
  %s9 = scalar_select 0, %s8, %s6
  $region1: #{supcon_effnet_forward.2} parent=0
    #allocation3 [shape = 'u8[8192]{0}', space=vmem, size = 0x2000, scoped, tag = 'input window, operand 1, single buffered']
    #allocation4 [shape = 's32[2]{0}', space=sflag, size = 0x8, scoped, tag = 'scoped memory for supcon_effnet_forward.2']
    #allocation5 [shape = 'u8[512]{0}', space=vmem, size = 0x400, scoped, tag = 'input window, operand 2, single buffered']
    #allocation6 [shape = 's32[1]{0}', space=sflag, size = 0x4, scoped, tag = 'scoped memory for supcon_effnet_forward.2']
    #allocation7 [shape = 'u8[81920]{0}', space=vmem, size = 0x14000, scoped, tag = 'input window, operand 3, single buffered']
    #allocation8 [shape = 'u8[5120]{0}', space=vmem, size = 0x1400, scoped, tag = 'input window, operand 4, single buffered']
    #allocation9 [shape = 's32[1]{0}', space=sflag, size = 0x4, scoped, tag = 'scoped memory for supcon_effnet_forward.2']
    %10 = vsyncpa [#allocation4], 0
    %11 = vsyncpa [#allocation6], 0
    %12 = vsyncpa [#allocation9], 0
    loop: start=0, step=1, limit=4
    $region2: #{supcon_effnet_forward.2} parent=1 // loop_pre_header
      _
    $region3: #{supcon_effnet_forward.2} parent=1 // loop_header
      %s14 = sphi 0, %s18
      %p15 = scmp.ge.s32.totalorder %s14, 4
      %s21 = sphi 0, %s33
      %s22 = sphi 0, %s29
      %s23 = sphi 0, %s21
      %s24 = sphi 0, %s22
      %s25 = sphi 0, %s23
      %s26 = sphi 0, %s24
      %s38 = sphi 0, %s40
      %s41 = sphi 0, %s38
      %s42 = sphi 0, %s41
      %s58 = sphi 0, %s42
      %s62 = sphi 0, %s62
      %s64 = sphi 0, %s62
      %s65 = sphi 0, %s64
      %s79 = sphi 0, %s65
      %s83 = sphi 0, %s83
      %s85 = sphi 0, %s83
      %s86 = sphi 0, %s85
      %s100 = sphi 0, %s86
      %s104 = sphi 0, %s104
      %s106 = sphi 0, %s104
      %s107 = sphi 0, %s106
      %s121 = sphi 0, %s107
      %s125 = sphi 0, %s125
      %s127 = sphi 0, %s125
      %s128 = sphi 0, %s127
      %s142 = sphi 0, %s128
      %s148 = sphi 0, %s150
      %s151 = sphi 0, %s148
      %s152 = sphi 0, %s151
      %s168 = sphi 0, %s152
    $region4: #{supcon_effnet_forward.2} parent=1 // loop_header_branch
      %17 = sbr.rel (%p15) target = $region8
    $region5: #{supcon_effnet_forward.2} parent=1 // loop_body
      %s19 = ssub.s32 %s14, 1
      %s20 = ssub.s32 %s14, 2
      %s27 = sadd.s32 1, %s22
      %p28 = scmp.ge.s32.totalorder %s27, 1
      %s29 = scalar_select %p28, 0, %s27
      %s30 = sadd.s32 1, %s21
      %s31 = scalar_select %p28, %s30, %s21
      %p32 = scmp.ge.s32.totalorder %s31, 2
      %s33 = scalar_select %p32, 0, %s31
      %s34 = ssub.s32 %s21, %s33
      %s35 = ssub.s32 %s22, %s29
      %s36 = sor.u32 %s34, %s35
      %p37 = scmp.eq.s32.totalorder %s36, 0
      %s39 = sadd.s32 %s38, 1
      %s40 = scalar_select %p37, %s38, %s39
      %p43 = pneg %p37
      %p44 = scmp.eq.s32.totalorder %s14, 1
      %p45 = por %p43, %p44
      %p46 = scmp.ne.s32.totalorder %s38, %s41
      %p47 = scmp.eq.s32.totalorder %s14, 0
      %p48 = por %p46, %p47
      %p49 = scmp.ne.s32.totalorder %s38, %s41
      %p50 = scmp.eq.s32.totalorder %s19, 1
      %p51 = por %p49, %p50
      %p52 = scmp.ne.s32.totalorder %s41, %s42
      %p53 = scmp.eq.s32.totalorder %s19, 0
      %p54 = por %p52, %p53
      %p55 = scmp.ne.s32.totalorder %s41, %s42
      %p56 = scmp.eq.s32.totalorder %s20, 1
      %p57 = por %p55, %p56
      %p59 = scmp.ne.s32.totalorder %s42, %s58
      %p60 = scmp.eq.s32.totalorder %s20, 0
      %p61 = por %p59, %p60
      %s63 = sadd.s32 %s62, 1
      %p66 = scmp.eq.s32.totalorder %s14, 1
      %p67 = scmp.ne.s32.totalorder %s62, %s64
      %p68 = scmp.eq.s32.totalorder %s14, 0
      %p69 = por %p67, %p68
      %p70 = scmp.ne.s32.totalorder %s62, %s64
      %p71 = scmp.eq.s32.totalorder %s19, 1
      %p72 = por %p70, %p71
      %p73 = scmp.ne.s32.totalorder %s64, %s65
      %p74 = scmp.eq.s32.totalorder %s19, 0
      %p75 = por %p73, %p74
      %p76 = scmp.ne.s32.totalorder %s64, %s65
      %p77 = scmp.eq.s32.totalorder %s20, 1
      %p78 = por %p76, %p77
      %p80 = scmp.ne.s32.totalorder %s65, %s79
      %p81 = scmp.eq.s32.totalorder %s20, 0
      %p82 = por %p80, %p81
      %s84 = sadd.s32 %s83, 1
      %p87 = scmp.eq.s32.totalorder %s14, 1
      %p88 = scmp.ne.s32.totalorder %s83, %s85
      %p89 = scmp.eq.s32.totalorder %s14, 0
      %p90 = por %p88, %p89
      %p91 = scmp.ne.s32.totalorder %s83, %s85
      %p92 = scmp.eq.s32.totalorder %s19, 1
      %p93 = por %p91, %p92
      %p94 = scmp.ne.s32.totalorder %s85, %s86
      %p95 = scmp.eq.s32.totalorder %s19, 0
      %p96 = por %p94, %p95
      %p97 = scmp.ne.s32.totalorder %s85, %s86
      %p98 = scmp.eq.s32.totalorder %s20, 1
      %p99 = por %p97, %p98
      %p101 = scmp.ne.s32.totalorder %s86, %s100
      %p102 = scmp.eq.s32.totalorder %s20, 0
      %p103 = por %p101, %p102
      %s105 = sadd.s32 %s104, 1
      %p108 = scmp.eq.s32.totalorder %s14, 1
      %p109 = scmp.ne.s32.totalorder %s104, %s106
      %p110 = scmp.eq.s32.totalorder %s14, 0
      %p111 = por %p109, %p110
      %p112 = scmp.ne.s32.totalorder %s104, %s106
      %p113 = scmp.eq.s32.totalorder %s19, 1
      %p114 = por %p112, %p113
      %p115 = scmp.ne.s32.totalorder %s106, %s107
      %p116 = scmp.eq.s32.totalorder %s19, 0
      %p117 = por %p115, %p116
      %p118 = scmp.ne.s32.totalorder %s106, %s107
      %p119 = scmp.eq.s32.totalorder %s20, 1
      %p120 = por %p118, %p119
      %p122 = scmp.ne.s32.totalorder %s107, %s121
      %p123 = scmp.eq.s32.totalorder %s20, 0
      %p124 = por %p122, %p123
      %s126 = sadd.s32 %s125, 1
      %p129 = scmp.eq.s32.totalorder %s14, 1
      %p130 = scmp.ne.s32.totalorder %s125, %s127
      %p131 = scmp.eq.s32.totalorder %s14, 0
      %p132 = por %p130, %p131
      %p133 = scmp.ne.s32.totalorder %s125, %s127
      %p134 = scmp.eq.s32.totalorder %s19, 1
      %p135 = por %p133, %p134
      %p136 = scmp.ne.s32.totalorder %s127, %s128
      %p137 = scmp.eq.s32.totalorder %s19, 0
      %p138 = por %p136, %p137
      %p139 = scmp.ne.s32.totalorder %s127, %s128
      %p140 = scmp.eq.s32.totalorder %s20, 1
      %p141 = por %p139, %p140
      %p143 = scmp.ne.s32.totalorder %s128, %s142
      %p144 = scmp.eq.s32.totalorder %s20, 0
      %p145 = por %p143, %p144
      %s146 = ssub.s32 %s21, %s33
      %p147 = scmp.eq.s32.totalorder %s146, 0
      %s149 = sadd.s32 %s148, 1
      %s150 = scalar_select %p147, %s148, %s149
      %p153 = pneg %p147
      %p154 = scmp.eq.s32.totalorder %s14, 1
      %p155 = por %p153, %p154
      %p156 = scmp.ne.s32.totalorder %s148, %s151
      %p157 = scmp.eq.s32.totalorder %s14, 0
      %p158 = por %p156, %p157
      %p159 = scmp.ne.s32.totalorder %s148, %s151
      %p160 = scmp.eq.s32.totalorder %s19, 1
      %p161 = por %p159, %p160
      %p162 = scmp.ne.s32.totalorder %s151, %s152
      %p163 = scmp.eq.s32.totalorder %s19, 0
      %p164 = por %p162, %p163
      %p165 = scmp.ne.s32.totalorder %s151, %s152
      %p166 = scmp.eq.s32.totalorder %s20, 1
      %p167 = por %p165, %p166
      %p169 = scmp.ne.s32.totalorder %s152, %s168
      %p170 = scmp.eq.s32.totalorder %s20, 0
      %p171 = por %p169, %p170
      %p172 = scmp.le.s32.totalorder 1, %s14
      %p173 = scmp.lt.s32.totalorder %s14, 3
      %p174 = pnand %p172, %p173
      %p175 = pneg %p174
      // Predicated region
      $region9: #{supcon_effnet_forward.2} parent=5 // pred_check
        _
      $region10: #{supcon_effnet_forward.2} parent=5 // pred_check_branch
        %177 = sbr.rel (%p174) target = $region12
      $region11: #{supcon_effnet_forward.2} parent=5 // pred_region
        %s178 = ssub.s32 %s14, 1
        // Predicated region
        $region13: #{supcon_effnet_forward.2} parent=11 // pred_check
          %p179 = pneg %p75
        $region14: #{supcon_effnet_forward.2} parent=11 // pred_check_branch
          %181 = sbr.rel (%p179) target = $region16
        $region15: #{supcon_effnet_forward.2} parent=11 // pred_region
          %183 = vsyncadd [#allocation4], 0
          %s184 = sshll.u32 %s1, 4
          %s185 = int_to_ptr.hbm [resolvable:$true] %s184
          %s186 = sshll.u32 [#allocation3], 4
          %s187 = int_to_ptr.vmem [resolvable:$true] %s186
          %192 = dma.hbm_to_vmem [thread:$0]  %s185, 256, %s187, [#allocation4], 64, 64, 4
        $region16: #{supcon_effnet_forward.2} parent=11 // pred_fallthru
          _
        // Predicated region
        $region17: #{supcon_effnet_forward.2} parent=11 // pred_check
          %p193 = pneg %p96
        $region18: #{supcon_effnet_forward.2} parent=11 // pred_check_branch
          %195 = sbr.rel (%p193) target = $region20
        $region19: #{supcon_effnet_forward.2} parent=11 // pred_region
          %197 = vsyncadd [#allocation6], 0
          %s199 = sshll.u32 %s2, 4
          %s200 = int_to_ptr.hbm [resolvable:$true] %s199
          %s201 = sshll.u32 [#allocation5], 4
          %s202 = int_to_ptr.vmem [resolvable:$true] %s201
          %204 = dma.hbm_to_vmem [thread:$0]  %s200, 16, %s202, [#allocation6]
        $region20: #{supcon_effnet_forward.2} parent=11 // pred_fallthru
          _
        // Predicated region
        $region21: #{supcon_effnet_forward.2} parent=11 // pred_check
          %p205 = pneg %p117
        $region22: #{supcon_effnet_forward.2} parent=11 // pred_check_branch
          %207 = sbr.rel (%p205) target = $region24
        $region23: #{supcon_effnet_forward.2} parent=11 // pred_region
          %209 = vsyncadd [#allocation6], 0
          %s210 = sshll.u32 %s3, 4
          %s211 = int_to_ptr.hbm [resolvable:$true] %s210
          %s212 = sshll.u32 [#allocation7], 4
          %s213 = int_to_ptr.vmem [resolvable:$true] %s212
          %218 = dma.hbm_to_vmem [thread:$0]  %s211, 2560, %s213, [#allocation6], 640, 640, 40
        $region24: #{supcon_effnet_forward.2} parent=11 // pred_fallthru
          _
        // Predicated region
        $region25: #{supcon_effnet_forward.2} parent=11 // pred_check
          %p219 = pneg %p138
        $region26: #{supcon_effnet_forward.2} parent=11 // pred_check_branch
          %221 = sbr.rel (%p219) target = $region28
        $region27: #{supcon_effnet_forward.2} parent=11 // pred_region
          %223 = vsyncadd [#allocation9], 0
          %s225 = sshll.u32 %s4, 4
          %s226 = int_to_ptr.hbm [resolvable:$true] %s225
          %s227 = sshll.u32 [#allocation8], 4
          %s228 = int_to_ptr.vmem [resolvable:$true] %s227
          %230 = dma.hbm_to_vmem [thread:$0]  %s226, 160, %s228, [#allocation9]
        $region28: #{supcon_effnet_forward.2} parent=11 // pred_fallthru
          _
      $region12: #{supcon_effnet_forward.2} parent=5 // pred_fallthru
        _
      %p231 = scmp.lt.s32.totalorder %s14, 2
      // Predicated region
      $region29: #{supcon_effnet_forward.2} parent=5 // pred_check
        %p232 = pneg %p231
      $region30: #{supcon_effnet_forward.2} parent=5 // pred_check_branch
        %234 = sbr.rel (%p232) target = $region32
      $region31: #{supcon_effnet_forward.2} parent=5 // pred_region
        // Predicated region
        $region33: #{supcon_effnet_forward.2} parent=31 // pred_check
          %p235 = pneg %p48
        $region34: #{supcon_effnet_forward.2} parent=31 // pred_check_branch
          %237 = sbr.rel (%p235) target = $region36
        $region35: #{supcon_effnet_forward.2} parent=31 // pred_region
          %s238 = smul.u32 8, %s22
          %p239 = scmp.lt.s32.totalorder %s21, 1
          %s240 = scalar_select %p239, %s21, 1
          %p241 = scmp.lt.s32.totalorder %s238, 7
          %s242 = scalar_select %p241, %s238, 7
          %s243 = smul.addr %s240, 8
          %s244 = sadd.s32 %s242, %s243
          %s245 = smul.addr %s244, 4
          %s246 = scalar_lea.vmem %s0, %s245
          %s247 = smul.u32 8, %s22
        $region36: #{supcon_effnet_forward.2} parent=31 // pred_fallthru
          _
      $region32: #{supcon_effnet_forward.2} parent=5 // pred_fallthru
        _
      %p248 = scmp.le.s32.totalorder 1, %s14
      %p249 = scmp.lt.s32.totalorder %s14, 3
      %p250 = pnand %p248, %p249
      %p251 = pneg %p250
      // Predicated region
      $region37: #{supcon_effnet_forward.2} parent=5 // pred_check
        _
      $region38: #{supcon_effnet_forward.2} parent=5 // pred_check_branch
        %253 = sbr.rel (%p250) target = $region40
      $region39: #{supcon_effnet_forward.2} parent=5 // pred_region
        %s254 = ssub.s32 %s14, 1
        // Predicated region
        $region41: #{supcon_effnet_forward.2} parent=39 // pred_check
          %p255 = pneg %p75
        $region42: #{supcon_effnet_forward.2} parent=39 // pred_check_branch
          %257 = sbr.rel (%p255) target = $region44
        $region43: #{supcon_effnet_forward.2} parent=39 // pred_region
          %259 = dma.done [#allocation4], 256
        $region44: #{supcon_effnet_forward.2} parent=39 // pred_fallthru
          _
        // Predicated region
        $region45: #{supcon_effnet_forward.2} parent=39 // pred_check
          %p260 = pneg %p96
        $region46: #{supcon_effnet_forward.2} parent=39 // pred_check_branch
          %262 = sbr.rel (%p260) target = $region48
        $region47: #{supcon_effnet_forward.2} parent=39 // pred_region
          %264 = dma.done [#allocation6], 16
        $region48: #{supcon_effnet_forward.2} parent=39 // pred_fallthru
          _
        // Predicated region
        $region49: #{supcon_effnet_forward.2} parent=39 // pred_check
          %p265 = pneg %p117
        $region50: #{supcon_effnet_forward.2} parent=39 // pred_check_branch
          %267 = sbr.rel (%p265) target = $region52
        $region51: #{supcon_effnet_forward.2} parent=39 // pred_region
          %269 = dma.done [#allocation6], 2560
        $region52: #{supcon_effnet_forward.2} parent=39 // pred_fallthru
          _
        // Predicated region
        $region53: #{supcon_effnet_forward.2} parent=39 // pred_check
          %p270 = pneg %p138
        $region54: #{supcon_effnet_forward.2} parent=39 // pred_check_branch
          %272 = sbr.rel (%p270) target = $region56
        $region55: #{supcon_effnet_forward.2} parent=39 // pred_region
          %274 = dma.done [#allocation9], 160
        $region56: #{supcon_effnet_forward.2} parent=39 // pred_fallthru
          _
        %s275 = smul.u32 8, %s24
        %p276 = scmp.lt.s32.totalorder %s23, 1
        %s277 = scalar_select %p276, %s23, 1
        %p278 = scmp.lt.s32.totalorder %s275, 7
        %s279 = scalar_select %p278, %s275, 7
        %s280 = smul.addr %s277, 8
        %s281 = sadd.s32 %s279, %s280
        %s282 = smul.addr %s281, 4
        %s283 = scalar_lea.vmem %s0, %s282
        %p284 = pneg %p54
        %p285 = pneg %p51
        %p286 = pneg %p75
        %p287 = pneg %p72
        %p288 = pneg %p96
        %p289 = pneg %p93
        %p290 = pneg %p117
        %p291 = pneg %p114
        %p292 = pneg %p138
        %p293 = pneg %p135
        %p294 = pneg %p164
        %p295 = pneg %p161
        %p296 = scmp.lt.s32.totalorder %s23, 1
        %s297 = scalar_select %p296, %s23, 1
        %s298 = smul.addr %s297, 10
        %s299 = scalar_lea.vmem %s5, %s298
        %s300 = smul.u32 8, %s24
        %p301 = scmp.lt.s32.totalorder %s23, 1
        %s302 = scalar_select %p301, %s23, 1
        %p303 = scmp.lt.s32.totalorder %s300, 7
        %s304 = scalar_select %p303, %s300, 7
        %s305 = smul.addr %s302, 8
        %s306 = sadd.s32 %s304, %s305
        %s307 = smul.addr %s306, 4
        %s308 = scalar_lea.vmem %s0, %s307
        %s309 = smul.u32 8, %s24
        %p310 = scmp.lt.s32.totalorder %s23, 1
        %s311 = scalar_select %p310, %s23, 1
        %s312 = smul.addr %s311, 10
        %s313 = scalar_lea.vmem %s5, %s312
        %p315 = scmp.eq.s32.totalorder %s24, 0
        // Predicated region
        $region57: #{supcon_effnet_forward.2} parent=39 // pred_check
          %p316 = pneg %p315
        $region58: #{supcon_effnet_forward.2} parent=39 // pred_check_branch
          %318 = sbr.rel (%p316) target = $region60
        $region59: #{supcon_effnet_forward.2} parent=39 // pred_region
          %319 = vst [vmem:[#allocation2] sm:$0xff] 0.0
          %v320 = vlaneseq
          %vm321 = vcmp.ge.s32.totalorder %v320, 0
          %vm322 = vcmp.lt.s32.totalorder %v320, 256
          %vm323 = vmand %vm321, %vm322
          %324 = vst.msk [vmem:[#allocation2 + $0x8] sm:$0x3] %vm323, 0.0
        $region60: #{supcon_effnet_forward.2} parent=39 // pred_fallthru
          _
        %v325 = vld [vmem:[%s308] sm:$0xf]
        %v326 = vld [vmem:[%s308 + $0x4] sm:$0xf]
        %v327 = vld [vmem:[%s308 + $0x8] sm:$0xf]
        %v328 = vld [vmem:[%s308 + $0xc] sm:$0xf]
        %v329 = vld [vmem:[%s308 + $0x10] sm:$0xf]
        %v330 = vld [vmem:[%s308 + $0x14] sm:$0xf]
        %v331 = vld [vmem:[%s308 + $0x18] sm:$0xf]
        %v332 = vld [vmem:[%s308 + $0x1c] sm:$0xf]
        %v333 = vld [vmem:[#allocation3] sm:$0xf]
        %v334 = vld [vmem:[#allocation3 + $0x4] sm:$0xf]
        %v335 = vld [vmem:[#allocation3 + $0x8] sm:$0xf]
        %v336 = vld [vmem:[#allocation3 + $0xc] sm:$0x3]
        %v337 = vld [vmem:[#allocation5] sm:$0x1]
        %v339 = vperm.slane %v337, 0
        %v349 = vunpack.c.l.b16 %v325
        %v350 = vunpack.c.l.b16 %v326
        %v351 = vunpack.c.l.b16 %v327
        %v352 = vunpack.c.l.b16 %v328
        %v353 = vunpack.c.l.b16 %v329
        %v354 = vunpack.c.l.b16 %v330
        %v355 = vunpack.c.l.b16 %v331
        %v356 = vunpack.c.l.b16 %v332
        %v357 = vpack.c.b16 %v350, %v349
        %v358 = vpack.c.b16 %v352, %v351
        %v359 = vpack.c.b16 %v354, %v353
        %v360 = vpack.c.b16 %v356, %v355
        %v365 = vunpack.c.l.b16 %v333
        %v366 = vunpack.c.l.b16 %v334
        %v367 = vunpack.c.l.b16 %v335
        %v368 = vunpack.c.l.b16 %v336
        %v369 = vpack.c.b16 %v366, %v365
        %v370 = vpack.c.b16 %v368, %v367
        %vm372 = vcmask 220160
        %v374 = vsel %vm372, %v357, 0
        %v377 = vsel %vm372, %v358, 0
        %v380 = vsel %vm372, %v359, 0
        %v383 = vsel %vm372, %v360, 0
        %vm385 = vcmask 1044480
        %vm386 = vcmask 1045504
        %v387 = vsel %vm385, 4294967295, 65535
        %v388 = vsel %vm386, %v387, 0
        %v390 = vand.u32 %v370, %v388
        %392 = vmatpush.bf16.msra.mxu0 0
        %393 = vmatpush.bf16.msra.mxu0 0
        %394 = vmatpush.bf16.msra.mxu0 0
        %395 = vmatpush.bf16.msra.mxu0 0
        %396 = vmatpush.bf16.msra.mxu0 0
        %397 = vmatpush.bf16.msra.mxu0 0
        %398 = vmatpush.bf16.msra.mxu0 %v390
        %399 = vmatpush.bf16.msra.mxu0 %v369
        %400 = vmatmul.bf16.gmra.mxu0 %v374
        %v401 = vpop.f32.mrf.mxu0
        %v402 = vadd.f32 %v339, %v401
        %v403 = vpop.f32.mrf.mxu0
        %v404 = vadd.f32 %v339, %v403
        %405 = vmatmul.bf16.gmra.mxu0 %v377
        %v406 = vpop.f32.mrf.mxu0
        %v407 = vadd.f32 %v339, %v406
        %v408 = vpop.f32.mrf.mxu0
        %v409 = vadd.f32 %v339, %v408
        %410 = vmatmul.bf16.gmra.mxu0 %v380
        %v411 = vpop.f32.mrf.mxu0
        %v412 = vadd.f32 %v339, %v411
        %v413 = vpop.f32.mrf.mxu0
        %v414 = vadd.f32 %v339, %v413
        %415 = vmatmul.bf16.gmra.mxu0 %v383
        %v416 = vpop.f32.mrf.mxu0
        %v417 = vadd.f32 %v339, %v416
        %v418 = vpop.f32.mrf.mxu0
        %v419 = vadd.f32 %v339, %v418
        %420 = vdwg.mxu0
        %v421 = vxor.u32 %v402, 2147483648
        %v422 = vxor.u32 %v404, 2147483648
        %v423 = vxor.u32 %v407, 2147483648
        %v424 = vxor.u32 %v409, 2147483648
        %v425 = vxor.u32 %v412, 2147483648
        %v426 = vxor.u32 %v414, 2147483648
        %v427 = vxor.u32 %v417, 2147483648
        %v428 = vxor.u32 %v419, 2147483648
        %v429 = vmul.f32 %v421, 1.442695
        %v430 = vpow.pop %v429
        %v431 = vmul.f32 %v422, 1.442695
        %v432 = vpow.pop %v431
        %v433 = vmul.f32 %v423, 1.442695
        %v434 = vpow.pop %v433
        %v435 = vmul.f32 %v424, 1.442695
        %v436 = vpow.pop %v435
        %v437 = vmul.f32 %v425, 1.442695
        %v438 = vpow.pop %v437
        %v439 = vmul.f32 %v426, 1.442695
        %v440 = vpow.pop %v439
        %v441 = vmul.f32 %v427, 1.442695
        %v442 = vpow.pop %v441
        %v443 = vmul.f32 %v428, 1.442695
        %v444 = vpow.pop %v443
        %v445 = vadd.f32 %v430, 1.0
        %v446 = vadd.f32 %v432, 1.0
        %v447 = vadd.f32 %v434, 1.0
        %v448 = vadd.f32 %v436, 1.0
        %v449 = vadd.f32 %v438, 1.0
        %v450 = vadd.f32 %v440, 1.0
        %v451 = vadd.f32 %v442, 1.0
        %v452 = vadd.f32 %v444, 1.0
        %v453 = vrcp.pop %v445
        %v454 = vmul.f32 %v445, %v453
        %v455 = vsub.f32 1.0, %v454
        %v456 = vmul.f32 %v453, %v455
        %v457 = vadd.f32 %v453, %v456
        %vm458 = vweird.f32 %v445
        %vm459 = vweird.f32 %v453
        %vm460 = vmor %vm458, %vm459
        %v461 = vsel %vm460, %v453, %v457
        %v462 = vand.u32 2147483647, %v445
        %vm463 = vcmp.eq.f32.partialorder %v462, 8.507059e+37
        %v464 = vand.u32 %v445, 2147483648
        %v465 = vor.u32 1.1754944e-38, %v464
        %v466 = vsel %vm463, %v465, %v461
        %v467 = vmul.f32 1.0, %v466
        %v468 = vrcp.pop %v446
        %v469 = vmul.f32 %v446, %v468
        %v470 = vsub.f32 1.0, %v469
        %v471 = vmul.f32 %v468, %v470
        %v472 = vadd.f32 %v468, %v471
        %vm473 = vweird.f32 %v446
        %vm474 = vweird.f32 %v468
        %vm475 = vmor %vm473, %vm474
        %v476 = vsel %vm475, %v468, %v472
        %v477 = vand.u32 2147483647, %v446
        %vm478 = vcmp.eq.f32.partialorder %v477, 8.507059e+37
        %v479 = vand.u32 %v446, 2147483648
        %v480 = vor.u32 1.1754944e-38, %v479
        %v481 = vsel %vm478, %v480, %v476
        %v482 = vmul.f32 1.0, %v481
        %v483 = vrcp.pop %v447
        %v484 = vmul.f32 %v447, %v483
        %v485 = vsub.f32 1.0, %v484
        %v486 = vmul.f32 %v483, %v485
        %v487 = vadd.f32 %v483, %v486
        %vm488 = vweird.f32 %v447
        %vm489 = vweird.f32 %v483
        %vm490 = vmor %vm488, %vm489
        %v491 = vsel %vm490, %v483, %v487
        %v492 = vand.u32 2147483647, %v447
        %vm493 = vcmp.eq.f32.partialorder %v492, 8.507059e+37
        %v494 = vand.u32 %v447, 2147483648
        %v495 = vor.u32 1.1754944e-38, %v494
        %v496 = vsel %vm493, %v495, %v491
        %v497 = vmul.f32 1.0, %v496
        %v498 = vrcp.pop %v448
        %v499 = vmul.f32 %v448, %v498
        %v500 = vsub.f32 1.0, %v499
        %v501 = vmul.f32 %v498, %v500
        %v502 = vadd.f32 %v498, %v501
        %vm503 = vweird.f32 %v448
        %vm504 = vweird.f32 %v498
        %vm505 = vmor %vm503, %vm504
        %v506 = vsel %vm505, %v498, %v502
        %v507 = vand.u32 2147483647, %v448
        %vm508 = vcmp.eq.f32.partialorder %v507, 8.507059e+37
        %v509 = vand.u32 %v448, 2147483648
        %v510 = vor.u32 1.1754944e-38, %v509
        %v511 = vsel %vm508, %v510, %v506
        %v512 = vmul.f32 1.0, %v511
        %v513 = vrcp.pop %v449
        %v514 = vmul.f32 %v449, %v513
        %v515 = vsub.f32 1.0, %v514
        %v516 = vmul.f32 %v513, %v515
        %v517 = vadd.f32 %v513, %v516
        %vm518 = vweird.f32 %v449
        %vm519 = vweird.f32 %v513
        %vm520 = vmor %vm518, %vm519
        %v521 = vsel %vm520, %v513, %v517
        %v522 = vand.u32 2147483647, %v449
        %vm523 = vcmp.eq.f32.partialorder %v522, 8.507059e+37
        %v524 = vand.u32 %v449, 2147483648
        %v525 = vor.u32 1.1754944e-38, %v524
        %v526 = vsel %vm523, %v525, %v521
        %v527 = vmul.f32 1.0, %v526
        %v528 = vrcp.pop %v450
        %v529 = vmul.f32 %v450, %v528
        %v530 = vsub.f32 1.0, %v529
        %v531 = vmul.f32 %v528, %v530
        %v532 = vadd.f32 %v528, %v531
        %vm533 = vweird.f32 %v450
        %vm534 = vweird.f32 %v528
        %vm535 = vmor %vm533, %vm534
        %v536 = vsel %vm535, %v528, %v532
        %v537 = vand.u32 2147483647, %v450
        %vm538 = vcmp.eq.f32.partialorder %v537, 8.507059e+37
        %v539 = vand.u32 %v450, 2147483648
        %v540 = vor.u32 1.1754944e-38, %v539
        %v541 = vsel %vm538, %v540, %v536
        %v542 = vmul.f32 1.0, %v541
        %v543 = vrcp.pop %v451
        %v544 = vmul.f32 %v451, %v543
        %v545 = vsub.f32 1.0, %v544
        %v546 = vmul.f32 %v543, %v545
        %v547 = vadd.f32 %v543, %v546
        %vm548 = vweird.f32 %v451
        %vm549 = vweird.f32 %v543
        %vm550 = vmor %vm548, %vm549
        %v551 = vsel %vm550, %v543, %v547
        %v552 = vand.u32 2147483647, %v451
        %vm553 = vcmp.eq.f32.partialorder %v552, 8.507059e+37
        %v554 = vand.u32 %v451, 2147483648
        %v555 = vor.u32 1.1754944e-38, %v554
        %v556 = vsel %vm553, %v555, %v551
        %v557 = vmul.f32 1.0, %v556
        %v558 = vrcp.pop %v452
        %v559 = vmul.f32 %v452, %v558
        %v560 = vsub.f32 1.0, %v559
        %v561 = vmul.f32 %v558, %v560
        %v562 = vadd.f32 %v558, %v561
        %vm563 = vweird.f32 %v452
        %vm564 = vweird.f32 %v558
        %vm565 = vmor %vm563, %vm564
        %v566 = vsel %vm565, %v558, %v562
        %v567 = vand.u32 2147483647, %v452
        %vm568 = vcmp.eq.f32.partialorder %v567, 8.507059e+37
        %v569 = vand.u32 %v452, 2147483648
        %v570 = vor.u32 1.1754944e-38, %v569
        %v571 = vsel %vm568, %v570, %v566
        %v572 = vmul.f32 1.0, %v571
        %v573 = vmul.f32 %v402, %v467
        %v574 = vmul.f32 %v404, %v482
        %v575 = vmul.f32 %v407, %v497
        %v576 = vmul.f32 %v409, %v512
        %v577 = vmul.f32 %v412, %v527
        %v578 = vmul.f32 %v414, %v542
        %v579 = vmul.f32 %v417, %v557
        %v580 = vmul.f32 %v419, %v572
        %v581 = vpack.c.bf16 %v574, %v573
        %v582 = vpack.c.bf16 %v576, %v575
        %v583 = vpack.c.bf16 %v578, %v577
        %v584 = vpack.c.bf16 %v580, %v579
        %v585 = vld [vmem:[#allocation7] sm:$0xff]
        %v586 = vld [vmem:[#allocation7 + $0x8] sm:$0xff]
        %v587 = vld [vmem:[#allocation7 + $0x10] sm:$0xff]
        %v588 = vld [vmem:[#allocation7 + $0x18] sm:$0xff]
        %v589 = vld [vmem:[#allocation7 + $0x20] sm:$0xff]
        %v590 = vld [vmem:[#allocation7 + $0x28] sm:$0xff]
        %v591 = vld [vmem:[#allocation7 + $0x30] sm:$0xff]
        %v592 = vld [vmem:[#allocation7 + $0x38] sm:$0xff]
        %v593 = vld [vmem:[#allocation7 + $0x40] sm:$0xff]
        %v594 = vld [vmem:[#allocation7 + $0x48] sm:$0xff]
        %v595 = vld [vmem:[#allocation7 + $0x50] sm:$0xff]
        %v596 = vld [vmem:[#allocation7 + $0x58] sm:$0xff]
        %v597 = vld [vmem:[#allocation7 + $0x60] sm:$0xff]
        %v598 = vld [vmem:[#allocation7 + $0x68] sm:$0xff]
        %v599 = vld [vmem:[#allocation7 + $0x70] sm:$0xff]
        %v600 = vld [vmem:[#allocation7 + $0x78] sm:$0xff]
        %v601 = vld [vmem:[#allocation7 + $0x80] sm:$0xff]
        %v602 = vld [vmem:[#allocation7 + $0x88] sm:$0xff]
        %v603 = vld [vmem:[#allocation7 + $0x90] sm:$0xff]
        %v604 = vld [vmem:[#allocation7 + $0x98] sm:$0xff]
        %v605 = vld [vmem:[#allocation8] sm:$0xff]
        %v606 = vld [vmem:[#allocation8 + $0x8] sm:$0x3]
        %v609 = vperm.slane %v605, 0
        %v610 = vperm.slane %v605, 1
        %v611 = vperm.slane %v605, 2
        %v612 = vperm.slane %v605, 3
        %v613 = vperm.slane %v605, 4
        %v614 = vperm.slane %v605, 5
        %v615 = vperm.slane %v605, 6
        %v616 = vperm.slane %v605, 7
        %v617 = vperm.slane %v606, 0
        %v618 = vperm.slane %v606, 1
        %v649 = vunpack.c.l.b16 %v585
        %v650 = vunpack.c.h.b16 %v585
        %v651 = vunpack.c.l.b16 %v586
        %v652 = vunpack.c.h.b16 %v586
        %v653 = vunpack.c.l.b16 %v587
        %v654 = vunpack.c.h.b16 %v587
        %v655 = vunpack.c.l.b16 %v588
        %v656 = vunpack.c.h.b16 %v588
        %v657 = vunpack.c.l.b16 %v589
        %v658 = vunpack.c.h.b16 %v589
        %v659 = vunpack.c.l.b16 %v590
        %v660 = vunpack.c.h.b16 %v590
        %v661 = vunpack.c.l.b16 %v591
        %v662 = vunpack.c.h.b16 %v591
        %v663 = vunpack.c.l.b16 %v592
        %v664 = vunpack.c.h.b16 %v592
        %v665 = vunpack.c.l.b16 %v593
        %v666 = vunpack.c.h.b16 %v593
        %v667 = vunpack.c.l.b16 %v594
        %v668 = vunpack.c.h.b16 %v594
        %v669 = vunpack.c.l.b16 %v595
        %v670 = vunpack.c.h.b16 %v595
        %v671 = vunpack.c.l.b16 %v596
        %v672 = vunpack.c.h.b16 %v596
        %v673 = vunpack.c.l.b16 %v597
        %v674 = vunpack.c.h.b16 %v597
        %v675 = vunpack.c.l.b16 %v598
        %v676 = vunpack.c.h.b16 %v598
        %v677 = vunpack.c.l.b16 %v599
        %v678 = vunpack.c.h.b16 %v599
        %v679 = vunpack.c.l.b16 %v600
        %v680 = vunpack.c.h.b16 %v600
        %v681 = vunpack.c.l.b16 %v601
        %v682 = vunpack.c.h.b16 %v601
        %v683 = vunpack.c.l.b16 %v602
        %v684 = vunpack.c.h.b16 %v602
        %v685 = vunpack.c.l.b16 %v603
        %v686 = vunpack.c.h.b16 %v603
        %v687 = vunpack.c.l.b16 %v604
        %v688 = vunpack.c.h.b16 %v604
        %v689 = vpack.c.b16 %v659, %v649
        %v690 = vpack.c.b16 %v660, %v650
        %v691 = vpack.c.b16 %v661, %v651
        %v692 = vpack.c.b16 %v662, %v652
        %v693 = vpack.c.b16 %v663, %v653
        %v694 = vpack.c.b16 %v664, %v654
        %v695 = vpack.c.b16 %v665, %v655
        %v696 = vpack.c.b16 %v666, %v656
        %v697 = vpack.c.b16 %v667, %v657
        %v698 = vpack.c.b16 %v668, %v658
        %v699 = vpack.c.b16 %v679, %v669
        %v700 = vpack.c.b16 %v680, %v670
        %v701 = vpack.c.b16 %v681, %v671
        %v702 = vpack.c.b16 %v682, %v672
        %v703 = vpack.c.b16 %v683, %v673
        %v704 = vpack.c.b16 %v684, %v674
        %v705 = vpack.c.b16 %v685, %v675
        %v706 = vpack.c.b16 %v686, %v676
        %v707 = vpack.c.b16 %v687, %v677
        %v708 = vpack.c.b16 %v688, %v678
        %vm729 = vcmask 261120
        %v731 = vsel %vm729, %v581, 0
        %v734 = vsel %vm729, %v582, 0
        %v737 = vsel %vm729, %v583, 0
        %v740 = vsel %vm729, %v584, 0
        %742 = vmatpush.bf16.msra.mxu0 0
        %743 = vmatpush.bf16.msra.mxu0 0
        %744 = vmatpush.bf16.msra.mxu0 0
        %745 = vmatpush.bf16.msra.mxu0 0
        %746 = vmatpush.bf16.msra.mxu0 0
        %747 = vmatpush.bf16.msra.mxu0 0
        %748 = vmatpush.bf16.msra.mxu0 %v699
        %749 = vmatpush.bf16.msra.mxu0 %v689
        %750 = vmatmul.bf16.gmra.mxu0 %v731
        %v751 = vpop.f32.mrf.mxu0
        %v752 = vadd.f32 %v609, %v751
        %v753 = vpop.f32.mrf.mxu0
        %v754 = vadd.f32 %v609, %v753
        %755 = vmatmul.bf16.gmra.mxu0 %v734
        %v756 = vpop.f32.mrf.mxu0
        %v757 = vadd.f32 %v609, %v756
        %v758 = vpop.f32.mrf.mxu0
        %v759 = vadd.f32 %v609, %v758
        %760 = vmatmul.bf16.gmra.mxu0 %v737
        %v761 = vpop.f32.mrf.mxu0
        %v762 = vadd.f32 %v609, %v761
        %v763 = vpop.f32.mrf.mxu0
        %v764 = vadd.f32 %v609, %v763
        %765 = vmatmul.bf16.gmra.mxu0 %v740
        %v766 = vpop.f32.mrf.mxu0
        %v767 = vadd.f32 %v609, %v766
        %v768 = vpop.f32.mrf.mxu0
        %v769 = vadd.f32 %v609, %v768
        %770 = vdwg.mxu0
        %771 = vmatpush.bf16.msra.mxu0 0
        %772 = vmatpush.bf16.msra.mxu0 0
        %773 = vmatpush.bf16.msra.mxu0 0
        %774 = vmatpush.bf16.msra.mxu0 0
        %775 = vmatpush.bf16.msra.mxu0 0
        %776 = vmatpush.bf16.msra.mxu0 0
        %777 = vmatpush.bf16.msra.mxu0 %v700
        %778 = vmatpush.bf16.msra.mxu0 %v690
        %779 = vmatmul.bf16.gmra.mxu0 %v731
        %v780 = vpop.f32.mrf.mxu0
        %v781 = vadd.f32 %v610, %v780
        %v782 = vpop.f32.mrf.mxu0
        %v783 = vadd.f32 %v610, %v782
        %784 = vmatmul.bf16.gmra.mxu0 %v734
        %v785 = vpop.f32.mrf.mxu0
        %v786 = vadd.f32 %v610, %v785
        %v787 = vpop.f32.mrf.mxu0
        %v788 = vadd.f32 %v610, %v787
        %789 = vmatmul.bf16.gmra.mxu0 %v737
        %v790 = vpop.f32.mrf.mxu0
        %v791 = vadd.f32 %v610, %v790
        %v792 = vpop.f32.mrf.mxu0
        %v793 = vadd.f32 %v610, %v792
        %794 = vmatmul.bf16.gmra.mxu0 %v740
        %v795 = vpop.f32.mrf.mxu0
        %v796 = vadd.f32 %v610, %v795
        %v797 = vpop.f32.mrf.mxu0
        %v798 = vadd.f32 %v610, %v797
        %799 = vdwg.mxu0
        %800 = vmatpush.bf16.msra.mxu0 0
        %801 = vmatpush.bf16.msra.mxu0 0
        %802 = vmatpush.bf16.msra.mxu0 0
        %803 = vmatpush.bf16.msra.mxu0 0
        %804 = vmatpush.bf16.msra.mxu0 0
        %805 = vmatpush.bf16.msra.mxu0 0
        %806 = vmatpush.bf16.msra.mxu0 %v701
        %807 = vmatpush.bf16.msra.mxu0 %v691
        %808 = vmatmul.bf16.gmra.mxu0 %v731
        %v809 = vpop.f32.mrf.mxu0
        %v810 = vadd.f32 %v611, %v809
        %v811 = vpop.f32.mrf.mxu0
        %v812 = vadd.f32 %v611, %v811
        %813 = vmatmul.bf16.gmra.mxu0 %v734
        %v814 = vpop.f32.mrf.mxu0
        %v815 = vadd.f32 %v611, %v814
        %v816 = vpop.f32.mrf.mxu0
        %v817 = vadd.f32 %v611, %v816
        %818 = vmatmul.bf16.gmra.mxu0 %v737
        %v819 = vpop.f32.mrf.mxu0
        %v820 = vadd.f32 %v611, %v819
        %v821 = vpop.f32.mrf.mxu0
        %v822 = vadd.f32 %v611, %v821
        %823 = vmatmul.bf16.gmra.mxu0 %v740
        %v824 = vpop.f32.mrf.mxu0
        %v825 = vadd.f32 %v611, %v824
        %v826 = vpop.f32.mrf.mxu0
        %v827 = vadd.f32 %v611, %v826
        %828 = vdwg.mxu0
        %829 = vmatpush.bf16.msra.mxu0 0
        %830 = vmatpush.bf16.msra.mxu0 0
        %831 = vmatpush.bf16.msra.mxu0 0
        %832 = vmatpush.bf16.msra.mxu0 0
        %833 = vmatpush.bf16.msra.mxu0 0
        %834 = vmatpush.bf16.msra.mxu0 0
        %835 = vmatpush.bf16.msra.mxu0 %v702
        %836 = vmatpush.bf16.msra.mxu0 %v692
        %837 = vmatmul.bf16.gmra.mxu0 %v731
        %v838 = vpop.f32.mrf.mxu0
        %v839 = vadd.f32 %v612, %v838
        %v840 = vpop.f32.mrf.mxu0
        %v841 = vadd.f32 %v612, %v840
        %842 = vmatmul.bf16.gmra.mxu0 %v734
        %v843 = vpop.f32.mrf.mxu0
        %v844 = vadd.f32 %v612, %v843
        %v845 = vpop.f32.mrf.mxu0
        %v846 = vadd.f32 %v612, %v845
        %847 = vmatmul.bf16.gmra.mxu0 %v737
        %v848 = vpop.f32.mrf.mxu0
        %v849 = vadd.f32 %v612, %v848
        %v850 = vpop.f32.mrf.mxu0
        %v851 = vadd.f32 %v612, %v850
        %852 = vmatmul.bf16.gmra.mxu0 %v740
        %v853 = vpop.f32.mrf.mxu0
        %v854 = vadd.f32 %v612, %v853
        %v855 = vpop.f32.mrf.mxu0
        %v856 = vadd.f32 %v612, %v855
        %857 = vdwg.mxu0
        %858 = vmatpush.bf16.msra.mxu0 0
        %859 = vmatpush.bf16.msra.mxu0 0
        %860 = vmatpush.bf16.msra.mxu0 0
        %861 = vmatpush.bf16.msra.mxu0 0
        %862 = vmatpush.bf16.msra.mxu0 0
        %863 = vmatpush.bf16.msra.mxu0 0
        %864 = vmatpush.bf16.msra.mxu0 %v703
        %865 = vmatpush.bf16.msra.mxu0 %v693
        %866 = vmatmul.bf16.gmra.mxu0 %v731
        %v867 = vpop.f32.mrf.mxu0
        %v868 = vadd.f32 %v613, %v867
        %v869 = vpop.f32.mrf.mxu0
        %v870 = vadd.f32 %v613, %v869
        %871 = vmatmul.bf16.gmra.mxu0 %v734
        %v872 = vpop.f32.mrf.mxu0
        %v873 = vadd.f32 %v613, %v872
        %v874 = vpop.f32.mrf.mxu0
        %v875 = vadd.f32 %v613, %v874
        %876 = vmatmul.bf16.gmra.mxu0 %v737
        %v877 = vpop.f32.mrf.mxu0
        %v878 = vadd.f32 %v613, %v877
        %v879 = vpop.f32.mrf.mxu0
        %v880 = vadd.f32 %v613, %v879
        %881 = vmatmul.bf16.gmra.mxu0 %v740
        %v882 = vpop.f32.mrf.mxu0
        %v883 = vadd.f32 %v613, %v882
        %v884 = vpop.f32.mrf.mxu0
        %v885 = vadd.f32 %v613, %v884
        %886 = vdwg.mxu0
        %887 = vmatpush.bf16.msra.mxu0 0
        %888 = vmatpush.bf16.msra.mxu0 0
        %889 = vmatpush.bf16.msra.mxu0 0
        %890 = vmatpush.bf16.msra.mxu0 0
        %891 = vmatpush.bf16.msra.mxu0 0
        %892 = vmatpush.bf16.msra.mxu0 0
        %893 = vmatpush.bf16.msra.mxu0 %v704
        %894 = vmatpush.bf16.msra.mxu0 %v694
        %895 = vmatmul.bf16.gmra.mxu0 %v731
        %v896 = vpop.f32.mrf.mxu0
        %v897 = vadd.f32 %v614, %v896
        %v898 = vpop.f32.mrf.mxu0
        %v899 = vadd.f32 %v614, %v898
        %900 = vmatmul.bf16.gmra.mxu0 %v734
        %v901 = vpop.f32.mrf.mxu0
        %v902 = vadd.f32 %v614, %v901
        %v903 = vpop.f32.mrf.mxu0
        %v904 = vadd.f32 %v614, %v903
        %905 = vmatmul.bf16.gmra.mxu0 %v737
        %v906 = vpop.f32.mrf.mxu0
        %v907 = vadd.f32 %v614, %v906
        %v908 = vpop.f32.mrf.mxu0
        %v909 = vadd.f32 %v614, %v908
        %910 = vmatmul.bf16.gmra.mxu0 %v740
        %v911 = vpop.f32.mrf.mxu0
        %v912 = vadd.f32 %v614, %v911
        %v913 = vpop.f32.mrf.mxu0
        %v914 = vadd.f32 %v614, %v913
        %915 = vdwg.mxu0
        %916 = vmatpush.bf16.msra.mxu0 0
        %917 = vmatpush.bf16.msra.mxu0 0
        %918 = vmatpush.bf16.msra.mxu0 0
        %919 = vmatpush.bf16.msra.mxu0 0
        %920 = vmatpush.bf16.msra.mxu0 0
        %921 = vmatpush.bf16.msra.mxu0 0
        %922 = vmatpush.bf16.msra.mxu0 %v705
        %923 = vmatpush.bf16.msra.mxu0 %v695
        %924 = vmatmul.bf16.gmra.mxu0 %v731
        %v925 = vpop.f32.mrf.mxu0
        %v926 = vadd.f32 %v615, %v925
        %v927 = vpop.f32.mrf.mxu0
        %v928 = vadd.f32 %v615, %v927
        %929 = vmatmul.bf16.gmra.mxu0 %v734
        %v930 = vpop.f32.mrf.mxu0
        %v931 = vadd.f32 %v615, %v930
        %v932 = vpop.f32.mrf.mxu0
        %v933 = vadd.f32 %v615, %v932
        %934 = vmatmul.bf16.gmra.mxu0 %v737
        %v935 = vpop.f32.mrf.mxu0
        %v936 = vadd.f32 %v615, %v935
        %v937 = vpop.f32.mrf.mxu0
        %v938 = vadd.f32 %v615, %v937
        %939 = vmatmul.bf16.gmra.mxu0 %v740
        %v940 = vpop.f32.mrf.mxu0
        %v941 = vadd.f32 %v615, %v940
        %v942 = vpop.f32.mrf.mxu0
        %v943 = vadd.f32 %v615, %v942
        %944 = vdwg.mxu0
        %945 = vmatpush.bf16.msra.mxu0 0
        %946 = vmatpush.bf16.msra.mxu0 0
        %947 = vmatpush.bf16.msra.mxu0 0
        %948 = vmatpush.bf16.msra.mxu0 0
        %949 = vmatpush.bf16.msra.mxu0 0
        %950 = vmatpush.bf16.msra.mxu0 0
        %951 = vmatpush.bf16.msra.mxu0 %v706
        %952 = vmatpush.bf16.msra.mxu0 %v696
        %953 = vmatmul.bf16.gmra.mxu0 %v731
        %v954 = vpop.f32.mrf.mxu0
        %v955 = vadd.f32 %v616, %v954
        %v956 = vpop.f32.mrf.mxu0
        %v957 = vadd.f32 %v616, %v956
        %958 = vmatmul.bf16.gmra.mxu0 %v734
        %v959 = vpop.f32.mrf.mxu0
        %v960 = vadd.f32 %v616, %v959
        %v961 = vpop.f32.mrf.mxu0
        %v962 = vadd.f32 %v616, %v961
        %963 = vmatmul.bf16.gmra.mxu0 %v737
        %v964 = vpop.f32.mrf.mxu0
        %v965 = vadd.f32 %v616, %v964
        %v966 = vpop.f32.mrf.mxu0
        %v967 = vadd.f32 %v616, %v966
        %968 = vmatmul.bf16.gmra.mxu0 %v740
        %v969 = vpop.f32.mrf.mxu0
        %v970 = vadd.f32 %v616, %v969
        %v971 = vpop.f32.mrf.mxu0
        %v972 = vadd.f32 %v616, %v971
        %973 = vdwg.mxu0
        %974 = vmatpush.bf16.msra.mxu0 0
        %975 = vmatpush.bf16.msra.mxu0 0
        %976 = vmatpush.bf16.msra.mxu0 0
        %977 = vmatpush.bf16.msra.mxu0 0
        %978 = vmatpush.bf16.msra.mxu0 0
        %979 = vmatpush.bf16.msra.mxu0 0
        %980 = vmatpush.bf16.msra.mxu0 %v707
        %981 = vmatpush.bf16.msra.mxu0 %v697
        %982 = vmatmul.bf16.gmra.mxu0 %v731
        %v983 = vpop.f32.mrf.mxu0
        %v984 = vadd.f32 %v617, %v983
        %v985 = vpop.f32.mrf.mxu0
        %v986 = vadd.f32 %v617, %v985
        %987 = vmatmul.bf16.gmra.mxu0 %v734
        %v988 = vpop.f32.mrf.mxu0
        %v989 = vadd.f32 %v617, %v988
        %v990 = vpop.f32.mrf.mxu0
        %v991 = vadd.f32 %v617, %v990
        %992 = vmatmul.bf16.gmra.mxu0 %v737
        %v993 = vpop.f32.mrf.mxu0
        %v994 = vadd.f32 %v617, %v993
        %v995 = vpop.f32.mrf.mxu0
        %v996 = vadd.f32 %v617, %v995
        %997 = vmatmul.bf16.gmra.mxu0 %v740
        %v998 = vpop.f32.mrf.mxu0
        %v999 = vadd.f32 %v617, %v998
        %v1000 = vpop.f32.mrf.mxu0
        %v1001 = vadd.f32 %v617, %v1000
        %1002 = vdwg.mxu0
        %1003 = vmatpush.bf16.msra.mxu0 0
        %1004 = vmatpush.bf16.msra.mxu0 0
        %1005 = vmatpush.bf16.msra.mxu0 0
        %1006 = vmatpush.bf16.msra.mxu0 0
        %1007 = vmatpush.bf16.msra.mxu0 0
        %1008 = vmatpush.bf16.msra.mxu0 0
        %1009 = vmatpush.bf16.msra.mxu0 %v708
        %1010 = vmatpush.bf16.msra.mxu0 %v698
        %1011 = vmatmul.bf16.gmra.mxu0 %v731
        %v1012 = vpop.f32.mrf.mxu0
        %v1013 = vadd.f32 %v618, %v1012
        %v1014 = vpop.f32.mrf.mxu0
        %v1015 = vadd.f32 %v618, %v1014
        %1016 = vmatmul.bf16.gmra.mxu0 %v734
        %v1017 = vpop.f32.mrf.mxu0
        %v1018 = vadd.f32 %v618, %v1017
        %v1019 = vpop.f32.mrf.mxu0
        %v1020 = vadd.f32 %v618, %v1019
        %1021 = vmatmul.bf16.gmra.mxu0 %v737
        %v1022 = vpop.f32.mrf.mxu0
        %v1023 = vadd.f32 %v618, %v1022
        %v1024 = vpop.f32.mrf.mxu0
        %v1025 = vadd.f32 %v618, %v1024
        %1026 = vmatmul.bf16.gmra.mxu0 %v740
        %v1027 = vpop.f32.mrf.mxu0
        %v1028 = vadd.f32 %v618, %v1027
        %v1029 = vpop.f32.mrf.mxu0
        %v1030 = vadd.f32 %v618, %v1029
        %1031 = vdwg.mxu0
        %v1032 = vxor.u32 %v752, 2147483648
        %v1033 = vxor.u32 %v781, 2147483648
        %v1034 = vxor.u32 %v810, 2147483648
        %v1035 = vxor.u32 %v839, 2147483648
        %v1036 = vxor.u32 %v868, 2147483648
        %v1037 = vxor.u32 %v897, 2147483648
        %v1038 = vxor.u32 %v926, 2147483648
        %v1039 = vxor.u32 %v955, 2147483648
        %v1040 = vxor.u32 %v984, 2147483648
        %v1041 = vxor.u32 %v1013, 2147483648
        %v1042 = vxor.u32 %v754, 2147483648
        %v1043 = vxor.u32 %v783, 2147483648
        %v1044 = vxor.u32 %v812, 2147483648
        %v1045 = vxor.u32 %v841, 2147483648
        %v1046 = vxor.u32 %v870, 2147483648
        %v1047 = vxor.u32 %v899, 2147483648
        %v1048 = vxor.u32 %v928, 2147483648
        %v1049 = vxor.u32 %v957, 2147483648
        %v1050 = vxor.u32 %v986, 2147483648
        %v1051 = vxor.u32 %v1015, 2147483648
        %v1052 = vxor.u32 %v757, 2147483648
        %v1053 = vxor.u32 %v786, 2147483648
        %v1054 = vxor.u32 %v815, 2147483648
        %v1055 = vxor.u32 %v844, 2147483648
        %v1056 = vxor.u32 %v873, 2147483648
        %v1057 = vxor.u32 %v902, 2147483648
        %v1058 = vxor.u32 %v931, 2147483648
        %v1059 = vxor.u32 %v960, 2147483648
        %v1060 = vxor.u32 %v989, 2147483648
        %v1061 = vxor.u32 %v1018, 2147483648
        %v1062 = vxor.u32 %v759, 2147483648
        %v1063 = vxor.u32 %v788, 2147483648
        %v1064 = vxor.u32 %v817, 2147483648
        %v1065 = vxor.u32 %v846, 2147483648
        %v1066 = vxor.u32 %v875, 2147483648
        %v1067 = vxor.u32 %v904, 2147483648
        %v1068 = vxor.u32 %v933, 2147483648
        %v1069 = vxor.u32 %v962, 2147483648
        %v1070 = vxor.u32 %v991, 2147483648
        %v1071 = vxor.u32 %v1020, 2147483648
        %v1072 = vxor.u32 %v762, 2147483648
        %v1073 = vxor.u32 %v791, 2147483648
        %v1074 = vxor.u32 %v820, 2147483648
        %v1075 = vxor.u32 %v849, 2147483648
        %v1076 = vxor.u32 %v878, 2147483648
        %v1077 = vxor.u32 %v907, 2147483648
        %v1078 = vxor.u32 %v936, 2147483648
        %v1079 = vxor.u32 %v965, 2147483648
        %v1080 = vxor.u32 %v994, 2147483648
        %v1081 = vxor.u32 %v1023, 2147483648
        %v1082 = vxor.u32 %v764, 2147483648
        %v1083 = vxor.u32 %v793, 2147483648
        %v1084 = vxor.u32 %v822, 2147483648
        %v1085 = vxor.u32 %v851, 2147483648
        %v1086 = vxor.u32 %v880, 2147483648
        %v1087 = vxor.u32 %v909, 2147483648
        %v1088 = vxor.u32 %v938, 2147483648
        %v1089 = vxor.u32 %v967, 2147483648
        %v1090 = vxor.u32 %v996, 2147483648
        %v1091 = vxor.u32 %v1025, 2147483648
        %v1092 = vxor.u32 %v767, 2147483648
        %v1093 = vxor.u32 %v796, 2147483648
        %v1094 = vxor.u32 %v825, 2147483648
        %v1095 = vxor.u32 %v854, 2147483648
        %v1096 = vxor.u32 %v883, 2147483648
        %v1097 = vxor.u32 %v912, 2147483648
        %v1098 = vxor.u32 %v941, 2147483648
        %v1099 = vxor.u32 %v970, 2147483648
        %v1100 = vxor.u32 %v999, 2147483648
        %v1101 = vxor.u32 %v1028, 2147483648
        %v1102 = vxor.u32 %v769, 2147483648
        %v1103 = vxor.u32 %v798, 2147483648
        %v1104 = vxor.u32 %v827, 2147483648
        %v1105 = vxor.u32 %v856, 2147483648
        %v1106 = vxor.u32 %v885, 2147483648
        %v1107 = vxor.u32 %v914, 2147483648
        %v1108 = vxor.u32 %v943, 2147483648
        %v1109 = vxor.u32 %v972, 2147483648
        %v1110 = vxor.u32 %v1001, 2147483648
        %v1111 = vxor.u32 %v1030, 2147483648
        %v1112 = vmul.f32 %v1032, 1.442695
        %v1113 = vpow.pop %v1112
        %v1114 = vmul.f32 %v1033, 1.442695
        %v1115 = vpow.pop %v1114
        %v1116 = vmul.f32 %v1034, 1.442695
        %v1117 = vpow.pop %v1116
        %v1118 = vmul.f32 %v1035, 1.442695
        %v1119 = vpow.pop %v1118
        %v1120 = vmul.f32 %v1036, 1.442695
        %v1121 = vpow.pop %v1120
        %v1122 = vmul.f32 %v1037, 1.442695
        %v1123 = vpow.pop %v1122
        %v1124 = vmul.f32 %v1038, 1.442695
        %v1125 = vpow.pop %v1124
        %v1126 = vmul.f32 %v1039, 1.442695
        %v1127 = vpow.pop %v1126
        %v1128 = vmul.f32 %v1040, 1.442695
        %v1129 = vpow.pop %v1128
        %v1130 = vmul.f32 %v1041, 1.442695
        %v1131 = vpow.pop %v1130
        %v1132 = vmul.f32 %v1042, 1.442695
        %v1133 = vpow.pop %v1132
        %v1134 = vmul.f32 %v1043, 1.442695
        %v1135 = vpow.pop %v1134
        %v1136 = vmul.f32 %v1044, 1.442695
        %v1137 = vpow.pop %v1136
        %v1138 = vmul.f32 %v1045, 1.442695
        %v1139 = vpow.pop %v1138
        %v1140 = vmul.f32 %v1046, 1.442695
        %v1141 = vpow.pop %v1140
        %v1142 = vmul.f32 %v1047, 1.442695
        %v1143 = vpow.pop %v1142
        %v1144 = vmul.f32 %v1048, 1.442695
        %v1145 = vpow.pop %v1144
        %v1146 = vmul.f32 %v1049, 1.442695
        %v1147 = vpow.pop %v1146
        %v1148 = vmul.f32 %v1050, 1.442695
        %v1149 = vpow.pop %v1148
        %v1150 = vmul.f32 %v1051, 1.442695
        %v1151 = vpow.pop %v1150
        %v1152 = vmul.f32 %v1052, 1.442695
        %v1153 = vpow.pop %v1152
        %v1154 = vmul.f32 %v1053, 1.442695
        %v1155 = vpow.pop %v1154
        %v1156 = vmul.f32 %v1054, 1.442695
        %v1157 = vpow.pop %v1156
        %v1158 = vmul.f32 %v1055, 1.442695
        %v1159 = vpow.pop %v1158
        %v1160 = vmul.f32 %v1056, 1.442695
        %v1161 = vpow.pop %v1160
        %v1162 = vmul.f32 %v1057, 1.442695
        %v1163 = vpow.pop %v1162
        %v1164 = vmul.f32 %v1058, 1.442695
        %v1165 = vpow.pop %v1164
        %v1166 = vmul.f32 %v1059, 1.442695
        %v1167 = vpow.pop %v1166
        %v1168 = vmul.f32 %v1060, 1.442695
        %v1169 = vpow.pop %v1168
        %v1170 = vmul.f32 %v1061, 1.442695
        %v1171 = vpow.pop %v1170
        %v1172 = vmul.f32 %v1062, 1.442695
        %v1173 = vpow.pop %v1172
        %v1174 = vmul.f32 %v1063, 1.442695
        %v1175 = vpow.pop %v1174
        %v1176 = vmul.f32 %v1064, 1.442695
        %v1177 = vpow.pop %v1176
        %v1178 = vmul.f32 %v1065, 1.442695
        %v1179 = vpow.pop %v1178
        %v1180 = vmul.f32 %v1066, 1.442695
        %v1181 = vpow.pop %v1180
        %v1182 = vmul.f32 %v1067, 1.442695
        %v1183 = vpow.pop %v1182
        %v1184 = vmul.f32 %v1068, 1.442695
        %v1185 = vpow.pop %v1184
        %v1186 = vmul.f32 %v1069, 1.442695
        %v1187 = vpow.pop %v1186
        %v1188 = vmul.f32 %v1070, 1.442695
        %v1189 = vpow.pop %v1188
        %v1190 = vmul.f32 %v1071, 1.442695
        %v1191 = vpow.pop %v1190
        %v1192 = vmul.f32 %v1072, 1.442695
        %v1193 = vpow.pop %v1192
        %v1194 = vmul.f32 %v1073, 1.442695
        %v1195 = vpow.pop %v1194
        %v1196 = vmul.f32 %v1074, 1.442695
        %v1197 = vpow.pop %v1196
        %v1198 = vmul.f32 %v1075, 1.442695
        %v1199 = vpow.pop %v1198
        %v1200 = vmul.f32 %v1076, 1.442695
        %v1201 = vpow.pop %v1200
        %v1202 = vmul.f32 %v1077, 1.442695
        %v1203 = vpow.pop %v1202
        %v1204 = vmul.f32 %v1078, 1.442695
        %v1205 = vpow.pop %v1204
        %v1206 = vmul.f32 %v1079, 1.442695
        %v1207 = vpow.pop %v1206
        %v1208 = vmul.f32 %v1080, 1.442695
        %v1209 = vpow.pop %v1208
        %v1210 = vmul.f32 %v1081, 1.442695
        %v1211 = vpow.pop %v1210
        %v1212 = vmul.f32 %v1082, 1.442695
        %v1213 = vpow.pop %v1212
        %v1214 = vmul.f32 %v1083, 1.442695
        %v1215 = vpow.pop %v1214
        %v1216 = vmul.f32 %v1084, 1.442695
        %v1217 = vpow.pop %v1216
        %v1218 = vmul.f32 %v1085, 1.442695
        %v1219 = vpow.pop %v1218
        %v1220 = vmul.f32 %v1086, 1.442695
        %v1221 = vpow.pop %v1220
        %v1222 = vmul.f32 %v1087, 1.442695
        %v1223 = vpow.pop %v1222
        %v1224 = vmul.f32 %v1088, 1.442695
        %v1225 = vpow.pop %v1224
        %v1226 = vmul.f32 %v1089, 1.442695
        %v1227 = vpow.pop %v1226
        %v1228 = vmul.f32 %v1090, 1.442695
        %v1229 = vpow.pop %v1228
        %v1230 = vmul.f32 %v1091, 1.442695
        %v1231 = vpow.pop %v1230
        %v1232 = vmul.f32 %v1092, 1.442695
        %v1233 = vpow.pop %v1232
        %v1234 = vmul.f32 %v1093, 1.442695
        %v1235 = vpow.pop %v1234
        %v1236 = vmul.f32 %v1094, 1.442695
        %v1237 = vpow.pop %v1236
        %v1238 = vmul.f32 %v1095, 1.442695
        %v1239 = vpow.pop %v1238
        %v1240 = vmul.f32 %v1096, 1.442695
        %v1241 = vpow.pop %v1240
        %v1242 = vmul.f32 %v1097, 1.442695
        %v1243 = vpow.pop %v1242
        %v1244 = vmul.f32 %v1098, 1.442695
        %v1245 = vpow.pop %v1244
        %v1246 = vmul.f32 %v1099, 1.442695
        %v1247 = vpow.pop %v1246
        %v1248 = vmul.f32 %v1100, 1.442695
        %v1249 = vpow.pop %v1248
        %v1250 = vmul.f32 %v1101, 1.442695
        %v1251 = vpow.pop %v1250
        %v1252 = vmul.f32 %v1102, 1.442695
        %v1253 = vpow.pop %v1252
        %v1254 = vmul.f32 %v1103, 1.442695
        %v1255 = vpow.pop %v1254
        %v1256 = vmul.f32 %v1104, 1.442695
        %v1257 = vpow.pop %v1256
        %v1258 = vmul.f32 %v1105, 1.442695
        %v1259 = vpow.pop %v1258
        %v1260 = vmul.f32 %v1106, 1.442695
        %v1261 = vpow.pop %v1260
        %v1262 = vmul.f32 %v1107, 1.442695
        %v1263 = vpow.pop %v1262
        %v1264 = vmul.f32 %v1108, 1.442695
        %v1265 = vpow.pop %v1264
        %v1266 = vmul.f32 %v1109, 1.442695
        %v1267 = vpow.pop %v1266
        %v1268 = vmul.f32 %v1110, 1.442695
        %v1269 = vpow.pop %v1268
        %v1270 = vmul.f32 %v1111, 1.442695
        %v1271 = vpow.pop %v1270
        %v1272 = vadd.f32 %v1113, 1.0
        %v1273 = vadd.f32 %v1115, 1.0
        %v1274 = vadd.f32 %v1117, 1.0
        %v1275 = vadd.f32 %v1119, 1.0
        %v1276 = vadd.f32 %v1121, 1.0
        %v1277 = vadd.f32 %v1123, 1.0
        %v1278 = vadd.f32 %v1125, 1.0
        %v1279 = vadd.f32 %v1127, 1.0
        %v1280 = vadd.f32 %v1129, 1.0
        %v1281 = vadd.f32 %v1131, 1.0
        %v1282 = vadd.f32 %v1133, 1.0
        %v1283 = vadd.f32 %v1135, 1.0
        %v1284 = vadd.f32 %v1137, 1.0
        %v1285 = vadd.f32 %v1139, 1.0
        %v1286 = vadd.f32 %v1141, 1.0
        %v1287 = vadd.f32 %v1143, 1.0
        %v1288 = vadd.f32 %v1145, 1.0
        %v1289 = vadd.f32 %v1147, 1.0
        %v1290 = vadd.f32 %v1149, 1.0
        %v1291 = vadd.f32 %v1151, 1.0
        %v1292 = vadd.f32 %v1153, 1.0
        %v1293 = vadd.f32 %v1155, 1.0
        %v1294 = vadd.f32 %v1157, 1.0
        %v1295 = vadd.f32 %v1159, 1.0
        %v1296 = vadd.f32 %v1161, 1.0
        %v1297 = vadd.f32 %v1163, 1.0
        %v1298 = vadd.f32 %v1165, 1.0
        %v1299 = vadd.f32 %v1167, 1.0
        %v1300 = vadd.f32 %v1169, 1.0
        %v1301 = vadd.f32 %v1171, 1.0
        %v1302 = vadd.f32 %v1173, 1.0
        %v1303 = vadd.f32 %v1175, 1.0
        %v1304 = vadd.f32 %v1177, 1.0
        %v1305 = vadd.f32 %v1179, 1.0
        %v1306 = vadd.f32 %v1181, 1.0
        %v1307 = vadd.f32 %v1183, 1.0
        %v1308 = vadd.f32 %v1185, 1.0
        %v1309 = vadd.f32 %v1187, 1.0
        %v1310 = vadd.f32 %v1189, 1.0
        %v1311 = vadd.f32 %v1191, 1.0
        %v1312 = vadd.f32 %v1193, 1.0
        %v1313 = vadd.f32 %v1195, 1.0
        %v1314 = vadd.f32 %v1197, 1.0
        %v1315 = vadd.f32 %v1199, 1.0
        %v1316 = vadd.f32 %v1201, 1.0
        %v1317 = vadd.f32 %v1203, 1.0
        %v1318 = vadd.f32 %v1205, 1.0
        %v1319 = vadd.f32 %v1207, 1.0
        %v1320 = vadd.f32 %v1209, 1.0
        %v1321 = vadd.f32 %v1211, 1.0
        %v1322 = vadd.f32 %v1213, 1.0
        %v1323 = vadd.f32 %v1215, 1.0
        %v1324 = vadd.f32 %v1217, 1.0
        %v1325 = vadd.f32 %v1219, 1.0
        %v1326 = vadd.f32 %v1221, 1.0
        %v1327 = vadd.f32 %v1223, 1.0
        %v1328 = vadd.f32 %v1225, 1.0
        %v1329 = vadd.f32 %v1227, 1.0
        %v1330 = vadd.f32 %v1229, 1.0
        %v1331 = vadd.f32 %v1231, 1.0
        %v1332 = vadd.f32 %v1233, 1.0
        %v1333 = vadd.f32 %v1235, 1.0
        %v1334 = vadd.f32 %v1237, 1.0
        %v1335 = vadd.f32 %v1239, 1.0
        %v1336 = vadd.f32 %v1241, 1.0
        %v1337 = vadd.f32 %v1243, 1.0
        %v1338 = vadd.f32 %v1245, 1.0
        %v1339 = vadd.f32 %v1247, 1.0
        %v1340 = vadd.f32 %v1249, 1.0
        %v1341 = vadd.f32 %v1251, 1.0
        %v1342 = vadd.f32 %v1253, 1.0
        %v1343 = vadd.f32 %v1255, 1.0
        %v1344 = vadd.f32 %v1257, 1.0
        %v1345 = vadd.f32 %v1259, 1.0
        %v1346 = vadd.f32 %v1261, 1.0
        %v1347 = vadd.f32 %v1263, 1.0
        %v1348 = vadd.f32 %v1265, 1.0
        %v1349 = vadd.f32 %v1267, 1.0
        %v1350 = vadd.f32 %v1269, 1.0
        %v1351 = vadd.f32 %v1271, 1.0
        %v1352 = vrcp.pop %v1272
        %v1353 = vmul.f32 %v1272, %v1352
        %v1354 = vsub.f32 1.0, %v1353
        %v1355 = vmul.f32 %v1352, %v1354
        %v1356 = vadd.f32 %v1352, %v1355
        %vm1357 = vweird.f32 %v1272
        %vm1358 = vweird.f32 %v1352
        %vm1359 = vmor %vm1357, %vm1358
        %v1360 = vsel %vm1359, %v1352, %v1356
        %v1361 = vand.u32 2147483647, %v1272
        %vm1362 = vcmp.eq.f32.partialorder %v1361, 8.507059e+37
        %v1363 = vand.u32 %v1272, 2147483648
        %v1364 = vor.u32 1.1754944e-38, %v1363
        %v1365 = vsel %vm1362, %v1364, %v1360
        %v1366 = vmul.f32 1.0, %v1365
        %v1367 = vrcp.pop %v1273
        %v1368 = vmul.f32 %v1273, %v1367
        %v1369 = vsub.f32 1.0, %v1368
        %v1370 = vmul.f32 %v1367, %v1369
        %v1371 = vadd.f32 %v1367, %v1370
        %vm1372 = vweird.f32 %v1273
        %vm1373 = vweird.f32 %v1367
        %vm1374 = vmor %vm1372, %vm1373
        %v1375 = vsel %vm1374, %v1367, %v1371
        %v1376 = vand.u32 2147483647, %v1273
        %vm1377 = vcmp.eq.f32.partialorder %v1376, 8.507059e+37
        %v1378 = vand.u32 %v1273, 2147483648
        %v1379 = vor.u32 1.1754944e-38, %v1378
        %v1380 = vsel %vm1377, %v1379, %v1375
        %v1381 = vmul.f32 1.0, %v1380
        %v1382 = vrcp.pop %v1274
        %v1383 = vmul.f32 %v1274, %v1382
        %v1384 = vsub.f32 1.0, %v1383
        %v1385 = vmul.f32 %v1382, %v1384
        %v1386 = vadd.f32 %v1382, %v1385
        %vm1387 = vweird.f32 %v1274
        %vm1388 = vweird.f32 %v1382
        %vm1389 = vmor %vm1387, %vm1388
        %v1390 = vsel %vm1389, %v1382, %v1386
        %v1391 = vand.u32 2147483647, %v1274
        %vm1392 = vcmp.eq.f32.partialorder %v1391, 8.507059e+37
        %v1393 = vand.u32 %v1274, 2147483648
        %v1394 = vor.u32 1.1754944e-38, %v1393
        %v1395 = vsel %vm1392, %v1394, %v1390
        %v1396 = vmul.f32 1.0, %v1395
        %v1397 = vrcp.pop %v1275
        %v1398 = vmul.f32 %v1275, %v1397
        %v1399 = vsub.f32 1.0, %v1398
        %v1400 = vmul.f32 %v1397, %v1399
        %v1401 = vadd.f32 %v1397, %v1400
        %vm1402 = vweird.f32 %v1275
        %vm1403 = vweird.f32 %v1397
        %vm1404 = vmor %vm1402, %vm1403
        %v1405 = vsel %vm1404, %v1397, %v1401
        %v1406 = vand.u32 2147483647, %v1275
        %vm1407 = vcmp.eq.f32.partialorder %v1406, 8.507059e+37
        %v1408 = vand.u32 %v1275, 2147483648
        %v1409 = vor.u32 1.1754944e-38, %v1408
        %v1410 = vsel %vm1407, %v1409, %v1405
        %v1411 = vmul.f32 1.0, %v1410
        %v1412 = vrcp.pop %v1276
        %v1413 = vmul.f32 %v1276, %v1412
        %v1414 = vsub.f32 1.0, %v1413
        %v1415 = vmul.f32 %v1412, %v1414
        %v1416 = vadd.f32 %v1412, %v1415
        %vm1417 = vweird.f32 %v1276
        %vm1418 = vweird.f32 %v1412
        %vm1419 = vmor %vm1417, %vm1418
        %v1420 = vsel %vm1419, %v1412, %v1416
        %v1421 = vand.u32 2147483647, %v1276
        %vm1422 = vcmp.eq.f32.partialorder %v1421, 8.507059e+37
        %v1423 = vand.u32 %v1276, 2147483648
        %v1424 = vor.u32 1.1754944e-38, %v1423
        %v1425 = vsel %vm1422, %v1424, %v1420
        %v1426 = vmul.f32 1.0, %v1425
        %v1427 = vrcp.pop %v1277
        %v1428 = vmul.f32 %v1277, %v1427
        %v1429 = vsub.f32 1.0, %v1428
        %v1430 = vmul.f32 %v1427, %v1429
        %v1431 = vadd.f32 %v1427, %v1430
        %vm1432 = vweird.f32 %v1277
        %vm1433 = vweird.f32 %v1427
        %vm1434 = vmor %vm1432, %vm1433
        %v1435 = vsel %vm1434, %v1427, %v1431
        %v1436 = vand.u32 2147483647, %v1277
        %vm1437 = vcmp.eq.f32.partialorder %v1436, 8.507059e+37
        %v1438 = vand.u32 %v1277, 2147483648
        %v1439 = vor.u32 1.1754944e-38, %v1438
        %v1440 = vsel %vm1437, %v1439, %v1435
        %v1441 = vmul.f32 1.0, %v1440
        %v1442 = vrcp.pop %v1278
        %v1443 = vmul.f32 %v1278, %v1442
        %v1444 = vsub.f32 1.0, %v1443
        %v1445 = vmul.f32 %v1442, %v1444
        %v1446 = vadd.f32 %v1442, %v1445
        %vm1447 = vweird.f32 %v1278
        %vm1448 = vweird.f32 %v1442
        %vm1449 = vmor %vm1447, %vm1448
        %v1450 = vsel %vm1449, %v1442, %v1446
        %v1451 = vand.u32 2147483647, %v1278
        %vm1452 = vcmp.eq.f32.partialorder %v1451, 8.507059e+37
        %v1453 = vand.u32 %v1278, 2147483648
        %v1454 = vor.u32 1.1754944e-38, %v1453
        %v1455 = vsel %vm1452, %v1454, %v1450
        %v1456 = vmul.f32 1.0, %v1455
        %v1457 = vrcp.pop %v1279
        %v1458 = vmul.f32 %v1279, %v1457
        %v1459 = vsub.f32 1.0, %v1458
        %v1460 = vmul.f32 %v1457, %v1459
        %v1461 = vadd.f32 %v1457, %v1460
        %vm1462 = vweird.f32 %v1279
        %vm1463 = vweird.f32 %v1457
        %vm1464 = vmor %vm1462, %vm1463
        %v1465 = vsel %vm1464, %v1457, %v1461
        %v1466 = vand.u32 2147483647, %v1279
        %vm1467 = vcmp.eq.f32.partialorder %v1466, 8.507059e+37
        %v1468 = vand.u32 %v1279, 2147483648
        %v1469 = vor.u32 1.1754944e-38, %v1468
        %v1470 = vsel %vm1467, %v1469, %v1465
        %v1471 = vmul.f32 1.0, %v1470
        %v1472 = vrcp.pop %v1280
        %v1473 = vmul.f32 %v1280, %v1472
        %v1474 = vsub.f32 1.0, %v1473
        %v1475 = vmul.f32 %v1472, %v1474
        %v1476 = vadd.f32 %v1472, %v1475
        %vm1477 = vweird.f32 %v1280
        %vm1478 = vweird.f32 %v1472
        %vm1479 = vmor %vm1477, %vm1478
        %v1480 = vsel %vm1479, %v1472, %v1476
        %v1481 = vand.u32 2147483647, %v1280
        %vm1482 = vcmp.eq.f32.partialorder %v1481, 8.507059e+37
        %v1483 = vand.u32 %v1280, 2147483648
        %v1484 = vor.u32 1.1754944e-38, %v1483
        %v1485 = vsel %vm1482, %v1484, %v1480
        %v1486 = vmul.f32 1.0, %v1485
        %v1487 = vrcp.pop %v1281
        %v1488 = vmul.f32 %v1281, %v1487
        %v1489 = vsub.f32 1.0, %v1488
        %v1490 = vmul.f32 %v1487, %v1489
        %v1491 = vadd.f32 %v1487, %v1490
        %vm1492 = vweird.f32 %v1281
        %vm1493 = vweird.f32 %v1487
        %vm1494 = vmor %vm1492, %vm1493
        %v1495 = vsel %vm1494, %v1487, %v1491
        %v1496 = vand.u32 2147483647, %v1281
        %vm1497 = vcmp.eq.f32.partialorder %v1496, 8.507059e+37
        %v1498 = vand.u32 %v1281, 2147483648
        %v1499 = vor.u32 1.1754944e-38, %v1498
        %v1500 = vsel %vm1497, %v1499, %v1495
        %v1501 = vmul.f32 1.0, %v1500
        %v1502 = vrcp.pop %v1282
        %v1503 = vmul.f32 %v1282, %v1502
        %v1504 = vsub.f32 1.0, %v1503
        %v1505 = vmul.f32 %v1502, %v1504
        %v1506 = vadd.f32 %v1502, %v1505
        %vm1507 = vweird.f32 %v1282
        %vm1508 = vweird.f32 %v1502
        %vm1509 = vmor %vm1507, %vm1508
        %v1510 = vsel %vm1509, %v1502, %v1506
        %v1511 = vand.u32 2147483647, %v1282
        %vm1512 = vcmp.eq.f32.partialorder %v1511, 8.507059e+37
        %v1513 = vand.u32 %v1282, 2147483648
        %v1514 = vor.u32 1.1754944e-38, %v1513
        %v1515 = vsel %vm1512, %v1514, %v1510
        %v1516 = vmul.f32 1.0, %v1515
        %v1517 = vrcp.pop %v1283
        %v1518 = vmul.f32 %v1283, %v1517
        %v1519 = vsub.f32 1.0, %v1518
        %v1520 = vmul.f32 %v1517, %v1519
        %v1521 = vadd.f32 %v1517, %v1520
        %vm1522 = vweird.f32 %v1283
        %vm1523 = vweird.f32 %v1517
        %vm1524 = vmor %vm1522, %vm1523
        %v1525 = vsel %vm1524, %v1517, %v1521
        %v1526 = vand.u32 2147483647, %v1283
        %vm1527 = vcmp.eq.f32.partialorder %v1526, 8.507059e+37
        %v1528 = vand.u32 %v1283, 2147483648
        %v1529 = vor.u32 1.1754944e-38, %v1528
        %v1530 = vsel %vm1527, %v1529, %v1525
        %v1531 = vmul.f32 1.0, %v1530
        %v1532 = vrcp.pop %v1284
        %v1533 = vmul.f32 %v1284, %v1532
        %v1534 = vsub.f32 1.0, %v1533
        %v1535 = vmul.f32 %v1532, %v1534
        %v1536 = vadd.f32 %v1532, %v1535
        %vm1537 = vweird.f32 %v1284
        %vm1538 = vweird.f32 %v1532
        %vm1539 = vmor %vm1537, %vm1538
        %v1540 = vsel %vm1539, %v1532, %v1536
        %v1541 = vand.u32 2147483647, %v1284
        %vm1542 = vcmp.eq.f32.partialorder %v1541, 8.507059e+37
        %v1543 = vand.u32 %v1284, 2147483648
        %v1544 = vor.u32 1.1754944e-38, %v1543
        %v1545 = vsel %vm1542, %v1544, %v1540
        %v1546 = vmul.f32 1.0, %v1545
        %v1547 = vrcp.pop %v1285
        %v1548 = vmul.f32 %v1285, %v1547
        %v1549 = vsub.f32 1.0, %v1548
        %v1550 = vmul.f32 %v1547, %v1549
        %v1551 = vadd.f32 %v1547, %v1550
        %vm1552 = vweird.f32 %v1285
        %vm1553 = vweird.f32 %v1547
        %vm1554 = vmor %vm1552, %vm1553
        %v1555 = vsel %vm1554, %v1547, %v1551
        %v1556 = vand.u32 2147483647, %v1285
        %vm1557 = vcmp.eq.f32.partialorder %v1556, 8.507059e+37
        %v1558 = vand.u32 %v1285, 2147483648
        %v1559 = vor.u32 1.1754944e-38, %v1558
        %v1560 = vsel %vm1557, %v1559, %v1555
        %v1561 = vmul.f32 1.0, %v1560
        %v1562 = vrcp.pop %v1286
        %v1563 = vmul.f32 %v1286, %v1562
        %v1564 = vsub.f32 1.0, %v1563
        %v1565 = vmul.f32 %v1562, %v1564
        %v1566 = vadd.f32 %v1562, %v1565
        %vm1567 = vweird.f32 %v1286
        %vm1568 = vweird.f32 %v1562
        %vm1569 = vmor %vm1567, %vm1568
        %v1570 = vsel %vm1569, %v1562, %v1566
        %v1571 = vand.u32 2147483647, %v1286
        %vm1572 = vcmp.eq.f32.partialorder %v1571, 8.507059e+37
        %v1573 = vand.u32 %v1286, 2147483648
        %v1574 = vor.u32 1.1754944e-38, %v1573
        %v1575 = vsel %vm1572, %v1574, %v1570
        %v1576 = vmul.f32 1.0, %v1575
        %v1577 = vrcp.pop %v1287
        %v1578 = vmul.f32 %v1287, %v1577
        %v1579 = vsub.f32 1.0, %v1578
        %v1580 = vmul.f32 %v1577, %v1579
        %v1581 = vadd.f32 %v1577, %v1580
        %vm1582 = vweird.f32 %v1287
        %vm1583 = vweird.f32 %v1577
        %vm1584 = vmor %vm1582, %vm1583
        %v1585 = vsel %vm1584, %v1577, %v1581
        %v1586 = vand.u32 2147483647, %v1287
        %vm1587 = vcmp.eq.f32.partialorder %v1586, 8.507059e+37
        %v1588 = vand.u32 %v1287, 2147483648
        %v1589 = vor.u32 1.1754944e-38, %v1588
        %v1590 = vsel %vm1587, %v1589, %v1585
        %v1591 = vmul.f32 1.0, %v1590
        %v1592 = vrcp.pop %v1288
        %v1593 = vmul.f32 %v1288, %v1592
        %v1594 = vsub.f32 1.0, %v1593
        %v1595 = vmul.f32 %v1592, %v1594
        %v1596 = vadd.f32 %v1592, %v1595
        %vm1597 = vweird.f32 %v1288
        %vm1598 = vweird.f32 %v1592
        %vm1599 = vmor %vm1597, %vm1598
        %v1600 = vsel %vm1599, %v1592, %v1596
        %v1601 = vand.u32 2147483647, %v1288
        %vm1602 = vcmp.eq.f32.partialorder %v1601, 8.507059e+37
        %v1603 = vand.u32 %v1288, 2147483648
        %v1604 = vor.u32 1.1754944e-38, %v1603
        %v1605 = vsel %vm1602, %v1604, %v1600
        %v1606 = vmul.f32 1.0, %v1605
        %v1607 = vrcp.pop %v1289
        %v1608 = vmul.f32 %v1289, %v1607
        %v1609 = vsub.f32 1.0, %v1608
        %v1610 = vmul.f32 %v1607, %v1609
        %v1611 = vadd.f32 %v1607, %v1610
        %vm1612 = vweird.f32 %v1289
        %vm1613 = vweird.f32 %v1607
        %vm1614 = vmor %vm1612, %vm1613
        %v1615 = vsel %vm1614, %v1607, %v1611
        %v1616 = vand.u32 2147483647, %v1289
        %vm1617 = vcmp.eq.f32.partialorder %v1616, 8.507059e+37
        %v1618 = vand.u32 %v1289, 2147483648
        %v1619 = vor.u32 1.1754944e-38, %v1618
        %v1620 = vsel %vm1617, %v1619, %v1615
        %v1621 = vmul.f32 1.0, %v1620
        %v1622 = vrcp.pop %v1290
        %v1623 = vmul.f32 %v1290, %v1622
        %v1624 = vsub.f32 1.0, %v1623
        %v1625 = vmul.f32 %v1622, %v1624
        %v1626 = vadd.f32 %v1622, %v1625
        %vm1627 = vweird.f32 %v1290
        %vm1628 = vweird.f32 %v1622
        %vm1629 = vmor %vm1627, %vm1628
        %v1630 = vsel %vm1629, %v1622, %v1626
        %v1631 = vand.u32 2147483647, %v1290
        %vm1632 = vcmp.eq.f32.partialorder %v1631, 8.507059e+37
        %v1633 = vand.u32 %v1290, 2147483648
        %v1634 = vor.u32 1.1754944e-38, %v1633
        %v1635 = vsel %vm1632, %v1634, %v1630
        %v1636 = vmul.f32 1.0, %v1635
        %v1637 = vrcp.pop %v1291
        %v1638 = vmul.f32 %v1291, %v1637
        %v1639 = vsub.f32 1.0, %v1638
        %v1640 = vmul.f32 %v1637, %v1639
        %v1641 = vadd.f32 %v1637, %v1640
        %vm1642 = vweird.f32 %v1291
        %vm1643 = vweird.f32 %v1637
        %vm1644 = vmor %vm1642, %vm1643
        %v1645 = vsel %vm1644, %v1637, %v1641
        %v1646 = vand.u32 2147483647, %v1291
        %vm1647 = vcmp.eq.f32.partialorder %v1646, 8.507059e+37
        %v1648 = vand.u32 %v1291, 2147483648
        %v1649 = vor.u32 1.1754944e-38, %v1648
        %v1650 = vsel %vm1647, %v1649, %v1645
        %v1651 = vmul.f32 1.0, %v1650
        %v1652 = vrcp.pop %v1292
        %v1653 = vmul.f32 %v1292, %v1652
        %v1654 = vsub.f32 1.0, %v1653
        %v1655 = vmul.f32 %v1652, %v1654
        %v1656 = vadd.f32 %v1652, %v1655
        %vm1657 = vweird.f32 %v1292
        %vm1658 = vweird.f32 %v1652
        %vm1659 = vmor %vm1657, %vm1658
        %v1660 = vsel %vm1659, %v1652, %v1656
        %v1661 = vand.u32 2147483647, %v1292
        %vm1662 = vcmp.eq.f32.partialorder %v1661, 8.507059e+37
        %v1663 = vand.u32 %v1292, 2147483648
        %v1664 = vor.u32 1.1754944e-38, %v1663
        %v1665 = vsel %vm1662, %v1664, %v1660
        %v1666 = vmul.f32 1.0, %v1665
        %v1667 = vrcp.pop %v1293
        %v1668 = vmul.f32 %v1293, %v1667
        %v1669 = vsub.f32 1.0, %v1668
        %v1670 = vmul.f32 %v1667, %v1669
        %v1671 = vadd.f32 %v1667, %v1670
        %vm1672 = vweird.f32 %v1293
        %vm1673 = vweird.f32 %v1667
        %vm1674 = vmor %vm1672, %vm1673
        %v1675 = vsel %vm1674, %v1667, %v1671
        %v1676 = vand.u32 2147483647, %v1293
        %vm1677 = vcmp.eq.f32.partialorder %v1676, 8.507059e+37
        %v1678 = vand.u32 %v1293, 2147483648
        %v1679 = vor.u32 1.1754944e-38, %v1678
        %v1680 = vsel %vm1677, %v1679, %v1675
        %v1681 = vmul.f32 1.0, %v1680
        %v1682 = vrcp.pop %v1294
        %v1683 = vmul.f32 %v1294, %v1682
        %v1684 = vsub.f32 1.0, %v1683
        %v1685 = vmul.f32 %v1682, %v1684
        %v1686 = vadd.f32 %v1682, %v1685
        %vm1687 = vweird.f32 %v1294
        %vm1688 = vweird.f32 %v1682
        %vm1689 = vmor %vm1687, %vm1688
        %v1690 = vsel %vm1689, %v1682, %v1686
        %v1691 = vand.u32 2147483647, %v1294
        %vm1692 = vcmp.eq.f32.partialorder %v1691, 8.507059e+37
        %v1693 = vand.u32 %v1294, 2147483648
        %v1694 = vor.u32 1.1754944e-38, %v1693
        %v1695 = vsel %vm1692, %v1694, %v1690
        %v1696 = vmul.f32 1.0, %v1695
        %v1697 = vrcp.pop %v1295
        %v1698 = vmul.f32 %v1295, %v1697
        %v1699 = vsub.f32 1.0, %v1698
        %v1700 = vmul.f32 %v1697, %v1699
        %v1701 = vadd.f32 %v1697, %v1700
        %vm1702 = vweird.f32 %v1295
        %vm1703 = vweird.f32 %v1697
        %vm1704 = vmor %vm1702, %vm1703
        %v1705 = vsel %vm1704, %v1697, %v1701
        %v1706 = vand.u32 2147483647, %v1295
        %vm1707 = vcmp.eq.f32.partialorder %v1706, 8.507059e+37
        %v1708 = vand.u32 %v1295, 2147483648
        %v1709 = vor.u32 1.1754944e-38, %v1708
        %v1710 = vsel %vm1707, %v1709, %v1705
        %v1711 = vmul.f32 1.0, %v1710
        %v1712 = vrcp.pop %v1296
        %v1713 = vmul.f32 %v1296, %v1712
        %v1714 = vsub.f32 1.0, %v1713
        %v1715 = vmul.f32 %v1712, %v1714
        %v1716 = vadd.f32 %v1712, %v1715
        %vm1717 = vweird.f32 %v1296
        %vm1718 = vweird.f32 %v1712
        %vm1719 = vmor %vm1717, %vm1718
        %v1720 = vsel %vm1719, %v1712, %v1716
        %v1721 = vand.u32 2147483647, %v1296
        %vm1722 = vcmp.eq.f32.partialorder %v1721, 8.507059e+37
        %v1723 = vand.u32 %v1296, 2147483648
        %v1724 = vor.u32 1.1754944e-38, %v1723
        %v1725 = vsel %vm1722, %v1724, %v1720
        %v1726 = vmul.f32 1.0, %v1725
        %v1727 = vrcp.pop %v1297
        %v1728 = vmul.f32 %v1297, %v1727
        %v1729 = vsub.f32 1.0, %v1728
        %v1730 = vmul.f32 %v1727, %v1729
        %v1731 = vadd.f32 %v1727, %v1730
        %vm1732 = vweird.f32 %v1297
        %vm1733 = vweird.f32 %v1727
        %vm1734 = vmor %vm1732, %vm1733
        %v1735 = vsel %vm1734, %v1727, %v1731
        %v1736 = vand.u32 2147483647, %v1297
        %vm1737 = vcmp.eq.f32.partialorder %v1736, 8.507059e+37
        %v1738 = vand.u32 %v1297, 2147483648
        %v1739 = vor.u32 1.1754944e-38, %v1738
        %v1740 = vsel %vm1737, %v1739, %v1735
        %v1741 = vmul.f32 1.0, %v1740
        %v1742 = vrcp.pop %v1298
        %v1743 = vmul.f32 %v1298, %v1742
        %v1744 = vsub.f32 1.0, %v1743
        %v1745 = vmul.f32 %v1742, %v1744
        %v1746 = vadd.f32 %v1742, %v1745
        %vm1747 = vweird.f32 %v1298
        %vm1748 = vweird.f32 %v1742
        %vm1749 = vmor %vm1747, %vm1748
        %v1750 = vsel %vm1749, %v1742, %v1746
        %v1751 = vand.u32 2147483647, %v1298
        %vm1752 = vcmp.eq.f32.partialorder %v1751, 8.507059e+37
        %v1753 = vand.u32 %v1298, 2147483648
        %v1754 = vor.u32 1.1754944e-38, %v1753
        %v1755 = vsel %vm1752, %v1754, %v1750
        %v1756 = vmul.f32 1.0, %v1755
        %v1757 = vrcp.pop %v1299
        %v1758 = vmul.f32 %v1299, %v1757
        %v1759 = vsub.f32 1.0, %v1758
        %v1760 = vmul.f32 %v1757, %v1759
        %v1761 = vadd.f32 %v1757, %v1760
        %vm1762 = vweird.f32 %v1299
        %vm1763 = vweird.f32 %v1757
        %vm1764 = vmor %vm1762, %vm1763
        %v1765 = vsel %vm1764, %v1757, %v1761
        %v1766 = vand.u32 2147483647, %v1299
        %vm1767 = vcmp.eq.f32.partialorder %v1766, 8.507059e+37
        %v1768 = vand.u32 %v1299, 2147483648
        %v1769 = vor.u32 1.1754944e-38, %v1768
        %v1770 = vsel %vm1767, %v1769, %v1765
        %v1771 = vmul.f32 1.0, %v1770
        %v1772 = vrcp.pop %v1300
        %v1773 = vmul.f32 %v1300, %v1772
        %v1774 = vsub.f32 1.0, %v1773
        %v1775 = vmul.f32 %v1772, %v1774
        %v1776 = vadd.f32 %v1772, %v1775
        %vm1777 = vweird.f32 %v1300
        %vm1778 = vweird.f32 %v1772
        %vm1779 = vmor %vm1777, %vm1778
        %v1780 = vsel %vm1779, %v1772, %v1776
        %v1781 = vand.u32 2147483647, %v1300
        %vm1782 = vcmp.eq.f32.partialorder %v1781, 8.507059e+37
        %v1783 = vand.u32 %v1300, 2147483648
        %v1784 = vor.u32 1.1754944e-38, %v1783
        %v1785 = vsel %vm1782, %v1784, %v1780
        %v1786 = vmul.f32 1.0, %v1785
        %v1787 = vrcp.pop %v1301
        %v1788 = vmul.f32 %v1301, %v1787
        %v1789 = vsub.f32 1.0, %v1788
        %v1790 = vmul.f32 %v1787, %v1789
        %v1791 = vadd.f32 %v1787, %v1790
        %vm1792 = vweird.f32 %v1301
        %vm1793 = vweird.f32 %v1787
        %vm1794 = vmor %vm1792, %vm1793
        %v1795 = vsel %vm1794, %v1787, %v1791
        %v1796 = vand.u32 2147483647, %v1301
        %vm1797 = vcmp.eq.f32.partialorder %v1796, 8.507059e+37
        %v1798 = vand.u32 %v1301, 2147483648
        %v1799 = vor.u32 1.1754944e-38, %v1798
        %v1800 = vsel %vm1797, %v1799, %v1795
        %v1801 = vmul.f32 1.0, %v1800
        %v1802 = vrcp.pop %v1302
        %v1803 = vmul.f32 %v1302, %v1802
        %v1804 = vsub.f32 1.0, %v1803
        %v1805 = vmul.f32 %v1802, %v1804
        %v1806 = vadd.f32 %v1802, %v1805
        %vm1807 = vweird.f32 %v1302
        %vm1808 = vweird.f32 %v1802
        %vm1809 = vmor %vm1807, %vm1808
        %v1810 = vsel %vm1809, %v1802, %v1806
        %v1811 = vand.u32 2147483647, %v1302
        %vm1812 = vcmp.eq.f32.partialorder %v1811, 8.507059e+37
        %v1813 = vand.u32 %v1302, 2147483648
        %v1814 = vor.u32 1.1754944e-38, %v1813
        %v1815 = vsel %vm1812, %v1814, %v1810
        %v1816 = vmul.f32 1.0, %v1815
        %v1817 = vrcp.pop %v1303
        %v1818 = vmul.f32 %v1303, %v1817
        %v1819 = vsub.f32 1.0, %v1818
        %v1820 = vmul.f32 %v1817, %v1819
        %v1821 = vadd.f32 %v1817, %v1820
        %vm1822 = vweird.f32 %v1303
        %vm1823 = vweird.f32 %v1817
        %vm1824 = vmor %vm1822, %vm1823
        %v1825 = vsel %vm1824, %v1817, %v1821
        %v1826 = vand.u32 2147483647, %v1303
        %vm1827 = vcmp.eq.f32.partialorder %v1826, 8.507059e+37
        %v1828 = vand.u32 %v1303, 2147483648
        %v1829 = vor.u32 1.1754944e-38, %v1828
        %v1830 = vsel %vm1827, %v1829, %v1825
        %v1831 = vmul.f32 1.0, %v1830
        %v1832 = vrcp.pop %v1304
        %v1833 = vmul.f32 %v1304, %v1832
        %v1834 = vsub.f32 1.0, %v1833
        %v1835 = vmul.f32 %v1832, %v1834
        %v1836 = vadd.f32 %v1832, %v1835
        %vm1837 = vweird.f32 %v1304
        %vm1838 = vweird.f32 %v1832
        %vm1839 = vmor %vm1837, %vm1838
        %v1840 = vsel %vm1839, %v1832, %v1836
        %v1841 = vand.u32 2147483647, %v1304
        %vm1842 = vcmp.eq.f32.partialorder %v1841, 8.507059e+37
        %v1843 = vand.u32 %v1304, 2147483648
        %v1844 = vor.u32 1.1754944e-38, %v1843
        %v1845 = vsel %vm1842, %v1844, %v1840
        %v1846 = vmul.f32 1.0, %v1845
        %v1847 = vrcp.pop %v1305
        %v1848 = vmul.f32 %v1305, %v1847
        %v1849 = vsub.f32 1.0, %v1848
        %v1850 = vmul.f32 %v1847, %v1849
        %v1851 = vadd.f32 %v1847, %v1850
        %vm1852 = vweird.f32 %v1305
        %vm1853 = vweird.f32 %v1847
        %vm1854 = vmor %vm1852, %vm1853
        %v1855 = vsel %vm1854, %v1847, %v1851
        %v1856 = vand.u32 2147483647, %v1305
        %vm1857 = vcmp.eq.f32.partialorder %v1856, 8.507059e+37
        %v1858 = vand.u32 %v1305, 2147483648
        %v1859 = vor.u32 1.1754944e-38, %v1858
        %v1860 = vsel %vm1857, %v1859, %v1855
        %v1861 = vmul.f32 1.0, %v1860
        %v1862 = vrcp.pop %v1306
        %v1863 = vmul.f32 %v1306, %v1862
        %v1864 = vsub.f32 1.0, %v1863
        %v1865 = vmul.f32 %v1862, %v1864
        %v1866 = vadd.f32 %v1862, %v1865
        %vm1867 = vweird.f32 %v1306
        %vm1868 = vweird.f32 %v1862
        %vm1869 = vmor %vm1867, %vm1868
        %v1870 = vsel %vm1869, %v1862, %v1866
        %v1871 = vand.u32 2147483647, %v1306
        %vm1872 = vcmp.eq.f32.partialorder %v1871, 8.507059e+37
        %v1873 = vand.u32 %v1306, 2147483648
        %v1874 = vor.u32 1.1754944e-38, %v1873
        %v1875 = vsel %vm1872, %v1874, %v1870
        %v1876 = vmul.f32 1.0, %v1875
        %v1877 = vrcp.pop %v1307
        %v1878 = vmul.f32 %v1307, %v1877
        %v1879 = vsub.f32 1.0, %v1878
        %v1880 = vmul.f32 %v1877, %v1879
        %v1881 = vadd.f32 %v1877, %v1880
        %vm1882 = vweird.f32 %v1307
        %vm1883 = vweird.f32 %v1877
        %vm1884 = vmor %vm1882, %vm1883
        %v1885 = vsel %vm1884, %v1877, %v1881
        %v1886 = vand.u32 2147483647, %v1307
        %vm1887 = vcmp.eq.f32.partialorder %v1886, 8.507059e+37
        %v1888 = vand.u32 %v1307, 2147483648
        %v1889 = vor.u32 1.1754944e-38, %v1888
        %v1890 = vsel %vm1887, %v1889, %v1885
        %v1891 = vmul.f32 1.0, %v1890
        %v1892 = vrcp.pop %v1308
        %v1893 = vmul.f32 %v1308, %v1892
        %v1894 = vsub.f32 1.0, %v1893
        %v1895 = vmul.f32 %v1892, %v1894
        %v1896 = vadd.f32 %v1892, %v1895
        %vm1897 = vweird.f32 %v1308
        %vm1898 = vweird.f32 %v1892
        %vm1899 = vmor %vm1897, %vm1898
        %v1900 = vsel %vm1899, %v1892, %v1896
        %v1901 = vand.u32 2147483647, %v1308
        %vm1902 = vcmp.eq.f32.partialorder %v1901, 8.507059e+37
        %v1903 = vand.u32 %v1308, 2147483648
        %v1904 = vor.u32 1.1754944e-38, %v1903
        %v1905 = vsel %vm1902, %v1904, %v1900
        %v1906 = vmul.f32 1.0, %v1905
        %v1907 = vrcp.pop %v1309
        %v1908 = vmul.f32 %v1309, %v1907
        %v1909 = vsub.f32 1.0, %v1908
        %v1910 = vmul.f32 %v1907, %v1909
        %v1911 = vadd.f32 %v1907, %v1910
        %vm1912 = vweird.f32 %v1309
        %vm1913 = vweird.f32 %v1907
        %vm1914 = vmor %vm1912, %vm1913
        %v1915 = vsel %vm1914, %v1907, %v1911
        %v1916 = vand.u32 2147483647, %v1309
        %vm1917 = vcmp.eq.f32.partialorder %v1916, 8.507059e+37
        %v1918 = vand.u32 %v1309, 2147483648
        %v1919 = vor.u32 1.1754944e-38, %v1918
        %v1920 = vsel %vm1917, %v1919, %v1915
        %v1921 = vmul.f32 1.0, %v1920
        %v1922 = vrcp.pop %v1310
        %v1923 = vmul.f32 %v1310, %v1922
        %v1924 = vsub.f32 1.0, %v1923
        %v1925 = vmul.f32 %v1922, %v1924
        %v1926 = vadd.f32 %v1922, %v1925
        %vm1927 = vweird.f32 %v1310
        %vm1928 = vweird.f32 %v1922
        %vm1929 = vmor %vm1927, %vm1928
        %v1930 = vsel %vm1929, %v1922, %v1926
        %v1931 = vand.u32 2147483647, %v1310
        %vm1932 = vcmp.eq.f32.partialorder %v1931, 8.507059e+37
        %v1933 = vand.u32 %v1310, 2147483648
        %v1934 = vor.u32 1.1754944e-38, %v1933
        %v1935 = vsel %vm1932, %v1934, %v1930
        %v1936 = vmul.f32 1.0, %v1935
        %v1937 = vrcp.pop %v1311
        %v1938 = vmul.f32 %v1311, %v1937
        %v1939 = vsub.f32 1.0, %v1938
        %v1940 = vmul.f32 %v1937, %v1939
        %v1941 = vadd.f32 %v1937, %v1940
        %vm1942 = vweird.f32 %v1311
        %vm1943 = vweird.f32 %v1937
        %vm1944 = vmor %vm1942, %vm1943
        %v1945 = vsel %vm1944, %v1937, %v1941
        %v1946 = vand.u32 2147483647, %v1311
        %vm1947 = vcmp.eq.f32.partialorder %v1946, 8.507059e+37
        %v1948 = vand.u32 %v1311, 2147483648
        %v1949 = vor.u32 1.1754944e-38, %v1948
        %v1950 = vsel %vm1947, %v1949, %v1945
        %v1951 = vmul.f32 1.0, %v1950
        %v1952 = vrcp.pop %v1312
        %v1953 = vmul.f32 %v1312, %v1952
        %v1954 = vsub.f32 1.0, %v1953
        %v1955 = vmul.f32 %v1952, %v1954
        %v1956 = vadd.f32 %v1952, %v1955
        %vm1957 = vweird.f32 %v1312
        %vm1958 = vweird.f32 %v1952
        %vm1959 = vmor %vm1957, %vm1958
        %v1960 = vsel %vm1959, %v1952, %v1956
        %v1961 = vand.u32 2147483647, %v1312
        %vm1962 = vcmp.eq.f32.partialorder %v1961, 8.507059e+37
        %v1963 = vand.u32 %v1312, 2147483648
        %v1964 = vor.u32 1.1754944e-38, %v1963
        %v1965 = vsel %vm1962, %v1964, %v1960
        %v1966 = vmul.f32 1.0, %v1965
        %v1967 = vrcp.pop %v1313
        %v1968 = vmul.f32 %v1313, %v1967
        %v1969 = vsub.f32 1.0, %v1968
        %v1970 = vmul.f32 %v1967, %v1969
        %v1971 = vadd.f32 %v1967, %v1970
        %vm1972 = vweird.f32 %v1313
        %vm1973 = vweird.f32 %v1967
        %vm1974 = vmor %vm1972, %vm1973
        %v1975 = vsel %vm1974, %v1967, %v1971
        %v1976 = vand.u32 2147483647, %v1313
        %vm1977 = vcmp.eq.f32.partialorder %v1976, 8.507059e+37
        %v1978 = vand.u32 %v1313, 2147483648
        %v1979 = vor.u32 1.1754944e-38, %v1978
        %v1980 = vsel %vm1977, %v1979, %v1975
        %v1981 = vmul.f32 1.0, %v1980
        %v1982 = vrcp.pop %v1314
        %v1983 = vmul.f32 %v1314, %v1982
        %v1984 = vsub.f32 1.0, %v1983
        %v1985 = vmul.f32 %v1982, %v1984
        %v1986 = vadd.f32 %v1982, %v1985
        %vm1987 = vweird.f32 %v1314
        %vm1988 = vweird.f32 %v1982
        %vm1989 = vmor %vm1987, %vm1988
        %v1990 = vsel %vm1989, %v1982, %v1986
        %v1991 = vand.u32 2147483647, %v1314
        %vm1992 = vcmp.eq.f32.partialorder %v1991, 8.507059e+37
        %v1993 = vand.u32 %v1314, 2147483648
        %v1994 = vor.u32 1.1754944e-38, %v1993
        %v1995 = vsel %vm1992, %v1994, %v1990
        %v1996 = vmul.f32 1.0, %v1995
        %v1997 = vrcp.pop %v1315
        %v1998 = vmul.f32 %v1315, %v1997
        %v1999 = vsub.f32 1.0, %v1998
        %v2000 = vmul.f32 %v1997, %v1999
        %v2001 = vadd.f32 %v1997, %v2000
        %vm2002 = vweird.f32 %v1315
        %vm2003 = vweird.f32 %v1997
        %vm2004 = vmor %vm2002, %vm2003
        %v2005 = vsel %vm2004, %v1997, %v2001
        %v2006 = vand.u32 2147483647, %v1315
        %vm2007 = vcmp.eq.f32.partialorder %v2006, 8.507059e+37
        %v2008 = vand.u32 %v1315, 2147483648
        %v2009 = vor.u32 1.1754944e-38, %v2008
        %v2010 = vsel %vm2007, %v2009, %v2005
        %v2011 = vmul.f32 1.0, %v2010
        %v2012 = vrcp.pop %v1316
        %v2013 = vmul.f32 %v1316, %v2012
        %v2014 = vsub.f32 1.0, %v2013
        %v2015 = vmul.f32 %v2012, %v2014
        %v2016 = vadd.f32 %v2012, %v2015
        %vm2017 = vweird.f32 %v1316
        %vm2018 = vweird.f32 %v2012
        %vm2019 = vmor %vm2017, %vm2018
        %v2020 = vsel %vm2019, %v2012, %v2016
        %v2021 = vand.u32 2147483647, %v1316
        %vm2022 = vcmp.eq.f32.partialorder %v2021, 8.507059e+37
        %v2023 = vand.u32 %v1316, 2147483648
        %v2024 = vor.u32 1.1754944e-38, %v2023
        %v2025 = vsel %vm2022, %v2024, %v2020
        %v2026 = vmul.f32 1.0, %v2025
        %v2027 = vrcp.pop %v1317
        %v2028 = vmul.f32 %v1317, %v2027
        %v2029 = vsub.f32 1.0, %v2028
        %v2030 = vmul.f32 %v2027, %v2029
        %v2031 = vadd.f32 %v2027, %v2030
        %vm2032 = vweird.f32 %v1317
        %vm2033 = vweird.f32 %v2027
        %vm2034 = vmor %vm2032, %vm2033
        %v2035 = vsel %vm2034, %v2027, %v2031
        %v2036 = vand.u32 2147483647, %v1317
        %vm2037 = vcmp.eq.f32.partialorder %v2036, 8.507059e+37
        %v2038 = vand.u32 %v1317, 2147483648
        %v2039 = vor.u32 1.1754944e-38, %v2038
        %v2040 = vsel %vm2037, %v2039, %v2035
        %v2041 = vmul.f32 1.0, %v2040
        %v2042 = vrcp.pop %v1318
        %v2043 = vmul.f32 %v1318, %v2042
        %v2044 = vsub.f32 1.0, %v2043
        %v2045 = vmul.f32 %v2042, %v2044
        %v2046 = vadd.f32 %v2042, %v2045
        %vm2047 = vweird.f32 %v1318
        %vm2048 = vweird.f32 %v2042
        %vm2049 = vmor %vm2047, %vm2048
        %v2050 = vsel %vm2049, %v2042, %v2046
        %v2051 = vand.u32 2147483647, %v1318
        %vm2052 = vcmp.eq.f32.partialorder %v2051, 8.507059e+37
        %v2053 = vand.u32 %v1318, 2147483648
        %v2054 = vor.u32 1.1754944e-38, %v2053
        %v2055 = vsel %vm2052, %v2054, %v2050
        %v2056 = vmul.f32 1.0, %v2055
        %v2057 = vrcp.pop %v1319
        %v2058 = vmul.f32 %v1319, %v2057
        %v2059 = vsub.f32 1.0, %v2058
        %v2060 = vmul.f32 %v2057, %v2059
        %v2061 = vadd.f32 %v2057, %v2060
        %vm2062 = vweird.f32 %v1319
        %vm2063 = vweird.f32 %v2057
        %vm2064 = vmor %vm2062, %vm2063
        %v2065 = vsel %vm2064, %v2057, %v2061
        %v2066 = vand.u32 2147483647, %v1319
        %vm2067 = vcmp.eq.f32.partialorder %v2066, 8.507059e+37
        %v2068 = vand.u32 %v1319, 2147483648
        %v2069 = vor.u32 1.1754944e-38, %v2068
        %v2070 = vsel %vm2067, %v2069, %v2065
        %v2071 = vmul.f32 1.0, %v2070
        %v2072 = vrcp.pop %v1320
        %v2073 = vmul.f32 %v1320, %v2072
        %v2074 = vsub.f32 1.0, %v2073
        %v2075 = vmul.f32 %v2072, %v2074
        %v2076 = vadd.f32 %v2072, %v2075
        %vm2077 = vweird.f32 %v1320
        %vm2078 = vweird.f32 %v2072
        %vm2079 = vmor %vm2077, %vm2078
        %v2080 = vsel %vm2079, %v2072, %v2076
        %v2081 = vand.u32 2147483647, %v1320
        %vm2082 = vcmp.eq.f32.partialorder %v2081, 8.507059e+37
        %v2083 = vand.u32 %v1320, 2147483648
        %v2084 = vor.u32 1.1754944e-38, %v2083
        %v2085 = vsel %vm2082, %v2084, %v2080
        %v2086 = vmul.f32 1.0, %v2085
        %v2087 = vrcp.pop %v1321
        %v2088 = vmul.f32 %v1321, %v2087
        %v2089 = vsub.f32 1.0, %v2088
        %v2090 = vmul.f32 %v2087, %v2089
        %v2091 = vadd.f32 %v2087, %v2090
        %vm2092 = vweird.f32 %v1321
        %vm2093 = vweird.f32 %v2087
        %vm2094 = vmor %vm2092, %vm2093
        %v2095 = vsel %vm2094, %v2087, %v2091
        %v2096 = vand.u32 2147483647, %v1321
        %vm2097 = vcmp.eq.f32.partialorder %v2096, 8.507059e+37
        %v2098 = vand.u32 %v1321, 2147483648
        %v2099 = vor.u32 1.1754944e-38, %v2098
        %v2100 = vsel %vm2097, %v2099, %v2095
        %v2101 = vmul.f32 1.0, %v2100
        %v2102 = vrcp.pop %v1322
        %v2103 = vmul.f32 %v1322, %v2102
        %v2104 = vsub.f32 1.0, %v2103
        %v2105 = vmul.f32 %v2102, %v2104
        %v2106 = vadd.f32 %v2102, %v2105
        %vm2107 = vweird.f32 %v1322
        %vm2108 = vweird.f32 %v2102
        %vm2109 = vmor %vm2107, %vm2108
        %v2110 = vsel %vm2109, %v2102, %v2106
        %v2111 = vand.u32 2147483647, %v1322
        %vm2112 = vcmp.eq.f32.partialorder %v2111, 8.507059e+37
        %v2113 = vand.u32 %v1322, 2147483648
        %v2114 = vor.u32 1.1754944e-38, %v2113
        %v2115 = vsel %vm2112, %v2114, %v2110
        %v2116 = vmul.f32 1.0, %v2115
        %v2117 = vrcp.pop %v1323
        %v2118 = vmul.f32 %v1323, %v2117
        %v2119 = vsub.f32 1.0, %v2118
        %v2120 = vmul.f32 %v2117, %v2119
        %v2121 = vadd.f32 %v2117, %v2120
        %vm2122 = vweird.f32 %v1323
        %vm2123 = vweird.f32 %v2117
        %vm2124 = vmor %vm2122, %vm2123
        %v2125 = vsel %vm2124, %v2117, %v2121
        %v2126 = vand.u32 2147483647, %v1323
        %vm2127 = vcmp.eq.f32.partialorder %v2126, 8.507059e+37
        %v2128 = vand.u32 %v1323, 2147483648
        %v2129 = vor.u32 1.1754944e-38, %v2128
        %v2130 = vsel %vm2127, %v2129, %v2125
        %v2131 = vmul.f32 1.0, %v2130
        %v2132 = vrcp.pop %v1324
        %v2133 = vmul.f32 %v1324, %v2132
        %v2134 = vsub.f32 1.0, %v2133
        %v2135 = vmul.f32 %v2132, %v2134
        %v2136 = vadd.f32 %v2132, %v2135
        %vm2137 = vweird.f32 %v1324
        %vm2138 = vweird.f32 %v2132
        %vm2139 = vmor %vm2137, %vm2138
        %v2140 = vsel %vm2139, %v2132, %v2136
        %v2141 = vand.u32 2147483647, %v1324
        %vm2142 = vcmp.eq.f32.partialorder %v2141, 8.507059e+37
        %v2143 = vand.u32 %v1324, 2147483648
        %v2144 = vor.u32 1.1754944e-38, %v2143
        %v2145 = vsel %vm2142, %v2144, %v2140
        %v2146 = vmul.f32 1.0, %v2145
        %v2147 = vrcp.pop %v1325
        %v2148 = vmul.f32 %v1325, %v2147
        %v2149 = vsub.f32 1.0, %v2148
        %v2150 = vmul.f32 %v2147, %v2149
        %v2151 = vadd.f32 %v2147, %v2150
        %vm2152 = vweird.f32 %v1325
        %vm2153 = vweird.f32 %v2147
        %vm2154 = vmor %vm2152, %vm2153
        %v2155 = vsel %vm2154, %v2147, %v2151
        %v2156 = vand.u32 2147483647, %v1325
        %vm2157 = vcmp.eq.f32.partialorder %v2156, 8.507059e+37
        %v2158 = vand.u32 %v1325, 2147483648
        %v2159 = vor.u32 1.1754944e-38, %v2158
        %v2160 = vsel %vm2157, %v2159, %v2155
        %v2161 = vmul.f32 1.0, %v2160
        %v2162 = vrcp.pop %v1326
        %v2163 = vmul.f32 %v1326, %v2162
        %v2164 = vsub.f32 1.0, %v2163
        %v2165 = vmul.f32 %v2162, %v2164
        %v2166 = vadd.f32 %v2162, %v2165
        %vm2167 = vweird.f32 %v1326
        %vm2168 = vweird.f32 %v2162
        %vm2169 = vmor %vm2167, %vm2168
        %v2170 = vsel %vm2169, %v2162, %v2166
        %v2171 = vand.u32 2147483647, %v1326
        %vm2172 = vcmp.eq.f32.partialorder %v2171, 8.507059e+37
        %v2173 = vand.u32 %v1326, 2147483648
        %v2174 = vor.u32 1.1754944e-38, %v2173
        %v2175 = vsel %vm2172, %v2174, %v2170
        %v2176 = vmul.f32 1.0, %v2175
        %v2177 = vrcp.pop %v1327
        %v2178 = vmul.f32 %v1327, %v2177
        %v2179 = vsub.f32 1.0, %v2178
        %v2180 = vmul.f32 %v2177, %v2179
        %v2181 = vadd.f32 %v2177, %v2180
        %vm2182 = vweird.f32 %v1327
        %vm2183 = vweird.f32 %v2177
        %vm2184 = vmor %vm2182, %vm2183
        %v2185 = vsel %vm2184, %v2177, %v2181
        %v2186 = vand.u32 2147483647, %v1327
        %vm2187 = vcmp.eq.f32.partialorder %v2186, 8.507059e+37
        %v2188 = vand.u32 %v1327, 2147483648
        %v2189 = vor.u32 1.1754944e-38, %v2188
        %v2190 = vsel %vm2187, %v2189, %v2185
        %v2191 = vmul.f32 1.0, %v2190
        %v2192 = vrcp.pop %v1328
        %v2193 = vmul.f32 %v1328, %v2192
        %v2194 = vsub.f32 1.0, %v2193
        %v2195 = vmul.f32 %v2192, %v2194
        %v2196 = vadd.f32 %v2192, %v2195
        %vm2197 = vweird.f32 %v1328
        %vm2198 = vweird.f32 %v2192
        %vm2199 = vmor %vm2197, %vm2198
        %v2200 = vsel %vm2199, %v2192, %v2196
        %v2201 = vand.u32 2147483647, %v1328
        %vm2202 = vcmp.eq.f32.partialorder %v2201, 8.507059e+37
        %v2203 = vand.u32 %v1328, 2147483648
        %v2204 = vor.u32 1.1754944e-38, %v2203
        %v2205 = vsel %vm2202, %v2204, %v2200
        %v2206 = vmul.f32 1.0, %v2205
        %v2207 = vrcp.pop %v1329
        %v2208 = vmul.f32 %v1329, %v2207
        %v2209 = vsub.f32 1.0, %v2208
        %v2210 = vmul.f32 %v2207, %v2209
        %v2211 = vadd.f32 %v2207, %v2210
        %vm2212 = vweird.f32 %v1329
        %vm2213 = vweird.f32 %v2207
        %vm2214 = vmor %vm2212, %vm2213
        %v2215 = vsel %vm2214, %v2207, %v2211
        %v2216 = vand.u32 2147483647, %v1329
        %vm2217 = vcmp.eq.f32.partialorder %v2216, 8.507059e+37
        %v2218 = vand.u32 %v1329, 2147483648
        %v2219 = vor.u32 1.1754944e-38, %v2218
        %v2220 = vsel %vm2217, %v2219, %v2215
        %v2221 = vmul.f32 1.0, %v2220
        %v2222 = vrcp.pop %v1330
        %v2223 = vmul.f32 %v1330, %v2222
        %v2224 = vsub.f32 1.0, %v2223
        %v2225 = vmul.f32 %v2222, %v2224
        %v2226 = vadd.f32 %v2222, %v2225
        %vm2227 = vweird.f32 %v1330
        %vm2228 = vweird.f32 %v2222
        %vm2229 = vmor %vm2227, %vm2228
        %v2230 = vsel %vm2229, %v2222, %v2226
        %v2231 = vand.u32 2147483647, %v1330
        %vm2232 = vcmp.eq.f32.partialorder %v2231, 8.507059e+37
        %v2233 = vand.u32 %v1330, 2147483648
        %v2234 = vor.u32 1.1754944e-38, %v2233
        %v2235 = vsel %vm2232, %v2234, %v2230
        %v2236 = vmul.f32 1.0, %v2235
        %v2237 = vrcp.pop %v1331
        %v2238 = vmul.f32 %v1331, %v2237
        %v2239 = vsub.f32 1.0, %v2238
        %v2240 = vmul.f32 %v2237, %v2239
        %v2241 = vadd.f32 %v2237, %v2240
        %vm2242 = vweird.f32 %v1331
        %vm2243 = vweird.f32 %v2237
        %vm2244 = vmor %vm2242, %vm2243
        %v2245 = vsel %vm2244, %v2237, %v2241
        %v2246 = vand.u32 2147483647, %v1331
        %vm2247 = vcmp.eq.f32.partialorder %v2246, 8.507059e+37
        %v2248 = vand.u32 %v1331, 2147483648
        %v2249 = vor.u32 1.1754944e-38, %v2248
        %v2250 = vsel %vm2247, %v2249, %v2245
        %v2251 = vmul.f32 1.0, %v2250
        %v2252 = vrcp.pop %v1332
        %v2253 = vmul.f32 %v1332, %v2252
        %v2254 = vsub.f32 1.0, %v2253
        %v2255 = vmul.f32 %v2252, %v2254
        %v2256 = vadd.f32 %v2252, %v2255
        %vm2257 = vweird.f32 %v1332
        %vm2258 = vweird.f32 %v2252
        %vm2259 = vmor %vm2257, %vm2258
        %v2260 = vsel %vm2259, %v2252, %v2256
        %v2261 = vand.u32 2147483647, %v1332
        %vm2262 = vcmp.eq.f32.partialorder %v2261, 8.507059e+37
        %v2263 = vand.u32 %v1332, 2147483648
        %v2264 = vor.u32 1.1754944e-38, %v2263
        %v2265 = vsel %vm2262, %v2264, %v2260
        %v2266 = vmul.f32 1.0, %v2265
        %v2267 = vrcp.pop %v1333
        %v2268 = vmul.f32 %v1333, %v2267
        %v2269 = vsub.f32 1.0, %v2268
        %v2270 = vmul.f32 %v2267, %v2269
        %v2271 = vadd.f32 %v2267, %v2270
        %vm2272 = vweird.f32 %v1333
        %vm2273 = vweird.f32 %v2267
        %vm2274 = vmor %vm2272, %vm2273
        %v2275 = vsel %vm2274, %v2267, %v2271
        %v2276 = vand.u32 2147483647, %v1333
        %vm2277 = vcmp.eq.f32.partialorder %v2276, 8.507059e+37
        %v2278 = vand.u32 %v1333, 2147483648
        %v2279 = vor.u32 1.1754944e-38, %v2278
        %v2280 = vsel %vm2277, %v2279, %v2275
        %v2281 = vmul.f32 1.0, %v2280
        %v2282 = vrcp.pop %v1334
        %v2283 = vmul.f32 %v1334, %v2282
        %v2284 = vsub.f32 1.0, %v2283
        %v2285 = vmul.f32 %v2282, %v2284
        %v2286 = vadd.f32 %v2282, %v2285
        %vm2287 = vweird.f32 %v1334
        %vm2288 = vweird.f32 %v2282
        %vm2289 = vmor %vm2287, %vm2288
        %v2290 = vsel %vm2289, %v2282, %v2286
        %v2291 = vand.u32 2147483647, %v1334
        %vm2292 = vcmp.eq.f32.partialorder %v2291, 8.507059e+37
        %v2293 = vand.u32 %v1334, 2147483648
        %v2294 = vor.u32 1.1754944e-38, %v2293
        %v2295 = vsel %vm2292, %v2294, %v2290
        %v2296 = vmul.f32 1.0, %v2295
        %v2297 = vrcp.pop %v1335
        %v2298 = vmul.f32 %v1335, %v2297
        %v2299 = vsub.f32 1.0, %v2298
        %v2300 = vmul.f32 %v2297, %v2299
        %v2301 = vadd.f32 %v2297, %v2300
        %vm2302 = vweird.f32 %v1335
        %vm2303 = vweird.f32 %v2297
        %vm2304 = vmor %vm2302, %vm2303
        %v2305 = vsel %vm2304, %v2297, %v2301
        %v2306 = vand.u32 2147483647, %v1335
        %vm2307 = vcmp.eq.f32.partialorder %v2306, 8.507059e+37
        %v2308 = vand.u32 %v1335, 2147483648
        %v2309 = vor.u32 1.1754944e-38, %v2308
        %v2310 = vsel %vm2307, %v2309, %v2305
        %v2311 = vmul.f32 1.0, %v2310
        %v2312 = vrcp.pop %v1336
        %v2313 = vmul.f32 %v1336, %v2312
        %v2314 = vsub.f32 1.0, %v2313
        %v2315 = vmul.f32 %v2312, %v2314
        %v2316 = vadd.f32 %v2312, %v2315
        %vm2317 = vweird.f32 %v1336
        %vm2318 = vweird.f32 %v2312
        %vm2319 = vmor %vm2317, %vm2318
        %v2320 = vsel %vm2319, %v2312, %v2316
        %v2321 = vand.u32 2147483647, %v1336
        %vm2322 = vcmp.eq.f32.partialorder %v2321, 8.507059e+37
        %v2323 = vand.u32 %v1336, 2147483648
        %v2324 = vor.u32 1.1754944e-38, %v2323
        %v2325 = vsel %vm2322, %v2324, %v2320
        %v2326 = vmul.f32 1.0, %v2325
        %v2327 = vrcp.pop %v1337
        %v2328 = vmul.f32 %v1337, %v2327
        %v2329 = vsub.f32 1.0, %v2328
        %v2330 = vmul.f32 %v2327, %v2329
        %v2331 = vadd.f32 %v2327, %v2330
        %vm2332 = vweird.f32 %v1337
        %vm2333 = vweird.f32 %v2327
        %vm2334 = vmor %vm2332, %vm2333
        %v2335 = vsel %vm2334, %v2327, %v2331
        %v2336 = vand.u32 2147483647, %v1337
        %vm2337 = vcmp.eq.f32.partialorder %v2336, 8.507059e+37
        %v2338 = vand.u32 %v1337, 2147483648
        %v2339 = vor.u32 1.1754944e-38, %v2338
        %v2340 = vsel %vm2337, %v2339, %v2335
        %v2341 = vmul.f32 1.0, %v2340
        %v2342 = vrcp.pop %v1338
        %v2343 = vmul.f32 %v1338, %v2342
        %v2344 = vsub.f32 1.0, %v2343
        %v2345 = vmul.f32 %v2342, %v2344
        %v2346 = vadd.f32 %v2342, %v2345
        %vm2347 = vweird.f32 %v1338
        %vm2348 = vweird.f32 %v2342
        %vm2349 = vmor %vm2347, %vm2348
        %v2350 = vsel %vm2349, %v2342, %v2346
        %v2351 = vand.u32 2147483647, %v1338
        %vm2352 = vcmp.eq.f32.partialorder %v2351, 8.507059e+37
        %v2353 = vand.u32 %v1338, 2147483648
        %v2354 = vor.u32 1.1754944e-38, %v2353
        %v2355 = vsel %vm2352, %v2354, %v2350
        %v2356 = vmul.f32 1.0, %v2355
        %v2357 = vrcp.pop %v1339
        %v2358 = vmul.f32 %v1339, %v2357
        %v2359 = vsub.f32 1.0, %v2358
        %v2360 = vmul.f32 %v2357, %v2359
        %v2361 = vadd.f32 %v2357, %v2360
        %vm2362 = vweird.f32 %v1339
        %vm2363 = vweird.f32 %v2357
        %vm2364 = vmor %vm2362, %vm2363
        %v2365 = vsel %vm2364, %v2357, %v2361
        %v2366 = vand.u32 2147483647, %v1339
        %vm2367 = vcmp.eq.f32.partialorder %v2366, 8.507059e+37
        %v2368 = vand.u32 %v1339, 2147483648
        %v2369 = vor.u32 1.1754944e-38, %v2368
        %v2370 = vsel %vm2367, %v2369, %v2365
        %v2371 = vmul.f32 1.0, %v2370
        %v2372 = vrcp.pop %v1340
        %v2373 = vmul.f32 %v1340, %v2372
        %v2374 = vsub.f32 1.0, %v2373
        %v2375 = vmul.f32 %v2372, %v2374
        %v2376 = vadd.f32 %v2372, %v2375
        %vm2377 = vweird.f32 %v1340
        %vm2378 = vweird.f32 %v2372
        %vm2379 = vmor %vm2377, %vm2378
        %v2380 = vsel %vm2379, %v2372, %v2376
        %v2381 = vand.u32 2147483647, %v1340
        %vm2382 = vcmp.eq.f32.partialorder %v2381, 8.507059e+37
        %v2383 = vand.u32 %v1340, 2147483648
        %v2384 = vor.u32 1.1754944e-38, %v2383
        %v2385 = vsel %vm2382, %v2384, %v2380
        %v2386 = vmul.f32 1.0, %v2385
        %v2387 = vrcp.pop %v1341
        %v2388 = vmul.f32 %v1341, %v2387
        %v2389 = vsub.f32 1.0, %v2388
        %v2390 = vmul.f32 %v2387, %v2389
        %v2391 = vadd.f32 %v2387, %v2390
        %vm2392 = vweird.f32 %v1341
        %vm2393 = vweird.f32 %v2387
        %vm2394 = vmor %vm2392, %vm2393
        %v2395 = vsel %vm2394, %v2387, %v2391
        %v2396 = vand.u32 2147483647, %v1341
        %vm2397 = vcmp.eq.f32.partialorder %v2396, 8.507059e+37
        %v2398 = vand.u32 %v1341, 2147483648
        %v2399 = vor.u32 1.1754944e-38, %v2398
        %v2400 = vsel %vm2397, %v2399, %v2395
        %v2401 = vmul.f32 1.0, %v2400
        %v2402 = vrcp.pop %v1342
        %v2403 = vmul.f32 %v1342, %v2402
        %v2404 = vsub.f32 1.0, %v2403
        %v2405 = vmul.f32 %v2402, %v2404
        %v2406 = vadd.f32 %v2402, %v2405
        %vm2407 = vweird.f32 %v1342
        %vm2408 = vweird.f32 %v2402
        %vm2409 = vmor %vm2407, %vm2408
        %v2410 = vsel %vm2409, %v2402, %v2406
        %v2411 = vand.u32 2147483647, %v1342
        %vm2412 = vcmp.eq.f32.partialorder %v2411, 8.507059e+37
        %v2413 = vand.u32 %v1342, 2147483648
        %v2414 = vor.u32 1.1754944e-38, %v2413
        %v2415 = vsel %vm2412, %v2414, %v2410
        %v2416 = vmul.f32 1.0, %v2415
        %v2417 = vrcp.pop %v1343
        %v2418 = vmul.f32 %v1343, %v2417
        %v2419 = vsub.f32 1.0, %v2418
        %v2420 = vmul.f32 %v2417, %v2419
        %v2421 = vadd.f32 %v2417, %v2420
        %vm2422 = vweird.f32 %v1343
        %vm2423 = vweird.f32 %v2417
        %vm2424 = vmor %vm2422, %vm2423
        %v2425 = vsel %vm2424, %v2417, %v2421
        %v2426 = vand.u32 2147483647, %v1343
        %vm2427 = vcmp.eq.f32.partialorder %v2426, 8.507059e+37
        %v2428 = vand.u32 %v1343, 2147483648
        %v2429 = vor.u32 1.1754944e-38, %v2428
        %v2430 = vsel %vm2427, %v2429, %v2425
        %v2431 = vmul.f32 1.0, %v2430
        %v2432 = vrcp.pop %v1344
        %v2433 = vmul.f32 %v1344, %v2432
        %v2434 = vsub.f32 1.0, %v2433
        %v2435 = vmul.f32 %v2432, %v2434
        %v2436 = vadd.f32 %v2432, %v2435
        %vm2437 = vweird.f32 %v1344
        %vm2438 = vweird.f32 %v2432
        %vm2439 = vmor %vm2437, %vm2438
        %v2440 = vsel %vm2439, %v2432, %v2436
        %v2441 = vand.u32 2147483647, %v1344
        %vm2442 = vcmp.eq.f32.partialorder %v2441, 8.507059e+37
        %v2443 = vand.u32 %v1344, 2147483648
        %v2444 = vor.u32 1.1754944e-38, %v2443
        %v2445 = vsel %vm2442, %v2444, %v2440
        %v2446 = vmul.f32 1.0, %v2445
        %v2447 = vrcp.pop %v1345
        %v2448 = vmul.f32 %v1345, %v2447
        %v2449 = vsub.f32 1.0, %v2448
        %v2450 = vmul.f32 %v2447, %v2449
        %v2451 = vadd.f32 %v2447, %v2450
        %vm2452 = vweird.f32 %v1345
        %vm2453 = vweird.f32 %v2447
        %vm2454 = vmor %vm2452, %vm2453
        %v2455 = vsel %vm2454, %v2447, %v2451
        %v2456 = vand.u32 2147483647, %v1345
        %vm2457 = vcmp.eq.f32.partialorder %v2456, 8.507059e+37
        %v2458 = vand.u32 %v1345, 2147483648
        %v2459 = vor.u32 1.1754944e-38, %v2458
        %v2460 = vsel %vm2457, %v2459, %v2455
        %v2461 = vmul.f32 1.0, %v2460
        %v2462 = vrcp.pop %v1346
        %v2463 = vmul.f32 %v1346, %v2462
        %v2464 = vsub.f32 1.0, %v2463
        %v2465 = vmul.f32 %v2462, %v2464
        %v2466 = vadd.f32 %v2462, %v2465
        %vm2467 = vweird.f32 %v1346
        %vm2468 = vweird.f32 %v2462
        %vm2469 = vmor %vm2467, %vm2468
        %v2470 = vsel %vm2469, %v2462, %v2466
        %v2471 = vand.u32 2147483647, %v1346
        %vm2472 = vcmp.eq.f32.partialorder %v2471, 8.507059e+37
        %v2473 = vand.u32 %v1346, 2147483648
        %v2474 = vor.u32 1.1754944e-38, %v2473
        %v2475 = vsel %vm2472, %v2474, %v2470
        %v2476 = vmul.f32 1.0, %v2475
        %v2477 = vrcp.pop %v1347
        %v2478 = vmul.f32 %v1347, %v2477
        %v2479 = vsub.f32 1.0, %v2478
        %v2480 = vmul.f32 %v2477, %v2479
        %v2481 = vadd.f32 %v2477, %v2480
        %vm2482 = vweird.f32 %v1347
        %vm2483 = vweird.f32 %v2477
        %vm2484 = vmor %vm2482, %vm2483
        %v2485 = vsel %vm2484, %v2477, %v2481
        %v2486 = vand.u32 2147483647, %v1347
        %vm2487 = vcmp.eq.f32.partialorder %v2486, 8.507059e+37
        %v2488 = vand.u32 %v1347, 2147483648
        %v2489 = vor.u32 1.1754944e-38, %v2488
        %v2490 = vsel %vm2487, %v2489, %v2485
        %v2491 = vmul.f32 1.0, %v2490
        %v2492 = vrcp.pop %v1348
        %v2493 = vmul.f32 %v1348, %v2492
        %v2494 = vsub.f32 1.0, %v2493
        %v2495 = vmul.f32 %v2492, %v2494
        %v2496 = vadd.f32 %v2492, %v2495
        %vm2497 = vweird.f32 %v1348
        %vm2498 = vweird.f32 %v2492
        %vm2499 = vmor %vm2497, %vm2498
        %v2500 = vsel %vm2499, %v2492, %v2496
        %v2501 = vand.u32 2147483647, %v1348
        %vm2502 = vcmp.eq.f32.partialorder %v2501, 8.507059e+37
        %v2503 = vand.u32 %v1348, 2147483648
        %v2504 = vor.u32 1.1754944e-38, %v2503
        %v2505 = vsel %vm2502, %v2504, %v2500
        %v2506 = vmul.f32 1.0, %v2505
        %v2507 = vrcp.pop %v1349
        %v2508 = vmul.f32 %v1349, %v2507
        %v2509 = vsub.f32 1.0, %v2508
        %v2510 = vmul.f32 %v2507, %v2509
        %v2511 = vadd.f32 %v2507, %v2510
        %vm2512 = vweird.f32 %v1349
        %vm2513 = vweird.f32 %v2507
        %vm2514 = vmor %vm2512, %vm2513
        %v2515 = vsel %vm2514, %v2507, %v2511
        %v2516 = vand.u32 2147483647, %v1349
        %vm2517 = vcmp.eq.f32.partialorder %v2516, 8.507059e+37
        %v2518 = vand.u32 %v1349, 2147483648
        %v2519 = vor.u32 1.1754944e-38, %v2518
        %v2520 = vsel %vm2517, %v2519, %v2515
        %v2521 = vmul.f32 1.0, %v2520
        %v2522 = vrcp.pop %v1350
        %v2523 = vmul.f32 %v1350, %v2522
        %v2524 = vsub.f32 1.0, %v2523
        %v2525 = vmul.f32 %v2522, %v2524
        %v2526 = vadd.f32 %v2522, %v2525
        %vm2527 = vweird.f32 %v1350
        %vm2528 = vweird.f32 %v2522
        %vm2529 = vmor %vm2527, %vm2528
        %v2530 = vsel %vm2529, %v2522, %v2526
        %v2531 = vand.u32 2147483647, %v1350
        %vm2532 = vcmp.eq.f32.partialorder %v2531, 8.507059e+37
        %v2533 = vand.u32 %v1350, 2147483648
        %v2534 = vor.u32 1.1754944e-38, %v2533
        %v2535 = vsel %vm2532, %v2534, %v2530
        %v2536 = vmul.f32 1.0, %v2535
        %v2537 = vrcp.pop %v1351
        %v2538 = vmul.f32 %v1351, %v2537
        %v2539 = vsub.f32 1.0, %v2538
        %v2540 = vmul.f32 %v2537, %v2539
        %v2541 = vadd.f32 %v2537, %v2540
        %vm2542 = vweird.f32 %v1351
        %vm2543 = vweird.f32 %v2537
        %vm2544 = vmor %vm2542, %vm2543
        %v2545 = vsel %vm2544, %v2537, %v2541
        %v2546 = vand.u32 2147483647, %v1351
        %vm2547 = vcmp.eq.f32.partialorder %v2546, 8.507059e+37
        %v2548 = vand.u32 %v1351, 2147483648
        %v2549 = vor.u32 1.1754944e-38, %v2548
        %v2550 = vsel %vm2547, %v2549, %v2545
        %v2551 = vmul.f32 1.0, %v2550
        %v2552 = vmul.f32 %v752, %v1366
        %v2553 = vmul.f32 %v781, %v1381
        %v2554 = vmul.f32 %v810, %v1396
        %v2555 = vmul.f32 %v839, %v1411
        %v2556 = vmul.f32 %v868, %v1426
        %v2557 = vmul.f32 %v897, %v1441
        %v2558 = vmul.f32 %v926, %v1456
        %v2559 = vmul.f32 %v955, %v1471
        %v2560 = vmul.f32 %v984, %v1486
        %v2561 = vmul.f32 %v1013, %v1501
        %v2562 = vmul.f32 %v754, %v1516
        %v2563 = vmul.f32 %v783, %v1531
        %v2564 = vmul.f32 %v812, %v1546
        %v2565 = vmul.f32 %v841, %v1561
        %v2566 = vmul.f32 %v870, %v1576
        %v2567 = vmul.f32 %v899, %v1591
        %v2568 = vmul.f32 %v928, %v1606
        %v2569 = vmul.f32 %v957, %v1621
        %v2570 = vmul.f32 %v986, %v1636
        %v2571 = vmul.f32 %v1015, %v1651
        %v2572 = vmul.f32 %v757, %v1666
        %v2573 = vmul.f32 %v786, %v1681
        %v2574 = vmul.f32 %v815, %v1696
        %v2575 = vmul.f32 %v844, %v1711
        %v2576 = vmul.f32 %v873, %v1726
        %v2577 = vmul.f32 %v902, %v1741
        %v2578 = vmul.f32 %v931, %v1756
        %v2579 = vmul.f32 %v960, %v1771
        %v2580 = vmul.f32 %v989, %v1786
        %v2581 = vmul.f32 %v1018, %v1801
        %v2582 = vmul.f32 %v759, %v1816
        %v2583 = vmul.f32 %v788, %v1831
        %v2584 = vmul.f32 %v817, %v1846
        %v2585 = vmul.f32 %v846, %v1861
        %v2586 = vmul.f32 %v875, %v1876
        %v2587 = vmul.f32 %v904, %v1891
        %v2588 = vmul.f32 %v933, %v1906
        %v2589 = vmul.f32 %v962, %v1921
        %v2590 = vmul.f32 %v991, %v1936
        %v2591 = vmul.f32 %v1020, %v1951
        %v2592 = vmul.f32 %v762, %v1966
        %v2593 = vmul.f32 %v791, %v1981
        %v2594 = vmul.f32 %v820, %v1996
        %v2595 = vmul.f32 %v849, %v2011
        %v2596 = vmul.f32 %v878, %v2026
        %v2597 = vmul.f32 %v907, %v2041
        %v2598 = vmul.f32 %v936, %v2056
        %v2599 = vmul.f32 %v965, %v2071
        %v2600 = vmul.f32 %v994, %v2086
        %v2601 = vmul.f32 %v1023, %v2101
        %v2602 = vmul.f32 %v764, %v2116
        %v2603 = vmul.f32 %v793, %v2131
        %v2604 = vmul.f32 %v822, %v2146
        %v2605 = vmul.f32 %v851, %v2161
        %v2606 = vmul.f32 %v880, %v2176
        %v2607 = vmul.f32 %v909, %v2191
        %v2608 = vmul.f32 %v938, %v2206
        %v2609 = vmul.f32 %v967, %v2221
        %v2610 = vmul.f32 %v996, %v2236
        %v2611 = vmul.f32 %v1025, %v2251
        %v2612 = vmul.f32 %v767, %v2266
        %v2613 = vmul.f32 %v796, %v2281
        %v2614 = vmul.f32 %v825, %v2296
        %v2615 = vmul.f32 %v854, %v2311
        %v2616 = vmul.f32 %v883, %v2326
        %v2617 = vmul.f32 %v912, %v2341
        %v2618 = vmul.f32 %v941, %v2356
        %v2619 = vmul.f32 %v970, %v2371
        %v2620 = vmul.f32 %v999, %v2386
        %v2621 = vmul.f32 %v1028, %v2401
        %v2622 = vmul.f32 %v769, %v2416
        %v2623 = vmul.f32 %v798, %v2431
        %v2624 = vmul.f32 %v827, %v2446
        %v2625 = vmul.f32 %v856, %v2461
        %v2626 = vmul.f32 %v885, %v2476
        %v2627 = vmul.f32 %v914, %v2491
        %v2628 = vmul.f32 %v943, %v2506
        %v2629 = vmul.f32 %v972, %v2521
        %v2630 = vmul.f32 %v1001, %v2536
        %v2631 = vmul.f32 %v1030, %v2551
        %v2632 = vld [vmem:[#allocation2] sm:$0xff]
        %v2633 = vld [vmem:[#allocation2 + $0x8] sm:$0x3]
        %v2634 = vadd.f32 %v2552, %v2562
        %v2635 = vadd.f32 %v2634, %v2572
        %v2636 = vadd.f32 %v2635, %v2582
        %v2637 = vadd.f32 %v2636, %v2592
        %v2638 = vadd.f32 %v2637, %v2602
        %v2639 = vadd.f32 %v2638, %v2612
        %v2640 = vadd.f32 %v2639, %v2622
        %v2641 = vrot.slane %v2640, 4
        %v2642 = vadd.f32 %v2640, %v2641
        %v2643 = vrot.slane %v2642, 2
        %v2644 = vadd.f32 %v2642, %v2643
        %v2645 = vrot.slane %v2644, 1
        %v2646 = vadd.f32 %v2644, %v2645
        %v2647 = vadd.f32 %v2553, %v2563
        %v2648 = vadd.f32 %v2647, %v2573
        %v2649 = vadd.f32 %v2648, %v2583
        %v2650 = vadd.f32 %v2649, %v2593
        %v2651 = vadd.f32 %v2650, %v2603
        %v2652 = vadd.f32 %v2651, %v2613
        %v2653 = vadd.f32 %v2652, %v2623
        %v2654 = vrot.slane %v2653, 4
        %v2655 = vadd.f32 %v2653, %v2654
        %v2656 = vrot.slane %v2655, 2
        %v2657 = vadd.f32 %v2655, %v2656
        %v2658 = vrot.slane %v2657, 1
        %v2659 = vadd.f32 %v2657, %v2658
        %v2660 = vadd.f32 %v2554, %v2564
        %v2661 = vadd.f32 %v2660, %v2574
        %v2662 = vadd.f32 %v2661, %v2584
        %v2663 = vadd.f32 %v2662, %v2594
        %v2664 = vadd.f32 %v2663, %v2604
        %v2665 = vadd.f32 %v2664, %v2614
        %v2666 = vadd.f32 %v2665, %v2624
        %v2667 = vrot.slane %v2666, 4
        %v2668 = vadd.f32 %v2666, %v2667
        %v2669 = vrot.slane %v2668, 2
        %v2670 = vadd.f32 %v2668, %v2669
        %v2671 = vrot.slane %v2670, 1
        %v2672 = vadd.f32 %v2670, %v2671
        %v2673 = vadd.f32 %v2555, %v2565
        %v2674 = vadd.f32 %v2673, %v2575
        %v2675 = vadd.f32 %v2674, %v2585
        %v2676 = vadd.f32 %v2675, %v2595
        %v2677 = vadd.f32 %v2676, %v2605
        %v2678 = vadd.f32 %v2677, %v2615
        %v2679 = vadd.f32 %v2678, %v2625
        %v2680 = vrot.slane %v2679, 4
        %v2681 = vadd.f32 %v2679, %v2680
        %v2682 = vrot.slane %v2681, 2
        %v2683 = vadd.f32 %v2681, %v2682
        %v2684 = vrot.slane %v2683, 1
        %v2685 = vadd.f32 %v2683, %v2684
        %v2686 = vadd.f32 %v2556, %v2566
        %v2687 = vadd.f32 %v2686, %v2576
        %v2688 = vadd.f32 %v2687, %v2586
        %v2689 = vadd.f32 %v2688, %v2596
        %v2690 = vadd.f32 %v2689, %v2606
        %v2691 = vadd.f32 %v2690, %v2616
        %v2692 = vadd.f32 %v2691, %v2626
        %v2693 = vrot.slane %v2692, 4
        %v2694 = vadd.f32 %v2692, %v2693
        %v2695 = vrot.slane %v2694, 2
        %v2696 = vadd.f32 %v2694, %v2695
        %v2697 = vrot.slane %v2696, 1
        %v2698 = vadd.f32 %v2696, %v2697
        %v2699 = vadd.f32 %v2557, %v2567
        %v2700 = vadd.f32 %v2699, %v2577
        %v2701 = vadd.f32 %v2700, %v2587
        %v2702 = vadd.f32 %v2701, %v2597
        %v2703 = vadd.f32 %v2702, %v2607
        %v2704 = vadd.f32 %v2703, %v2617
        %v2705 = vadd.f32 %v2704, %v2627
        %v2706 = vrot.slane %v2705, 4
        %v2707 = vadd.f32 %v2705, %v2706
        %v2708 = vrot.slane %v2707, 2
        %v2709 = vadd.f32 %v2707, %v2708
        %v2710 = vrot.slane %v2709, 1
        %v2711 = vadd.f32 %v2709, %v2710
        %v2712 = vadd.f32 %v2558, %v2568
        %v2713 = vadd.f32 %v2712, %v2578
        %v2714 = vadd.f32 %v2713, %v2588
        %v2715 = vadd.f32 %v2714, %v2598
        %v2716 = vadd.f32 %v2715, %v2608
        %v2717 = vadd.f32 %v2716, %v2618
        %v2718 = vadd.f32 %v2717, %v2628
        %v2719 = vrot.slane %v2718, 4
        %v2720 = vadd.f32 %v2718, %v2719
        %v2721 = vrot.slane %v2720, 2
        %v2722 = vadd.f32 %v2720, %v2721
        %v2723 = vrot.slane %v2722, 1
        %v2724 = vadd.f32 %v2722, %v2723
        %v2725 = vadd.f32 %v2559, %v2569
        %v2726 = vadd.f32 %v2725, %v2579
        %v2727 = vadd.f32 %v2726, %v2589
        %v2728 = vadd.f32 %v2727, %v2599
        %v2729 = vadd.f32 %v2728, %v2609
        %v2730 = vadd.f32 %v2729, %v2619
        %v2731 = vadd.f32 %v2730, %v2629
        %v2732 = vrot.slane %v2731, 4
        %v2733 = vadd.f32 %v2731, %v2732
        %v2734 = vrot.slane %v2733, 2
        %v2735 = vadd.f32 %v2733, %v2734
        %v2736 = vrot.slane %v2735, 1
        %v2737 = vadd.f32 %v2735, %v2736
        %v2738 = vadd.f32 %v2560, %v2570
        %v2739 = vadd.f32 %v2738, %v2580
        %v2740 = vadd.f32 %v2739, %v2590
        %v2741 = vadd.f32 %v2740, %v2600
        %v2742 = vadd.f32 %v2741, %v2610
        %v2743 = vadd.f32 %v2742, %v2620
        %v2744 = vadd.f32 %v2743, %v2630
        %v2745 = vrot.slane %v2744, 4
        %v2746 = vadd.f32 %v2744, %v2745
        %v2747 = vrot.slane %v2746, 2
        %v2748 = vadd.f32 %v2746, %v2747
        %v2749 = vrot.slane %v2748, 1
        %v2750 = vadd.f32 %v2748, %v2749
        %v2751 = vadd.f32 %v2561, %v2571
        %v2752 = vadd.f32 %v2751, %v2581
        %v2753 = vadd.f32 %v2752, %v2591
        %v2754 = vadd.f32 %v2753, %v2601
        %v2755 = vadd.f32 %v2754, %v2611
        %v2756 = vadd.f32 %v2755, %v2621
        %v2757 = vadd.f32 %v2756, %v2631
        %v2758 = vrot.slane %v2757, 4
        %v2759 = vadd.f32 %v2757, %v2758
        %v2760 = vrot.slane %v2759, 2
        %v2761 = vadd.f32 %v2759, %v2760
        %v2762 = vrot.slane %v2761, 1
        %v2763 = vadd.f32 %v2761, %v2762
        %v2774 = vrot.slane %v2659, 7
        %v2775 = vrot.slane %v2672, 6
        %v2776 = vrot.slane %v2685, 5
        %v2777 = vrot.slane %v2698, 4
        %v2778 = vrot.slane %v2711, 3
        %v2779 = vrot.slane %v2724, 2
        %v2780 = vrot.slane %v2737, 1
        %v2781 = vrot.slane %v2763, 7
        %vm2782 = vcmask 1040384
        %v2783 = vsel %vm2782, %v2646, %v2774
        %vm2784 = vcmask 1042434
        %v2785 = vsel %vm2784, %v2775, %v2776
        %vm2786 = vcmask 1041408
        %v2787 = vsel %vm2786, %v2783, %v2785
        %vm2788 = vcmask 1044484
        %v2789 = vsel %vm2788, %v2777, %v2778
        %vm2790 = vcmask 1046534
        %v2791 = vsel %vm2790, %v2779, %v2780
        %vm2792 = vcmask 1045508
        %v2793 = vsel %vm2792, %v2789, %v2791
        %vm2794 = vcmask 1043456
        %v2795 = vsel %vm2794, %v2787, %v2793
        %v2796 = vsel %vm2782, %v2750, %v2781
        %v2799 = vadd.f32 %v2632, %v2795
        %v2800 = vadd.f32 %v2633, %v2796
        %2801 = vst [vmem:[#allocation2] sm:$0xff] %v2799
        %v2802 = vlaneseq
        %vm2803 = vcmp.ge.s32.totalorder %v2802, 0
        %vm2804 = vcmp.lt.s32.totalorder %v2802, 256
        %vm2805 = vmand %vm2803, %vm2804
        %2806 = vst.msk [vmem:[#allocation2 + $0x8] sm:$0x3] %vm2805, %v2800
        // Predicated region
        $region61: #{supcon_effnet_forward.2} parent=39 // pred_check
          %p2807 = pneg %p315
        $region62: #{supcon_effnet_forward.2} parent=39 // pred_check_branch
          %2809 = sbr.rel (%p2807) target = $region64
        $region63: #{supcon_effnet_forward.2} parent=39 // pred_region
          %v2810 = vld [vmem:[#allocation2] sm:$0xff]
          %v2811 = vld [vmem:[#allocation2 + $0x8] sm:$0x3]
          %v2812 = vmul.f32 %v2810, 0.015625
          %v2813 = vmul.f32 %v2811, 0.015625
          %v2816 = vperm.slane %v2812, 0
          %v2817 = vperm.slane %v2812, 1
          %v2818 = vperm.slane %v2812, 2
          %v2819 = vperm.slane %v2812, 3
          %v2820 = vperm.slane %v2812, 4
          %v2821 = vperm.slane %v2812, 5
          %v2822 = vperm.slane %v2812, 6
          %v2823 = vperm.slane %v2812, 7
          %v2824 = vperm.slane %v2813, 0
          %v2825 = vperm.slane %v2813, 1
          %v2836 = vpack.c.bf16 %v2817, %v2816
          %v2837 = vpack.c.bf16 %v2819, %v2818
          %v2838 = vpack.c.bf16 %v2821, %v2820
          %v2839 = vpack.c.bf16 %v2823, %v2822
          %v2840 = vpack.c.bf16 %v2825, %v2824
          %v2846 = vrot.slane %v2836, 3
          %v2847 = vrot.slane %v2837, 6
          %v2848 = vrot.slane %v2837, 1
          %v2849 = vrot.slane %v2838, 4
          %v2850 = vrot.slane %v2838, 7
          %v2851 = vrot.slane %v2839, 2
          %v2852 = vrot.slane %v2839, 5
          %v2853 = vrot.slane %v2840, 3
          %v2856 = vsel %vm2782, %v2836, %v2846
          %v2859 = vsel %vm2784, %v2847, %v2848
          %v2860 = vsel %vm2786, %v2856, %v2859
          %v2863 = vsel %vm2788, %v2849, %v2850
          %v2866 = vsel %vm2790, %v2851, %v2852
          %v2867 = vsel %vm2792, %v2863, %v2866
          %v2868 = vsel %vm2794, %v2860, %v2867
          %v2871 = vsel %vm2782, %v2840, %v2853
          %vm2874 = vcmask 1040384
          %vm2875 = vsmask.f32 256
          %vm2876 = vmand %vm2874, %vm2875
          %vm2877 = vcmask 1041409
          %vm2878 = vsmask.f32 1280
          %vm2879 = vmand %vm2877, %vm2878
          %vm2880 = vmor %vm2879, %vm2876
          %vm2881 = vcmask 1042434
          %vm2882 = vsmask.f32 2304
          %vm2883 = vmand %vm2881, %vm2882
          %vm2884 = vmor %vm2883, %vm2880
          %vm2885 = vcmask 1043459
          %vm2886 = vsmask.f32 3328
          %vm2887 = vmand %vm2885, %vm2886
          %vm2888 = vmor %vm2887, %vm2884
          %vm2889 = vcmask 1044484
          %vm2890 = vsmask.f32 4352
          %vm2891 = vmand %vm2889, %vm2890
          %vm2892 = vmor %vm2891, %vm2888
          %vm2893 = vcmask 1045509
          %vm2894 = vsmask.f32 5376
          %vm2895 = vmand %vm2893, %vm2894
          %vm2896 = vmor %vm2895, %vm2892
          %vm2897 = vcmask 1046534
          %vm2898 = vsmask.f32 6400
          %vm2899 = vmand %vm2897, %vm2898
          %vm2900 = vmor %vm2899, %vm2896
          %vm2901 = vcmask 1047559
          %vm2902 = vsmask.f32 7424
          %vm2903 = vmand %vm2901, %vm2902
          %vm2904 = vmor %vm2903, %vm2900
          %v2905 = vld [vmem:[%s313] sm:$0xff]
          %v2906 = vsel %vm2904, %v2868, %v2905
          %2907 = vst [vmem:[%s313] sm:$0xff] %v2906
          %v2908 = vld [vmem:[%s313 + $0x8] sm:$0x3]
          %v2909 = vsel %vm2880, %v2871, %v2908
          %2910 = vst [vmem:[%s313 + $0x8] sm:$0x3] %v2909
        $region64: #{supcon_effnet_forward.2} parent=39 // pred_fallthru
          _
        %p2911 = scmp.lt.s32.totalorder %s23, 1
        %s2912 = scalar_select %p2911, %s23, 1
        %s2913 = smul.addr %s2912, 10
        %s2914 = scalar_lea.vmem %s5, %s2913
        // Predicated region
        $region65: #{supcon_effnet_forward.2} parent=39 // pred_check
          %p2915 = pneg %p161
        $region66: #{supcon_effnet_forward.2} parent=39 // pred_check_branch
          %2917 = sbr.rel (%p2915) target = $region68
        $region67: #{supcon_effnet_forward.2} parent=39 // pred_region
          _
        $region68: #{supcon_effnet_forward.2} parent=39 // pred_fallthru
          _
      $region40: #{supcon_effnet_forward.2} parent=5 // pred_fallthru
        _
      %p2918 = scmp.le.s32.totalorder 2, %s14
      // Predicated region
      $region69: #{supcon_effnet_forward.2} parent=5 // pred_check
        %p2919 = pneg %p2918
      $region70: #{supcon_effnet_forward.2} parent=5 // pred_check_branch
        %2921 = sbr.rel (%p2919) target = $region72
      $region71: #{supcon_effnet_forward.2} parent=5 // pred_region
        %s2922 = ssub.s32 %s14, 2
        // Predicated region
        $region73: #{supcon_effnet_forward.2} parent=71 // pred_check
          %p2923 = pneg %p167
        $region74: #{supcon_effnet_forward.2} parent=71 // pred_check_branch
          %2925 = sbr.rel (%p2923) target = $region76
        $region75: #{supcon_effnet_forward.2} parent=71 // pred_region
          %p2926 = scmp.lt.s32.totalorder %s25, 1
          %s2927 = scalar_select %p2926, %s25, 1
          %s2928 = smul.addr %s2927, 10
          %s2929 = scalar_lea.vmem %s5, %s2928
        $region76: #{supcon_effnet_forward.2} parent=71 // pred_fallthru
          _
      $region72: #{supcon_effnet_forward.2} parent=5 // pred_fallthru
        _
    $region6: #{supcon_effnet_forward.2} parent=1 // loop_footer
      %s18 = sadd.s32 1, %s14
    $region7: #{supcon_effnet_forward.2} parent=1 // loop_footer_branch
      %13 = sbr.rel target = $region3
    $region8: #{supcon_effnet_forward.2} parent=1 // loop_exit
      _
    %2930 = vsyncpa [#allocation4], 1
    %s2931 = scalar_lea.sflag [#allocation4], 1
    %2932 = vsyncpa %s2931, 1
    %2933 = vsyncpa [#allocation6], 1
    %2934 = vsyncpa [#allocation9], 1

// kernel: supcon_effnet_forward.3
$region0: #{supcon_effnet_forward.3}
  #allocation0 [shape = 'u32[]', space=smem, size = 0x4, offset = 0x4, fixed_abs, tag = 'smem constant byte address 0x4 - core index']
  #allocation1 [shape = 'u32[72,128]{1,0:T(1,128)}', space=vmem, size = 0x9000, scoped, tag = 'internal scratch']
  %s0 = inlined_call_operand.vmem [shape: bf16[8,1280], index: 0, kind: input, shape index: {}]
  %s1 = inlined_call_operand.hbm [shape: bf16[1280,1280], index: 1, kind: input, shape index: {}]
  %s2 = inlined_call_operand.hbm [shape: f32[1,1280], index: 2, kind: input, shape index: {}]
  %s3 = inlined_call_operand.hbm [shape: bf16[1280,128], index: 3, kind: input, shape index: {}]
  %s4 = inlined_call_operand.hbm [shape: f32[1,128], index: 4, kind: input, shape index: {}]
  %s5 = inlined_call_operand.vmem [shape: f32[8,128], index: 5, kind: output, shape index: {}]
  %s6 = sld [smem:[#allocation0]]
  $region46: #{supcon_effnet_forward.3} parent=0
    _
  %s8 = ssub.s32 1, %s6
  %s9 = scalar_select 0, %s8, %s6
  $region1: #{supcon_effnet_forward.3} parent=0
    #allocation2 [shape = 'u8[3276800]{0}', space=vmem, size = 0x320000, scoped, tag = 'input window, operand 1, single buffered']
    #allocation3 [shape = 's32[1]{0}', space=sflag, size = 0x4, scoped, tag = 'scoped memory for supcon_effnet_forward.3']
    #allocation4 [shape = 'u8[5120]{0}', space=vmem, size = 0x1400, scoped, tag = 'input window, operand 2, single buffered']
    #allocation5 [shape = 's32[1]{0}', space=sflag, size = 0x4, scoped, tag = 'scoped memory for supcon_effnet_forward.3']
    #allocation6 [shape = 'u8[327680]{0}', space=vmem, size = 0x50000, scoped, tag = 'input window, operand 3, single buffered']
    #allocation7 [shape = 'u8[512]{0}', space=vmem, size = 0x400, scoped, tag = 'input window, operand 4, single buffered']
    #allocation8 [shape = 's32[1]{0}', space=sflag, size = 0x4, scoped, tag = 'scoped memory for supcon_effnet_forward.3']
    %10 = vsyncpa [#allocation3], 0
    %11 = vsyncpa [#allocation5], 0
    %12 = vsyncpa [#allocation8], 0
    // Predicated region
    $region2: #{supcon_effnet_forward.3} parent=1 // pred_check
      _
    $region3: #{supcon_effnet_forward.3} parent=1 // pred_check_branch
      %14 = sbr.rel (0) target = $region5
    $region4: #{supcon_effnet_forward.3} parent=1 // pred_region
      _
    $region5: #{supcon_effnet_forward.3} parent=1 // pred_fallthru
      _
    // Predicated region
    $region6: #{supcon_effnet_forward.3} parent=1 // pred_check
      _
    $region7: #{supcon_effnet_forward.3} parent=1 // pred_check_branch
      %16 = sbr.rel (0) target = $region9
    $region8: #{supcon_effnet_forward.3} parent=1 // pred_region
      %18 = vsyncadd [#allocation3], 0
      %s19 = sshll.u32 %s1, 4
      %s20 = int_to_ptr.hbm [resolvable:$true] %s19
      %s21 = sshll.u32 [#allocation2], 4
      %s22 = int_to_ptr.vmem [resolvable:$true] %s21
      %27 = dma.hbm_to_vmem [thread:$0]  %s20, 102400, %s22, [#allocation3], 640, 640, 40
    $region9: #{supcon_effnet_forward.3} parent=1 // pred_fallthru
      _
    // Predicated region
    $region10: #{supcon_effnet_forward.3} parent=1 // pred_check
      _
    $region11: #{supcon_effnet_forward.3} parent=1 // pred_check_branch
      %29 = sbr.rel (0) target = $region13
    $region12: #{supcon_effnet_forward.3} parent=1 // pred_region
      %31 = vsyncadd [#allocation5], 0
      %s33 = sshll.u32 %s2, 4
      %s34 = int_to_ptr.hbm [resolvable:$true] %s33
      %s35 = sshll.u32 [#allocation4], 4
      %s36 = int_to_ptr.vmem [resolvable:$true] %s35
      %38 = dma.hbm_to_vmem [thread:$0]  %s34, 160, %s36, [#allocation5]
    $region13: #{supcon_effnet_forward.3} parent=1 // pred_fallthru
      _
    // Predicated region
    $region14: #{supcon_effnet_forward.3} parent=1 // pred_check
      _
    $region15: #{supcon_effnet_forward.3} parent=1 // pred_check_branch
      %40 = sbr.rel (0) target = $region17
    $region16: #{supcon_effnet_forward.3} parent=1 // pred_region
      %42 = vsyncadd [#allocation5], 0
      %s43 = sshll.u32 %s3, 4
      %s44 = int_to_ptr.hbm [resolvable:$true] %s43
      %s45 = sshll.u32 [#allocation6], 4
      %s46 = int_to_ptr.vmem [resolvable:$true] %s45
      %51 = dma.hbm_to_vmem [thread:$0]  %s44, 10240, %s46, [#allocation5], 64, 64, 4
    $region17: #{supcon_effnet_forward.3} parent=1 // pred_fallthru
      _
    // Predicated region
    $region18: #{supcon_effnet_forward.3} parent=1 // pred_check
      _
    $region19: #{supcon_effnet_forward.3} parent=1 // pred_check_branch
      %53 = sbr.rel (0) target = $region21
    $region20: #{supcon_effnet_forward.3} parent=1 // pred_region
      %55 = vsyncadd [#allocation8], 0
      %s57 = sshll.u32 %s4, 4
      %s58 = int_to_ptr.hbm [resolvable:$true] %s57
      %s59 = sshll.u32 [#allocation7], 4
      %s60 = int_to_ptr.vmem [resolvable:$true] %s59
      %62 = dma.hbm_to_vmem [thread:$0]  %s58, 16, %s60, [#allocation8]
    $region21: #{supcon_effnet_forward.3} parent=1 // pred_fallthru
      _
    // Predicated region
    $region22: #{supcon_effnet_forward.3} parent=1 // pred_check
      _
    $region23: #{supcon_effnet_forward.3} parent=1 // pred_check_branch
      %64 = sbr.rel (0) target = $region25
    $region24: #{supcon_effnet_forward.3} parent=1 // pred_region
      %66 = dma.done [#allocation3], 102400
    $region25: #{supcon_effnet_forward.3} parent=1 // pred_fallthru
      _
    // Predicated region
    $region26: #{supcon_effnet_forward.3} parent=1 // pred_check
      _
    $region27: #{supcon_effnet_forward.3} parent=1 // pred_check_branch
      %68 = sbr.rel (0) target = $region29
    $region28: #{supcon_effnet_forward.3} parent=1 // pred_region
      %70 = dma.done [#allocation5], 160
    $region29: #{supcon_effnet_forward.3} parent=1 // pred_fallthru
      _
    // Predicated region
    $region30: #{supcon_effnet_forward.3} parent=1 // pred_check
      _
    $region31: #{supcon_effnet_forward.3} parent=1 // pred_check_branch
      %72 = sbr.rel (0) target = $region33
    $region32: #{supcon_effnet_forward.3} parent=1 // pred_region
      %74 = dma.done [#allocation5], 10240
    $region33: #{supcon_effnet_forward.3} parent=1 // pred_fallthru
      _
    // Predicated region
    $region34: #{supcon_effnet_forward.3} parent=1 // pred_check
      _
    $region35: #{supcon_effnet_forward.3} parent=1 // pred_check_branch
      %76 = sbr.rel (0) target = $region37
    $region36: #{supcon_effnet_forward.3} parent=1 // pred_region
      %78 = dma.done [#allocation8], 16
    $region37: #{supcon_effnet_forward.3} parent=1 // pred_fallthru
      _
    %v79 = vld [vmem:[%s0] sm:$0xff]
    %v80 = vld [vmem:[%s0 + $0x8] sm:$0xff]
    %v81 = vld [vmem:[%s0 + $0x10] sm:$0xff]
    %v82 = vld [vmem:[%s0 + $0x18] sm:$0xff]
    %v83 = vld [vmem:[%s0 + $0x20] sm:$0xff]
    %v84 = vld [vmem:[#allocation2] sm:$0xff]
    %v85 = vld [vmem:[#allocation2 + $0x8] sm:$0xff]
    %v86 = vld [vmem:[#allocation2 + $0x10] sm:$0xff]
    %v87 = vld [vmem:[#allocation2 + $0x18] sm:$0xff]
    %v88 = vld [vmem:[#allocation2 + $0x20] sm:$0xff]
    %v89 = vld [vmem:[#allocation2 + $0x28] sm:$0xff]
    %v90 = vld [vmem:[#allocation2 + $0x30] sm:$0xff]
    %v91 = vld [vmem:[#allocation2 + $0x38] sm:$0xff]
    %v92 = vld [vmem:[#allocation2 + $0x40] sm:$0xff]
    %v93 = vld [vmem:[#allocation2 + $0x48] sm:$0xff]
    %v94 = vld [vmem:[#allocation2 + $0x50] sm:$0xff]
    %v95 = vld [vmem:[#allocation2 + $0x58] sm:$0xff]
    %v96 = vld [vmem:[#allocation2 + $0x60] sm:$0xff]
    %v97 = vld [vmem:[#allocation2 + $0x68] sm:$0xff]
    %v98 = vld [vmem:[#allocation2 + $0x70] sm:$0xff]
    %v99 = vld [vmem:[#allocation2 + $0x78] sm:$0xff]
    %v100 = vld [vmem:[#allocation2 + $0x80] sm:$0xff]
    %v101 = vld [vmem:[#allocation2 + $0x88] sm:$0xff]
    %v102 = vld [vmem:[#allocation2 + $0x90] sm:$0xff]
    %v103 = vld [vmem:[#allocation2 + $0x98] sm:$0xff]
    %v104 = vld [vmem:[#allocation2 + $0xa0] sm:$0xff]
    %v105 = vld [vmem:[#allocation2 + $0xa8] sm:$0xff]
    %v106 = vld [vmem:[#allocation2 + $0xb0] sm:$0xff]
    %v107 = vld [vmem:[#allocation2 + $0xb8] sm:$0xff]
    %v108 = vld [vmem:[#allocation2 + $0xc0] sm:$0xff]
    %v109 = vld [vmem:[#allocation2 + $0xc8] sm:$0xff]
    %v110 = vld [vmem:[#allocation2 + $0xd0] sm:$0xff]
    %v111 = vld [vmem:[#allocation2 + $0xd8] sm:$0xff]
    %v112 = vld [vmem:[#allocation2 + $0xe0] sm:$0xff]
    %v113 = vld [vmem:[#allocation2 + $0xe8] sm:$0xff]
    %v114 = vld [vmem:[#allocation2 + $0xf0] sm:$0xff]
    %v115 = vld [vmem:[#allocation2 + $0xf8] sm:$0xff]
    %v116 = vld [vmem:[#allocation2 + $0x100] sm:$0xff]
    %v117 = vld [vmem:[#allocation2 + $0x108] sm:$0xff]
    %v118 = vld [vmem:[#allocation2 + $0x110] sm:$0xff]
    %v119 = vld [vmem:[#allocation2 + $0x118] sm:$0xff]
    %v120 = vld [vmem:[#allocation2 + $0x120] sm:$0xff]
    %v121 = vld [vmem:[#allocation2 + $0x128] sm:$0xff]
    %v122 = vld [vmem:[#allocation2 + $0x130] sm:$0xff]
    %v123 = vld [vmem:[#allocation2 + $0x138] sm:$0xff]
    %v124 = vld [vmem:[#allocation2 + $0x140] sm:$0xff]
    %v125 = vld [vmem:[#allocation2 + $0x148] sm:$0xff]
    %v126 = vld [vmem:[#allocation2 + $0x150] sm:$0xff]
    %v127 = vld [vmem:[#allocation2 + $0x158] sm:$0xff]
    %v128 = vld [vmem:[#allocation2 + $0x160] sm:$0xff]
    %v129 = vld [vmem:[#allocation2 + $0x168] sm:$0xff]
    %v130 = vld [vmem:[#allocation2 + $0x170] sm:$0xff]
    %v131 = vld [vmem:[#allocation2 + $0x178] sm:$0xff]
    %v132 = vld [vmem:[#allocation2 + $0x180] sm:$0xff]
    %v133 = vld [vmem:[#allocation2 + $0x188] sm:$0xff]
    %v134 = vld [vmem:[#allocation2 + $0x190] sm:$0xff]
    %v135 = vld [vmem:[#allocation2 + $0x198] sm:$0xff]
    %v136 = vld [vmem:[#allocation2 + $0x1a0] sm:$0xff]
    %v137 = vld [vmem:[#allocation2 + $0x1a8] sm:$0xff]
    %v138 = vld [vmem:[#allocation2 + $0x1b0] sm:$0xff]
    %v139 = vld [vmem:[#allocation2 + $0x1b8] sm:$0xff]
    %v140 = vld [vmem:[#allocation2 + $0x1c0] sm:$0xff]
    %v141 = vld [vmem:[#allocation2 + $0x1c8] sm:$0xff]
    %v142 = vld [vmem:[#allocation2 + $0x1d0] sm:$0xff]
    %v143 = vld [vmem:[#allocation2 + $0x1d8] sm:$0xff]
    %v144 = vld [vmem:[#allocation2 + $0x1e0] sm:$0xff]
    %v145 = vld [vmem:[#allocation2 + $0x1e8] sm:$0xff]
    %v146 = vld [vmem:[#allocation2 + $0x1f0] sm:$0xff]
    %v147 = vld [vmem:[#allocation2 + $0x1f8] sm:$0xff]
    %v148 = vld [vmem:[#allocation2 + $0x200] sm:$0xff]
    %v149 = vld [vmem:[#allocation2 + $0x208] sm:$0xff]
    %v150 = vld [vmem:[#allocation2 + $0x210] sm:$0xff]
    %v151 = vld [vmem:[#allocation2 + $0x218] sm:$0xff]
    %v152 = vld [vmem:[#allocation2 + $0x220] sm:$0xff]
    %v153 = vld [vmem:[#allocation2 + $0x228] sm:$0xff]
    %v154 = vld [vmem:[#allocation2 + $0x230] sm:$0xff]
    %v155 = vld [vmem:[#allocation2 + $0x238] sm:$0xff]
    %v156 = vld [vmem:[#allocation2 + $0x240] sm:$0xff]
    %v157 = vld [vmem:[#allocation2 + $0x248] sm:$0xff]
    %v158 = vld [vmem:[#allocation2 + $0x250] sm:$0xff]
    %v159 = vld [vmem:[#allocation2 + $0x258] sm:$0xff]
    %v160 = vld [vmem:[#allocation2 + $0x260] sm:$0xff]
    %v161 = vld [vmem:[#allocation2 + $0x268] sm:$0xff]
    %v162 = vld [vmem:[#allocation2 + $0x270] sm:$0xff]
    %v163 = vld [vmem:[#allocation2 + $0x278] sm:$0xff]
    %v164 = vld [vmem:[#allocation2 + $0x280] sm:$0xff]
    %v165 = vld [vmem:[#allocation2 + $0x288] sm:$0xff]
    %v166 = vld [vmem:[#allocation2 + $0x290] sm:$0xff]
    %v167 = vld [vmem:[#allocation2 + $0x298] sm:$0xff]
    %v168 = vld [vmem:[#allocation2 + $0x2a0] sm:$0xff]
    %v169 = vld [vmem:[#allocation2 + $0x2a8] sm:$0xff]
    %v170 = vld [vmem:[#allocation2 + $0x2b0] sm:$0xff]
    %v171 = vld [vmem:[#allocation2 + $0x2b8] sm:$0xff]
    %v172 = vld [vmem:[#allocation2 + $0x2c0] sm:$0xff]
    %v173 = vld [vmem:[#allocation2 + $0x2c8] sm:$0xff]
    %v174 = vld [vmem:[#allocation2 + $0x2d0] sm:$0xff]
    %v175 = vld [vmem:[#allocation2 + $0x2d8] sm:$0xff]
    %v176 = vld [vmem:[#allocation2 + $0x2e0] sm:$0xff]
    %v177 = vld [vmem:[#allocation2 + $0x2e8] sm:$0xff]
    %v178 = vld [vmem:[#allocation2 + $0x2f0] sm:$0xff]
    %v179 = vld [vmem:[#allocation2 + $0x2f8] sm:$0xff]
    %v180 = vld [vmem:[#allocation2 + $0x300] sm:$0xff]
    %v181 = vld [vmem:[#allocation2 + $0x308] sm:$0xff]
    %v182 = vld [vmem:[#allocation2 + $0x310] sm:$0xff]
    %v183 = vld [vmem:[#allocation2 + $0x318] sm:$0xff]
    %v184 = vld [vmem:[#allocation2 + $0x320] sm:$0xff]
    %v185 = vld [vmem:[#allocation2 + $0x328] sm:$0xff]
    %v186 = vld [vmem:[#allocation2 + $0x330] sm:$0xff]
    %v187 = vld [vmem:[#allocation2 + $0x338] sm:$0xff]
    %v188 = vld [vmem:[#allocation2 + $0x340] sm:$0xff]
    %v189 = vld [vmem:[#allocation2 + $0x348] sm:$0xff]
    %v190 = vld [vmem:[#allocation2 + $0x350] sm:$0xff]
    %v191 = vld [vmem:[#allocation2 + $0x358] sm:$0xff]
    %v192 = vld [vmem:[#allocation2 + $0x360] sm:$0xff]
    %v193 = vld [vmem:[#allocation2 + $0x368] sm:$0xff]
    %v194 = vld [vmem:[#allocation2 + $0x370] sm:$0xff]
    %v195 = vld [vmem:[#allocation2 + $0x378] sm:$0xff]
    %v196 = vld [vmem:[#allocation2 + $0x380] sm:$0xff]
    %v197 = vld [vmem:[#allocation2 + $0x388] sm:$0xff]
    %v198 = vld [vmem:[#allocation2 + $0x390] sm:$0xff]
    %v199 = vld [vmem:[#allocation2 + $0x398] sm:$0xff]
    %v200 = vld [vmem:[#allocation2 + $0x3a0] sm:$0xff]
    %v201 = vld [vmem:[#allocation2 + $0x3a8] sm:$0xff]
    %v202 = vld [vmem:[#allocation2 + $0x3b0] sm:$0xff]
    %v203 = vld [vmem:[#allocation2 + $0x3b8] sm:$0xff]
    %v204 = vld [vmem:[#allocation2 + $0x3c0] sm:$0xff]
    %v205 = vld [vmem:[#allocation2 + $0x3c8] sm:$0xff]
    %v206 = vld [vmem:[#allocation2 + $0x3d0] sm:$0xff]
    %v207 = vld [vmem:[#allocation2 + $0x3d8] sm:$0xff]
    %v208 = vld [vmem:[#allocation2 + $0x3e0] sm:$0xff]
    %v209 = vld [vmem:[#allocation2 + $0x3e8] sm:$0xff]
    %v210 = vld [vmem:[#allocation2 + $0x3f0] sm:$0xff]
    %v211 = vld [vmem:[#allocation2 + $0x3f8] sm:$0xff]
    %v212 = vld [vmem:[#allocation2 + $0x400] sm:$0xff]
    %v213 = vld [vmem:[#allocation2 + $0x408] sm:$0xff]
    %v214 = vld [vmem:[#allocation2 + $0x410] sm:$0xff]
    %v215 = vld [vmem:[#allocation2 + $0x418] sm:$0xff]
    %v216 = vld [vmem:[#allocation2 + $0x420] sm:$0xff]
    %v217 = vld [vmem:[#allocation2 + $0x428] sm:$0xff]
    %v218 = vld [vmem:[#allocation2 + $0x430] sm:$0xff]
    %v219 = vld [vmem:[#allocation2 + $0x438] sm:$0xff]
    %v220 = vld [vmem:[#allocation2 + $0x440] sm:$0xff]
    %v221 = vld [vmem:[#allocation2 + $0x448] sm:$0xff]
    %v222 = vld [vmem:[#allocation2 + $0x450] sm:$0xff]
    %v223 = vld [vmem:[#allocation2 + $0x458] sm:$0xff]
    %v224 = vld [vmem:[#allocation2 + $0x460] sm:$0xff]
    %v225 = vld [vmem:[#allocation2 + $0x468] sm:$0xff]
    %v226 = vld [vmem:[#allocation2 + $0x470] sm:$0xff]
    %v227 = vld [vmem:[#allocation2 + $0x478] sm:$0xff]
    %v228 = vld [vmem:[#allocation2 + $0x480] sm:$0xff]
    %v229 = vld [vmem:[#allocation2 + $0x488] sm:$0xff]
    %v230 = vld [vmem:[#allocation2 + $0x490] sm:$0xff]
    %v231 = vld [vmem:[#allocation2 + $0x498] sm:$0xff]
    %v232 = vld [vmem:[#allocation2 + $0x4a0] sm:$0xff]
    %v233 = vld [vmem:[#allocation2 + $0x4a8] sm:$0xff]
    %v234 = vld [vmem:[#allocation2 + $0x4b0] sm:$0xff]
    %v235 = vld [vmem:[#allocation2 + $0x4b8] sm:$0xff]
    %v236 = vld [vmem:[#allocation2 + $0x4c0] sm:$0xff]
    %v237 = vld [vmem:[#allocation2 + $0x4c8] sm:$0xff]
    %v238 = vld [vmem:[#allocation2 + $0x4d0] sm:$0xff]
    %v239 = vld [vmem:[#allocation2 + $0x4d8] sm:$0xff]
    %v240 = vld [vmem:[#allocation2 + $0x4e0] sm:$0xff]
    %v241 = vld [vmem:[#allocation2 + $0x4e8] sm:$0xff]
    %v242 = vld [vmem:[#allocation2 + $0x4f0] sm:$0xff]
    %v243 = vld [vmem:[#allocation2 + $0x4f8] sm:$0xff]
    %v244 = vld [vmem:[#allocation2 + $0x500] sm:$0xff]
    %v245 = vld [vmem:[#allocation2 + $0x508] sm:$0xff]
    %v246 = vld [vmem:[#allocation2 + $0x510] sm:$0xff]
    %v247 = vld [vmem:[#allocation2 + $0x518] sm:$0xff]
    %v248 = vld [vmem:[#allocation2 + $0x520] sm:$0xff]
    %v249 = vld [vmem:[#allocation2 + $0x528] sm:$0xff]
    %v250 = vld [vmem:[#allocation2 + $0x530] sm:$0xff]
    %v251 = vld [vmem:[#allocation2 + $0x538] sm:$0xff]
    %v252 = vld [vmem:[#allocation2 + $0x540] sm:$0xff]
    %v253 = vld [vmem:[#allocation2 + $0x548] sm:$0xff]
    %v254 = vld [vmem:[#allocation2 + $0x550] sm:$0xff]
    %v255 = vld [vmem:[#allocation2 + $0x558] sm:$0xff]
    %v256 = vld [vmem:[#allocation2 + $0x560] sm:$0xff]
    %v257 = vld [vmem:[#allocation2 + $0x568] sm:$0xff]
    %v258 = vld [vmem:[#allocation2 + $0x570] sm:$0xff]
    %v259 = vld [vmem:[#allocation2 + $0x578] sm:$0xff]
    %v260 = vld [vmem:[#allocation2 + $0x580] sm:$0xff]
    %v261 = vld [vmem:[#allocation2 + $0x588] sm:$0xff]
    %v262 = vld [vmem:[#allocation2 + $0x590] sm:$0xff]
    %v263 = vld [vmem:[#allocation2 + $0x598] sm:$0xff]
    %v264 = vld [vmem:[#allocation2 + $0x5a0] sm:$0xff]
    %v265 = vld [vmem:[#allocation2 + $0x5a8] sm:$0xff]
    %v266 = vld [vmem:[#allocation2 + $0x5b0] sm:$0xff]
    %v267 = vld [vmem:[#allocation2 + $0x5b8] sm:$0xff]
    %v268 = vld [vmem:[#allocation2 + $0x5c0] sm:$0xff]
    %v269 = vld [vmem:[#allocation2 + $0x5c8] sm:$0xff]
    %v270 = vld [vmem:[#allocation2 + $0x5d0] sm:$0xff]
    %v271 = vld [vmem:[#allocation2 + $0x5d8] sm:$0xff]
    %v272 = vld [vmem:[#allocation2 + $0x5e0] sm:$0xff]
    %v273 = vld [vmem:[#allocation2 + $0x5e8] sm:$0xff]
    %v274 = vld [vmem:[#allocation2 + $0x5f0] sm:$0xff]
    %v275 = vld [vmem:[#allocation2 + $0x5f8] sm:$0xff]
    %v276 = vld [vmem:[#allocation2 + $0x600] sm:$0xff]
    %v277 = vld [vmem:[#allocation2 + $0x608] sm:$0xff]
    %v278 = vld [vmem:[#allocation2 + $0x610] sm:$0xff]
    %v279 = vld [vmem:[#allocation2 + $0x618] sm:$0xff]
    %v280 = vld [vmem:[#allocation2 + $0x620] sm:$0xff]
    %v281 = vld [vmem:[#allocation2 + $0x628] sm:$0xff]
    %v282 = vld [vmem:[#allocation2 + $0x630] sm:$0xff]
    %v283 = vld [vmem:[#allocation2 + $0x638] sm:$0xff]
    %v284 = vld [vmem:[#allocation2 + $0x640] sm:$0xff]
    %v285 = vld [vmem:[#allocation2 + $0x648] sm:$0xff]
    %v286 = vld [vmem:[#allocation2 + $0x650] sm:$0xff]
    %v287 = vld [vmem:[#allocation2 + $0x658] sm:$0xff]
    %v288 = vld [vmem:[#allocation2 + $0x660] sm:$0xff]
    %v289 = vld [vmem:[#allocation2 + $0x668] sm:$0xff]
    %v290 = vld [vmem:[#allocation2 + $0x670] sm:$0xff]
    %v291 = vld [vmem:[#allocation2 + $0x678] sm:$0xff]
    %v292 = vld [vmem:[#allocation2 + $0x680] sm:$0xff]
    %v293 = vld [vmem:[#allocation2 + $0x688] sm:$0xff]
    %v294 = vld [vmem:[#allocation2 + $0x690] sm:$0xff]
    %v295 = vld [vmem:[#allocation2 + $0x698] sm:$0xff]
    %v296 = vld [vmem:[#allocation2 + $0x6a0] sm:$0xff]
    %v297 = vld [vmem:[#allocation2 + $0x6a8] sm:$0xff]
    %v298 = vld [vmem:[#allocation2 + $0x6b0] sm:$0xff]
    %v299 = vld [vmem:[#allocation2 + $0x6b8] sm:$0xff]
    %v300 = vld [vmem:[#allocation2 + $0x6c0] sm:$0xff]
    %v301 = vld [vmem:[#allocation2 + $0x6c8] sm:$0xff]
    %v302 = vld [vmem:[#allocation2 + $0x6d0] sm:$0xff]
    %v303 = vld [vmem:[#allocation2 + $0x6d8] sm:$0xff]
    %v304 = vld [vmem:[#allocation2 + $0x6e0] sm:$0xff]
    %v305 = vld [vmem:[#allocation2 + $0x6e8] sm:$0xff]
    %v306 = vld [vmem:[#allocation2 + $0x6f0] sm:$0xff]
    %v307 = vld [vmem:[#allocation2 + $0x6f8] sm:$0xff]
    %v308 = vld [vmem:[#allocation2 + $0x700] sm:$0xff]
    %v309 = vld [vmem:[#allocation2 + $0x708] sm:$0xff]
    %v310 = vld [vmem:[#allocation2 + $0x710] sm:$0xff]
    %v311 = vld [vmem:[#allocation2 + $0x718] sm:$0xff]
    %v312 = vld [vmem:[#allocation2 + $0x720] sm:$0xff]
    %v313 = vld [vmem:[#allocation2 + $0x728] sm:$0xff]
    %v314 = vld [vmem:[#allocation2 + $0x730] sm:$0xff]
    %v315 = vld [vmem:[#allocation2 + $0x738] sm:$0xff]
    %v316 = vld [vmem:[#allocation2 + $0x740] sm:$0xff]
    %v317 = vld [vmem:[#allocation2 + $0x748] sm:$0xff]
    %v318 = vld [vmem:[#allocation2 + $0x750] sm:$0xff]
    %v319 = vld [vmem:[#allocation2 + $0x758] sm:$0xff]
    %v320 = vld [vmem:[#allocation2 + $0x760] sm:$0xff]
    %v321 = vld [vmem:[#allocation2 + $0x768] sm:$0xff]
    %v322 = vld [vmem:[#allocation2 + $0x770] sm:$0xff]
    %v323 = vld [vmem:[#allocation2 + $0x778] sm:$0xff]
    %v324 = vld [vmem:[#allocation2 + $0x780] sm:$0xff]
    %v325 = vld [vmem:[#allocation2 + $0x788] sm:$0xff]
    %v326 = vld [vmem:[#allocation2 + $0x790] sm:$0xff]
    %v327 = vld [vmem:[#allocation2 + $0x798] sm:$0xff]
    %v328 = vld [vmem:[#allocation2 + $0x7a0] sm:$0xff]
    %v329 = vld [vmem:[#allocation2 + $0x7a8] sm:$0xff]
    %v330 = vld [vmem:[#allocation2 + $0x7b0] sm:$0xff]
    %v331 = vld [vmem:[#allocation2 + $0x7b8] sm:$0xff]
    %v332 = vld [vmem:[#allocation2 + $0x7c0] sm:$0xff]
    %v333 = vld [vmem:[#allocation2 + $0x7c8] sm:$0xff]
    %v334 = vld [vmem:[#allocation2 + $0x7d0] sm:$0xff]
    %v335 = vld [vmem:[#allocation2 + $0x7d8] sm:$0xff]
    %v336 = vld [vmem:[#allocation2 + $0x7e0] sm:$0xff]
    %v337 = vld [vmem:[#allocation2 + $0x7e8] sm:$0xff]
    %v338 = vld [vmem:[#allocation2 + $0x7f0] sm:$0xff]
    %v339 = vld [vmem:[#allocation2 + $0x7f8] sm:$0xff]
    %v340 = vld [vmem:[#allocation2 + $0x800] sm:$0xff]
    %v341 = vld [vmem:[#allocation2 + $0x808] sm:$0xff]
    %v342 = vld [vmem:[#allocation2 + $0x810] sm:$0xff]
    %v343 = vld [vmem:[#allocation2 + $0x818] sm:$0xff]
    %v344 = vld [vmem:[#allocation2 + $0x820] sm:$0xff]
    %v345 = vld [vmem:[#allocation2 + $0x828] sm:$0xff]
    %v346 = vld [vmem:[#allocation2 + $0x830] sm:$0xff]
    %v347 = vld [vmem:[#allocation2 + $0x838] sm:$0xff]
    %v348 = vld [vmem:[#allocation2 + $0x840] sm:$0xff]
    %v349 = vld [vmem:[#allocation2 + $0x848] sm:$0xff]
    %v350 = vld [vmem:[#allocation2 + $0x850] sm:$0xff]
    %v351 = vld [vmem:[#allocation2 + $0x858] sm:$0xff]
    %v352 = vld [vmem:[#allocation2 + $0x860] sm:$0xff]
    %v353 = vld [vmem:[#allocation2 + $0x868] sm:$0xff]
    %v354 = vld [vmem:[#allocation2 + $0x870] sm:$0xff]
    %v355 = vld [vmem:[#allocation2 + $0x878] sm:$0xff]
    %v356 = vld [vmem:[#allocation2 + $0x880] sm:$0xff]
    %v357 = vld [vmem:[#allocation2 + $0x888] sm:$0xff]
    %v358 = vld [vmem:[#allocation2 + $0x890] sm:$0xff]
    %v359 = vld [vmem:[#allocation2 + $0x898] sm:$0xff]
    %v360 = vld [vmem:[#allocation2 + $0x8a0] sm:$0xff]
    %v361 = vld [vmem:[#allocation2 + $0x8a8] sm:$0xff]
    %v362 = vld [vmem:[#allocation2 + $0x8b0] sm:$0xff]
    %v363 = vld [vmem:[#allocation2 + $0x8b8] sm:$0xff]
    %v364 = vld [vmem:[#allocation2 + $0x8c0] sm:$0xff]
    %v365 = vld [vmem:[#allocation2 + $0x8c8] sm:$0xff]
    %v366 = vld [vmem:[#allocation2 + $0x8d0] sm:$0xff]
    %v367 = vld [vmem:[#allocation2 + $0x8d8] sm:$0xff]
    %v368 = vld [vmem:[#allocation2 + $0x8e0] sm:$0xff]
    %v369 = vld [vmem:[#allocation2 + $0x8e8] sm:$0xff]
    %v370 = vld [vmem:[#allocation2 + $0x8f0] sm:$0xff]
    %v371 = vld [vmem:[#allocation2 + $0x8f8] sm:$0xff]
    %v372 = vld [vmem:[#allocation2 + $0x900] sm:$0xff]
    %v373 = vld [vmem:[#allocation2 + $0x908] sm:$0xff]
    %v374 = vld [vmem:[#allocation2 + $0x910] sm:$0xff]
    %v375 = vld [vmem:[#allocation2 + $0x918] sm:$0xff]
    %v376 = vld [vmem:[#allocation2 + $0x920] sm:$0xff]
    %v377 = vld [vmem:[#allocation2 + $0x928] sm:$0xff]
    %v378 = vld [vmem:[#allocation2 + $0x930] sm:$0xff]
    %v379 = vld [vmem:[#allocation2 + $0x938] sm:$0xff]
    %v380 = vld [vmem:[#allocation2 + $0x940] sm:$0xff]
    %v381 = vld [vmem:[#allocation2 + $0x948] sm:$0xff]
    %v382 = vld [vmem:[#allocation2 + $0x950] sm:$0xff]
    %v383 = vld [vmem:[#allocation2 + $0x958] sm:$0xff]
    %v384 = vld [vmem:[#allocation2 + $0x960] sm:$0xff]
    %v385 = vld [vmem:[#allocation2 + $0x968] sm:$0xff]
    %v386 = vld [vmem:[#allocation2 + $0x970] sm:$0xff]
    %v387 = vld [vmem:[#allocation2 + $0x978] sm:$0xff]
    %v388 = vld [vmem:[#allocation2 + $0x980] sm:$0xff]
    %v389 = vld [vmem:[#allocation2 + $0x988] sm:$0xff]
    %v390 = vld [vmem:[#allocation2 + $0x990] sm:$0xff]
    %v391 = vld [vmem:[#allocation2 + $0x998] sm:$0xff]
    %v392 = vld [vmem:[#allocation2 + $0x9a0] sm:$0xff]
    %v393 = vld [vmem:[#allocation2 + $0x9a8] sm:$0xff]
    %v394 = vld [vmem:[#allocation2 + $0x9b0] sm:$0xff]
    %v395 = vld [vmem:[#allocation2 + $0x9b8] sm:$0xff]
    %v396 = vld [vmem:[#allocation2 + $0x9c0] sm:$0xff]
    %v397 = vld [vmem:[#allocation2 + $0x9c8] sm:$0xff]
    %v398 = vld [vmem:[#allocation2 + $0x9d0] sm:$0xff]
    %v399 = vld [vmem:[#allocation2 + $0x9d8] sm:$0xff]
    %v400 = vld [vmem:[#allocation2 + $0x9e0] sm:$0xff]
    %v401 = vld [vmem:[#allocation2 + $0x9e8] sm:$0xff]
    %v402 = vld [vmem:[#allocation2 + $0x9f0] sm:$0xff]
    %v403 = vld [vmem:[#allocation2 + $0x9f8] sm:$0xff]
    %v404 = vld [vmem:[#allocation2 + $0xa00] sm:$0xff]
    %v405 = vld [vmem:[#allocation2 + $0xa08] sm:$0xff]
    %v406 = vld [vmem:[#allocation2 + $0xa10] sm:$0xff]
    %v407 = vld [vmem:[#allocation2 + $0xa18] sm:$0xff]
    %v408 = vld [vmem:[#allocation2 + $0xa20] sm:$0xff]
    %v409 = vld [vmem:[#allocation2 + $0xa28] sm:$0xff]
    %v410 = vld [vmem:[#allocation2 + $0xa30] sm:$0xff]
    %v411 = vld [vmem:[#allocation2 + $0xa38] sm:$0xff]
    %v412 = vld [vmem:[#allocation2 + $0xa40] sm:$0xff]
    %v413 = vld [vmem:[#allocation2 + $0xa48] sm:$0xff]
    %v414 = vld [vmem:[#allocation2 + $0xa50] sm:$0xff]
    %v415 = vld [vmem:[#allocation2 + $0xa58] sm:$0xff]
    %v416 = vld [vmem:[#allocation2 + $0xa60] sm:$0xff]
    %v417 = vld [vmem:[#allocation2 + $0xa68] sm:$0xff]
    %v418 = vld [vmem:[#allocation2 + $0xa70] sm:$0xff]
    %v419 = vld [vmem:[#allocation2 + $0xa78] sm:$0xff]
    %v420 = vld [vmem:[#allocation2 + $0xa80] sm:$0xff]
    %v421 = vld [vmem:[#allocation2 + $0xa88] sm:$0xff]
    %v422 = vld [vmem:[#allocation2 + $0xa90] sm:$0xff]
    %v423 = vld [vmem:[#allocation2 + $0xa98] sm:$0xff]
    %v424 = vld [vmem:[#allocation2 + $0xaa0] sm:$0xff]
    %v425 = vld [vmem:[#allocation2 + $0xaa8] sm:$0xff]
    %v426 = vld [vmem:[#allocation2 + $0xab0] sm:$0xff]
    %v427 = vld [vmem:[#allocation2 + $0xab8] sm:$0xff]
    %v428 = vld [vmem:[#allocation2 + $0xac0] sm:$0xff]
    %v429 = vld [vmem:[#allocation2 + $0xac8] sm:$0xff]
    %v430 = vld [vmem:[#allocation2 + $0xad0] sm:$0xff]
    %v431 = vld [vmem:[#allocation2 + $0xad8] sm:$0xff]
    %v432 = vld [vmem:[#allocation2 + $0xae0] sm:$0xff]
    %v433 = vld [vmem:[#allocation2 + $0xae8] sm:$0xff]
    %v434 = vld [vmem:[#allocation2 + $0xaf0] sm:$0xff]
    %v435 = vld [vmem:[#allocation2 + $0xaf8] sm:$0xff]
    %v436 = vld [vmem:[#allocation2 + $0xb00] sm:$0xff]
    %v437 = vld [vmem:[#allocation2 + $0xb08] sm:$0xff]
    %v438 = vld [vmem:[#allocation2 + $0xb10] sm:$0xff]
    %v439 = vld [vmem:[#allocation2 + $0xb18] sm:$0xff]
    %v440 = vld [vmem:[#allocation2 + $0xb20] sm:$0xff]
    %v441 = vld [vmem:[#allocation2 + $0xb28] sm:$0xff]
    %v442 = vld [vmem:[#allocation2 + $0xb30] sm:$0xff]
    %v443 = vld [vmem:[#allocation2 + $0xb38] sm:$0xff]
    %v444 = vld [vmem:[#allocation2 + $0xb40] sm:$0xff]
    %v445 = vld [vmem:[#allocation2 + $0xb48] sm:$0xff]
    %v446 = vld [vmem:[#allocation2 + $0xb50] sm:$0xff]
    %v447 = vld [vmem:[#allocation2 + $0xb58] sm:$0xff]
    %v448 = vld [vmem:[#allocation2 + $0xb60] sm:$0xff]
    %v449 = vld [vmem:[#allocation2 + $0xb68] sm:$0xff]
    %v450 = vld [vmem:[#allocation2 + $0xb70] sm:$0xff]
    %v451 = vld [vmem:[#allocation2 + $0xb78] sm:$0xff]
    %v452 = vld [vmem:[#allocation2 + $0xb80] sm:$0xff]
    %v453 = vld [vmem:[#allocation2 + $0xb88] sm:$0xff]
    %v454 = vld [vmem:[#allocation2 + $0xb90] sm:$0xff]
    %v455 = vld [vmem:[#allocation2 + $0xb98] sm:$0xff]
    %v456 = vld [vmem:[#allocation2 + $0xba0] sm:$0xff]
    %v457 = vld [vmem:[#allocation2 + $0xba8] sm:$0xff]
    %v458 = vld [vmem:[#allocation2 + $0xbb0] sm:$0xff]
    %v459 = vld [vmem:[#allocation2 + $0xbb8] sm:$0xff]
    %v460 = vld [vmem:[#allocation2 + $0xbc0] sm:$0xff]
    %v461 = vld [vmem:[#allocation2 + $0xbc8] sm:$0xff]
    %v462 = vld [vmem:[#allocation2 + $0xbd0] sm:$0xff]
    %v463 = vld [vmem:[#allocation2 + $0xbd8] sm:$0xff]
    %v464 = vld [vmem:[#allocation2 + $0xbe0] sm:$0xff]
    %v465 = vld [vmem:[#allocation2 + $0xbe8] sm:$0xff]
    %v466 = vld [vmem:[#allocation2 + $0xbf0] sm:$0xff]
    %v467 = vld [vmem:[#allocation2 + $0xbf8] sm:$0xff]
    %v468 = vld [vmem:[#allocation2 + $0xc00] sm:$0xff]
    %v469 = vld [vmem:[#allocation2 + $0xc08] sm:$0xff]
    %v470 = vld [vmem:[#allocation2 + $0xc10] sm:$0xff]
    %v471 = vld [vmem:[#allocation2 + $0xc18] sm:$0xff]
    %v472 = vld [vmem:[#allocation2 + $0xc20] sm:$0xff]
    %v473 = vld [vmem:[#allocation2 + $0xc28] sm:$0xff]
    %v474 = vld [vmem:[#allocation2 + $0xc30] sm:$0xff]
    %v475 = vld [vmem:[#allocation2 + $0xc38] sm:$0xff]
    %v476 = vld [vmem:[#allocation2 + $0xc40] sm:$0xff]
    %v477 = vld [vmem:[#allocation2 + $0xc48] sm:$0xff]
    %v478 = vld [vmem:[#allocation2 + $0xc50] sm:$0xff]
    %v479 = vld [vmem:[#allocation2 + $0xc58] sm:$0xff]
    %v480 = vld [vmem:[#allocation2 + $0xc60] sm:$0xff]
    %v481 = vld [vmem:[#allocation2 + $0xc68] sm:$0xff]
    %v482 = vld [vmem:[#allocation2 + $0xc70] sm:$0xff]
    %v483 = vld [vmem:[#allocation2 + $0xc78] sm:$0xff]
    %v484 = vld [vmem:[#allocation2 + $0xc80] sm:$0xff]
    %v485 = vld [vmem:[#allocation2 + $0xc88] sm:$0xff]
    %v486 = vld [vmem:[#allocation2 + $0xc90] sm:$0xff]
    %v487 = vld [vmem:[#allocation2 + $0xc98] sm:$0xff]
    %v488 = vld [vmem:[#allocation2 + $0xca0] sm:$0xff]
    %v489 = vld [vmem:[#allocation2 + $0xca8] sm:$0xff]
    %v490 = vld [vmem:[#allocation2 + $0xcb0] sm:$0xff]
    %v491 = vld [vmem:[#allocation2 + $0xcb8] sm:$0xff]
    %v492 = vld [vmem:[#allocation2 + $0xcc0] sm:$0xff]
    %v493 = vld [vmem:[#allocation2 + $0xcc8] sm:$0xff]
    %v494 = vld [vmem:[#allocation2 + $0xcd0] sm:$0xff]
    %v495 = vld [vmem:[#allocation2 + $0xcd8] sm:$0xff]
    %v496 = vld [vmem:[#allocation2 + $0xce0] sm:$0xff]
    %v497 = vld [vmem:[#allocation2 + $0xce8] sm:$0xff]
    %v498 = vld [vmem:[#allocation2 + $0xcf0] sm:$0xff]
    %v499 = vld [vmem:[#allocation2 + $0xcf8] sm:$0xff]
    %v500 = vld [vmem:[#allocation2 + $0xd00] sm:$0xff]
    %v501 = vld [vmem:[#allocation2 + $0xd08] sm:$0xff]
    %v502 = vld [vmem:[#allocation2 + $0xd10] sm:$0xff]
    %v503 = vld [vmem:[#allocation2 + $0xd18] sm:$0xff]
    %v504 = vld [vmem:[#allocation2 + $0xd20] sm:$0xff]
    %v505 = vld [vmem:[#allocation2 + $0xd28] sm:$0xff]
    %v506 = vld [vmem:[#allocation2 + $0xd30] sm:$0xff]
    %v507 = vld [vmem:[#allocation2 + $0xd38] sm:$0xff]
    %v508 = vld [vmem:[#allocation2 + $0xd40] sm:$0xff]
    %v509 = vld [vmem:[#allocation2 + $0xd48] sm:$0xff]
    %v510 = vld [vmem:[#allocation2 + $0xd50] sm:$0xff]
    %v511 = vld [vmem:[#allocation2 + $0xd58] sm:$0xff]
    %v512 = vld [vmem:[#allocation2 + $0xd60] sm:$0xff]
    %v513 = vld [vmem:[#allocation2 + $0xd68] sm:$0xff]
    %v514 = vld [vmem:[#allocation2 + $0xd70] sm:$0xff]
    %v515 = vld [vmem:[#allocation2 + $0xd78] sm:$0xff]
    %v516 = vld [vmem:[#allocation2 + $0xd80] sm:$0xff]
    %v517 = vld [vmem:[#allocation2 + $0xd88] sm:$0xff]
    %v518 = vld [vmem:[#allocation2 + $0xd90] sm:$0xff]
    %v519 = vld [vmem:[#allocation2 + $0xd98] sm:$0xff]
    %v520 = vld [vmem:[#allocation2 + $0xda0] sm:$0xff]
    %v521 = vld [vmem:[#allocation2 + $0xda8] sm:$0xff]
    %v522 = vld [vmem:[#allocation2 + $0xdb0] sm:$0xff]
    %v523 = vld [vmem:[#allocation2 + $0xdb8] sm:$0xff]
    %v524 = vld [vmem:[#allocation2 + $0xdc0] sm:$0xff]
    %v525 = vld [vmem:[#allocation2 + $0xdc8] sm:$0xff]
    %v526 = vld [vmem:[#allocation2 + $0xdd0] sm:$0xff]
    %v527 = vld [vmem:[#allocation2 + $0xdd8] sm:$0xff]
    %v528 = vld [vmem:[#allocation2 + $0xde0] sm:$0xff]
    %v529 = vld [vmem:[#allocation2 + $0xde8] sm:$0xff]
    %v530 = vld [vmem:[#allocation2 + $0xdf0] sm:$0xff]
    %v531 = vld [vmem:[#allocation2 + $0xdf8] sm:$0xff]
    %v532 = vld [vmem:[#allocation2 + $0xe00] sm:$0xff]
    %v533 = vld [vmem:[#allocation2 + $0xe08] sm:$0xff]
    %v534 = vld [vmem:[#allocation2 + $0xe10] sm:$0xff]
    %v535 = vld [vmem:[#allocation2 + $0xe18] sm:$0xff]
    %v536 = vld [vmem:[#allocation2 + $0xe20] sm:$0xff]
    %v537 = vld [vmem:[#allocation2 + $0xe28] sm:$0xff]
    %v538 = vld [vmem:[#allocation2 + $0xe30] sm:$0xff]
    %v539 = vld [vmem:[#allocation2 + $0xe38] sm:$0xff]
    %v540 = vld [vmem:[#allocation2 + $0xe40] sm:$0xff]
    %v541 = vld [vmem:[#allocation2 + $0xe48] sm:$0xff]
    %v542 = vld [vmem:[#allocation2 + $0xe50] sm:$0xff]
    %v543 = vld [vmem:[#allocation2 + $0xe58] sm:$0xff]
    %v544 = vld [vmem:[#allocation2 + $0xe60] sm:$0xff]
    %v545 = vld [vmem:[#allocation2 + $0xe68] sm:$0xff]
    %v546 = vld [vmem:[#allocation2 + $0xe70] sm:$0xff]
    %v547 = vld [vmem:[#allocation2 + $0xe78] sm:$0xff]
    %v548 = vld [vmem:[#allocation2 + $0xe80] sm:$0xff]
    %v549 = vld [vmem:[#allocation2 + $0xe88] sm:$0xff]
    %v550 = vld [vmem:[#allocation2 + $0xe90] sm:$0xff]
    %v551 = vld [vmem:[#allocation2 + $0xe98] sm:$0xff]
    %v552 = vld [vmem:[#allocation2 + $0xea0] sm:$0xff]
    %v553 = vld [vmem:[#allocation2 + $0xea8] sm:$0xff]
    %v554 = vld [vmem:[#allocation2 + $0xeb0] sm:$0xff]
    %v555 = vld [vmem:[#allocation2 + $0xeb8] sm:$0xff]
    %v556 = vld [vmem:[#allocation2 + $0xec0] sm:$0xff]
    %v557 = vld [vmem:[#allocation2 + $0xec8] sm:$0xff]
    %v558 = vld [vmem:[#allocation2 + $0xed0] sm:$0xff]
    %v559 = vld [vmem:[#allocation2 + $0xed8] sm:$0xff]
    %v560 = vld [vmem:[#allocation2 + $0xee0] sm:$0xff]
    %v561 = vld [vmem:[#allocation2 + $0xee8] sm:$0xff]
    %v562 = vld [vmem:[#allocation2 + $0xef0] sm:$0xff]
    %v563 = vld [vmem:[#allocation2 + $0xef8] sm:$0xff]
    %v564 = vld [vmem:[#allocation2 + $0xf00] sm:$0xff]
    %v565 = vld [vmem:[#allocation2 + $0xf08] sm:$0xff]
    %v566 = vld [vmem:[#allocation2 + $0xf10] sm:$0xff]
    %v567 = vld [vmem:[#allocation2 + $0xf18] sm:$0xff]
    %v568 = vld [vmem:[#allocation2 + $0xf20] sm:$0xff]
    %v569 = vld [vmem:[#allocation2 + $0xf28] sm:$0xff]
    %v570 = vld [vmem:[#allocation2 + $0xf30] sm:$0xff]
    %v571 = vld [vmem:[#allocation2 + $0xf38] sm:$0xff]
    %v572 = vld [vmem:[#allocation2 + $0xf40] sm:$0xff]
    %v573 = vld [vmem:[#allocation2 + $0xf48] sm:$0xff]
    %v574 = vld [vmem:[#allocation2 + $0xf50] sm:$0xff]
    %v575 = vld [vmem:[#allocation2 + $0xf58] sm:$0xff]
    %v576 = vld [vmem:[#allocation2 + $0xf60] sm:$0xff]
    %v577 = vld [vmem:[#allocation2 + $0xf68] sm:$0xff]
    %v578 = vld [vmem:[#allocation2 + $0xf70] sm:$0xff]
    %v579 = vld [vmem:[#allocation2 + $0xf78] sm:$0xff]
    %v580 = vld [vmem:[#allocation2 + $0xf80] sm:$0xff]
    %v581 = vld [vmem:[#allocation2 + $0xf88] sm:$0xff]
    %v582 = vld [vmem:[#allocation2 + $0xf90] sm:$0xff]
    %v583 = vld [vmem:[#allocation2 + $0xf98] sm:$0xff]
    %v584 = vld [vmem:[#allocation2 + $0xfa0] sm:$0xff]
    %v585 = vld [vmem:[#allocation2 + $0xfa8] sm:$0xff]
    %v586 = vld [vmem:[#allocation2 + $0xfb0] sm:$0xff]
    %v587 = vld [vmem:[#allocation2 + $0xfb8] sm:$0xff]
    %v588 = vld [vmem:[#allocation2 + $0xfc0] sm:$0xff]
    %v589 = vld [vmem:[#allocation2 + $0xfc8] sm:$0xff]
    %v590 = vld [vmem:[#allocation2 + $0xfd0] sm:$0xff]
    %v591 = vld [vmem:[#allocation2 + $0xfd8] sm:$0xff]
    %v592 = vld [vmem:[#allocation2 + $0xfe0] sm:$0xff]
    %v593 = vld [vmem:[#allocation2 + $0xfe8] sm:$0xff]
    %v594 = vld [vmem:[#allocation2 + $0xff0] sm:$0xff]
    %v595 = vld [vmem:[#allocation2 + $0xff8] sm:$0xff]
    %v596 = vld [vmem:[#allocation2 + $0x1000] sm:$0xff]
    %v597 = vld [vmem:[#allocation2 + $0x1008] sm:$0xff]
    %v598 = vld [vmem:[#allocation2 + $0x1010] sm:$0xff]
    %v599 = vld [vmem:[#allocation2 + $0x1018] sm:$0xff]
    %v600 = vld [vmem:[#allocation2 + $0x1020] sm:$0xff]
    %v601 = vld [vmem:[#allocation2 + $0x1028] sm:$0xff]
    %v602 = vld [vmem:[#allocation2 + $0x1030] sm:$0xff]
    %v603 = vld [vmem:[#allocation2 + $0x1038] sm:$0xff]
    %v604 = vld [vmem:[#allocation2 + $0x1040] sm:$0xff]
    %v605 = vld [vmem:[#allocation2 + $0x1048] sm:$0xff]
    %v606 = vld [vmem:[#allocation2 + $0x1050] sm:$0xff]
    %v607 = vld [vmem:[#allocation2 + $0x1058] sm:$0xff]
    %v608 = vld [vmem:[#allocation2 + $0x1060] sm:$0xff]
    %v609 = vld [vmem:[#allocation2 + $0x1068] sm:$0xff]
    %v610 = vld [vmem:[#allocation2 + $0x1070] sm:$0xff]
    %v611 = vld [vmem:[#allocation2 + $0x1078] sm:$0xff]
    %v612 = vld [vmem:[#allocation2 + $0x1080] sm:$0xff]
    %v613 = vld [vmem:[#allocation2 + $0x1088] sm:$0xff]
    %v614 = vld [vmem:[#allocation2 + $0x1090] sm:$0xff]
    %v615 = vld [vmem:[#allocation2 + $0x1098] sm:$0xff]
    %v616 = vld [vmem:[#allocation2 + $0x10a0] sm:$0xff]
    %v617 = vld [vmem:[#allocation2 + $0x10a8] sm:$0xff]
    %v618 = vld [vmem:[#allocation2 + $0x10b0] sm:$0xff]
    %v619 = vld [vmem:[#allocation2 + $0x10b8] sm:$0xff]
    %v620 = vld [vmem:[#allocation2 + $0x10c0] sm:$0xff]
    %v621 = vld [vmem:[#allocation2 + $0x10c8] sm:$0xff]
    %v622 = vld [vmem:[#allocation2 + $0x10d0] sm:$0xff]
    %v623 = vld [vmem:[#allocation2 + $0x10d8] sm:$0xff]
    %v624 = vld [vmem:[#allocation2 + $0x10e0] sm:$0xff]
    %v625 = vld [vmem:[#allocation2 + $0x10e8] sm:$0xff]
    %v626 = vld [vmem:[#allocation2 + $0x10f0] sm:$0xff]
    %v627 = vld [vmem:[#allocation2 + $0x10f8] sm:$0xff]
    %v628 = vld [vmem:[#allocation2 + $0x1100] sm:$0xff]
    %v629 = vld [vmem:[#allocation2 + $0x1108] sm:$0xff]
    %v630 = vld [vmem:[#allocation2 + $0x1110] sm:$0xff]
    %v631 = vld [vmem:[#allocation2 + $0x1118] sm:$0xff]
    %v632 = vld [vmem:[#allocation2 + $0x1120] sm:$0xff]
    %v633 = vld [vmem:[#allocation2 + $0x1128] sm:$0xff]
    %v634 = vld [vmem:[#allocation2 + $0x1130] sm:$0xff]
    %v635 = vld [vmem:[#allocation2 + $0x1138] sm:$0xff]
    %v636 = vld [vmem:[#allocation2 + $0x1140] sm:$0xff]
    %v637 = vld [vmem:[#allocation2 + $0x1148] sm:$0xff]
    %v638 = vld [vmem:[#allocation2 + $0x1150] sm:$0xff]
    %v639 = vld [vmem:[#allocation2 + $0x1158] sm:$0xff]
    %v640 = vld [vmem:[#allocation2 + $0x1160] sm:$0xff]
    %v641 = vld [vmem:[#allocation2 + $0x1168] sm:$0xff]
    %v642 = vld [vmem:[#allocation2 + $0x1170] sm:$0xff]
    %v643 = vld [vmem:[#allocation2 + $0x1178] sm:$0xff]
    %v644 = vld [vmem:[#allocation2 + $0x1180] sm:$0xff]
    %v645 = vld [vmem:[#allocation2 + $0x1188] sm:$0xff]
    %v646 = vld [vmem:[#allocation2 + $0x1190] sm:$0xff]
    %v647 = vld [vmem:[#allocation2 + $0x1198] sm:$0xff]
    %v648 = vld [vmem:[#allocation2 + $0x11a0] sm:$0xff]
    %v649 = vld [vmem:[#allocation2 + $0x11a8] sm:$0xff]
    %v650 = vld [vmem:[#allocation2 + $0x11b0] sm:$0xff]
    %v651 = vld [vmem:[#allocation2 + $0x11b8] sm:$0xff]
    %v652 = vld [vmem:[#allocation2 + $0x11c0] sm:$0xff]
    %v653 = vld [vmem:[#allocation2 + $0x11c8] sm:$0xff]
    %v654 = vld [vmem:[#allocation2 + $0x11d0] sm:$0xff]
    %v655 = vld [vmem:[#allocation2 + $0x11d8] sm:$0xff]
    %v656 = vld [vmem:[#allocation2 + $0x11e0] sm:$0xff]
    %v657 = vld [vmem:[#allocation2 + $0x11e8] sm:$0xff]
    %v658 = vld [vmem:[#allocation2 + $0x11f0] sm:$0xff]
    %v659 = vld [vmem:[#allocation2 + $0x11f8] sm:$0xff]
    %v660 = vld [vmem:[#allocation2 + $0x1200] sm:$0xff]
    %v661 = vld [vmem:[#allocation2 + $0x1208] sm:$0xff]
    %v662 = vld [vmem:[#allocation2 + $0x1210] sm:$0xff]
    %v663 = vld [vmem:[#allocation2 + $0x1218] sm:$0xff]
    %v664 = vld [vmem:[#allocation2 + $0x1220] sm:$0xff]
    %v665 = vld [vmem:[#allocation2 + $0x1228] sm:$0xff]
    %v666 = vld [vmem:[#allocation2 + $0x1230] sm:$0xff]
    %v667 = vld [vmem:[#allocation2 + $0x1238] sm:$0xff]
    %v668 = vld [vmem:[#allocation2 + $0x1240] sm:$0xff]
    %v669 = vld [vmem:[#allocation2 + $0x1248] sm:$0xff]
    %v670 = vld [vmem:[#allocation2 + $0x1250] sm:$0xff]
    %v671 = vld [vmem:[#allocation2 + $0x1258] sm:$0xff]
    %v672 = vld [vmem:[#allocation2 + $0x1260] sm:$0xff]
    %v673 = vld [vmem:[#allocation2 + $0x1268] sm:$0xff]
    %v674 = vld [vmem:[#allocation2 + $0x1270] sm:$0xff]
    %v675 = vld [vmem:[#allocation2 + $0x1278] sm:$0xff]
    %v676 = vld [vmem:[#allocation2 + $0x1280] sm:$0xff]
    %v677 = vld [vmem:[#allocation2 + $0x1288] sm:$0xff]
    %v678 = vld [vmem:[#allocation2 + $0x1290] sm:$0xff]
    %v679 = vld [vmem:[#allocation2 + $0x1298] sm:$0xff]
    %v680 = vld [vmem:[#allocation2 + $0x12a0] sm:$0xff]
    %v681 = vld [vmem:[#allocation2 + $0x12a8] sm:$0xff]
    %v682 = vld [vmem:[#allocation2 + $0x12b0] sm:$0xff]
    %v683 = vld [vmem:[#allocation2 + $0x12b8] sm:$0xff]
    %v684 = vld [vmem:[#allocation2 + $0x12c0] sm:$0xff]
    %v685 = vld [vmem:[#allocation2 + $0x12c8] sm:$0xff]
    %v686 = vld [vmem:[#allocation2 + $0x12d0] sm:$0xff]
    %v687 = vld [vmem:[#allocation2 + $0x12d8] sm:$0xff]
    %v688 = vld [vmem:[#allocation2 + $0x12e0] sm:$0xff]
    %v689 = vld [vmem:[#allocation2 + $0x12e8] sm:$0xff]
    %v690 = vld [vmem:[#allocation2 + $0x12f0] sm:$0xff]
    %v691 = vld [vmem:[#allocation2 + $0x12f8] sm:$0xff]
    %v692 = vld [vmem:[#allocation2 + $0x1300] sm:$0xff]
    %v693 = vld [vmem:[#allocation2 + $0x1308] sm:$0xff]
    %v694 = vld [vmem:[#allocation2 + $0x1310] sm:$0xff]
    %v695 = vld [vmem:[#allocation2 + $0x1318] sm:$0xff]
    %v696 = vld [vmem:[#allocation2 + $0x1320] sm:$0xff]
    %v697 = vld [vmem:[#allocation2 + $0x1328] sm:$0xff]
    %v698 = vld [vmem:[#allocation2 + $0x1330] sm:$0xff]
    %v699 = vld [vmem:[#allocation2 + $0x1338] sm:$0xff]
    %v700 = vld [vmem:[#allocation2 + $0x1340] sm:$0xff]
    %v701 = vld [vmem:[#allocation2 + $0x1348] sm:$0xff]
    %v702 = vld [vmem:[#allocation2 + $0x1350] sm:$0xff]
    %v703 = vld [vmem:[#allocation2 + $0x1358] sm:$0xff]
    %v704 = vld [vmem:[#allocation2 + $0x1360] sm:$0xff]
    %v705 = vld [vmem:[#allocation2 + $0x1368] sm:$0xff]
    %v706 = vld [vmem:[#allocation2 + $0x1370] sm:$0xff]
    %v707 = vld [vmem:[#allocation2 + $0x1378] sm:$0xff]
    %v708 = vld [vmem:[#allocation2 + $0x1380] sm:$0xff]
    %v709 = vld [vmem:[#allocation2 + $0x1388] sm:$0xff]
    %v710 = vld [vmem:[#allocation2 + $0x1390] sm:$0xff]
    %v711 = vld [vmem:[#allocation2 + $0x1398] sm:$0xff]
    %v712 = vld [vmem:[#allocation2 + $0x13a0] sm:$0xff]
    %v713 = vld [vmem:[#allocation2 + $0x13a8] sm:$0xff]
    %v714 = vld [vmem:[#allocation2 + $0x13b0] sm:$0xff]
    %v715 = vld [vmem:[#allocation2 + $0x13b8] sm:$0xff]
    %v716 = vld [vmem:[#allocation2 + $0x13c0] sm:$0xff]
    %v717 = vld [vmem:[#allocation2 + $0x13c8] sm:$0xff]
    %v718 = vld [vmem:[#allocation2 + $0x13d0] sm:$0xff]
    %v719 = vld [vmem:[#allocation2 + $0x13d8] sm:$0xff]
    %v720 = vld [vmem:[#allocation2 + $0x13e0] sm:$0xff]
    %v721 = vld [vmem:[#allocation2 + $0x13e8] sm:$0xff]
    %v722 = vld [vmem:[#allocation2 + $0x13f0] sm:$0xff]
    %v723 = vld [vmem:[#allocation2 + $0x13f8] sm:$0xff]
    %v724 = vld [vmem:[#allocation2 + $0x1400] sm:$0xff]
    %v725 = vld [vmem:[#allocation2 + $0x1408] sm:$0xff]
    %v726 = vld [vmem:[#allocation2 + $0x1410] sm:$0xff]
    %v727 = vld [vmem:[#allocation2 + $0x1418] sm:$0xff]
    %v728 = vld [vmem:[#allocation2 + $0x1420] sm:$0xff]
    %v729 = vld [vmem:[#allocation2 + $0x1428] sm:$0xff]
    %v730 = vld [vmem:[#allocation2 + $0x1430] sm:$0xff]
    %v731 = vld [vmem:[#allocation2 + $0x1438] sm:$0xff]
    %v732 = vld [vmem:[#allocation2 + $0x1440] sm:$0xff]
    %v733 = vld [vmem:[#allocation2 + $0x1448] sm:$0xff]
    %v734 = vld [vmem:[#allocation2 + $0x1450] sm:$0xff]
    %v735 = vld [vmem:[#allocation2 + $0x1458] sm:$0xff]
    %v736 = vld [vmem:[#allocation2 + $0x1460] sm:$0xff]
    %v737 = vld [vmem:[#allocation2 + $0x1468] sm:$0xff]
    %v738 = vld [vmem:[#allocation2 + $0x1470] sm:$0xff]
    %v739 = vld [vmem:[#allocation2 + $0x1478] sm:$0xff]
    %v740 = vld [vmem:[#allocation2 + $0x1480] sm:$0xff]
    %v741 = vld [vmem:[#allocation2 + $0x1488] sm:$0xff]
    %v742 = vld [vmem:[#allocation2 + $0x1490] sm:$0xff]
    %v743 = vld [vmem:[#allocation2 + $0x1498] sm:$0xff]
    %v744 = vld [vmem:[#allocation2 + $0x14a0] sm:$0xff]
    %v745 = vld [vmem:[#allocation2 + $0x14a8] sm:$0xff]
    %v746 = vld [vmem:[#allocation2 + $0x14b0] sm:$0xff]
    %v747 = vld [vmem:[#allocation2 + $0x14b8] sm:$0xff]
    %v748 = vld [vmem:[#allocation2 + $0x14c0] sm:$0xff]
    %v749 = vld [vmem:[#allocation2 + $0x14c8] sm:$0xff]
    %v750 = vld [vmem:[#allocation2 + $0x14d0] sm:$0xff]
    %v751 = vld [vmem:[#allocation2 + $0x14d8] sm:$0xff]
    %v752 = vld [vmem:[#allocation2 + $0x14e0] sm:$0xff]
    %v753 = vld [vmem:[#allocation2 + $0x14e8] sm:$0xff]
    %v754 = vld [vmem:[#allocation2 + $0x14f0] sm:$0xff]
    %v755 = vld [vmem:[#allocation2 + $0x14f8] sm:$0xff]
    %v756 = vld [vmem:[#allocation2 + $0x1500] sm:$0xff]
    %v757 = vld [vmem:[#allocation2 + $0x1508] sm:$0xff]
    %v758 = vld [vmem:[#allocation2 + $0x1510] sm:$0xff]
    %v759 = vld [vmem:[#allocation2 + $0x1518] sm:$0xff]
    %v760 = vld [vmem:[#allocation2 + $0x1520] sm:$0xff]
    %v761 = vld [vmem:[#allocation2 + $0x1528] sm:$0xff]
    %v762 = vld [vmem:[#allocation2 + $0x1530] sm:$0xff]
    %v763 = vld [vmem:[#allocation2 + $0x1538] sm:$0xff]
    %v764 = vld [vmem:[#allocation2 + $0x1540] sm:$0xff]
    %v765 = vld [vmem:[#allocation2 + $0x1548] sm:$0xff]
    %v766 = vld [vmem:[#allocation2 + $0x1550] sm:$0xff]
    %v767 = vld [vmem:[#allocation2 + $0x1558] sm:$0xff]
    %v768 = vld [vmem:[#allocation2 + $0x1560] sm:$0xff]
    %v769 = vld [vmem:[#allocation2 + $0x1568] sm:$0xff]
    %v770 = vld [vmem:[#allocation2 + $0x1570] sm:$0xff]
    %v771 = vld [vmem:[#allocation2 + $0x1578] sm:$0xff]
    %v772 = vld [vmem:[#allocation2 + $0x1580] sm:$0xff]
    %v773 = vld [vmem:[#allocation2 + $0x1588] sm:$0xff]
    %v774 = vld [vmem:[#allocation2 + $0x1590] sm:$0xff]
    %v775 = vld [vmem:[#allocation2 + $0x1598] sm:$0xff]
    %v776 = vld [vmem:[#allocation2 + $0x15a0] sm:$0xff]
    %v777 = vld [vmem:[#allocation2 + $0x15a8] sm:$0xff]
    %v778 = vld [vmem:[#allocation2 + $0x15b0] sm:$0xff]
    %v779 = vld [vmem:[#allocation2 + $0x15b8] sm:$0xff]
    %v780 = vld [vmem:[#allocation2 + $0x15c0] sm:$0xff]
    %v781 = vld [vmem:[#allocation2 + $0x15c8] sm:$0xff]
    %v782 = vld [vmem:[#allocation2 + $0x15d0] sm:$0xff]
    %v783 = vld [vmem:[#allocation2 + $0x15d8] sm:$0xff]
    %v784 = vld [vmem:[#allocation2 + $0x15e0] sm:$0xff]
    %v785 = vld [vmem:[#allocation2 + $0x15e8] sm:$0xff]
    %v786 = vld [vmem:[#allocation2 + $0x15f0] sm:$0xff]
    %v787 = vld [vmem:[#allocation2 + $0x15f8] sm:$0xff]
    %v788 = vld [vmem:[#allocation2 + $0x1600] sm:$0xff]
    %v789 = vld [vmem:[#allocation2 + $0x1608] sm:$0xff]
    %v790 = vld [vmem:[#allocation2 + $0x1610] sm:$0xff]
    %v791 = vld [vmem:[#allocation2 + $0x1618] sm:$0xff]
    %v792 = vld [vmem:[#allocation2 + $0x1620] sm:$0xff]
    %v793 = vld [vmem:[#allocation2 + $0x1628] sm:$0xff]
    %v794 = vld [vmem:[#allocation2 + $0x1630] sm:$0xff]
    %v795 = vld [vmem:[#allocation2 + $0x1638] sm:$0xff]
    %v796 = vld [vmem:[#allocation2 + $0x1640] sm:$0xff]
    %v797 = vld [vmem:[#allocation2 + $0x1648] sm:$0xff]
    %v798 = vld [vmem:[#allocation2 + $0x1650] sm:$0xff]
    %v799 = vld [vmem:[#allocation2 + $0x1658] sm:$0xff]
    %v800 = vld [vmem:[#allocation2 + $0x1660] sm:$0xff]
    %v801 = vld [vmem:[#allocation2 + $0x1668] sm:$0xff]
    %v802 = vld [vmem:[#allocation2 + $0x1670] sm:$0xff]
    %v803 = vld [vmem:[#allocation2 + $0x1678] sm:$0xff]
    %v804 = vld [vmem:[#allocation2 + $0x1680] sm:$0xff]
    %v805 = vld [vmem:[#allocation2 + $0x1688] sm:$0xff]
    %v806 = vld [vmem:[#allocation2 + $0x1690] sm:$0xff]
    %v807 = vld [vmem:[#allocation2 + $0x1698] sm:$0xff]
    %v808 = vld [vmem:[#allocation2 + $0x16a0] sm:$0xff]
    %v809 = vld [vmem:[#allocation2 + $0x16a8] sm:$0xff]
    %v810 = vld [vmem:[#allocation2 + $0x16b0] sm:$0xff]
    %v811 = vld [vmem:[#allocation2 + $0x16b8] sm:$0xff]
    %v812 = vld [vmem:[#allocation2 + $0x16c0] sm:$0xff]
    %v813 = vld [vmem:[#allocation2 + $0x16c8] sm:$0xff]
    %v814 = vld [vmem:[#allocation2 + $0x16d0] sm:$0xff]
    %v815 = vld [vmem:[#allocation2 + $0x16d8] sm:$0xff]
    %v816 = vld [vmem:[#allocation2 + $0x16e0] sm:$0xff]
    %v817 = vld [vmem:[#allocation2 + $0x16e8] sm:$0xff]
    %v818 = vld [vmem:[#allocation2 + $0x16f0] sm:$0xff]
    %v819 = vld [vmem:[#allocation2 + $0x16f8] sm:$0xff]
    %v820 = vld [vmem:[#allocation2 + $0x1700] sm:$0xff]
    %v821 = vld [vmem:[#allocation2 + $0x1708] sm:$0xff]
    %v822 = vld [vmem:[#allocation2 + $0x1710] sm:$0xff]
    %v823 = vld [vmem:[#allocation2 + $0x1718] sm:$0xff]
    %v824 = vld [vmem:[#allocation2 + $0x1720] sm:$0xff]
    %v825 = vld [vmem:[#allocation2 + $0x1728] sm:$0xff]
    %v826 = vld [vmem:[#allocation2 + $0x1730] sm:$0xff]
    %v827 = vld [vmem:[#allocation2 + $0x1738] sm:$0xff]
    %v828 = vld [vmem:[#allocation2 + $0x1740] sm:$0xff]
    %v829 = vld [vmem:[#allocation2 + $0x1748] sm:$0xff]
    %v830 = vld [vmem:[#allocation2 + $0x1750] sm:$0xff]
    %v831 = vld [vmem:[#allocation2 + $0x1758] sm:$0xff]
    %v832 = vld [vmem:[#allocation2 + $0x1760] sm:$0xff]
    %v833 = vld [vmem:[#allocation2 + $0x1768] sm:$0xff]
    %v834 = vld [vmem:[#allocation2 + $0x1770] sm:$0xff]
    %v835 = vld [vmem:[#allocation2 + $0x1778] sm:$0xff]
    %v836 = vld [vmem:[#allocation2 + $0x1780] sm:$0xff]
    %v837 = vld [vmem:[#allocation2 + $0x1788] sm:$0xff]
    %v838 = vld [vmem:[#allocation2 + $0x1790] sm:$0xff]
    %v839 = vld [vmem:[#allocation2 + $0x1798] sm:$0xff]
    %v840 = vld [vmem:[#allocation2 + $0x17a0] sm:$0xff]
    %v841 = vld [vmem:[#allocation2 + $0x17a8] sm:$0xff]
    %v842 = vld [vmem:[#allocation2 + $0x17b0] sm:$0xff]
    %v843 = vld [vmem:[#allocation2 + $0x17b8] sm:$0xff]
    %v844 = vld [vmem:[#allocation2 + $0x17c0] sm:$0xff]
    %v845 = vld [vmem:[#allocation2 + $0x17c8] sm:$0xff]
    %v846 = vld [vmem:[#allocation2 + $0x17d0] sm:$0xff]
    %v847 = vld [vmem:[#allocation2 + $0x17d8] sm:$0xff]
    %v848 = vld [vmem:[#allocation2 + $0x17e0] sm:$0xff]
    %v849 = vld [vmem:[#allocation2 + $0x17e8] sm:$0xff]
    %v850 = vld [vmem:[#allocation2 + $0x17f0] sm:$0xff]
    %v851 = vld [vmem:[#allocation2 + $0x17f8] sm:$0xff]
    %v852 = vld [vmem:[#allocation2 + $0x1800] sm:$0xff]
    %v853 = vld [vmem:[#allocation2 + $0x1808] sm:$0xff]
    %v854 = vld [vmem:[#allocation2 + $0x1810] sm:$0xff]
    %v855 = vld [vmem:[#allocation2 + $0x1818] sm:$0xff]
    %v856 = vld [vmem:[#allocation2 + $0x1820] sm:$0xff]
    %v857 = vld [vmem:[#allocation2 + $0x1828] sm:$0xff]
    %v858 = vld [vmem:[#allocation2 + $0x1830] sm:$0xff]
    %v859 = vld [vmem:[#allocation2 + $0x1838] sm:$0xff]
    %v860 = vld [vmem:[#allocation2 + $0x1840] sm:$0xff]
    %v861 = vld [vmem:[#allocation2 + $0x1848] sm:$0xff]
    %v862 = vld [vmem:[#allocation2 + $0x1850] sm:$0xff]
    %v863 = vld [vmem:[#allocation2 + $0x1858] sm:$0xff]
    %v864 = vld [vmem:[#allocation2 + $0x1860] sm:$0xff]
    %v865 = vld [vmem:[#allocation2 + $0x1868] sm:$0xff]
    %v866 = vld [vmem:[#allocation2 + $0x1870] sm:$0xff]
    %v867 = vld [vmem:[#allocation2 + $0x1878] sm:$0xff]
    %v868 = vld [vmem:[#allocation2 + $0x1880] sm:$0xff]
    %v869 = vld [vmem:[#allocation2 + $0x1888] sm:$0xff]
    %v870 = vld [vmem:[#allocation2 + $0x1890] sm:$0xff]
    %v871 = vld [vmem:[#allocation2 + $0x1898] sm:$0xff]
    %v872 = vld [vmem:[#allocation2 + $0x18a0] sm:$0xff]
    %v873 = vld [vmem:[#allocation2 + $0x18a8] sm:$0xff]
    %v874 = vld [vmem:[#allocation2 + $0x18b0] sm:$0xff]
    %v875 = vld [vmem:[#allocation2 + $0x18b8] sm:$0xff]
    %v876 = vld [vmem:[#allocation2 + $0x18c0] sm:$0xff]
    %v877 = vld [vmem:[#allocation2 + $0x18c8] sm:$0xff]
    %v878 = vld [vmem:[#allocation2 + $0x18d0] sm:$0xff]
    %v879 = vld [vmem:[#allocation2 + $0x18d8] sm:$0xff]
    %v880 = vld [vmem:[#allocation2 + $0x18e0] sm:$0xff]
    %v881 = vld [vmem:[#allocation2 + $0x18e8] sm:$0xff]
    %v882 = vld [vmem:[#allocation2 + $0x18f0] sm:$0xff]
    %v883 = vld [vmem:[#allocation2 + $0x18f8] sm:$0xff]
    %v884 = vld [vmem:[#allocation4] sm:$0xff]
    %v885 = vld [vmem:[#allocation4 + $0x8] sm:$0x3]
    %v888 = vperm.slane %v884, 0
    %v889 = vperm.slane %v884, 1
    %v890 = vperm.slane %v884, 2
    %v891 = vperm.slane %v884, 3
    %v892 = vperm.slane %v884, 4
    %v893 = vperm.slane %v884, 5
    %v894 = vperm.slane %v884, 6
    %v895 = vperm.slane %v884, 7
    %v896 = vperm.slane %v885, 0
    %v897 = vperm.slane %v885, 1
    %v913 = vunpack.c.l.b16 %v79
    %v914 = vunpack.c.h.b16 %v79
    %v915 = vunpack.c.l.b16 %v80
    %v916 = vunpack.c.h.b16 %v80
    %v917 = vunpack.c.l.b16 %v81
    %v918 = vunpack.c.h.b16 %v81
    %v919 = vunpack.c.l.b16 %v82
    %v920 = vunpack.c.h.b16 %v82
    %v921 = vunpack.c.l.b16 %v83
    %v922 = vunpack.c.h.b16 %v83
    %v923 = vpack.c.b16 %v913, %v913
    %v924 = vpack.c.b16 %v914, %v914
    %v925 = vpack.c.b16 %v915, %v915
    %v926 = vpack.c.b16 %v916, %v916
    %v927 = vpack.c.b16 %v917, %v917
    %v928 = vpack.c.b16 %v918, %v918
    %v929 = vpack.c.b16 %v919, %v919
    %v930 = vpack.c.b16 %v920, %v920
    %v931 = vpack.c.b16 %v921, %v921
    %v932 = vpack.c.b16 %v922, %v922
    %v1743 = vunpack.c.l.b16 %v84
    %v1744 = vunpack.c.h.b16 %v84
    %v1745 = vunpack.c.l.b16 %v85
    %v1746 = vunpack.c.h.b16 %v85
    %v1747 = vunpack.c.l.b16 %v86
    %v1748 = vunpack.c.h.b16 %v86
    %v1749 = vunpack.c.l.b16 %v87
    %v1750 = vunpack.c.h.b16 %v87
    %v1751 = vunpack.c.l.b16 %v88
    %v1752 = vunpack.c.h.b16 %v88
    %v1753 = vunpack.c.l.b16 %v89
    %v1754 = vunpack.c.h.b16 %v89
    %v1755 = vunpack.c.l.b16 %v90
    %v1756 = vunpack.c.h.b16 %v90
    %v1757 = vunpack.c.l.b16 %v91
    %v1758 = vunpack.c.h.b16 %v91
    %v1759 = vunpack.c.l.b16 %v92
    %v1760 = vunpack.c.h.b16 %v92
    %v1761 = vunpack.c.l.b16 %v93
    %v1762 = vunpack.c.h.b16 %v93
    %v1763 = vunpack.c.l.b16 %v94
    %v1764 = vunpack.c.h.b16 %v94
    %v1765 = vunpack.c.l.b16 %v95
    %v1766 = vunpack.c.h.b16 %v95
    %v1767 = vunpack.c.l.b16 %v96
    %v1768 = vunpack.c.h.b16 %v96
    %v1769 = vunpack.c.l.b16 %v97
    %v1770 = vunpack.c.h.b16 %v97
    %v1771 = vunpack.c.l.b16 %v98
    %v1772 = vunpack.c.h.b16 %v98
    %v1773 = vunpack.c.l.b16 %v99
    %v1774 = vunpack.c.h.b16 %v99
    %v1775 = vunpack.c.l.b16 %v100
    %v1776 = vunpack.c.h.b16 %v100
    %v1777 = vunpack.c.l.b16 %v101
    %v1778 = vunpack.c.h.b16 %v101
    %v1779 = vunpack.c.l.b16 %v102
    %v1780 = vunpack.c.h.b16 %v102
    %v1781 = vunpack.c.l.b16 %v103
    %v1782 = vunpack.c.h.b16 %v103
    %v1783 = vunpack.c.l.b16 %v104
    %v1784 = vunpack.c.h.b16 %v104
    %v1785 = vunpack.c.l.b16 %v105
    %v1786 = vunpack.c.h.b16 %v105
    %v1787 = vunpack.c.l.b16 %v106
    %v1788 = vunpack.c.h.b16 %v106
    %v1789 = vunpack.c.l.b16 %v107
    %v1790 = vunpack.c.h.b16 %v107
    %v1791 = vunpack.c.l.b16 %v108
    %v1792 = vunpack.c.h.b16 %v108
    %v1793 = vunpack.c.l.b16 %v109
    %v1794 = vunpack.c.h.b16 %v109
    %v1795 = vunpack.c.l.b16 %v110
    %v1796 = vunpack.c.h.b16 %v110
    %v1797 = vunpack.c.l.b16 %v111
    %v1798 = vunpack.c.h.b16 %v111
    %v1799 = vunpack.c.l.b16 %v112
    %v1800 = vunpack.c.h.b16 %v112
    %v1801 = vunpack.c.l.b16 %v113
    %v1802 = vunpack.c.h.b16 %v113
    %v1803 = vunpack.c.l.b16 %v114
    %v1804 = vunpack.c.h.b16 %v114
    %v1805 = vunpack.c.l.b16 %v115
    %v1806 = vunpack.c.h.b16 %v115
    %v1807 = vunpack.c.l.b16 %v116
    %v1808 = vunpack.c.h.b16 %v116
    %v1809 = vunpack.c.l.b16 %v117
    %v1810 = vunpack.c.h.b16 %v117
    %v1811 = vunpack.c.l.b16 %v118
    %v1812 = vunpack.c.h.b16 %v118
    %v1813 = vunpack.c.l.b16 %v119
    %v1814 = vunpack.c.h.b16 %v119
    %v1815 = vunpack.c.l.b16 %v120
    %v1816 = vunpack.c.h.b16 %v120
    %v1817 = vunpack.c.l.b16 %v121
    %v1818 = vunpack.c.h.b16 %v121
    %v1819 = vunpack.c.l.b16 %v122
    %v1820 = vunpack.c.h.b16 %v122
    %v1821 = vunpack.c.l.b16 %v123
    %v1822 = vunpack.c.h.b16 %v123
    %v1823 = vunpack.c.l.b16 %v124
    %v1824 = vunpack.c.h.b16 %v124
    %v1825 = vunpack.c.l.b16 %v125
    %v1826 = vunpack.c.h.b16 %v125
    %v1827 = vunpack.c.l.b16 %v126
    %v1828 = vunpack.c.h.b16 %v126
    %v1829 = vunpack.c.l.b16 %v127
    %v1830 = vunpack.c.h.b16 %v127
    %v1831 = vunpack.c.l.b16 %v128
    %v1832 = vunpack.c.h.b16 %v128
    %v1833 = vunpack.c.l.b16 %v129
    %v1834 = vunpack.c.h.b16 %v129
    %v1835 = vunpack.c.l.b16 %v130
    %v1836 = vunpack.c.h.b16 %v130
    %v1837 = vunpack.c.l.b16 %v131
    %v1838 = vunpack.c.h.b16 %v131
    %v1839 = vunpack.c.l.b16 %v132
    %v1840 = vunpack.c.h.b16 %v132
    %v1841 = vunpack.c.l.b16 %v133
    %v1842 = vunpack.c.h.b16 %v133
    %v1843 = vunpack.c.l.b16 %v134
    %v1844 = vunpack.c.h.b16 %v134
    %v1845 = vunpack.c.l.b16 %v135
    %v1846 = vunpack.c.h.b16 %v135
    %v1847 = vunpack.c.l.b16 %v136
    %v1848 = vunpack.c.h.b16 %v136
    %v1849 = vunpack.c.l.b16 %v137
    %v1850 = vunpack.c.h.b16 %v137
    %v1851 = vunpack.c.l.b16 %v138
    %v1852 = vunpack.c.h.b16 %v138
    %v1853 = vunpack.c.l.b16 %v139
    %v1854 = vunpack.c.h.b16 %v139
    %v1855 = vunpack.c.l.b16 %v140
    %v1856 = vunpack.c.h.b16 %v140
    %v1857 = vunpack.c.l.b16 %v141
    %v1858 = vunpack.c.h.b16 %v141
    %v1859 = vunpack.c.l.b16 %v142
    %v1860 = vunpack.c.h.b16 %v142
    %v1861 = vunpack.c.l.b16 %v143
    %v1862 = vunpack.c.h.b16 %v143
    %v1863 = vunpack.c.l.b16 %v144
    %v1864 = vunpack.c.h.b16 %v144
    %v1865 = vunpack.c.l.b16 %v145
    %v1866 = vunpack.c.h.b16 %v145
    %v1867 = vunpack.c.l.b16 %v146
    %v1868 = vunpack.c.h.b16 %v146
    %v1869 = vunpack.c.l.b16 %v147
    %v1870 = vunpack.c.h.b16 %v147
    %v1871 = vunpack.c.l.b16 %v148
    %v1872 = vunpack.c.h.b16 %v148
    %v1873 = vunpack.c.l.b16 %v149
    %v1874 = vunpack.c.h.b16 %v149
    %v1875 = vunpack.c.l.b16 %v150
    %v1876 = vunpack.c.h.b16 %v150
    %v1877 = vunpack.c.l.b16 %v151
    %v1878 = vunpack.c.h.b16 %v151
    %v1879 = vunpack.c.l.b16 %v152
    %v1880 = vunpack.c.h.b16 %v152
    %v1881 = vunpack.c.l.b16 %v153
    %v1882 = vunpack.c.h.b16 %v153
    %v1883 = vunpack.c.l.b16 %v154
    %v1884 = vunpack.c.h.b16 %v154
    %v1885 = vunpack.c.l.b16 %v155
    %v1886 = vunpack.c.h.b16 %v155
    %v1887 = vunpack.c.l.b16 %v156
    %v1888 = vunpack.c.h.b16 %v156
    %v1889 = vunpack.c.l.b16 %v157
    %v1890 = vunpack.c.h.b16 %v157
    %v1891 = vunpack.c.l.b16 %v158
    %v1892 = vunpack.c.h.b16 %v158
    %v1893 = vunpack.c.l.b16 %v159
    %v1894 = vunpack.c.h.b16 %v159
    %v1895 = vunpack.c.l.b16 %v160
    %v1896 = vunpack.c.h.b16 %v160
    %v1897 = vunpack.c.l.b16 %v161
    %v1898 = vunpack.c.h.b16 %v161
    %v1899 = vunpack.c.l.b16 %v162
    %v1900 = vunpack.c.h.b16 %v162
    %v1901 = vunpack.c.l.b16 %v163
    %v1902 = vunpack.c.h.b16 %v163
    %v1903 = vunpack.c.l.b16 %v164
    %v1904 = vunpack.c.h.b16 %v164
    %v1905 = vunpack.c.l.b16 %v165
    %v1906 = vunpack.c.h.b16 %v165
    %v1907 = vunpack.c.l.b16 %v166
    %v1908 = vunpack.c.h.b16 %v166
    %v1909 = vunpack.c.l.b16 %v167
    %v1910 = vunpack.c.h.b16 %v167
    %v1911 = vunpack.c.l.b16 %v168
    %v1912 = vunpack.c.h.b16 %v168
    %v1913 = vunpack.c.l.b16 %v169
    %v1914 = vunpack.c.h.b16 %v169
    %v1915 = vunpack.c.l.b16 %v170
    %v1916 = vunpack.c.h.b16 %v170
    %v1917 = vunpack.c.l.b16 %v171
    %v1918 = vunpack.c.h.b16 %v171
    %v1919 = vunpack.c.l.b16 %v172
    %v1920 = vunpack.c.h.b16 %v172
    %v1921 = vunpack.c.l.b16 %v173
    %v1922 = vunpack.c.h.b16 %v173
    %v1923 = vunpack.c.l.b16 %v174
    %v1924 = vunpack.c.h.b16 %v174
    %v1925 = vunpack.c.l.b16 %v175
    %v1926 = vunpack.c.h.b16 %v175
    %v1927 = vunpack.c.l.b16 %v176
    %v1928 = vunpack.c.h.b16 %v176
    %v1929 = vunpack.c.l.b16 %v177
    %v1930 = vunpack.c.h.b16 %v177
    %v1931 = vunpack.c.l.b16 %v178
    %v1932 = vunpack.c.h.b16 %v178
    %v1933 = vunpack.c.l.b16 %v179
    %v1934 = vunpack.c.h.b16 %v179
    %v1935 = vunpack.c.l.b16 %v180
    %v1936 = vunpack.c.h.b16 %v180
    %v1937 = vunpack.c.l.b16 %v181
    %v1938 = vunpack.c.h.b16 %v181
    %v1939 = vunpack.c.l.b16 %v182
    %v1940 = vunpack.c.h.b16 %v182
    %v1941 = vunpack.c.l.b16 %v183
    %v1942 = vunpack.c.h.b16 %v183
    %v1943 = vunpack.c.l.b16 %v184
    %v1944 = vunpack.c.h.b16 %v184
    %v1945 = vunpack.c.l.b16 %v185
    %v1946 = vunpack.c.h.b16 %v185
    %v1947 = vunpack.c.l.b16 %v186
    %v1948 = vunpack.c.h.b16 %v186
    %v1949 = vunpack.c.l.b16 %v187
    %v1950 = vunpack.c.h.b16 %v187
    %v1951 = vunpack.c.l.b16 %v188
    %v1952 = vunpack.c.h.b16 %v188
    %v1953 = vunpack.c.l.b16 %v189
    %v1954 = vunpack.c.h.b16 %v189
    %v1955 = vunpack.c.l.b16 %v190
    %v1956 = vunpack.c.h.b16 %v190
    %v1957 = vunpack.c.l.b16 %v191
    %v1958 = vunpack.c.h.b16 %v191
    %v1959 = vunpack.c.l.b16 %v192
    %v1960 = vunpack.c.h.b16 %v192
    %v1961 = vunpack.c.l.b16 %v193
    %v1962 = vunpack.c.h.b16 %v193
    %v1963 = vunpack.c.l.b16 %v194
    %v1964 = vunpack.c.h.b16 %v194
    %v1965 = vunpack.c.l.b16 %v195
    %v1966 = vunpack.c.h.b16 %v195
    %v1967 = vunpack.c.l.b16 %v196
    %v1968 = vunpack.c.h.b16 %v196
    %v1969 = vunpack.c.l.b16 %v197
    %v1970 = vunpack.c.h.b16 %v197
    %v1971 = vunpack.c.l.b16 %v198
    %v1972 = vunpack.c.h.b16 %v198
    %v1973 = vunpack.c.l.b16 %v199
    %v1974 = vunpack.c.h.b16 %v199
    %v1975 = vunpack.c.l.b16 %v200
    %v1976 = vunpack.c.h.b16 %v200
    %v1977 = vunpack.c.l.b16 %v201
    %v1978 = vunpack.c.h.b16 %v201
    %v1979 = vunpack.c.l.b16 %v202
    %v1980 = vunpack.c.h.b16 %v202
    %v1981 = vunpack.c.l.b16 %v203
    %v1982 = vunpack.c.h.b16 %v203
    %v1983 = vunpack.c.l.b16 %v204
    %v1984 = vunpack.c.h.b16 %v204
    %v1985 = vunpack.c.l.b16 %v205
    %v1986 = vunpack.c.h.b16 %v205
    %v1987 = vunpack.c.l.b16 %v206
    %v1988 = vunpack.c.h.b16 %v206
    %v1989 = vunpack.c.l.b16 %v207
    %v1990 = vunpack.c.h.b16 %v207
    %v1991 = vunpack.c.l.b16 %v208
    %v1992 = vunpack.c.h.b16 %v208
    %v1993 = vunpack.c.l.b16 %v209
    %v1994 = vunpack.c.h.b16 %v209
    %v1995 = vunpack.c.l.b16 %v210
    %v1996 = vunpack.c.h.b16 %v210
    %v1997 = vunpack.c.l.b16 %v211
    %v1998 = vunpack.c.h.b16 %v211
    %v1999 = vunpack.c.l.b16 %v212
    %v2000 = vunpack.c.h.b16 %v212
    %v2001 = vunpack.c.l.b16 %v213
    %v2002 = vunpack.c.h.b16 %v213
    %v2003 = vunpack.c.l.b16 %v214
    %v2004 = vunpack.c.h.b16 %v214
    %v2005 = vunpack.c.l.b16 %v215
    %v2006 = vunpack.c.h.b16 %v215
    %v2007 = vunpack.c.l.b16 %v216
    %v2008 = vunpack.c.h.b16 %v216
    %v2009 = vunpack.c.l.b16 %v217
    %v2010 = vunpack.c.h.b16 %v217
    %v2011 = vunpack.c.l.b16 %v218
    %v2012 = vunpack.c.h.b16 %v218
    %v2013 = vunpack.c.l.b16 %v219
    %v2014 = vunpack.c.h.b16 %v219
    %v2015 = vunpack.c.l.b16 %v220
    %v2016 = vunpack.c.h.b16 %v220
    %v2017 = vunpack.c.l.b16 %v221
    %v2018 = vunpack.c.h.b16 %v221
    %v2019 = vunpack.c.l.b16 %v222
    %v2020 = vunpack.c.h.b16 %v222
    %v2021 = vunpack.c.l.b16 %v223
    %v2022 = vunpack.c.h.b16 %v223
    %v2023 = vunpack.c.l.b16 %v224
    %v2024 = vunpack.c.h.b16 %v224
    %v2025 = vunpack.c.l.b16 %v225
    %v2026 = vunpack.c.h.b16 %v225
    %v2027 = vunpack.c.l.b16 %v226
    %v2028 = vunpack.c.h.b16 %v226
    %v2029 = vunpack.c.l.b16 %v227
    %v2030 = vunpack.c.h.b16 %v227
    %v2031 = vunpack.c.l.b16 %v228
    %v2032 = vunpack.c.h.b16 %v228
    %v2033 = vunpack.c.l.b16 %v229
    %v2034 = vunpack.c.h.b16 %v229
    %v2035 = vunpack.c.l.b16 %v230
    %v2036 = vunpack.c.h.b16 %v230
    %v2037 = vunpack.c.l.b16 %v231
    %v2038 = vunpack.c.h.b16 %v231
    %v2039 = vunpack.c.l.b16 %v232
    %v2040 = vunpack.c.h.b16 %v232
    %v2041 = vunpack.c.l.b16 %v233
    %v2042 = vunpack.c.h.b16 %v233
    %v2043 = vunpack.c.l.b16 %v234
    %v2044 = vunpack.c.h.b16 %v234
    %v2045 = vunpack.c.l.b16 %v235
    %v2046 = vunpack.c.h.b16 %v235
    %v2047 = vunpack.c.l.b16 %v236
    %v2048 = vunpack.c.h.b16 %v236
    %v2049 = vunpack.c.l.b16 %v237
    %v2050 = vunpack.c.h.b16 %v237
    %v2051 = vunpack.c.l.b16 %v238
    %v2052 = vunpack.c.h.b16 %v238
    %v2053 = vunpack.c.l.b16 %v239
    %v2054 = vunpack.c.h.b16 %v239
    %v2055 = vunpack.c.l.b16 %v240
    %v2056 = vunpack.c.h.b16 %v240
    %v2057 = vunpack.c.l.b16 %v241
    %v2058 = vunpack.c.h.b16 %v241
    %v2059 = vunpack.c.l.b16 %v242
    %v2060 = vunpack.c.h.b16 %v242
    %v2061 = vunpack.c.l.b16 %v243
    %v2062 = vunpack.c.h.b16 %v243
    %v2063 = vunpack.c.l.b16 %v244
    %v2064 = vunpack.c.h.b16 %v244
    %v2065 = vunpack.c.l.b16 %v245
    %v2066 = vunpack.c.h.b16 %v245
    %v2067 = vunpack.c.l.b16 %v246
    %v2068 = vunpack.c.h.b16 %v246
    %v2069 = vunpack.c.l.b16 %v247
    %v2070 = vunpack.c.h.b16 %v247
    %v2071 = vunpack.c.l.b16 %v248
    %v2072 = vunpack.c.h.b16 %v248
    %v2073 = vunpack.c.l.b16 %v249
    %v2074 = vunpack.c.h.b16 %v249
    %v2075 = vunpack.c.l.b16 %v250
    %v2076 = vunpack.c.h.b16 %v250
    %v2077 = vunpack.c.l.b16 %v251
    %v2078 = vunpack.c.h.b16 %v251
    %v2079 = vunpack.c.l.b16 %v252
    %v2080 = vunpack.c.h.b16 %v252
    %v2081 = vunpack.c.l.b16 %v253
    %v2082 = vunpack.c.h.b16 %v253
    %v2083 = vunpack.c.l.b16 %v254
    %v2084 = vunpack.c.h.b16 %v254
    %v2085 = vunpack.c.l.b16 %v255
    %v2086 = vunpack.c.h.b16 %v255
    %v2087 = vunpack.c.l.b16 %v256
    %v2088 = vunpack.c.h.b16 %v256
    %v2089 = vunpack.c.l.b16 %v257
    %v2090 = vunpack.c.h.b16 %v257
    %v2091 = vunpack.c.l.b16 %v258
    %v2092 = vunpack.c.h.b16 %v258
    %v2093 = vunpack.c.l.b16 %v259
    %v2094 = vunpack.c.h.b16 %v259
    %v2095 = vunpack.c.l.b16 %v260
    %v2096 = vunpack.c.h.b16 %v260
    %v2097 = vunpack.c.l.b16 %v261
    %v2098 = vunpack.c.h.b16 %v261
    %v2099 = vunpack.c.l.b16 %v262
    %v2100 = vunpack.c.h.b16 %v262
    %v2101 = vunpack.c.l.b16 %v263
    %v2102 = vunpack.c.h.b16 %v263
    %v2103 = vunpack.c.l.b16 %v264
    %v2104 = vunpack.c.h.b16 %v264
    %v2105 = vunpack.c.l.b16 %v265
    %v2106 = vunpack.c.h.b16 %v265
    %v2107 = vunpack.c.l.b16 %v266
    %v2108 = vunpack.c.h.b16 %v266
    %v2109 = vunpack.c.l.b16 %v267
    %v2110 = vunpack.c.h.b16 %v267
    %v2111 = vunpack.c.l.b16 %v268
    %v2112 = vunpack.c.h.b16 %v268
    %v2113 = vunpack.c.l.b16 %v269
    %v2114 = vunpack.c.h.b16 %v269
    %v2115 = vunpack.c.l.b16 %v270
    %v2116 = vunpack.c.h.b16 %v270
    %v2117 = vunpack.c.l.b16 %v271
    %v2118 = vunpack.c.h.b16 %v271
    %v2119 = vunpack.c.l.b16 %v272
    %v2120 = vunpack.c.h.b16 %v272
    %v2121 = vunpack.c.l.b16 %v273
    %v2122 = vunpack.c.h.b16 %v273
    %v2123 = vunpack.c.l.b16 %v274
    %v2124 = vunpack.c.h.b16 %v274
    %v2125 = vunpack.c.l.b16 %v275
    %v2126 = vunpack.c.h.b16 %v275
    %v2127 = vunpack.c.l.b16 %v276
    %v2128 = vunpack.c.h.b16 %v276
    %v2129 = vunpack.c.l.b16 %v277
    %v2130 = vunpack.c.h.b16 %v277
    %v2131 = vunpack.c.l.b16 %v278
    %v2132 = vunpack.c.h.b16 %v278
    %v2133 = vunpack.c.l.b16 %v279
    %v2134 = vunpack.c.h.b16 %v279
    %v2135 = vunpack.c.l.b16 %v280
    %v2136 = vunpack.c.h.b16 %v280
    %v2137 = vunpack.c.l.b16 %v281
    %v2138 = vunpack.c.h.b16 %v281
    %v2139 = vunpack.c.l.b16 %v282
    %v2140 = vunpack.c.h.b16 %v282
    %v2141 = vunpack.c.l.b16 %v283
    %v2142 = vunpack.c.h.b16 %v283
    %v2143 = vunpack.c.l.b16 %v284
    %v2144 = vunpack.c.h.b16 %v284
    %v2145 = vunpack.c.l.b16 %v285
    %v2146 = vunpack.c.h.b16 %v285
    %v2147 = vunpack.c.l.b16 %v286
    %v2148 = vunpack.c.h.b16 %v286
    %v2149 = vunpack.c.l.b16 %v287
    %v2150 = vunpack.c.h.b16 %v287
    %v2151 = vunpack.c.l.b16 %v288
    %v2152 = vunpack.c.h.b16 %v288
    %v2153 = vunpack.c.l.b16 %v289
    %v2154 = vunpack.c.h.b16 %v289
    %v2155 = vunpack.c.l.b16 %v290
    %v2156 = vunpack.c.h.b16 %v290
    %v2157 = vunpack.c.l.b16 %v291
    %v2158 = vunpack.c.h.b16 %v291
    %v2159 = vunpack.c.l.b16 %v292
    %v2160 = vunpack.c.h.b16 %v292
    %v2161 = vunpack.c.l.b16 %v293
    %v2162 = vunpack.c.h.b16 %v293
    %v2163 = vunpack.c.l.b16 %v294
    %v2164 = vunpack.c.h.b16 %v294
    %v2165 = vunpack.c.l.b16 %v295
    %v2166 = vunpack.c.h.b16 %v295
    %v2167 = vunpack.c.l.b16 %v296
    %v2168 = vunpack.c.h.b16 %v296
    %v2169 = vunpack.c.l.b16 %v297
    %v2170 = vunpack.c.h.b16 %v297
    %v2171 = vunpack.c.l.b16 %v298
    %v2172 = vunpack.c.h.b16 %v298
    %v2173 = vunpack.c.l.b16 %v299
    %v2174 = vunpack.c.h.b16 %v299
    %v2175 = vunpack.c.l.b16 %v300
    %v2176 = vunpack.c.h.b16 %v300
    %v2177 = vunpack.c.l.b16 %v301
    %v2178 = vunpack.c.h.b16 %v301
    %v2179 = vunpack.c.l.b16 %v302
    %v2180 = vunpack.c.h.b16 %v302
    %v2181 = vunpack.c.l.b16 %v303
    %v2182 = vunpack.c.h.b16 %v303
    %v2183 = vunpack.c.l.b16 %v304
    %v2184 = vunpack.c.h.b16 %v304
    %v2185 = vunpack.c.l.b16 %v305
    %v2186 = vunpack.c.h.b16 %v305
    %v2187 = vunpack.c.l.b16 %v306
    %v2188 = vunpack.c.h.b16 %v306
    %v2189 = vunpack.c.l.b16 %v307
    %v2190 = vunpack.c.h.b16 %v307
    %v2191 = vunpack.c.l.b16 %v308
    %v2192 = vunpack.c.h.b16 %v308
    %v2193 = vunpack.c.l.b16 %v309
    %v2194 = vunpack.c.h.b16 %v309
    %v2195 = vunpack.c.l.b16 %v310
    %v2196 = vunpack.c.h.b16 %v310
    %v2197 = vunpack.c.l.b16 %v311
    %v2198 = vunpack.c.h.b16 %v311
    %v2199 = vunpack.c.l.b16 %v312
    %v2200 = vunpack.c.h.b16 %v312
    %v2201 = vunpack.c.l.b16 %v313
    %v2202 = vunpack.c.h.b16 %v313
    %v2203 = vunpack.c.l.b16 %v314
    %v2204 = vunpack.c.h.b16 %v314
    %v2205 = vunpack.c.l.b16 %v315
    %v2206 = vunpack.c.h.b16 %v315
    %v2207 = vunpack.c.l.b16 %v316
    %v2208 = vunpack.c.h.b16 %v316
    %v2209 = vunpack.c.l.b16 %v317
    %v2210 = vunpack.c.h.b16 %v317
    %v2211 = vunpack.c.l.b16 %v318
    %v2212 = vunpack.c.h.b16 %v318
    %v2213 = vunpack.c.l.b16 %v319
    %v2214 = vunpack.c.h.b16 %v319
    %v2215 = vunpack.c.l.b16 %v320
    %v2216 = vunpack.c.h.b16 %v320
    %v2217 = vunpack.c.l.b16 %v321
    %v2218 = vunpack.c.h.b16 %v321
    %v2219 = vunpack.c.l.b16 %v322
    %v2220 = vunpack.c.h.b16 %v322
    %v2221 = vunpack.c.l.b16 %v323
    %v2222 = vunpack.c.h.b16 %v323
    %v2223 = vunpack.c.l.b16 %v324
    %v2224 = vunpack.c.h.b16 %v324
    %v2225 = vunpack.c.l.b16 %v325
    %v2226 = vunpack.c.h.b16 %v325
    %v2227 = vunpack.c.l.b16 %v326
    %v2228 = vunpack.c.h.b16 %v326
    %v2229 = vunpack.c.l.b16 %v327
    %v2230 = vunpack.c.h.b16 %v327
    %v2231 = vunpack.c.l.b16 %v328
    %v2232 = vunpack.c.h.b16 %v328
    %v2233 = vunpack.c.l.b16 %v329
    %v2234 = vunpack.c.h.b16 %v329
    %v2235 = vunpack.c.l.b16 %v330
    %v2236 = vunpack.c.h.b16 %v330
    %v2237 = vunpack.c.l.b16 %v331
    %v2238 = vunpack.c.h.b16 %v331
    %v2239 = vunpack.c.l.b16 %v332
    %v2240 = vunpack.c.h.b16 %v332
    %v2241 = vunpack.c.l.b16 %v333
    %v2242 = vunpack.c.h.b16 %v333
    %v2243 = vunpack.c.l.b16 %v334
    %v2244 = vunpack.c.h.b16 %v334
    %v2245 = vunpack.c.l.b16 %v335
    %v2246 = vunpack.c.h.b16 %v335
    %v2247 = vunpack.c.l.b16 %v336
    %v2248 = vunpack.c.h.b16 %v336
    %v2249 = vunpack.c.l.b16 %v337
    %v2250 = vunpack.c.h.b16 %v337
    %v2251 = vunpack.c.l.b16 %v338
    %v2252 = vunpack.c.h.b16 %v338
    %v2253 = vunpack.c.l.b16 %v339
    %v2254 = vunpack.c.h.b16 %v339
    %v2255 = vunpack.c.l.b16 %v340
    %v2256 = vunpack.c.h.b16 %v340
    %v2257 = vunpack.c.l.b16 %v341
    %v2258 = vunpack.c.h.b16 %v341
    %v2259 = vunpack.c.l.b16 %v342
    %v2260 = vunpack.c.h.b16 %v342
    %v2261 = vunpack.c.l.b16 %v343
    %v2262 = vunpack.c.h.b16 %v343
    %v2263 = vunpack.c.l.b16 %v344
    %v2264 = vunpack.c.h.b16 %v344
    %v2265 = vunpack.c.l.b16 %v345
    %v2266 = vunpack.c.h.b16 %v345
    %v2267 = vunpack.c.l.b16 %v346
    %v2268 = vunpack.c.h.b16 %v346
    %v2269 = vunpack.c.l.b16 %v347
    %v2270 = vunpack.c.h.b16 %v347
    %v2271 = vunpack.c.l.b16 %v348
    %v2272 = vunpack.c.h.b16 %v348
    %v2273 = vunpack.c.l.b16 %v349
    %v2274 = vunpack.c.h.b16 %v349
    %v2275 = vunpack.c.l.b16 %v350
    %v2276 = vunpack.c.h.b16 %v350
    %v2277 = vunpack.c.l.b16 %v351
    %v2278 = vunpack.c.h.b16 %v351
    %v2279 = vunpack.c.l.b16 %v352
    %v2280 = vunpack.c.h.b16 %v352
    %v2281 = vunpack.c.l.b16 %v353
    %v2282 = vunpack.c.h.b16 %v353
    %v2283 = vunpack.c.l.b16 %v354
    %v2284 = vunpack.c.h.b16 %v354
    %v2285 = vunpack.c.l.b16 %v355
    %v2286 = vunpack.c.h.b16 %v355
    %v2287 = vunpack.c.l.b16 %v356
    %v2288 = vunpack.c.h.b16 %v356
    %v2289 = vunpack.c.l.b16 %v357
    %v2290 = vunpack.c.h.b16 %v357
    %v2291 = vunpack.c.l.b16 %v358
    %v2292 = vunpack.c.h.b16 %v358
    %v2293 = vunpack.c.l.b16 %v359
    %v2294 = vunpack.c.h.b16 %v359
    %v2295 = vunpack.c.l.b16 %v360
    %v2296 = vunpack.c.h.b16 %v360
    %v2297 = vunpack.c.l.b16 %v361
    %v2298 = vunpack.c.h.b16 %v361
    %v2299 = vunpack.c.l.b16 %v362
    %v2300 = vunpack.c.h.b16 %v362
    %v2301 = vunpack.c.l.b16 %v363
    %v2302 = vunpack.c.h.b16 %v363
    %v2303 = vunpack.c.l.b16 %v364
    %v2304 = vunpack.c.h.b16 %v364
    %v2305 = vunpack.c.l.b16 %v365
    %v2306 = vunpack.c.h.b16 %v365
    %v2307 = vunpack.c.l.b16 %v366
    %v2308 = vunpack.c.h.b16 %v366
    %v2309 = vunpack.c.l.b16 %v367
    %v2310 = vunpack.c.h.b16 %v367
    %v2311 = vunpack.c.l.b16 %v368
    %v2312 = vunpack.c.h.b16 %v368
    %v2313 = vunpack.c.l.b16 %v369
    %v2314 = vunpack.c.h.b16 %v369
    %v2315 = vunpack.c.l.b16 %v370
    %v2316 = vunpack.c.h.b16 %v370
    %v2317 = vunpack.c.l.b16 %v371
    %v2318 = vunpack.c.h.b16 %v371
    %v2319 = vunpack.c.l.b16 %v372
    %v2320 = vunpack.c.h.b16 %v372
    %v2321 = vunpack.c.l.b16 %v373
    %v2322 = vunpack.c.h.b16 %v373
    %v2323 = vunpack.c.l.b16 %v374
    %v2324 = vunpack.c.h.b16 %v374
    %v2325 = vunpack.c.l.b16 %v375
    %v2326 = vunpack.c.h.b16 %v375
    %v2327 = vunpack.c.l.b16 %v376
    %v2328 = vunpack.c.h.b16 %v376
    %v2329 = vunpack.c.l.b16 %v377
    %v2330 = vunpack.c.h.b16 %v377
    %v2331 = vunpack.c.l.b16 %v378
    %v2332 = vunpack.c.h.b16 %v378
    %v2333 = vunpack.c.l.b16 %v379
    %v2334 = vunpack.c.h.b16 %v379
    %v2335 = vunpack.c.l.b16 %v380
    %v2336 = vunpack.c.h.b16 %v380
    %v2337 = vunpack.c.l.b16 %v381
    %v2338 = vunpack.c.h.b16 %v381
    %v2339 = vunpack.c.l.b16 %v382
    %v2340 = vunpack.c.h.b16 %v382
    %v2341 = vunpack.c.l.b16 %v383
    %v2342 = vunpack.c.h.b16 %v383
    %v2343 = vunpack.c.l.b16 %v384
    %v2344 = vunpack.c.h.b16 %v384
    %v2345 = vunpack.c.l.b16 %v385
    %v2346 = vunpack.c.h.b16 %v385
    %v2347 = vunpack.c.l.b16 %v386
    %v2348 = vunpack.c.h.b16 %v386
    %v2349 = vunpack.c.l.b16 %v387
    %v2350 = vunpack.c.h.b16 %v387
    %v2351 = vunpack.c.l.b16 %v388
    %v2352 = vunpack.c.h.b16 %v388
    %v2353 = vunpack.c.l.b16 %v389
    %v2354 = vunpack.c.h.b16 %v389
    %v2355 = vunpack.c.l.b16 %v390
    %v2356 = vunpack.c.h.b16 %v390
    %v2357 = vunpack.c.l.b16 %v391
    %v2358 = vunpack.c.h.b16 %v391
    %v2359 = vunpack.c.l.b16 %v392
    %v2360 = vunpack.c.h.b16 %v392
    %v2361 = vunpack.c.l.b16 %v393
    %v2362 = vunpack.c.h.b16 %v393
    %v2363 = vunpack.c.l.b16 %v394
    %v2364 = vunpack.c.h.b16 %v394
    %v2365 = vunpack.c.l.b16 %v395
    %v2366 = vunpack.c.h.b16 %v395
    %v2367 = vunpack.c.l.b16 %v396
    %v2368 = vunpack.c.h.b16 %v396
    %v2369 = vunpack.c.l.b16 %v397
    %v2370 = vunpack.c.h.b16 %v397
    %v2371 = vunpack.c.l.b16 %v398
    %v2372 = vunpack.c.h.b16 %v398
    %v2373 = vunpack.c.l.b16 %v399
    %v2374 = vunpack.c.h.b16 %v399
    %v2375 = vunpack.c.l.b16 %v400
    %v2376 = vunpack.c.h.b16 %v400
    %v2377 = vunpack.c.l.b16 %v401
    %v2378 = vunpack.c.h.b16 %v401
    %v2379 = vunpack.c.l.b16 %v402
    %v2380 = vunpack.c.h.b16 %v402
    %v2381 = vunpack.c.l.b16 %v403
    %v2382 = vunpack.c.h.b16 %v403
    %v2383 = vunpack.c.l.b16 %v404
    %v2384 = vunpack.c.h.b16 %v404
    %v2385 = vunpack.c.l.b16 %v405
    %v2386 = vunpack.c.h.b16 %v405
    %v2387 = vunpack.c.l.b16 %v406
    %v2388 = vunpack.c.h.b16 %v406
    %v2389 = vunpack.c.l.b16 %v407
    %v2390 = vunpack.c.h.b16 %v407
    %v2391 = vunpack.c.l.b16 %v408
    %v2392 = vunpack.c.h.b16 %v408
    %v2393 = vunpack.c.l.b16 %v409
    %v2394 = vunpack.c.h.b16 %v409
    %v2395 = vunpack.c.l.b16 %v410
    %v2396 = vunpack.c.h.b16 %v410
    %v2397 = vunpack.c.l.b16 %v411
    %v2398 = vunpack.c.h.b16 %v411
    %v2399 = vunpack.c.l.b16 %v412
    %v2400 = vunpack.c.h.b16 %v412
    %v2401 = vunpack.c.l.b16 %v413
    %v2402 = vunpack.c.h.b16 %v413
    %v2403 = vunpack.c.l.b16 %v414
    %v2404 = vunpack.c.h.b16 %v414
    %v2405 = vunpack.c.l.b16 %v415
    %v2406 = vunpack.c.h.b16 %v415
    %v2407 = vunpack.c.l.b16 %v416
    %v2408 = vunpack.c.h.b16 %v416
    %v2409 = vunpack.c.l.b16 %v417
    %v2410 = vunpack.c.h.b16 %v417
    %v2411 = vunpack.c.l.b16 %v418
    %v2412 = vunpack.c.h.b16 %v418
    %v2413 = vunpack.c.l.b16 %v419
    %v2414 = vunpack.c.h.b16 %v419
    %v2415 = vunpack.c.l.b16 %v420
    %v2416 = vunpack.c.h.b16 %v420
    %v2417 = vunpack.c.l.b16 %v421
    %v2418 = vunpack.c.h.b16 %v421
    %v2419 = vunpack.c.l.b16 %v422
    %v2420 = vunpack.c.h.b16 %v422
    %v2421 = vunpack.c.l.b16 %v423
    %v2422 = vunpack.c.h.b16 %v423
    %v2423 = vunpack.c.l.b16 %v424
    %v2424 = vunpack.c.h.b16 %v424
    %v2425 = vunpack.c.l.b16 %v425
    %v2426 = vunpack.c.h.b16 %v425
    %v2427 = vunpack.c.l.b16 %v426
    %v2428 = vunpack.c.h.b16 %v426
    %v2429 = vunpack.c.l.b16 %v427
    %v2430 = vunpack.c.h.b16 %v427
    %v2431 = vunpack.c.l.b16 %v428
    %v2432 = vunpack.c.h.b16 %v428
    %v2433 = vunpack.c.l.b16 %v429
    %v2434 = vunpack.c.h.b16 %v429
    %v2435 = vunpack.c.l.b16 %v430
    %v2436 = vunpack.c.h.b16 %v430
    %v2437 = vunpack.c.l.b16 %v431
    %v2438 = vunpack.c.h.b16 %v431
    %v2439 = vunpack.c.l.b16 %v432
    %v2440 = vunpack.c.h.b16 %v432
    %v2441 = vunpack.c.l.b16 %v433
    %v2442 = vunpack.c.h.b16 %v433
    %v2443 = vunpack.c.l.b16 %v434
    %v2444 = vunpack.c.h.b16 %v434
    %v2445 = vunpack.c.l.b16 %v435
    %v2446 = vunpack.c.h.b16 %v435
    %v2447 = vunpack.c.l.b16 %v436
    %v2448 = vunpack.c.h.b16 %v436
    %v2449 = vunpack.c.l.b16 %v437
    %v2450 = vunpack.c.h.b16 %v437
    %v2451 = vunpack.c.l.b16 %v438
    %v2452 = vunpack.c.h.b16 %v438
    %v2453 = vunpack.c.l.b16 %v439
    %v2454 = vunpack.c.h.b16 %v439
    %v2455 = vunpack.c.l.b16 %v440
    %v2456 = vunpack.c.h.b16 %v440
    %v2457 = vunpack.c.l.b16 %v441
    %v2458 = vunpack.c.h.b16 %v441
    %v2459 = vunpack.c.l.b16 %v442
    %v2460 = vunpack.c.h.b16 %v442
    %v2461 = vunpack.c.l.b16 %v443
    %v2462 = vunpack.c.h.b16 %v443
    %v2463 = vunpack.c.l.b16 %v444
    %v2464 = vunpack.c.h.b16 %v444
    %v2465 = vunpack.c.l.b16 %v445
    %v2466 = vunpack.c.h.b16 %v445
    %v2467 = vunpack.c.l.b16 %v446
    %v2468 = vunpack.c.h.b16 %v446
    %v2469 = vunpack.c.l.b16 %v447
    %v2470 = vunpack.c.h.b16 %v447
    %v2471 = vunpack.c.l.b16 %v448
    %v2472 = vunpack.c.h.b16 %v448
    %v2473 = vunpack.c.l.b16 %v449
    %v2474 = vunpack.c.h.b16 %v449
    %v2475 = vunpack.c.l.b16 %v450
    %v2476 = vunpack.c.h.b16 %v450
    %v2477 = vunpack.c.l.b16 %v451
    %v2478 = vunpack.c.h.b16 %v451
    %v2479 = vunpack.c.l.b16 %v452
    %v2480 = vunpack.c.h.b16 %v452
    %v2481 = vunpack.c.l.b16 %v453
    %v2482 = vunpack.c.h.b16 %v453
    %v2483 = vunpack.c.l.b16 %v454
    %v2484 = vunpack.c.h.b16 %v454
    %v2485 = vunpack.c.l.b16 %v455
    %v2486 = vunpack.c.h.b16 %v455
    %v2487 = vunpack.c.l.b16 %v456
    %v2488 = vunpack.c.h.b16 %v456
    %v2489 = vunpack.c.l.b16 %v457
    %v2490 = vunpack.c.h.b16 %v457
    %v2491 = vunpack.c.l.b16 %v458
    %v2492 = vunpack.c.h.b16 %v458
    %v2493 = vunpack.c.l.b16 %v459
    %v2494 = vunpack.c.h.b16 %v459
    %v2495 = vunpack.c.l.b16 %v460
    %v2496 = vunpack.c.h.b16 %v460
    %v2497 = vunpack.c.l.b16 %v461
    %v2498 = vunpack.c.h.b16 %v461
    %v2499 = vunpack.c.l.b16 %v462
    %v2500 = vunpack.c.h.b16 %v462
    %v2501 = vunpack.c.l.b16 %v463
    %v2502 = vunpack.c.h.b16 %v463
    %v2503 = vunpack.c.l.b16 %v464
    %v2504 = vunpack.c.h.b16 %v464
    %v2505 = vunpack.c.l.b16 %v465
    %v2506 = vunpack.c.h.b16 %v465
    %v2507 = vunpack.c.l.b16 %v466
    %v2508 = vunpack.c.h.b16 %v466
    %v2509 = vunpack.c.l.b16 %v467
    %v2510 = vunpack.c.h.b16 %v467
    %v2511 = vunpack.c.l.b16 %v468
    %v2512 = vunpack.c.h.b16 %v468
    %v2513 = vunpack.c.l.b16 %v469
    %v2514 = vunpack.c.h.b16 %v469
    %v2515 = vunpack.c.l.b16 %v470
    %v2516 = vunpack.c.h.b16 %v470
    %v2517 = vunpack.c.l.b16 %v471
    %v2518 = vunpack.c.h.b16 %v471
    %v2519 = vunpack.c.l.b16 %v472
    %v2520 = vunpack.c.h.b16 %v472
    %v2521 = vunpack.c.l.b16 %v473
    %v2522 = vunpack.c.h.b16 %v473
    %v2523 = vunpack.c.l.b16 %v474
    %v2524 = vunpack.c.h.b16 %v474
    %v2525 = vunpack.c.l.b16 %v475
    %v2526 = vunpack.c.h.b16 %v475
    %v2527 = vunpack.c.l.b16 %v476
    %v2528 = vunpack.c.h.b16 %v476
    %v2529 = vunpack.c.l.b16 %v477
    %v2530 = vunpack.c.h.b16 %v477
    %v2531 = vunpack.c.l.b16 %v478
    %v2532 = vunpack.c.h.b16 %v478
    %v2533 = vunpack.c.l.b16 %v479
    %v2534 = vunpack.c.h.b16 %v479
    %v2535 = vunpack.c.l.b16 %v480
    %v2536 = vunpack.c.h.b16 %v480
    %v2537 = vunpack.c.l.b16 %v481
    %v2538 = vunpack.c.h.b16 %v481
    %v2539 = vunpack.c.l.b16 %v482
    %v2540 = vunpack.c.h.b16 %v482
    %v2541 = vunpack.c.l.b16 %v483
    %v2542 = vunpack.c.h.b16 %v483
    %v2543 = vunpack.c.l.b16 %v484
    %v2544 = vunpack.c.h.b16 %v484
    %v2545 = vunpack.c.l.b16 %v485
    %v2546 = vunpack.c.h.b16 %v485
    %v2547 = vunpack.c.l.b16 %v486
    %v2548 = vunpack.c.h.b16 %v486
    %v2549 = vunpack.c.l.b16 %v487
    %v2550 = vunpack.c.h.b16 %v487
    %v2551 = vunpack.c.l.b16 %v488
    %v2552 = vunpack.c.h.b16 %v488
    %v2553 = vunpack.c.l.b16 %v489
    %v2554 = vunpack.c.h.b16 %v489
    %v2555 = vunpack.c.l.b16 %v490
    %v2556 = vunpack.c.h.b16 %v490
    %v2557 = vunpack.c.l.b16 %v491
    %v2558 = vunpack.c.h.b16 %v491
    %v2559 = vunpack.c.l.b16 %v492
    %v2560 = vunpack.c.h.b16 %v492
    %v2561 = vunpack.c.l.b16 %v493
    %v2562 = vunpack.c.h.b16 %v493
    %v2563 = vunpack.c.l.b16 %v494
    %v2564 = vunpack.c.h.b16 %v494
    %v2565 = vunpack.c.l.b16 %v495
    %v2566 = vunpack.c.h.b16 %v495
    %v2567 = vunpack.c.l.b16 %v496
    %v2568 = vunpack.c.h.b16 %v496
    %v2569 = vunpack.c.l.b16 %v497
    %v2570 = vunpack.c.h.b16 %v497
    %v2571 = vunpack.c.l.b16 %v498
    %v2572 = vunpack.c.h.b16 %v498
    %v2573 = vunpack.c.l.b16 %v499
    %v2574 = vunpack.c.h.b16 %v499
    %v2575 = vunpack.c.l.b16 %v500
    %v2576 = vunpack.c.h.b16 %v500
    %v2577 = vunpack.c.l.b16 %v501
    %v2578 = vunpack.c.h.b16 %v501
    %v2579 = vunpack.c.l.b16 %v502
    %v2580 = vunpack.c.h.b16 %v502
    %v2581 = vunpack.c.l.b16 %v503
    %v2582 = vunpack.c.h.b16 %v503
    %v2583 = vunpack.c.l.b16 %v504
    %v2584 = vunpack.c.h.b16 %v504
    %v2585 = vunpack.c.l.b16 %v505
    %v2586 = vunpack.c.h.b16 %v505
    %v2587 = vunpack.c.l.b16 %v506
    %v2588 = vunpack.c.h.b16 %v506
    %v2589 = vunpack.c.l.b16 %v507
    %v2590 = vunpack.c.h.b16 %v507
    %v2591 = vunpack.c.l.b16 %v508
    %v2592 = vunpack.c.h.b16 %v508
    %v2593 = vunpack.c.l.b16 %v509
    %v2594 = vunpack.c.h.b16 %v509
    %v2595 = vunpack.c.l.b16 %v510
    %v2596 = vunpack.c.h.b16 %v510
    %v2597 = vunpack.c.l.b16 %v511
    %v2598 = vunpack.c.h.b16 %v511
    %v2599 = vunpack.c.l.b16 %v512
    %v2600 = vunpack.c.h.b16 %v512
    %v2601 = vunpack.c.l.b16 %v513
    %v2602 = vunpack.c.h.b16 %v513
    %v2603 = vunpack.c.l.b16 %v514
    %v2604 = vunpack.c.h.b16 %v514
    %v2605 = vunpack.c.l.b16 %v515
    %v2606 = vunpack.c.h.b16 %v515
    %v2607 = vunpack.c.l.b16 %v516
    %v2608 = vunpack.c.h.b16 %v516
    %v2609 = vunpack.c.l.b16 %v517
    %v2610 = vunpack.c.h.b16 %v517
    %v2611 = vunpack.c.l.b16 %v518
    %v2612 = vunpack.c.h.b16 %v518
    %v2613 = vunpack.c.l.b16 %v519
    %v2614 = vunpack.c.h.b16 %v519
    %v2615 = vunpack.c.l.b16 %v520
    %v2616 = vunpack.c.h.b16 %v520
    %v2617 = vunpack.c.l.b16 %v521
    %v2618 = vunpack.c.h.b16 %v521
    %v2619 = vunpack.c.l.b16 %v522
    %v2620 = vunpack.c.h.b16 %v522
    %v2621 = vunpack.c.l.b16 %v523
    %v2622 = vunpack.c.h.b16 %v523
    %v2623 = vunpack.c.l.b16 %v524
    %v2624 = vunpack.c.h.b16 %v524
    %v2625 = vunpack.c.l.b16 %v525
    %v2626 = vunpack.c.h.b16 %v525
    %v2627 = vunpack.c.l.b16 %v526
    %v2628 = vunpack.c.h.b16 %v526
    %v2629 = vunpack.c.l.b16 %v527
    %v2630 = vunpack.c.h.b16 %v527
    %v2631 = vunpack.c.l.b16 %v528
    %v2632 = vunpack.c.h.b16 %v528
    %v2633 = vunpack.c.l.b16 %v529
    %v2634 = vunpack.c.h.b16 %v529
    %v2635 = vunpack.c.l.b16 %v530
    %v2636 = vunpack.c.h.b16 %v530
    %v2637 = vunpack.c.l.b16 %v531
    %v2638 = vunpack.c.h.b16 %v531
    %v2639 = vunpack.c.l.b16 %v532
    %v2640 = vunpack.c.h.b16 %v532
    %v2641 = vunpack.c.l.b16 %v533
    %v2642 = vunpack.c.h.b16 %v533
    %v2643 = vunpack.c.l.b16 %v534
    %v2644 = vunpack.c.h.b16 %v534
    %v2645 = vunpack.c.l.b16 %v535
    %v2646 = vunpack.c.h.b16 %v535
    %v2647 = vunpack.c.l.b16 %v536
    %v2648 = vunpack.c.h.b16 %v536
    %v2649 = vunpack.c.l.b16 %v537
    %v2650 = vunpack.c.h.b16 %v537
    %v2651 = vunpack.c.l.b16 %v538
    %v2652 = vunpack.c.h.b16 %v538
    %v2653 = vunpack.c.l.b16 %v539
    %v2654 = vunpack.c.h.b16 %v539
    %v2655 = vunpack.c.l.b16 %v540
    %v2656 = vunpack.c.h.b16 %v540
    %v2657 = vunpack.c.l.b16 %v541
    %v2658 = vunpack.c.h.b16 %v541
    %v2659 = vunpack.c.l.b16 %v542
    %v2660 = vunpack.c.h.b16 %v542
    %v2661 = vunpack.c.l.b16 %v543
    %v2662 = vunpack.c.h.b16 %v543
    %v2663 = vunpack.c.l.b16 %v544
    %v2664 = vunpack.c.h.b16 %v544
    %v2665 = vunpack.c.l.b16 %v545
    %v2666 = vunpack.c.h.b16 %v545
    %v2667 = vunpack.c.l.b16 %v546
    %v2668 = vunpack.c.h.b16 %v546
    %v2669 = vunpack.c.l.b16 %v547
    %v2670 = vunpack.c.h.b16 %v547
    %v2671 = vunpack.c.l.b16 %v548
    %v2672 = vunpack.c.h.b16 %v548
    %v2673 = vunpack.c.l.b16 %v549
    %v2674 = vunpack.c.h.b16 %v549
    %v2675 = vunpack.c.l.b16 %v550
    %v2676 = vunpack.c.h.b16 %v550
    %v2677 = vunpack.c.l.b16 %v551
    %v2678 = vunpack.c.h.b16 %v551
    %v2679 = vunpack.c.l.b16 %v552
    %v2680 = vunpack.c.h.b16 %v552
    %v2681 = vunpack.c.l.b16 %v553
    %v2682 = vunpack.c.h.b16 %v553
    %v2683 = vunpack.c.l.b16 %v554
    %v2684 = vunpack.c.h.b16 %v554
    %v2685 = vunpack.c.l.b16 %v555
    %v2686 = vunpack.c.h.b16 %v555
    %v2687 = vunpack.c.l.b16 %v556
    %v2688 = vunpack.c.h.b16 %v556
    %v2689 = vunpack.c.l.b16 %v557
    %v2690 = vunpack.c.h.b16 %v557
    %v2691 = vunpack.c.l.b16 %v558
    %v2692 = vunpack.c.h.b16 %v558
    %v2693 = vunpack.c.l.b16 %v559
    %v2694 = vunpack.c.h.b16 %v559
    %v2695 = vunpack.c.l.b16 %v560
    %v2696 = vunpack.c.h.b16 %v560
    %v2697 = vunpack.c.l.b16 %v561
    %v2698 = vunpack.c.h.b16 %v561
    %v2699 = vunpack.c.l.b16 %v562
    %v2700 = vunpack.c.h.b16 %v562
    %v2701 = vunpack.c.l.b16 %v563
    %v2702 = vunpack.c.h.b16 %v563
    %v2703 = vunpack.c.l.b16 %v564
    %v2704 = vunpack.c.h.b16 %v564
    %v2705 = vunpack.c.l.b16 %v565
    %v2706 = vunpack.c.h.b16 %v565
    %v2707 = vunpack.c.l.b16 %v566
    %v2708 = vunpack.c.h.b16 %v566
    %v2709 = vunpack.c.l.b16 %v567
    %v2710 = vunpack.c.h.b16 %v567
    %v2711 = vunpack.c.l.b16 %v568
    %v2712 = vunpack.c.h.b16 %v568
    %v2713 = vunpack.c.l.b16 %v569
    %v2714 = vunpack.c.h.b16 %v569
    %v2715 = vunpack.c.l.b16 %v570
    %v2716 = vunpack.c.h.b16 %v570
    %v2717 = vunpack.c.l.b16 %v571
    %v2718 = vunpack.c.h.b16 %v571
    %v2719 = vunpack.c.l.b16 %v572
    %v2720 = vunpack.c.h.b16 %v572
    %v2721 = vunpack.c.l.b16 %v573
    %v2722 = vunpack.c.h.b16 %v573
    %v2723 = vunpack.c.l.b16 %v574
    %v2724 = vunpack.c.h.b16 %v574
    %v2725 = vunpack.c.l.b16 %v575
    %v2726 = vunpack.c.h.b16 %v575
    %v2727 = vunpack.c.l.b16 %v576
    %v2728 = vunpack.c.h.b16 %v576
    %v2729 = vunpack.c.l.b16 %v577
    %v2730 = vunpack.c.h.b16 %v577
    %v2731 = vunpack.c.l.b16 %v578
    %v2732 = vunpack.c.h.b16 %v578
    %v2733 = vunpack.c.l.b16 %v579
    %v2734 = vunpack.c.h.b16 %v579
    %v2735 = vunpack.c.l.b16 %v580
    %v2736 = vunpack.c.h.b16 %v580
    %v2737 = vunpack.c.l.b16 %v581
    %v2738 = vunpack.c.h.b16 %v581
    %v2739 = vunpack.c.l.b16 %v582
    %v2740 = vunpack.c.h.b16 %v582
    %v2741 = vunpack.c.l.b16 %v583
    %v2742 = vunpack.c.h.b16 %v583
    %v2743 = vunpack.c.l.b16 %v584
    %v2744 = vunpack.c.h.b16 %v584
    %v2745 = vunpack.c.l.b16 %v585
    %v2746 = vunpack.c.h.b16 %v585
    %v2747 = vunpack.c.l.b16 %v586
    %v2748 = vunpack.c.h.b16 %v586
    %v2749 = vunpack.c.l.b16 %v587
    %v2750 = vunpack.c.h.b16 %v587
    %v2751 = vunpack.c.l.b16 %v588
    %v2752 = vunpack.c.h.b16 %v588
    %v2753 = vunpack.c.l.b16 %v589
    %v2754 = vunpack.c.h.b16 %v589
    %v2755 = vunpack.c.l.b16 %v590
    %v2756 = vunpack.c.h.b16 %v590
    %v2757 = vunpack.c.l.b16 %v591
    %v2758 = vunpack.c.h.b16 %v591
    %v2759 = vunpack.c.l.b16 %v592
    %v2760 = vunpack.c.h.b16 %v592
    %v2761 = vunpack.c.l.b16 %v593
    %v2762 = vunpack.c.h.b16 %v593
    %v2763 = vunpack.c.l.b16 %v594
    %v2764 = vunpack.c.h.b16 %v594
    %v2765 = vunpack.c.l.b16 %v595
    %v2766 = vunpack.c.h.b16 %v595
    %v2767 = vunpack.c.l.b16 %v596
    %v2768 = vunpack.c.h.b16 %v596
    %v2769 = vunpack.c.l.b16 %v597
    %v2770 = vunpack.c.h.b16 %v597
    %v2771 = vunpack.c.l.b16 %v598
    %v2772 = vunpack.c.h.b16 %v598
    %v2773 = vunpack.c.l.b16 %v599
    %v2774 = vunpack.c.h.b16 %v599
    %v2775 = vunpack.c.l.b16 %v600
    %v2776 = vunpack.c.h.b16 %v600
    %v2777 = vunpack.c.l.b16 %v601
    %v2778 = vunpack.c.h.b16 %v601
    %v2779 = vunpack.c.l.b16 %v602
    %v2780 = vunpack.c.h.b16 %v602
    %v2781 = vunpack.c.l.b16 %v603
    %v2782 = vunpack.c.h.b16 %v603
    %v2783 = vunpack.c.l.b16 %v604
    %v2784 = vunpack.c.h.b16 %v604
    %v2785 = vunpack.c.l.b16 %v605
    %v2786 = vunpack.c.h.b16 %v605
    %v2787 = vunpack.c.l.b16 %v606
    %v2788 = vunpack.c.h.b16 %v606
    %v2789 = vunpack.c.l.b16 %v607
    %v2790 = vunpack.c.h.b16 %v607
    %v2791 = vunpack.c.l.b16 %v608
    %v2792 = vunpack.c.h.b16 %v608
    %v2793 = vunpack.c.l.b16 %v609
    %v2794 = vunpack.c.h.b16 %v609
    %v2795 = vunpack.c.l.b16 %v610
    %v2796 = vunpack.c.h.b16 %v610
    %v2797 = vunpack.c.l.b16 %v611
    %v2798 = vunpack.c.h.b16 %v611
    %v2799 = vunpack.c.l.b16 %v612
    %v2800 = vunpack.c.h.b16 %v612
    %v2801 = vunpack.c.l.b16 %v613
    %v2802 = vunpack.c.h.b16 %v613
    %v2803 = vunpack.c.l.b16 %v614
    %v2804 = vunpack.c.h.b16 %v614
    %v2805 = vunpack.c.l.b16 %v615
    %v2806 = vunpack.c.h.b16 %v615
    %v2807 = vunpack.c.l.b16 %v616
    %v2808 = vunpack.c.h.b16 %v616
    %v2809 = vunpack.c.l.b16 %v617
    %v2810 = vunpack.c.h.b16 %v617
    %v2811 = vunpack.c.l.b16 %v618
    %v2812 = vunpack.c.h.b16 %v618
    %v2813 = vunpack.c.l.b16 %v619
    %v2814 = vunpack.c.h.b16 %v619
    %v2815 = vunpack.c.l.b16 %v620
    %v2816 = vunpack.c.h.b16 %v620
    %v2817 = vunpack.c.l.b16 %v621
    %v2818 = vunpack.c.h.b16 %v621
    %v2819 = vunpack.c.l.b16 %v622
    %v2820 = vunpack.c.h.b16 %v622
    %v2821 = vunpack.c.l.b16 %v623
    %v2822 = vunpack.c.h.b16 %v623
    %v2823 = vunpack.c.l.b16 %v624
    %v2824 = vunpack.c.h.b16 %v624
    %v2825 = vunpack.c.l.b16 %v625
    %v2826 = vunpack.c.h.b16 %v625
    %v2827 = vunpack.c.l.b16 %v626
    %v2828 = vunpack.c.h.b16 %v626
    %v2829 = vunpack.c.l.b16 %v627
    %v2830 = vunpack.c.h.b16 %v627
    %v2831 = vunpack.c.l.b16 %v628
    %v2832 = vunpack.c.h.b16 %v628
    %v2833 = vunpack.c.l.b16 %v629
    %v2834 = vunpack.c.h.b16 %v629
    %v2835 = vunpack.c.l.b16 %v630
    %v2836 = vunpack.c.h.b16 %v630
    %v2837 = vunpack.c.l.b16 %v631
    %v2838 = vunpack.c.h.b16 %v631
    %v2839 = vunpack.c.l.b16 %v632
    %v2840 = vunpack.c.h.b16 %v632
    %v2841 = vunpack.c.l.b16 %v633
    %v2842 = vunpack.c.h.b16 %v633
    %v2843 = vunpack.c.l.b16 %v634
    %v2844 = vunpack.c.h.b16 %v634
    %v2845 = vunpack.c.l.b16 %v635
    %v2846 = vunpack.c.h.b16 %v635
    %v2847 = vunpack.c.l.b16 %v636
    %v2848 = vunpack.c.h.b16 %v636
    %v2849 = vunpack.c.l.b16 %v637
    %v2850 = vunpack.c.h.b16 %v637
    %v2851 = vunpack.c.l.b16 %v638
    %v2852 = vunpack.c.h.b16 %v638
    %v2853 = vunpack.c.l.b16 %v639
    %v2854 = vunpack.c.h.b16 %v639
    %v2855 = vunpack.c.l.b16 %v640
    %v2856 = vunpack.c.h.b16 %v640
    %v2857 = vunpack.c.l.b16 %v641
    %v2858 = vunpack.c.h.b16 %v641
    %v2859 = vunpack.c.l.b16 %v642
    %v2860 = vunpack.c.h.b16 %v642
    %v2861 = vunpack.c.l.b16 %v643
    %v2862 = vunpack.c.h.b16 %v643
    %v2863 = vunpack.c.l.b16 %v644
    %v2864 = vunpack.c.h.b16 %v644
    %v2865 = vunpack.c.l.b16 %v645
    %v2866 = vunpack.c.h.b16 %v645
    %v2867 = vunpack.c.l.b16 %v646
    %v2868 = vunpack.c.h.b16 %v646
    %v2869 = vunpack.c.l.b16 %v647
    %v2870 = vunpack.c.h.b16 %v647
    %v2871 = vunpack.c.l.b16 %v648
    %v2872 = vunpack.c.h.b16 %v648
    %v2873 = vunpack.c.l.b16 %v649
    %v2874 = vunpack.c.h.b16 %v649
    %v2875 = vunpack.c.l.b16 %v650
    %v2876 = vunpack.c.h.b16 %v650
    %v2877 = vunpack.c.l.b16 %v651
    %v2878 = vunpack.c.h.b16 %v651
    %v2879 = vunpack.c.l.b16 %v652
    %v2880 = vunpack.c.h.b16 %v652
    %v2881 = vunpack.c.l.b16 %v653
    %v2882 = vunpack.c.h.b16 %v653
    %v2883 = vunpack.c.l.b16 %v654
    %v2884 = vunpack.c.h.b16 %v654
    %v2885 = vunpack.c.l.b16 %v655
    %v2886 = vunpack.c.h.b16 %v655
    %v2887 = vunpack.c.l.b16 %v656
    %v2888 = vunpack.c.h.b16 %v656
    %v2889 = vunpack.c.l.b16 %v657
    %v2890 = vunpack.c.h.b16 %v657
    %v2891 = vunpack.c.l.b16 %v658
    %v2892 = vunpack.c.h.b16 %v658
    %v2893 = vunpack.c.l.b16 %v659
    %v2894 = vunpack.c.h.b16 %v659
    %v2895 = vunpack.c.l.b16 %v660
    %v2896 = vunpack.c.h.b16 %v660
    %v2897 = vunpack.c.l.b16 %v661
    %v2898 = vunpack.c.h.b16 %v661
    %v2899 = vunpack.c.l.b16 %v662
    %v2900 = vunpack.c.h.b16 %v662
    %v2901 = vunpack.c.l.b16 %v663
    %v2902 = vunpack.c.h.b16 %v663
    %v2903 = vunpack.c.l.b16 %v664
    %v2904 = vunpack.c.h.b16 %v664
    %v2905 = vunpack.c.l.b16 %v665
    %v2906 = vunpack.c.h.b16 %v665
    %v2907 = vunpack.c.l.b16 %v666
    %v2908 = vunpack.c.h.b16 %v666
    %v2909 = vunpack.c.l.b16 %v667
    %v2910 = vunpack.c.h.b16 %v667
    %v2911 = vunpack.c.l.b16 %v668
    %v2912 = vunpack.c.h.b16 %v668
    %v2913 = vunpack.c.l.b16 %v669
    %v2914 = vunpack.c.h.b16 %v669
    %v2915 = vunpack.c.l.b16 %v670
    %v2916 = vunpack.c.h.b16 %v670
    %v2917 = vunpack.c.l.b16 %v671
    %v2918 = vunpack.c.h.b16 %v671
    %v2919 = vunpack.c.l.b16 %v672
    %v2920 = vunpack.c.h.b16 %v672
    %v2921 = vunpack.c.l.b16 %v673
    %v2922 = vunpack.c.h.b16 %v673
    %v2923 = vunpack.c.l.b16 %v674
    %v2924 = vunpack.c.h.b16 %v674
    %v2925 = vunpack.c.l.b16 %v675
    %v2926 = vunpack.c.h.b16 %v675
    %v2927 = vunpack.c.l.b16 %v676
    %v2928 = vunpack.c.h.b16 %v676
    %v2929 = vunpack.c.l.b16 %v677
    %v2930 = vunpack.c.h.b16 %v677
    %v2931 = vunpack.c.l.b16 %v678
    %v2932 = vunpack.c.h.b16 %v678
    %v2933 = vunpack.c.l.b16 %v679
    %v2934 = vunpack.c.h.b16 %v679
    %v2935 = vunpack.c.l.b16 %v680
    %v2936 = vunpack.c.h.b16 %v680
    %v2937 = vunpack.c.l.b16 %v681
    %v2938 = vunpack.c.h.b16 %v681
    %v2939 = vunpack.c.l.b16 %v682
    %v2940 = vunpack.c.h.b16 %v682
    %v2941 = vunpack.c.l.b16 %v683
    %v2942 = vunpack.c.h.b16 %v683
    %v2943 = vunpack.c.l.b16 %v684
    %v2944 = vunpack.c.h.b16 %v684
    %v2945 = vunpack.c.l.b16 %v685
    %v2946 = vunpack.c.h.b16 %v685
    %v2947 = vunpack.c.l.b16 %v686
    %v2948 = vunpack.c.h.b16 %v686
    %v2949 = vunpack.c.l.b16 %v687
    %v2950 = vunpack.c.h.b16 %v687
    %v2951 = vunpack.c.l.b16 %v688
    %v2952 = vunpack.c.h.b16 %v688
    %v2953 = vunpack.c.l.b16 %v689
    %v2954 = vunpack.c.h.b16 %v689
    %v2955 = vunpack.c.l.b16 %v690
    %v2956 = vunpack.c.h.b16 %v690
    %v2957 = vunpack.c.l.b16 %v691
    %v2958 = vunpack.c.h.b16 %v691
    %v2959 = vunpack.c.l.b16 %v692
    %v2960 = vunpack.c.h.b16 %v692
    %v2961 = vunpack.c.l.b16 %v693
    %v2962 = vunpack.c.h.b16 %v693
    %v2963 = vunpack.c.l.b16 %v694
    %v2964 = vunpack.c.h.b16 %v694
    %v2965 = vunpack.c.l.b16 %v695
    %v2966 = vunpack.c.h.b16 %v695
    %v2967 = vunpack.c.l.b16 %v696
    %v2968 = vunpack.c.h.b16 %v696
    %v2969 = vunpack.c.l.b16 %v697
    %v2970 = vunpack.c.h.b16 %v697
    %v2971 = vunpack.c.l.b16 %v698
    %v2972 = vunpack.c.h.b16 %v698
    %v2973 = vunpack.c.l.b16 %v699
    %v2974 = vunpack.c.h.b16 %v699
    %v2975 = vunpack.c.l.b16 %v700
    %v2976 = vunpack.c.h.b16 %v700
    %v2977 = vunpack.c.l.b16 %v701
    %v2978 = vunpack.c.h.b16 %v701
    %v2979 = vunpack.c.l.b16 %v702
    %v2980 = vunpack.c.h.b16 %v702
    %v2981 = vunpack.c.l.b16 %v703
    %v2982 = vunpack.c.h.b16 %v703
    %v2983 = vunpack.c.l.b16 %v704
    %v2984 = vunpack.c.h.b16 %v704
    %v2985 = vunpack.c.l.b16 %v705
    %v2986 = vunpack.c.h.b16 %v705
    %v2987 = vunpack.c.l.b16 %v706
    %v2988 = vunpack.c.h.b16 %v706
    %v2989 = vunpack.c.l.b16 %v707
    %v2990 = vunpack.c.h.b16 %v707
    %v2991 = vunpack.c.l.b16 %v708
    %v2992 = vunpack.c.h.b16 %v708
    %v2993 = vunpack.c.l.b16 %v709
    %v2994 = vunpack.c.h.b16 %v709
    %v2995 = vunpack.c.l.b16 %v710
    %v2996 = vunpack.c.h.b16 %v710
    %v2997 = vunpack.c.l.b16 %v711
    %v2998 = vunpack.c.h.b16 %v711
    %v2999 = vunpack.c.l.b16 %v712
    %v3000 = vunpack.c.h.b16 %v712
    %v3001 = vunpack.c.l.b16 %v713
    %v3002 = vunpack.c.h.b16 %v713
    %v3003 = vunpack.c.l.b16 %v714
    %v3004 = vunpack.c.h.b16 %v714
    %v3005 = vunpack.c.l.b16 %v715
    %v3006 = vunpack.c.h.b16 %v715
    %v3007 = vunpack.c.l.b16 %v716
    %v3008 = vunpack.c.h.b16 %v716
    %v3009 = vunpack.c.l.b16 %v717
    %v3010 = vunpack.c.h.b16 %v717
    %v3011 = vunpack.c.l.b16 %v718
    %v3012 = vunpack.c.h.b16 %v718
    %v3013 = vunpack.c.l.b16 %v719
    %v3014 = vunpack.c.h.b16 %v719
    %v3015 = vunpack.c.l.b16 %v720
    %v3016 = vunpack.c.h.b16 %v720
    %v3017 = vunpack.c.l.b16 %v721
    %v3018 = vunpack.c.h.b16 %v721
    %v3019 = vunpack.c.l.b16 %v722
    %v3020 = vunpack.c.h.b16 %v722
    %v3021 = vunpack.c.l.b16 %v723
    %v3022 = vunpack.c.h.b16 %v723
    %v3023 = vunpack.c.l.b16 %v724
    %v3024 = vunpack.c.h.b16 %v724
    %v3025 = vunpack.c.l.b16 %v725
    %v3026 = vunpack.c.h.b16 %v725
    %v3027 = vunpack.c.l.b16 %v726
    %v3028 = vunpack.c.h.b16 %v726
    %v3029 = vunpack.c.l.b16 %v727
    %v3030 = vunpack.c.h.b16 %v727
    %v3031 = vunpack.c.l.b16 %v728
    %v3032 = vunpack.c.h.b16 %v728
    %v3033 = vunpack.c.l.b16 %v729
    %v3034 = vunpack.c.h.b16 %v729
    %v3035 = vunpack.c.l.b16 %v730
    %v3036 = vunpack.c.h.b16 %v730
    %v3037 = vunpack.c.l.b16 %v731
    %v3038 = vunpack.c.h.b16 %v731
    %v3039 = vunpack.c.l.b16 %v732
    %v3040 = vunpack.c.h.b16 %v732
    %v3041 = vunpack.c.l.b16 %v733
    %v3042 = vunpack.c.h.b16 %v733
    %v3043 = vunpack.c.l.b16 %v734
    %v3044 = vunpack.c.h.b16 %v734
    %v3045 = vunpack.c.l.b16 %v735
    %v3046 = vunpack.c.h.b16 %v735
    %v3047 = vunpack.c.l.b16 %v736
    %v3048 = vunpack.c.h.b16 %v736
    %v3049 = vunpack.c.l.b16 %v737
    %v3050 = vunpack.c.h.b16 %v737
    %v3051 = vunpack.c.l.b16 %v738
    %v3052 = vunpack.c.h.b16 %v738
    %v3053 = vunpack.c.l.b16 %v739
    %v3054 = vunpack.c.h.b16 %v739
    %v3055 = vunpack.c.l.b16 %v740
    %v3056 = vunpack.c.h.b16 %v740
    %v3057 = vunpack.c.l.b16 %v741
    %v3058 = vunpack.c.h.b16 %v741
    %v3059 = vunpack.c.l.b16 %v742
    %v3060 = vunpack.c.h.b16 %v742
    %v3061 = vunpack.c.l.b16 %v743
    %v3062 = vunpack.c.h.b16 %v743
    %v3063 = vunpack.c.l.b16 %v744
    %v3064 = vunpack.c.h.b16 %v744
    %v3065 = vunpack.c.l.b16 %v745
    %v3066 = vunpack.c.h.b16 %v745
    %v3067 = vunpack.c.l.b16 %v746
    %v3068 = vunpack.c.h.b16 %v746
    %v3069 = vunpack.c.l.b16 %v747
    %v3070 = vunpack.c.h.b16 %v747
    %v3071 = vunpack.c.l.b16 %v748
    %v3072 = vunpack.c.h.b16 %v748
    %v3073 = vunpack.c.l.b16 %v749
    %v3074 = vunpack.c.h.b16 %v749
    %v3075 = vunpack.c.l.b16 %v750
    %v3076 = vunpack.c.h.b16 %v750
    %v3077 = vunpack.c.l.b16 %v751
    %v3078 = vunpack.c.h.b16 %v751
    %v3079 = vunpack.c.l.b16 %v752
    %v3080 = vunpack.c.h.b16 %v752
    %v3081 = vunpack.c.l.b16 %v753
    %v3082 = vunpack.c.h.b16 %v753
    %v3083 = vunpack.c.l.b16 %v754
    %v3084 = vunpack.c.h.b16 %v754
    %v3085 = vunpack.c.l.b16 %v755
    %v3086 = vunpack.c.h.b16 %v755
    %v3087 = vunpack.c.l.b16 %v756
    %v3088 = vunpack.c.h.b16 %v756
    %v3089 = vunpack.c.l.b16 %v757
    %v3090 = vunpack.c.h.b16 %v757
    %v3091 = vunpack.c.l.b16 %v758
    %v3092 = vunpack.c.h.b16 %v758
    %v3093 = vunpack.c.l.b16 %v759
    %v3094 = vunpack.c.h.b16 %v759
    %v3095 = vunpack.c.l.b16 %v760
    %v3096 = vunpack.c.h.b16 %v760
    %v3097 = vunpack.c.l.b16 %v761
    %v3098 = vunpack.c.h.b16 %v761
    %v3099 = vunpack.c.l.b16 %v762
    %v3100 = vunpack.c.h.b16 %v762
    %v3101 = vunpack.c.l.b16 %v763
    %v3102 = vunpack.c.h.b16 %v763
    %v3103 = vunpack.c.l.b16 %v764
    %v3104 = vunpack.c.h.b16 %v764
    %v3105 = vunpack.c.l.b16 %v765
    %v3106 = vunpack.c.h.b16 %v765
    %v3107 = vunpack.c.l.b16 %v766
    %v3108 = vunpack.c.h.b16 %v766
    %v3109 = vunpack.c.l.b16 %v767
    %v3110 = vunpack.c.h.b16 %v767
    %v3111 = vunpack.c.l.b16 %v768
    %v3112 = vunpack.c.h.b16 %v768
    %v3113 = vunpack.c.l.b16 %v769
    %v3114 = vunpack.c.h.b16 %v769
    %v3115 = vunpack.c.l.b16 %v770
    %v3116 = vunpack.c.h.b16 %v770
    %v3117 = vunpack.c.l.b16 %v771
    %v3118 = vunpack.c.h.b16 %v771
    %v3119 = vunpack.c.l.b16 %v772
    %v3120 = vunpack.c.h.b16 %v772
    %v3121 = vunpack.c.l.b16 %v773
    %v3122 = vunpack.c.h.b16 %v773
    %v3123 = vunpack.c.l.b16 %v774
    %v3124 = vunpack.c.h.b16 %v774
    %v3125 = vunpack.c.l.b16 %v775
    %v3126 = vunpack.c.h.b16 %v775
    %v3127 = vunpack.c.l.b16 %v776
    %v3128 = vunpack.c.h.b16 %v776
    %v3129 = vunpack.c.l.b16 %v777
    %v3130 = vunpack.c.h.b16 %v777
    %v3131 = vunpack.c.l.b16 %v778
    %v3132 = vunpack.c.h.b16 %v778
    %v3133 = vunpack.c.l.b16 %v779
    %v3134 = vunpack.c.h.b16 %v779
    %v3135 = vunpack.c.l.b16 %v780
    %v3136 = vunpack.c.h.b16 %v780
    %v3137 = vunpack.c.l.b16 %v781
    %v3138 = vunpack.c.h.b16 %v781
    %v3139 = vunpack.c.l.b16 %v782
    %v3140 = vunpack.c.h.b16 %v782
    %v3141 = vunpack.c.l.b16 %v783
    %v3142 = vunpack.c.h.b16 %v783
    %v3143 = vunpack.c.l.b16 %v784
    %v3144 = vunpack.c.h.b16 %v784
    %v3145 = vunpack.c.l.b16 %v785
    %v3146 = vunpack.c.h.b16 %v785
    %v3147 = vunpack.c.l.b16 %v786
    %v3148 = vunpack.c.h.b16 %v786
    %v3149 = vunpack.c.l.b16 %v787
    %v3150 = vunpack.c.h.b16 %v787
    %v3151 = vunpack.c.l.b16 %v788
    %v3152 = vunpack.c.h.b16 %v788
    %v3153 = vunpack.c.l.b16 %v789
    %v3154 = vunpack.c.h.b16 %v789
    %v3155 = vunpack.c.l.b16 %v790
    %v3156 = vunpack.c.h.b16 %v790
    %v3157 = vunpack.c.l.b16 %v791
    %v3158 = vunpack.c.h.b16 %v791
    %v3159 = vunpack.c.l.b16 %v792
    %v3160 = vunpack.c.h.b16 %v792
    %v3161 = vunpack.c.l.b16 %v793
    %v3162 = vunpack.c.h.b16 %v793
    %v3163 = vunpack.c.l.b16 %v794
    %v3164 = vunpack.c.h.b16 %v794
    %v3165 = vunpack.c.l.b16 %v795
    %v3166 = vunpack.c.h.b16 %v795
    %v3167 = vunpack.c.l.b16 %v796
    %v3168 = vunpack.c.h.b16 %v796
    %v3169 = vunpack.c.l.b16 %v797
    %v3170 = vunpack.c.h.b16 %v797
    %v3171 = vunpack.c.l.b16 %v798
    %v3172 = vunpack.c.h.b16 %v798
    %v3173 = vunpack.c.l.b16 %v799
    %v3174 = vunpack.c.h.b16 %v799
    %v3175 = vunpack.c.l.b16 %v800
    %v3176 = vunpack.c.h.b16 %v800
    %v3177 = vunpack.c.l.b16 %v801
    %v3178 = vunpack.c.h.b16 %v801
    %v3179 = vunpack.c.l.b16 %v802
    %v3180 = vunpack.c.h.b16 %v802
    %v3181 = vunpack.c.l.b16 %v803
    %v3182 = vunpack.c.h.b16 %v803
    %v3183 = vunpack.c.l.b16 %v804
    %v3184 = vunpack.c.h.b16 %v804
    %v3185 = vunpack.c.l.b16 %v805
    %v3186 = vunpack.c.h.b16 %v805
    %v3187 = vunpack.c.l.b16 %v806
    %v3188 = vunpack.c.h.b16 %v806
    %v3189 = vunpack.c.l.b16 %v807
    %v3190 = vunpack.c.h.b16 %v807
    %v3191 = vunpack.c.l.b16 %v808
    %v3192 = vunpack.c.h.b16 %v808
    %v3193 = vunpack.c.l.b16 %v809
    %v3194 = vunpack.c.h.b16 %v809
    %v3195 = vunpack.c.l.b16 %v810
    %v3196 = vunpack.c.h.b16 %v810
    %v3197 = vunpack.c.l.b16 %v811
    %v3198 = vunpack.c.h.b16 %v811
    %v3199 = vunpack.c.l.b16 %v812
    %v3200 = vunpack.c.h.b16 %v812
    %v3201 = vunpack.c.l.b16 %v813
    %v3202 = vunpack.c.h.b16 %v813
    %v3203 = vunpack.c.l.b16 %v814
    %v3204 = vunpack.c.h.b16 %v814
    %v3205 = vunpack.c.l.b16 %v815
    %v3206 = vunpack.c.h.b16 %v815
    %v3207 = vunpack.c.l.b16 %v816
    %v3208 = vunpack.c.h.b16 %v816
    %v3209 = vunpack.c.l.b16 %v817
    %v3210 = vunpack.c.h.b16 %v817
    %v3211 = vunpack.c.l.b16 %v818
    %v3212 = vunpack.c.h.b16 %v818
    %v3213 = vunpack.c.l.b16 %v819
    %v3214 = vunpack.c.h.b16 %v819
    %v3215 = vunpack.c.l.b16 %v820
    %v3216 = vunpack.c.h.b16 %v820
    %v3217 = vunpack.c.l.b16 %v821
    %v3218 = vunpack.c.h.b16 %v821
    %v3219 = vunpack.c.l.b16 %v822
    %v3220 = vunpack.c.h.b16 %v822
    %v3221 = vunpack.c.l.b16 %v823
    %v3222 = vunpack.c.h.b16 %v823
    %v3223 = vunpack.c.l.b16 %v824
    %v3224 = vunpack.c.h.b16 %v824
    %v3225 = vunpack.c.l.b16 %v825
    %v3226 = vunpack.c.h.b16 %v825
    %v3227 = vunpack.c.l.b16 %v826
    %v3228 = vunpack.c.h.b16 %v826
    %v3229 = vunpack.c.l.b16 %v827
    %v3230 = vunpack.c.h.b16 %v827
    %v3231 = vunpack.c.l.b16 %v828
    %v3232 = vunpack.c.h.b16 %v828
    %v3233 = vunpack.c.l.b16 %v829
    %v3234 = vunpack.c.h.b16 %v829
    %v3235 = vunpack.c.l.b16 %v830
    %v3236 = vunpack.c.h.b16 %v830
    %v3237 = vunpack.c.l.b16 %v831
    %v3238 = vunpack.c.h.b16 %v831
    %v3239 = vunpack.c.l.b16 %v832
    %v3240 = vunpack.c.h.b16 %v832
    %v3241 = vunpack.c.l.b16 %v833
    %v3242 = vunpack.c.h.b16 %v833
    %v3243 = vunpack.c.l.b16 %v834
    %v3244 = vunpack.c.h.b16 %v834
    %v3245 = vunpack.c.l.b16 %v835
    %v3246 = vunpack.c.h.b16 %v835
    %v3247 = vunpack.c.l.b16 %v836
    %v3248 = vunpack.c.h.b16 %v836
    %v3249 = vunpack.c.l.b16 %v837
    %v3250 = vunpack.c.h.b16 %v837
    %v3251 = vunpack.c.l.b16 %v838
    %v3252 = vunpack.c.h.b16 %v838
    %v3253 = vunpack.c.l.b16 %v839
    %v3254 = vunpack.c.h.b16 %v839
    %v3255 = vunpack.c.l.b16 %v840
    %v3256 = vunpack.c.h.b16 %v840
    %v3257 = vunpack.c.l.b16 %v841
    %v3258 = vunpack.c.h.b16 %v841
    %v3259 = vunpack.c.l.b16 %v842
    %v3260 = vunpack.c.h.b16 %v842
    %v3261 = vunpack.c.l.b16 %v843
    %v3262 = vunpack.c.h.b16 %v843
    %v3263 = vunpack.c.l.b16 %v844
    %v3264 = vunpack.c.h.b16 %v844
    %v3265 = vunpack.c.l.b16 %v845
    %v3266 = vunpack.c.h.b16 %v845
    %v3267 = vunpack.c.l.b16 %v846
    %v3268 = vunpack.c.h.b16 %v846
    %v3269 = vunpack.c.l.b16 %v847
    %v3270 = vunpack.c.h.b16 %v847
    %v3271 = vunpack.c.l.b16 %v848
    %v3272 = vunpack.c.h.b16 %v848
    %v3273 = vunpack.c.l.b16 %v849
    %v3274 = vunpack.c.h.b16 %v849
    %v3275 = vunpack.c.l.b16 %v850
    %v3276 = vunpack.c.h.b16 %v850
    %v3277 = vunpack.c.l.b16 %v851
    %v3278 = vunpack.c.h.b16 %v851
    %v3279 = vunpack.c.l.b16 %v852
    %v3280 = vunpack.c.h.b16 %v852
    %v3281 = vunpack.c.l.b16 %v853
    %v3282 = vunpack.c.h.b16 %v853
    %v3283 = vunpack.c.l.b16 %v854
    %v3284 = vunpack.c.h.b16 %v854
    %v3285 = vunpack.c.l.b16 %v855
    %v3286 = vunpack.c.h.b16 %v855
    %v3287 = vunpack.c.l.b16 %v856
    %v3288 = vunpack.c.h.b16 %v856
    %v3289 = vunpack.c.l.b16 %v857
    %v3290 = vunpack.c.h.b16 %v857
    %v3291 = vunpack.c.l.b16 %v858
    %v3292 = vunpack.c.h.b16 %v858
    %v3293 = vunpack.c.l.b16 %v859
    %v3294 = vunpack.c.h.b16 %v859
    %v3295 = vunpack.c.l.b16 %v860
    %v3296 = vunpack.c.h.b16 %v860
    %v3297 = vunpack.c.l.b16 %v861
    %v3298 = vunpack.c.h.b16 %v861
    %v3299 = vunpack.c.l.b16 %v862
    %v3300 = vunpack.c.h.b16 %v862
    %v3301 = vunpack.c.l.b16 %v863
    %v3302 = vunpack.c.h.b16 %v863
    %v3303 = vunpack.c.l.b16 %v864
    %v3304 = vunpack.c.h.b16 %v864
    %v3305 = vunpack.c.l.b16 %v865
    %v3306 = vunpack.c.h.b16 %v865
    %v3307 = vunpack.c.l.b16 %v866
    %v3308 = vunpack.c.h.b16 %v866
    %v3309 = vunpack.c.l.b16 %v867
    %v3310 = vunpack.c.h.b16 %v867
    %v3311 = vunpack.c.l.b16 %v868
    %v3312 = vunpack.c.h.b16 %v868
    %v3313 = vunpack.c.l.b16 %v869
    %v3314 = vunpack.c.h.b16 %v869
    %v3315 = vunpack.c.l.b16 %v870
    %v3316 = vunpack.c.h.b16 %v870
    %v3317 = vunpack.c.l.b16 %v871
    %v3318 = vunpack.c.h.b16 %v871
    %v3319 = vunpack.c.l.b16 %v872
    %v3320 = vunpack.c.h.b16 %v872
    %v3321 = vunpack.c.l.b16 %v873
    %v3322 = vunpack.c.h.b16 %v873
    %v3323 = vunpack.c.l.b16 %v874
    %v3324 = vunpack.c.h.b16 %v874
    %v3325 = vunpack.c.l.b16 %v875
    %v3326 = vunpack.c.h.b16 %v875
    %v3327 = vunpack.c.l.b16 %v876
    %v3328 = vunpack.c.h.b16 %v876
    %v3329 = vunpack.c.l.b16 %v877
    %v3330 = vunpack.c.h.b16 %v877
    %v3331 = vunpack.c.l.b16 %v878
    %v3332 = vunpack.c.h.b16 %v878
    %v3333 = vunpack.c.l.b16 %v879
    %v3334 = vunpack.c.h.b16 %v879
    %v3335 = vunpack.c.l.b16 %v880
    %v3336 = vunpack.c.h.b16 %v880
    %v3337 = vunpack.c.l.b16 %v881
    %v3338 = vunpack.c.h.b16 %v881
    %v3339 = vunpack.c.l.b16 %v882
    %v3340 = vunpack.c.h.b16 %v882
    %v3341 = vunpack.c.l.b16 %v883
    %v3342 = vunpack.c.h.b16 %v883
    %v3343 = vpack.c.b16 %v1753, %v1743
    %v3344 = vpack.c.b16 %v1754, %v1744
    %v3345 = vpack.c.b16 %v1755, %v1745
    %v3346 = vpack.c.b16 %v1756, %v1746
    %v3347 = vpack.c.b16 %v1757, %v1747
    %v3348 = vpack.c.b16 %v1758, %v1748
    %v3349 = vpack.c.b16 %v1759, %v1749
    %v3350 = vpack.c.b16 %v1760, %v1750
    %v3351 = vpack.c.b16 %v1761, %v1751
    %v3352 = vpack.c.b16 %v1762, %v1752
    %v3353 = vpack.c.b16 %v1773, %v1763
    %v3354 = vpack.c.b16 %v1774, %v1764
    %v3355 = vpack.c.b16 %v1775, %v1765
    %v3356 = vpack.c.b16 %v1776, %v1766
    %v3357 = vpack.c.b16 %v1777, %v1767
    %v3358 = vpack.c.b16 %v1778, %v1768
    %v3359 = vpack.c.b16 %v1779, %v1769
    %v3360 = vpack.c.b16 %v1780, %v1770
    %v3361 = vpack.c.b16 %v1781, %v1771
    %v3362 = vpack.c.b16 %v1782, %v1772
    %v3363 = vpack.c.b16 %v1793, %v1783
    %v3364 = vpack.c.b16 %v1794, %v1784
    %v3365 = vpack.c.b16 %v1795, %v1785
    %v3366 = vpack.c.b16 %v1796, %v1786
    %v3367 = vpack.c.b16 %v1797, %v1787
    %v3368 = vpack.c.b16 %v1798, %v1788
    %v3369 = vpack.c.b16 %v1799, %v1789
    %v3370 = vpack.c.b16 %v1800, %v1790
    %v3371 = vpack.c.b16 %v1801, %v1791
    %v3372 = vpack.c.b16 %v1802, %v1792
    %v3373 = vpack.c.b16 %v1813, %v1803
    %v3374 = vpack.c.b16 %v1814, %v1804
    %v3375 = vpack.c.b16 %v1815, %v1805
    %v3376 = vpack.c.b16 %v1816, %v1806
    %v3377 = vpack.c.b16 %v1817, %v1807
    %v3378 = vpack.c.b16 %v1818, %v1808
    %v3379 = vpack.c.b16 %v1819, %v1809
    %v3380 = vpack.c.b16 %v1820, %v1810
    %v3381 = vpack.c.b16 %v1821, %v1811
    %v3382 = vpack.c.b16 %v1822, %v1812
    %v3383 = vpack.c.b16 %v1833, %v1823
    %v3384 = vpack.c.b16 %v1834, %v1824
    %v3385 = vpack.c.b16 %v1835, %v1825
    %v3386 = vpack.c.b16 %v1836, %v1826
    %v3387 = vpack.c.b16 %v1837, %v1827
    %v3388 = vpack.c.b16 %v1838, %v1828
    %v3389 = vpack.c.b16 %v1839, %v1829
    %v3390 = vpack.c.b16 %v1840, %v1830
    %v3391 = vpack.c.b16 %v1841, %v1831
    %v3392 = vpack.c.b16 %v1842, %v1832
    %v3393 = vpack.c.b16 %v1853, %v1843
    %v3394 = vpack.c.b16 %v1854, %v1844
    %v3395 = vpack.c.b16 %v1855, %v1845
    %v3396 = vpack.c.b16 %v1856, %v1846
    %v3397 = vpack.c.b16 %v1857, %v1847
    %v3398 = vpack.c.b16 %v1858, %v1848
    %v3399 = vpack.c.b16 %v1859, %v1849
    %v3400 = vpack.c.b16 %v1860, %v1850
    %v3401 = vpack.c.b16 %v1861, %v1851
    %v3402 = vpack.c.b16 %v1862, %v1852
    %v3403 = vpack.c.b16 %v1873, %v1863
    %v3404 = vpack.c.b16 %v1874, %v1864
    %v3405 = vpack.c.b16 %v1875, %v1865
    %v3406 = vpack.c.b16 %v1876, %v1866
    %v3407 = vpack.c.b16 %v1877, %v1867
    %v3408 = vpack.c.b16 %v1878, %v1868
    %v3409 = vpack.c.b16 %v1879, %v1869
    %v3410 = vpack.c.b16 %v1880, %v1870
    %v3411 = vpack.c.b16 %v1881, %v1871
    %v3412 = vpack.c.b16 %v1882, %v1872
    %v3413 = vpack.c.b16 %v1893, %v1883
    %v3414 = vpack.c.b16 %v1894, %v1884
    %v3415 = vpack.c.b16 %v1895, %v1885
    %v3416 = vpack.c.b16 %v1896, %v1886
    %v3417 = vpack.c.b16 %v1897, %v1887
    %v3418 = vpack.c.b16 %v1898, %v1888
    %v3419 = vpack.c.b16 %v1899, %v1889
    %v3420 = vpack.c.b16 %v1900, %v1890
    %v3421 = vpack.c.b16 %v1901, %v1891
    %v3422 = vpack.c.b16 %v1902, %v1892
    %v3423 = vpack.c.b16 %v1913, %v1903
    %v3424 = vpack.c.b16 %v1914, %v1904
    %v3425 = vpack.c.b16 %v1915, %v1905
    %v3426 = vpack.c.b16 %v1916, %v1906
    %v3427 = vpack.c.b16 %v1917, %v1907
    %v3428 = vpack.c.b16 %v1918, %v1908
    %v3429 = vpack.c.b16 %v1919, %v1909
    %v3430 = vpack.c.b16 %v1920, %v1910
    %v3431 = vpack.c.b16 %v1921, %v1911
    %v3432 = vpack.c.b16 %v1922, %v1912
    %v3433 = vpack.c.b16 %v1933, %v1923
    %v3434 = vpack.c.b16 %v1934, %v1924
    %v3435 = vpack.c.b16 %v1935, %v1925
    %v3436 = vpack.c.b16 %v1936, %v1926
    %v3437 = vpack.c.b16 %v1937, %v1927
    %v3438 = vpack.c.b16 %v1938, %v1928
    %v3439 = vpack.c.b16 %v1939, %v1929
    %v3440 = vpack.c.b16 %v1940, %v1930
    %v3441 = vpack.c.b16 %v1941, %v1931
    %v3442 = vpack.c.b16 %v1942, %v1932
    %v3443 = vpack.c.b16 %v1953, %v1943
    %v3444 = vpack.c.b16 %v1954, %v1944
    %v3445 = vpack.c.b16 %v1955, %v1945
    %v3446 = vpack.c.b16 %v1956, %v1946
    %v3447 = vpack.c.b16 %v1957, %v1947
    %v3448 = vpack.c.b16 %v1958, %v1948
    %v3449 = vpack.c.b16 %v1959, %v1949
    %v3450 = vpack.c.b16 %v1960, %v1950
    %v3451 = vpack.c.b16 %v1961, %v1951
    %v3452 = vpack.c.b16 %v1962, %v1952
    %v3453 = vpack.c.b16 %v1973, %v1963
    %v3454 = vpack.c.b16 %v1974, %v1964
    %v3455 = vpack.c.b16 %v1975, %v1965
    %v3456 = vpack.c.b16 %v1976, %v1966
    %v3457 = vpack.c.b16 %v1977, %v1967
    %v3458 = vpack.c.b16 %v1978, %v1968
    %v3459 = vpack.c.b16 %v1979, %v1969
    %v3460 = vpack.c.b16 %v1980, %v1970
    %v3461 = vpack.c.b16 %v1981, %v1971
    %v3462 = vpack.c.b16 %v1982, %v1972
    %v3463 = vpack.c.b16 %v1993, %v1983
    %v3464 = vpack.c.b16 %v1994, %v1984
    %v3465 = vpack.c.b16 %v1995, %v1985
    %v3466 = vpack.c.b16 %v1996, %v1986
    %v3467 = vpack.c.b16 %v1997, %v1987
    %v3468 = vpack.c.b16 %v1998, %v1988
    %v3469 = vpack.c.b16 %v1999, %v1989
    %v3470 = vpack.c.b16 %v2000, %v1990
    %v3471 = vpack.c.b16 %v2001, %v1991
    %v3472 = vpack.c.b16 %v2002, %v1992
    %v3473 = vpack.c.b16 %v2013, %v2003
    %v3474 = vpack.c.b16 %v2014, %v2004
    %v3475 = vpack.c.b16 %v2015, %v2005
    %v3476 = vpack.c.b16 %v2016, %v2006
    %v3477 = vpack.c.b16 %v2017, %v2007
    %v3478 = vpack.c.b16 %v2018, %v2008
    %v3479 = vpack.c.b16 %v2019, %v2009
    %v3480 = vpack.c.b16 %v2020, %v2010
    %v3481 = vpack.c.b16 %v2021, %v2011
    %v3482 = vpack.c.b16 %v2022, %v2012
    %v3483 = vpack.c.b16 %v2033, %v2023
    %v3484 = vpack.c.b16 %v2034, %v2024
    %v3485 = vpack.c.b16 %v2035, %v2025
    %v3486 = vpack.c.b16 %v2036, %v2026
    %v3487 = vpack.c.b16 %v2037, %v2027
    %v3488 = vpack.c.b16 %v2038, %v2028
    %v3489 = vpack.c.b16 %v2039, %v2029
    %v3490 = vpack.c.b16 %v2040, %v2030
    %v3491 = vpack.c.b16 %v2041, %v2031
    %v3492 = vpack.c.b16 %v2042, %v2032
    %v3493 = vpack.c.b16 %v2053, %v2043
    %v3494 = vpack.c.b16 %v2054, %v2044
    %v3495 = vpack.c.b16 %v2055, %v2045
    %v3496 = vpack.c.b16 %v2056, %v2046
    %v3497 = vpack.c.b16 %v2057, %v2047
    %v3498 = vpack.c.b16 %v2058, %v2048
    %v3499 = vpack.c.b16 %v2059, %v2049
    %v3500 = vpack.c.b16 %v2060, %v2050
    %v3501 = vpack.c.b16 %v2061, %v2051
    %v3502 = vpack.c.b16 %v2062, %v2052
    %v3503 = vpack.c.b16 %v2073, %v2063
    %v3504 = vpack.c.b16 %v2074, %v2064
    %v3505 = vpack.c.b16 %v2075, %v2065
    %v3506 = vpack.c.b16 %v2076, %v2066
    %v3507 = vpack.c.b16 %v2077, %v2067
    %v3508 = vpack.c.b16 %v2078, %v2068
    %v3509 = vpack.c.b16 %v2079, %v2069
    %v3510 = vpack.c.b16 %v2080, %v2070
    %v3511 = vpack.c.b16 %v2081, %v2071
    %v3512 = vpack.c.b16 %v2082, %v2072
    %v3513 = vpack.c.b16 %v2093, %v2083
    %v3514 = vpack.c.b16 %v2094, %v2084
    %v3515 = vpack.c.b16 %v2095, %v2085
    %v3516 = vpack.c.b16 %v2096, %v2086
    %v3517 = vpack.c.b16 %v2097, %v2087
    %v3518 = vpack.c.b16 %v2098, %v2088
    %v3519 = vpack.c.b16 %v2099, %v2089
    %v3520 = vpack.c.b16 %v2100, %v2090
    %v3521 = vpack.c.b16 %v2101, %v2091
    %v3522 = vpack.c.b16 %v2102, %v2092
    %v3523 = vpack.c.b16 %v2113, %v2103
    %v3524 = vpack.c.b16 %v2114, %v2104
    %v3525 = vpack.c.b16 %v2115, %v2105
    %v3526 = vpack.c.b16 %v2116, %v2106
    %v3527 = vpack.c.b16 %v2117, %v2107
    %v3528 = vpack.c.b16 %v2118, %v2108
    %v3529 = vpack.c.b16 %v2119, %v2109
    %v3530 = vpack.c.b16 %v2120, %v2110
    %v3531 = vpack.c.b16 %v2121, %v2111
    %v3532 = vpack.c.b16 %v2122, %v2112
    %v3533 = vpack.c.b16 %v2133, %v2123
    %v3534 = vpack.c.b16 %v2134, %v2124
    %v3535 = vpack.c.b16 %v2135, %v2125
    %v3536 = vpack.c.b16 %v2136, %v2126
    %v3537 = vpack.c.b16 %v2137, %v2127
    %v3538 = vpack.c.b16 %v2138, %v2128
    %v3539 = vpack.c.b16 %v2139, %v2129
    %v3540 = vpack.c.b16 %v2140, %v2130
    %v3541 = vpack.c.b16 %v2141, %v2131
    %v3542 = vpack.c.b16 %v2142, %v2132
    %v3543 = vpack.c.b16 %v2153, %v2143
    %v3544 = vpack.c.b16 %v2154, %v2144
    %v3545 = vpack.c.b16 %v2155, %v2145
    %v3546 = vpack.c.b16 %v2156, %v2146
    %v3547 = vpack.c.b16 %v2157, %v2147
    %v3548 = vpack.c.b16 %v2158, %v2148
    %v3549 = vpack.c.b16 %v2159, %v2149
    %v3550 = vpack.c.b16 %v2160, %v2150
    %v3551 = vpack.c.b16 %v2161, %v2151
    %v3552 = vpack.c.b16 %v2162, %v2152
    %v3553 = vpack.c.b16 %v2173, %v2163
    %v3554 = vpack.c.b16 %v2174, %v2164
    %v3555 = vpack.c.b16 %v2175, %v2165
    %v3556 = vpack.c.b16 %v2176, %v2166
    %v3557 = vpack.c.b16 %v2177, %v2167
    %v3558 = vpack.c.b16 %v2178, %v2168
    %v3559 = vpack.c.b16 %v2179, %v2169
    %v3560 = vpack.c.b16 %v2180, %v2170
    %v3561 = vpack.c.b16 %v2181, %v2171
    %v3562 = vpack.c.b16 %v2182, %v2172
    %v3563 = vpack.c.b16 %v2193, %v2183
    %v3564 = vpack.c.b16 %v2194, %v2184
    %v3565 = vpack.c.b16 %v2195, %v2185
    %v3566 = vpack.c.b16 %v2196, %v2186
    %v3567 = vpack.c.b16 %v2197, %v2187
    %v3568 = vpack.c.b16 %v2198, %v2188
    %v3569 = vpack.c.b16 %v2199, %v2189
    %v3570 = vpack.c.b16 %v2200, %v2190
    %v3571 = vpack.c.b16 %v2201, %v2191
    %v3572 = vpack.c.b16 %v2202, %v2192
    %v3573 = vpack.c.b16 %v2213, %v2203
    %v3574 = vpack.c.b16 %v2214, %v2204
    %v3575 = vpack.c.b16 %v2215, %v2205
    %v3576 = vpack.c.b16 %v2216, %v2206
    %v3577 = vpack.c.b16 %v2217, %v2207
    %v3578 = vpack.c.b16 %v2218, %v2208
    %v3579 = vpack.c.b16 %v2219, %v2209
    %v3580 = vpack.c.b16 %v2220, %v2210
    %v3581 = vpack.c.b16 %v2221, %v2211
    %v3582 = vpack.c.b16 %v2222, %v2212
    %v3583 = vpack.c.b16 %v2233, %v2223
    %v3584 = vpack.c.b16 %v2234, %v2224
    %v3585 = vpack.c.b16 %v2235, %v2225
    %v3586 = vpack.c.b16 %v2236, %v2226
    %v3587 = vpack.c.b16 %v2237, %v2227
    %v3588 = vpack.c.b16 %v2238, %v2228
    %v3589 = vpack.c.b16 %v2239, %v2229
    %v3590 = vpack.c.b16 %v2240, %v2230
    %v3591 = vpack.c.b16 %v2241, %v2231
    %v3592 = vpack.c.b16 %v2242, %v2232
    %v3593 = vpack.c.b16 %v2253, %v2243
    %v3594 = vpack.c.b16 %v2254, %v2244
    %v3595 = vpack.c.b16 %v2255, %v2245
    %v3596 = vpack.c.b16 %v2256, %v2246
    %v3597 = vpack.c.b16 %v2257, %v2247
    %v3598 = vpack.c.b16 %v2258, %v2248
    %v3599 = vpack.c.b16 %v2259, %v2249
    %v3600 = vpack.c.b16 %v2260, %v2250
    %v3601 = vpack.c.b16 %v2261, %v2251
    %v3602 = vpack.c.b16 %v2262, %v2252
    %v3603 = vpack.c.b16 %v2273, %v2263
    %v3604 = vpack.c.b16 %v2274, %v2264
    %v3605 = vpack.c.b16 %v2275, %v2265
    %v3606 = vpack.c.b16 %v2276, %v2266
    %v3607 = vpack.c.b16 %v2277, %v2267
    %v3608 = vpack.c.b16 %v2278, %v2268
    %v3609 = vpack.c.b16 %v2279, %v2269
    %v3610 = vpack.c.b16 %v2280, %v2270
    %v3611 = vpack.c.b16 %v2281, %v2271
    %v3612 = vpack.c.b16 %v2282, %v2272
    %v3613 = vpack.c.b16 %v2293, %v2283
    %v3614 = vpack.c.b16 %v2294, %v2284
    %v3615 = vpack.c.b16 %v2295, %v2285
    %v3616 = vpack.c.b16 %v2296, %v2286
    %v3617 = vpack.c.b16 %v2297, %v2287
    %v3618 = vpack.c.b16 %v2298, %v2288
    %v3619 = vpack.c.b16 %v2299, %v2289
    %v3620 = vpack.c.b16 %v2300, %v2290
    %v3621 = vpack.c.b16 %v2301, %v2291
    %v3622 = vpack.c.b16 %v2302, %v2292
    %v3623 = vpack.c.b16 %v2313, %v2303
    %v3624 = vpack.c.b16 %v2314, %v2304
    %v3625 = vpack.c.b16 %v2315, %v2305
    %v3626 = vpack.c.b16 %v2316, %v2306
    %v3627 = vpack.c.b16 %v2317, %v2307
    %v3628 = vpack.c.b16 %v2318, %v2308
    %v3629 = vpack.c.b16 %v2319, %v2309
    %v3630 = vpack.c.b16 %v2320, %v2310
    %v3631 = vpack.c.b16 %v2321, %v2311
    %v3632 = vpack.c.b16 %v2322, %v2312
    %v3633 = vpack.c.b16 %v2333, %v2323
    %v3634 = vpack.c.b16 %v2334, %v2324
    %v3635 = vpack.c.b16 %v2335, %v2325
    %v3636 = vpack.c.b16 %v2336, %v2326
    %v3637 = vpack.c.b16 %v2337, %v2327
    %v3638 = vpack.c.b16 %v2338, %v2328
    %v3639 = vpack.c.b16 %v2339, %v2329
    %v3640 = vpack.c.b16 %v2340, %v2330
    %v3641 = vpack.c.b16 %v2341, %v2331
    %v3642 = vpack.c.b16 %v2342, %v2332
    %v3643 = vpack.c.b16 %v2353, %v2343
    %v3644 = vpack.c.b16 %v2354, %v2344
    %v3645 = vpack.c.b16 %v2355, %v2345
    %v3646 = vpack.c.b16 %v2356, %v2346
    %v3647 = vpack.c.b16 %v2357, %v2347
    %v3648 = vpack.c.b16 %v2358, %v2348
    %v3649 = vpack.c.b16 %v2359, %v2349
    %v3650 = vpack.c.b16 %v2360, %v2350
    %v3651 = vpack.c.b16 %v2361, %v2351
    %v3652 = vpack.c.b16 %v2362, %v2352
    %v3653 = vpack.c.b16 %v2373, %v2363
    %v3654 = vpack.c.b16 %v2374, %v2364
    %v3655 = vpack.c.b16 %v2375, %v2365
    %v3656 = vpack.c.b16 %v2376, %v2366
    %v3657 = vpack.c.b16 %v2377, %v2367
    %v3658 = vpack.c.b16 %v2378, %v2368
    %v3659 = vpack.c.b16 %v2379, %v2369
    %v3660 = vpack.c.b16 %v2380, %v2370
    %v3661 = vpack.c.b16 %v2381, %v2371
    %v3662 = vpack.c.b16 %v2382, %v2372
    %v3663 = vpack.c.b16 %v2393, %v2383
    %v3664 = vpack.c.b16 %v2394, %v2384
    %v3665 = vpack.c.b16 %v2395, %v2385
    %v3666 = vpack.c.b16 %v2396, %v2386
    %v3667 = vpack.c.b16 %v2397, %v2387
    %v3668 = vpack.c.b16 %v2398, %v2388
    %v3669 = vpack.c.b16 %v2399, %v2389
    %v3670 = vpack.c.b16 %v2400, %v2390
    %v3671 = vpack.c.b16 %v2401, %v2391
    %v3672 = vpack.c.b16 %v2402, %v2392
    %v3673 = vpack.c.b16 %v2413, %v2403
    %v3674 = vpack.c.b16 %v2414, %v2404
    %v3675 = vpack.c.b16 %v2415, %v2405
    %v3676 = vpack.c.b16 %v2416, %v2406
    %v3677 = vpack.c.b16 %v2417, %v2407
    %v3678 = vpack.c.b16 %v2418, %v2408
    %v3679 = vpack.c.b16 %v2419, %v2409
    %v3680 = vpack.c.b16 %v2420, %v2410
    %v3681 = vpack.c.b16 %v2421, %v2411
    %v3682 = vpack.c.b16 %v2422, %v2412
    %v3683 = vpack.c.b16 %v2433, %v2423
    %v3684 = vpack.c.b16 %v2434, %v2424
    %v3685 = vpack.c.b16 %v2435, %v2425
    %v3686 = vpack.c.b16 %v2436, %v2426
    %v3687 = vpack.c.b16 %v2437, %v2427
    %v3688 = vpack.c.b16 %v2438, %v2428
    %v3689 = vpack.c.b16 %v2439, %v2429
    %v3690 = vpack.c.b16 %v2440, %v2430
    %v3691 = vpack.c.b16 %v2441, %v2431
    %v3692 = vpack.c.b16 %v2442, %v2432
    %v3693 = vpack.c.b16 %v2453, %v2443
    %v3694 = vpack.c.b16 %v2454, %v2444
    %v3695 = vpack.c.b16 %v2455, %v2445
    %v3696 = vpack.c.b16 %v2456, %v2446
    %v3697 = vpack.c.b16 %v2457, %v2447
    %v3698 = vpack.c.b16 %v2458, %v2448
    %v3699 = vpack.c.b16 %v2459, %v2449
    %v3700 = vpack.c.b16 %v2460, %v2450
    %v3701 = vpack.c.b16 %v2461, %v2451
    %v3702 = vpack.c.b16 %v2462, %v2452
    %v3703 = vpack.c.b16 %v2473, %v2463
    %v3704 = vpack.c.b16 %v2474, %v2464
    %v3705 = vpack.c.b16 %v2475, %v2465
    %v3706 = vpack.c.b16 %v2476, %v2466
    %v3707 = vpack.c.b16 %v2477, %v2467
    %v3708 = vpack.c.b16 %v2478, %v2468
    %v3709 = vpack.c.b16 %v2479, %v2469
    %v3710 = vpack.c.b16 %v2480, %v2470
    %v3711 = vpack.c.b16 %v2481, %v2471
    %v3712 = vpack.c.b16 %v2482, %v2472
    %v3713 = vpack.c.b16 %v2493, %v2483
    %v3714 = vpack.c.b16 %v2494, %v2484
    %v3715 = vpack.c.b16 %v2495, %v2485
    %v3716 = vpack.c.b16 %v2496, %v2486
    %v3717 = vpack.c.b16 %v2497, %v2487
    %v3718 = vpack.c.b16 %v2498, %v2488
    %v3719 = vpack.c.b16 %v2499, %v2489
    %v3720 = vpack.c.b16 %v2500, %v2490
    %v3721 = vpack.c.b16 %v2501, %v2491
    %v3722 = vpack.c.b16 %v2502, %v2492
    %v3723 = vpack.c.b16 %v2513, %v2503
    %v3724 = vpack.c.b16 %v2514, %v2504
    %v3725 = vpack.c.b16 %v2515, %v2505
    %v3726 = vpack.c.b16 %v2516, %v2506
    %v3727 = vpack.c.b16 %v2517, %v2507
    %v3728 = vpack.c.b16 %v2518, %v2508
    %v3729 = vpack.c.b16 %v2519, %v2509
    %v3730 = vpack.c.b16 %v2520, %v2510
    %v3731 = vpack.c.b16 %v2521, %v2511
    %v3732 = vpack.c.b16 %v2522, %v2512
    %v3733 = vpack.c.b16 %v2533, %v2523
    %v3734 = vpack.c.b16 %v2534, %v2524
    %v3735 = vpack.c.b16 %v2535, %v2525
    %v3736 = vpack.c.b16 %v2536, %v2526
    %v3737 = vpack.c.b16 %v2537, %v2527
    %v3738 = vpack.c.b16 %v2538, %v2528
    %v3739 = vpack.c.b16 %v2539, %v2529
    %v3740 = vpack.c.b16 %v2540, %v2530
    %v3741 = vpack.c.b16 %v2541, %v2531
    %v3742 = vpack.c.b16 %v2542, %v2532
    %v3743 = vpack.c.b16 %v2553, %v2543
    %v3744 = vpack.c.b16 %v2554, %v2544
    %v3745 = vpack.c.b16 %v2555, %v2545
    %v3746 = vpack.c.b16 %v2556, %v2546
    %v3747 = vpack.c.b16 %v2557, %v2547
    %v3748 = vpack.c.b16 %v2558, %v2548
    %v3749 = vpack.c.b16 %v2559, %v2549
    %v3750 = vpack.c.b16 %v2560, %v2550
    %v3751 = vpack.c.b16 %v2561, %v2551
    %v3752 = vpack.c.b16 %v2562, %v2552
    %v3753 = vpack.c.b16 %v2573, %v2563
    %v3754 = vpack.c.b16 %v2574, %v2564
    %v3755 = vpack.c.b16 %v2575, %v2565
    %v3756 = vpack.c.b16 %v2576, %v2566
    %v3757 = vpack.c.b16 %v2577, %v2567
    %v3758 = vpack.c.b16 %v2578, %v2568
    %v3759 = vpack.c.b16 %v2579, %v2569
    %v3760 = vpack.c.b16 %v2580, %v2570
    %v3761 = vpack.c.b16 %v2581, %v2571
    %v3762 = vpack.c.b16 %v2582, %v2572
    %v3763 = vpack.c.b16 %v2593, %v2583
    %v3764 = vpack.c.b16 %v2594, %v2584
    %v3765 = vpack.c.b16 %v2595, %v2585
    %v3766 = vpack.c.b16 %v2596, %v2586
    %v3767 = vpack.c.b16 %v2597, %v2587
    %v3768 = vpack.c.b16 %v2598, %v2588
    %v3769 = vpack.c.b16 %v2599, %v2589
    %v3770 = vpack.c.b16 %v2600, %v2590
    %v3771 = vpack.c.b16 %v2601, %v2591
    %v3772 = vpack.c.b16 %v2602, %v2592
    %v3773 = vpack.c.b16 %v2613, %v2603
    %v3774 = vpack.c.b16 %v2614, %v2604
    %v3775 = vpack.c.b16 %v2615, %v2605
    %v3776 = vpack.c.b16 %v2616, %v2606
    %v3777 = vpack.c.b16 %v2617, %v2607
    %v3778 = vpack.c.b16 %v2618, %v2608
    %v3779 = vpack.c.b16 %v2619, %v2609
    %v3780 = vpack.c.b16 %v2620, %v2610
    %v3781 = vpack.c.b16 %v2621, %v2611
    %v3782 = vpack.c.b16 %v2622, %v2612
    %v3783 = vpack.c.b16 %v2633, %v2623
    %v3784 = vpack.c.b16 %v2634, %v2624
    %v3785 = vpack.c.b16 %v2635, %v2625
    %v3786 = vpack.c.b16 %v2636, %v2626
    %v3787 = vpack.c.b16 %v2637, %v2627
    %v3788 = vpack.c.b16 %v2638, %v2628
    %v3789 = vpack.c.b16 %v2639, %v2629
    %v3790 = vpack.c.b16 %v2640, %v2630
    %v3791 = vpack.c.b16 %v2641, %v2631
    %v3792 = vpack.c.b16 %v2642, %v2632
    %v3793 = vpack.c.b16 %v2653, %v2643
    %v3794 = vpack.c.b16 %v2654, %v2644
    %v3795 = vpack.c.b16 %v2655, %v2645
    %v3796 = vpack.c.b16 %v2656, %v2646
    %v3797 = vpack.c.b16 %v2657, %v2647
    %v3798 = vpack.c.b16 %v2658, %v2648
    %v3799 = vpack.c.b16 %v2659, %v2649
    %v3800 = vpack.c.b16 %v2660, %v2650
    %v3801 = vpack.c.b16 %v2661, %v2651
    %v3802 = vpack.c.b16 %v2662, %v2652
    %v3803 = vpack.c.b16 %v2673, %v2663
    %v3804 = vpack.c.b16 %v2674, %v2664
    %v3805 = vpack.c.b16 %v2675, %v2665
    %v3806 = vpack.c.b16 %v2676, %v2666
    %v3807 = vpack.c.b16 %v2677, %v2667
    %v3808 = vpack.c.b16 %v2678, %v2668
    %v3809 = vpack.c.b16 %v2679, %v2669
    %v3810 = vpack.c.b16 %v2680, %v2670
    %v3811 = vpack.c.b16 %v2681, %v2671
    %v3812 = vpack.c.b16 %v2682, %v2672
    %v3813 = vpack.c.b16 %v2693, %v2683
    %v3814 = vpack.c.b16 %v2694, %v2684
    %v3815 = vpack.c.b16 %v2695, %v2685
    %v3816 = vpack.c.b16 %v2696, %v2686
    %v3817 = vpack.c.b16 %v2697, %v2687
    %v3818 = vpack.c.b16 %v2698, %v2688
    %v3819 = vpack.c.b16 %v2699, %v2689
    %v3820 = vpack.c.b16 %v2700, %v2690
    %v3821 = vpack.c.b16 %v2701, %v2691
    %v3822 = vpack.c.b16 %v2702, %v2692
    %v3823 = vpack.c.b16 %v2713, %v2703
    %v3824 = vpack.c.b16 %v2714, %v2704
    %v3825 = vpack.c.b16 %v2715, %v2705
    %v3826 = vpack.c.b16 %v2716, %v2706
    %v3827 = vpack.c.b16 %v2717, %v2707
    %v3828 = vpack.c.b16 %v2718, %v2708
    %v3829 = vpack.c.b16 %v2719, %v2709
    %v3830 = vpack.c.b16 %v2720, %v2710
    %v3831 = vpack.c.b16 %v2721, %v2711
    %v3832 = vpack.c.b16 %v2722, %v2712
    %v3833 = vpack.c.b16 %v2733, %v2723
    %v3834 = vpack.c.b16 %v2734, %v2724
    %v3835 = vpack.c.b16 %v2735, %v2725
    %v3836 = vpack.c.b16 %v2736, %v2726
    %v3837 = vpack.c.b16 %v2737, %v2727
    %v3838 = vpack.c.b16 %v2738, %v2728
    %v3839 = vpack.c.b16 %v2739, %v2729
    %v3840 = vpack.c.b16 %v2740, %v2730
    %v3841 = vpack.c.b16 %v2741, %v2731
    %v3842 = vpack.c.b16 %v2742, %v2732
    %v3843 = vpack.c.b16 %v2753, %v2743
    %v3844 = vpack.c.b16 %v2754, %v2744
    %v3845 = vpack.c.b16 %v2755, %v2745
    %v3846 = vpack.c.b16 %v2756, %v2746
    %v3847 = vpack.c.b16 %v2757, %v2747
    %v3848 = vpack.c.b16 %v2758, %v2748
    %v3849 = vpack.c.b16 %v2759, %v2749
    %v3850 = vpack.c.b16 %v2760, %v2750
    %v3851 = vpack.c.b16 %v2761, %v2751
    %v3852 = vpack.c.b16 %v2762, %v2752
    %v3853 = vpack.c.b16 %v2773, %v2763
    %v3854 = vpack.c.b16 %v2774, %v2764
    %v3855 = vpack.c.b16 %v2775, %v2765
    %v3856 = vpack.c.b16 %v2776, %v2766
    %v3857 = vpack.c.b16 %v2777, %v2767
    %v3858 = vpack.c.b16 %v2778, %v2768
    %v3859 = vpack.c.b16 %v2779, %v2769
    %v3860 = vpack.c.b16 %v2780, %v2770
    %v3861 = vpack.c.b16 %v2781, %v2771
    %v3862 = vpack.c.b16 %v2782, %v2772
    %v3863 = vpack.c.b16 %v2793, %v2783
    %v3864 = vpack.c.b16 %v2794, %v2784
    %v3865 = vpack.c.b16 %v2795, %v2785
    %v3866 = vpack.c.b16 %v2796, %v2786
    %v3867 = vpack.c.b16 %v2797, %v2787
    %v3868 = vpack.c.b16 %v2798, %v2788
    %v3869 = vpack.c.b16 %v2799, %v2789
    %v3870 = vpack.c.b16 %v2800, %v2790
    %v3871 = vpack.c.b16 %v2801, %v2791
    %v3872 = vpack.c.b16 %v2802, %v2792
    %v3873 = vpack.c.b16 %v2813, %v2803
    %v3874 = vpack.c.b16 %v2814, %v2804
    %v3875 = vpack.c.b16 %v2815, %v2805
    %v3876 = vpack.c.b16 %v2816, %v2806
    %v3877 = vpack.c.b16 %v2817, %v2807
    %v3878 = vpack.c.b16 %v2818, %v2808
    %v3879 = vpack.c.b16 %v2819, %v2809
    %v3880 = vpack.c.b16 %v2820, %v2810
    %v3881 = vpack.c.b16 %v2821, %v2811
    %v3882 = vpack.c.b16 %v2822, %v2812
    %v3883 = vpack.c.b16 %v2833, %v2823
    %v3884 = vpack.c.b16 %v2834, %v2824
    %v3885 = vpack.c.b16 %v2835, %v2825
    %v3886 = vpack.c.b16 %v2836, %v2826
    %v3887 = vpack.c.b16 %v2837, %v2827
    %v3888 = vpack.c.b16 %v2838, %v2828
    %v3889 = vpack.c.b16 %v2839, %v2829
    %v3890 = vpack.c.b16 %v2840, %v2830
    %v3891 = vpack.c.b16 %v2841, %v2831
    %v3892 = vpack.c.b16 %v2842, %v2832
    %v3893 = vpack.c.b16 %v2853, %v2843
    %v3894 = vpack.c.b16 %v2854, %v2844
    %v3895 = vpack.c.b16 %v2855, %v2845
    %v3896 = vpack.c.b16 %v2856, %v2846
    %v3897 = vpack.c.b16 %v2857, %v2847
    %v3898 = vpack.c.b16 %v2858, %v2848
    %v3899 = vpack.c.b16 %v2859, %v2849
    %v3900 = vpack.c.b16 %v2860, %v2850
    %v3901 = vpack.c.b16 %v2861, %v2851
    %v3902 = vpack.c.b16 %v2862, %v2852
    %v3903 = vpack.c.b16 %v2873, %v2863
    %v3904 = vpack.c.b16 %v2874, %v2864
    %v3905 = vpack.c.b16 %v2875, %v2865
    %v3906 = vpack.c.b16 %v2876, %v2866
    %v3907 = vpack.c.b16 %v2877, %v2867
    %v3908 = vpack.c.b16 %v2878, %v2868
    %v3909 = vpack.c.b16 %v2879, %v2869
    %v3910 = vpack.c.b16 %v2880, %v2870
    %v3911 = vpack.c.b16 %v2881, %v2871
    %v3912 = vpack.c.b16 %v2882, %v2872
    %v3913 = vpack.c.b16 %v2893, %v2883
    %v3914 = vpack.c.b16 %v2894, %v2884
    %v3915 = vpack.c.b16 %v2895, %v2885
    %v3916 = vpack.c.b16 %v2896, %v2886
    %v3917 = vpack.c.b16 %v2897, %v2887
    %v3918 = vpack.c.b16 %v2898, %v2888
    %v3919 = vpack.c.b16 %v2899, %v2889
    %v3920 = vpack.c.b16 %v2900, %v2890
    %v3921 = vpack.c.b16 %v2901, %v2891
    %v3922 = vpack.c.b16 %v2902, %v2892
    %v3923 = vpack.c.b16 %v2913, %v2903
    %v3924 = vpack.c.b16 %v2914, %v2904
    %v3925 = vpack.c.b16 %v2915, %v2905
    %v3926 = vpack.c.b16 %v2916, %v2906
    %v3927 = vpack.c.b16 %v2917, %v2907
    %v3928 = vpack.c.b16 %v2918, %v2908
    %v3929 = vpack.c.b16 %v2919, %v2909
    %v3930 = vpack.c.b16 %v2920, %v2910
    %v3931 = vpack.c.b16 %v2921, %v2911
    %v3932 = vpack.c.b16 %v2922, %v2912
    %v3933 = vpack.c.b16 %v2933, %v2923
    %v3934 = vpack.c.b16 %v2934, %v2924
    %v3935 = vpack.c.b16 %v2935, %v2925
    %v3936 = vpack.c.b16 %v2936, %v2926
    %v3937 = vpack.c.b16 %v2937, %v2927
    %v3938 = vpack.c.b16 %v2938, %v2928
    %v3939 = vpack.c.b16 %v2939, %v2929
    %v3940 = vpack.c.b16 %v2940, %v2930
    %v3941 = vpack.c.b16 %v2941, %v2931
    %v3942 = vpack.c.b16 %v2942, %v2932
    %v3943 = vpack.c.b16 %v2953, %v2943
    %v3944 = vpack.c.b16 %v2954, %v2944
    %v3945 = vpack.c.b16 %v2955, %v2945
    %v3946 = vpack.c.b16 %v2956, %v2946
    %v3947 = vpack.c.b16 %v2957, %v2947
    %v3948 = vpack.c.b16 %v2958, %v2948
    %v3949 = vpack.c.b16 %v2959, %v2949
    %v3950 = vpack.c.b16 %v2960, %v2950
    %v3951 = vpack.c.b16 %v2961, %v2951
    %v3952 = vpack.c.b16 %v2962, %v2952
    %v3953 = vpack.c.b16 %v2973, %v2963
    %v3954 = vpack.c.b16 %v2974, %v2964
    %v3955 = vpack.c.b16 %v2975, %v2965
    %v3956 = vpack.c.b16 %v2976, %v2966
    %v3957 = vpack.c.b16 %v2977, %v2967
    %v3958 = vpack.c.b16 %v2978, %v2968
    %v3959 = vpack.c.b16 %v2979, %v2969
    %v3960 = vpack.c.b16 %v2980, %v2970
    %v3961 = vpack.c.b16 %v2981, %v2971
    %v3962 = vpack.c.b16 %v2982, %v2972
    %v3963 = vpack.c.b16 %v2993, %v2983
    %v3964 = vpack.c.b16 %v2994, %v2984
    %v3965 = vpack.c.b16 %v2995, %v2985
    %v3966 = vpack.c.b16 %v2996, %v2986
    %v3967 = vpack.c.b16 %v2997, %v2987
    %v3968 = vpack.c.b16 %v2998, %v2988
    %v3969 = vpack.c.b16 %v2999, %v2989
    %v3970 = vpack.c.b16 %v3000, %v2990
    %v3971 = vpack.c.b16 %v3001, %v2991
    %v3972 = vpack.c.b16 %v3002, %v2992
    %v3973 = vpack.c.b16 %v3013, %v3003
    %v3974 = vpack.c.b16 %v3014, %v3004
    %v3975 = vpack.c.b16 %v3015, %v3005
    %v3976 = vpack.c.b16 %v3016, %v3006
    %v3977 = vpack.c.b16 %v3017, %v3007
    %v3978 = vpack.c.b16 %v3018, %v3008
    %v3979 = vpack.c.b16 %v3019, %v3009
    %v3980 = vpack.c.b16 %v3020, %v3010
    %v3981 = vpack.c.b16 %v3021, %v3011
    %v3982 = vpack.c.b16 %v3022, %v3012
    %v3983 = vpack.c.b16 %v3033, %v3023
    %v3984 = vpack.c.b16 %v3034, %v3024
    %v3985 = vpack.c.b16 %v3035, %v3025
    %v3986 = vpack.c.b16 %v3036, %v3026
    %v3987 = vpack.c.b16 %v3037, %v3027
    %v3988 = vpack.c.b16 %v3038, %v3028
    %v3989 = vpack.c.b16 %v3039, %v3029
    %v3990 = vpack.c.b16 %v3040, %v3030
    %v3991 = vpack.c.b16 %v3041, %v3031
    %v3992 = vpack.c.b16 %v3042, %v3032
    %v3993 = vpack.c.b16 %v3053, %v3043
    %v3994 = vpack.c.b16 %v3054, %v3044
    %v3995 = vpack.c.b16 %v3055, %v3045
    %v3996 = vpack.c.b16 %v3056, %v3046
    %v3997 = vpack.c.b16 %v3057, %v3047
    %v3998 = vpack.c.b16 %v3058, %v3048
    %v3999 = vpack.c.b16 %v3059, %v3049
    %v4000 = vpack.c.b16 %v3060, %v3050
    %v4001 = vpack.c.b16 %v3061, %v3051
    %v4002 = vpack.c.b16 %v3062, %v3052
    %v4003 = vpack.c.b16 %v3073, %v3063
    %v4004 = vpack.c.b16 %v3074, %v3064
    %v4005 = vpack.c.b16 %v3075, %v3065
    %v4006 = vpack.c.b16 %v3076, %v3066
    %v4007 = vpack.c.b16 %v3077, %v3067
    %v4008 = vpack.c.b16 %v3078, %v3068
    %v4009 = vpack.c.b16 %v3079, %v3069
    %v4010 = vpack.c.b16 %v3080, %v3070
    %v4011 = vpack.c.b16 %v3081, %v3071
    %v4012 = vpack.c.b16 %v3082, %v3072
    %v4013 = vpack.c.b16 %v3093, %v3083
    %v4014 = vpack.c.b16 %v3094, %v3084
    %v4015 = vpack.c.b16 %v3095, %v3085
    %v4016 = vpack.c.b16 %v3096, %v3086
    %v4017 = vpack.c.b16 %v3097, %v3087
    %v4018 = vpack.c.b16 %v3098, %v3088
    %v4019 = vpack.c.b16 %v3099, %v3089
    %v4020 = vpack.c.b16 %v3100, %v3090
    %v4021 = vpack.c.b16 %v3101, %v3091
    %v4022 = vpack.c.b16 %v3102, %v3092
    %v4023 = vpack.c.b16 %v3113, %v3103
    %v4024 = vpack.c.b16 %v3114, %v3104
    %v4025 = vpack.c.b16 %v3115, %v3105
    %v4026 = vpack.c.b16 %v3116, %v3106
    %v4027 = vpack.c.b16 %v3117, %v3107
    %v4028 = vpack.c.b16 %v3118, %v3108
    %v4029 = vpack.c.b16 %v3119, %v3109
    %v4030 = vpack.c.b16 %v3120, %v3110
    %v4031 = vpack.c.b16 %v3121, %v3111
    %v4032 = vpack.c.b16 %v3122, %v3112
    %v4033 = vpack.c.b16 %v3133, %v3123
    %v4034 = vpack.c.b16 %v3134, %v3124
    %v4035 = vpack.c.b16 %v3135, %v3125
    %v4036 = vpack.c.b16 %v3136, %v3126
    %v4037 = vpack.c.b16 %v3137, %v3127
    %v4038 = vpack.c.b16 %v3138, %v3128
    %v4039 = vpack.c.b16 %v3139, %v3129
    %v4040 = vpack.c.b16 %v3140, %v3130
    %v4041 = vpack.c.b16 %v3141, %v3131
    %v4042 = vpack.c.b16 %v3142, %v3132
    %v4043 = vpack.c.b16 %v3153, %v3143
    %v4044 = vpack.c.b16 %v3154, %v3144
    %v4045 = vpack.c.b16 %v3155, %v3145
    %v4046 = vpack.c.b16 %v3156, %v3146
    %v4047 = vpack.c.b16 %v3157, %v3147
    %v4048 = vpack.c.b16 %v3158, %v3148
    %v4049 = vpack.c.b16 %v3159, %v3149
    %v4050 = vpack.c.b16 %v3160, %v3150
    %v4051 = vpack.c.b16 %v3161, %v3151
    %v4052 = vpack.c.b16 %v3162, %v3152
    %v4053 = vpack.c.b16 %v3173, %v3163
    %v4054 = vpack.c.b16 %v3174, %v3164
    %v4055 = vpack.c.b16 %v3175, %v3165
    %v4056 = vpack.c.b16 %v3176, %v3166
    %v4057 = vpack.c.b16 %v3177, %v3167
    %v4058 = vpack.c.b16 %v3178, %v3168
    %v4059 = vpack.c.b16 %v3179, %v3169
    %v4060 = vpack.c.b16 %v3180, %v3170
    %v4061 = vpack.c.b16 %v3181, %v3171
    %v4062 = vpack.c.b16 %v3182, %v3172
    %v4063 = vpack.c.b16 %v3193, %v3183
    %v4064 = vpack.c.b16 %v3194, %v3184
    %v4065 = vpack.c.b16 %v3195, %v3185
    %v4066 = vpack.c.b16 %v3196, %v3186
    %v4067 = vpack.c.b16 %v3197, %v3187
    %v4068 = vpack.c.b16 %v3198, %v3188
    %v4069 = vpack.c.b16 %v3199, %v3189
    %v4070 = vpack.c.b16 %v3200, %v3190
    %v4071 = vpack.c.b16 %v3201, %v3191
    %v4072 = vpack.c.b16 %v3202, %v3192
    %v4073 = vpack.c.b16 %v3213, %v3203
    %v4074 = vpack.c.b16 %v3214, %v3204
    %v4075 = vpack.c.b16 %v3215, %v3205
    %v4076 = vpack.c.b16 %v3216, %v3206
    %v4077 = vpack.c.b16 %v3217, %v3207
    %v4078 = vpack.c.b16 %v3218, %v3208
    %v4079 = vpack.c.b16 %v3219, %v3209
    %v4080 = vpack.c.b16 %v3220, %v3210
    %v4081 = vpack.c.b16 %v3221, %v3211
    %v4082 = vpack.c.b16 %v3222, %v3212
    %v4083 = vpack.c.b16 %v3233, %v3223
    %v4084 = vpack.c.b16 %v3234, %v3224
    %v4085 = vpack.c.b16 %v3235, %v3225
    %v4086 = vpack.c.b16 %v3236, %v3226
    %v4087 = vpack.c.b16 %v3237, %v3227
    %v4088 = vpack.c.b16 %v3238, %v3228
    %v4089 = vpack.c.b16 %v3239, %v3229
    %v4090 = vpack.c.b16 %v3240, %v3230
    %v4091 = vpack.c.b16 %v3241, %v3231
    %v4092 = vpack.c.b16 %v3242, %v3232
    %v4093 = vpack.c.b16 %v3253, %v3243
    %v4094 = vpack.c.b16 %v3254, %v3244
    %v4095 = vpack.c.b16 %v3255, %v3245
    %v4096 = vpack.c.b16 %v3256, %v3246
    %v4097 = vpack.c.b16 %v3257, %v3247
    %v4098 = vpack.c.b16 %v3258, %v3248
    %v4099 = vpack.c.b16 %v3259, %v3249
    %v4100 = vpack.c.b16 %v3260, %v3250
    %v4101 = vpack.c.b16 %v3261, %v3251
    %v4102 = vpack.c.b16 %v3262, %v3252
    %v4103 = vpack.c.b16 %v3273, %v3263
    %v4104 = vpack.c.b16 %v3274, %v3264
    %v4105 = vpack.c.b16 %v3275, %v3265
    %v4106 = vpack.c.b16 %v3276, %v3266
    %v4107 = vpack.c.b16 %v3277, %v3267
    %v4108 = vpack.c.b16 %v3278, %v3268
    %v4109 = vpack.c.b16 %v3279, %v3269
    %v4110 = vpack.c.b16 %v3280, %v3270
    %v4111 = vpack.c.b16 %v3281, %v3271
    %v4112 = vpack.c.b16 %v3282, %v3272
    %v4113 = vpack.c.b16 %v3293, %v3283
    %v4114 = vpack.c.b16 %v3294, %v3284
    %v4115 = vpack.c.b16 %v3295, %v3285
    %v4116 = vpack.c.b16 %v3296, %v3286
    %v4117 = vpack.c.b16 %v3297, %v3287
    %v4118 = vpack.c.b16 %v3298, %v3288
    %v4119 = vpack.c.b16 %v3299, %v3289
    %v4120 = vpack.c.b16 %v3300, %v3290
    %v4121 = vpack.c.b16 %v3301, %v3291
    %v4122 = vpack.c.b16 %v3302, %v3292
    %v4123 = vpack.c.b16 %v3313, %v3303
    %v4124 = vpack.c.b16 %v3314, %v3304
    %v4125 = vpack.c.b16 %v3315, %v3305
    %v4126 = vpack.c.b16 %v3316, %v3306
    %v4127 = vpack.c.b16 %v3317, %v3307
    %v4128 = vpack.c.b16 %v3318, %v3308
    %v4129 = vpack.c.b16 %v3319, %v3309
    %v4130 = vpack.c.b16 %v3320, %v3310
    %v4131 = vpack.c.b16 %v3321, %v3311
    %v4132 = vpack.c.b16 %v3322, %v3312
    %v4133 = vpack.c.b16 %v3333, %v3323
    %v4134 = vpack.c.b16 %v3334, %v3324
    %v4135 = vpack.c.b16 %v3335, %v3325
    %v4136 = vpack.c.b16 %v3336, %v3326
    %v4137 = vpack.c.b16 %v3337, %v3327
    %v4138 = vpack.c.b16 %v3338, %v3328
    %v4139 = vpack.c.b16 %v3339, %v3329
    %v4140 = vpack.c.b16 %v3340, %v3330
    %v4141 = vpack.c.b16 %v3341, %v3331
    %v4142 = vpack.c.b16 %v3342, %v3332
    %4943 = vmatpush.bf16.msra.mxu0 %v3413
    %4944 = vmatpush.bf16.msra.mxu0 %v3403
    %4945 = vmatpush.bf16.msra.mxu0 %v3393
    %4946 = vmatpush.bf16.msra.mxu0 %v3383
    %4947 = vmatpush.bf16.msra.mxu0 %v3373
    %4948 = vmatpush.bf16.msra.mxu0 %v3363
    %4949 = vmatpush.bf16.msra.mxu0 %v3353
    %4950 = vmatpush.bf16.msra.mxu0 %v3343
    %4951 = vmatmul.bf16.gmra.mxu0 %v923
    %v4952 = vpop.f32.mrf.mxu0
    %v4953 = vadd.f32 %v888, %v4952
    %v4954 = vpop.f32.mrf.mxu0
    %4955 = vdwg.mxu0
    %4956 = vmatpush.bf16.msra.mxu0 %v3493
    %4957 = vmatpush.bf16.msra.mxu0 %v3483
    %4958 = vmatpush.bf16.msra.mxu0 %v3473
    %4959 = vmatpush.bf16.msra.mxu0 %v3463
    %4960 = vmatpush.bf16.msra.mxu0 %v3453
    %4961 = vmatpush.bf16.msra.mxu0 %v3443
    %4962 = vmatpush.bf16.msra.mxu0 %v3433
    %4963 = vmatpush.bf16.msra.mxu0 %v3423
    %4964 = vmatmul.bf16.gmra.mxu0 %v924
    %v4965 = vpop.f32.mrf.mxu0
    %v4966 = vadd.f32 %v4953, %v4965
    %v4967 = vpop.f32.mrf.mxu0
    %4968 = vdwg.mxu0
    %4969 = vmatpush.bf16.msra.mxu0 %v3573
    %4970 = vmatpush.bf16.msra.mxu0 %v3563
    %4971 = vmatpush.bf16.msra.mxu0 %v3553
    %4972 = vmatpush.bf16.msra.mxu0 %v3543
    %4973 = vmatpush.bf16.msra.mxu0 %v3533
    %4974 = vmatpush.bf16.msra.mxu0 %v3523
    %4975 = vmatpush.bf16.msra.mxu0 %v3513
    %4976 = vmatpush.bf16.msra.mxu0 %v3503
    %4977 = vmatmul.bf16.gmra.mxu0 %v925
    %v4978 = vpop.f32.mrf.mxu0
    %v4979 = vadd.f32 %v4966, %v4978
    %v4980 = vpop.f32.mrf.mxu0
    %4981 = vdwg.mxu0
    %4982 = vmatpush.bf16.msra.mxu0 %v3653
    %4983 = vmatpush.bf16.msra.mxu0 %v3643
    %4984 = vmatpush.bf16.msra.mxu0 %v3633
    %4985 = vmatpush.bf16.msra.mxu0 %v3623
    %4986 = vmatpush.bf16.msra.mxu0 %v3613
    %4987 = vmatpush.bf16.msra.mxu0 %v3603
    %4988 = vmatpush.bf16.msra.mxu0 %v3593
    %4989 = vmatpush.bf16.msra.mxu0 %v3583
    %4990 = vmatmul.bf16.gmra.mxu0 %v926
    %v4991 = vpop.f32.mrf.mxu0
    %v4992 = vadd.f32 %v4979, %v4991
    %v4993 = vpop.f32.mrf.mxu0
    %4994 = vdwg.mxu0
    %4995 = vmatpush.bf16.msra.mxu0 %v3733
    %4996 = vmatpush.bf16.msra.mxu0 %v3723
    %4997 = vmatpush.bf16.msra.mxu0 %v3713
    %4998 = vmatpush.bf16.msra.mxu0 %v3703
    %4999 = vmatpush.bf16.msra.mxu0 %v3693
    %5000 = vmatpush.bf16.msra.mxu0 %v3683
    %5001 = vmatpush.bf16.msra.mxu0 %v3673
    %5002 = vmatpush.bf16.msra.mxu0 %v3663
    %5003 = vmatmul.bf16.gmra.mxu0 %v927
    %v5004 = vpop.f32.mrf.mxu0
    %v5005 = vadd.f32 %v4992, %v5004
    %v5006 = vpop.f32.mrf.mxu0
    %5007 = vdwg.mxu0
    %5008 = vmatpush.bf16.msra.mxu0 %v3813
    %5009 = vmatpush.bf16.msra.mxu0 %v3803
    %5010 = vmatpush.bf16.msra.mxu0 %v3793
    %5011 = vmatpush.bf16.msra.mxu0 %v3783
    %5012 = vmatpush.bf16.msra.mxu0 %v3773
    %5013 = vmatpush.bf16.msra.mxu0 %v3763
    %5014 = vmatpush.bf16.msra.mxu0 %v3753
    %5015 = vmatpush.bf16.msra.mxu0 %v3743
    %5016 = vmatmul.bf16.gmra.mxu0 %v928
    %v5017 = vpop.f32.mrf.mxu0
    %v5018 = vadd.f32 %v5005, %v5017
    %v5019 = vpop.f32.mrf.mxu0
    %5020 = vdwg.mxu0
    %5021 = vmatpush.bf16.msra.mxu0 %v3893
    %5022 = vmatpush.bf16.msra.mxu0 %v3883
    %5023 = vmatpush.bf16.msra.mxu0 %v3873
    %5024 = vmatpush.bf16.msra.mxu0 %v3863
    %5025 = vmatpush.bf16.msra.mxu0 %v3853
    %5026 = vmatpush.bf16.msra.mxu0 %v3843
    %5027 = vmatpush.bf16.msra.mxu0 %v3833
    %5028 = vmatpush.bf16.msra.mxu0 %v3823
    %5029 = vmatmul.bf16.gmra.mxu0 %v929
    %v5030 = vpop.f32.mrf.mxu0
    %v5031 = vadd.f32 %v5018, %v5030
    %v5032 = vpop.f32.mrf.mxu0
    %5033 = vdwg.mxu0
    %5034 = vmatpush.bf16.msra.mxu0 %v3973
    %5035 = vmatpush.bf16.msra.mxu0 %v3963
    %5036 = vmatpush.bf16.msra.mxu0 %v3953
    %5037 = vmatpush.bf16.msra.mxu0 %v3943
    %5038 = vmatpush.bf16.msra.mxu0 %v3933
    %5039 = vmatpush.bf16.msra.mxu0 %v3923
    %5040 = vmatpush.bf16.msra.mxu0 %v3913
    %5041 = vmatpush.bf16.msra.mxu0 %v3903
    %5042 = vmatmul.bf16.gmra.mxu0 %v930
    %v5043 = vpop.f32.mrf.mxu0
    %v5044 = vadd.f32 %v5031, %v5043
    %v5045 = vpop.f32.mrf.mxu0
    %5046 = vdwg.mxu0
    %5047 = vmatpush.bf16.msra.mxu0 %v4053
    %5048 = vmatpush.bf16.msra.mxu0 %v4043
    %5049 = vmatpush.bf16.msra.mxu0 %v4033
    %5050 = vmatpush.bf16.msra.mxu0 %v4023
    %5051 = vmatpush.bf16.msra.mxu0 %v4013
    %5052 = vmatpush.bf16.msra.mxu0 %v4003
    %5053 = vmatpush.bf16.msra.mxu0 %v3993
    %5054 = vmatpush.bf16.msra.mxu0 %v3983
    %5055 = vmatmul.bf16.gmra.mxu0 %v931
    %v5056 = vpop.f32.mrf.mxu0
    %v5057 = vadd.f32 %v5044, %v5056
    %v5058 = vpop.f32.mrf.mxu0
    %5059 = vdwg.mxu0
    %5060 = vmatpush.bf16.msra.mxu0 %v4133
    %5061 = vmatpush.bf16.msra.mxu0 %v4123
    %5062 = vmatpush.bf16.msra.mxu0 %v4113
    %5063 = vmatpush.bf16.msra.mxu0 %v4103
    %5064 = vmatpush.bf16.msra.mxu0 %v4093
    %5065 = vmatpush.bf16.msra.mxu0 %v4083
    %5066 = vmatpush.bf16.msra.mxu0 %v4073
    %5067 = vmatpush.bf16.msra.mxu0 %v4063
    %5068 = vmatmul.bf16.gmra.mxu0 %v932
    %v5069 = vpop.f32.mrf.mxu0
    %v5070 = vadd.f32 %v5057, %v5069
    %v5071 = vpop.f32.mrf.mxu0
    %5072 = vdwg.mxu0
    %5073 = vmatpush.bf16.msra.mxu0 %v3414
    %5074 = vmatpush.bf16.msra.mxu0 %v3404
    %5075 = vmatpush.bf16.msra.mxu0 %v3394
    %5076 = vmatpush.bf16.msra.mxu0 %v3384
    %5077 = vmatpush.bf16.msra.mxu0 %v3374
    %5078 = vmatpush.bf16.msra.mxu0 %v3364
    %5079 = vmatpush.bf16.msra.mxu0 %v3354
    %5080 = vmatpush.bf16.msra.mxu0 %v3344
    %5081 = vmatmul.bf16.gmra.mxu0 %v923
    %v5082 = vpop.f32.mrf.mxu0
    %v5083 = vadd.f32 %v889, %v5082
    %v5084 = vpop.f32.mrf.mxu0
    %5085 = vdwg.mxu0
    %5086 = vmatpush.bf16.msra.mxu0 %v3494
    %5087 = vmatpush.bf16.msra.mxu0 %v3484
    %5088 = vmatpush.bf16.msra.mxu0 %v3474
    %5089 = vmatpush.bf16.msra.mxu0 %v3464
    %5090 = vmatpush.bf16.msra.mxu0 %v3454
    %5091 = vmatpush.bf16.msra.mxu0 %v3444
    %5092 = vmatpush.bf16.msra.mxu0 %v3434
    %5093 = vmatpush.bf16.msra.mxu0 %v3424
    %5094 = vmatmul.bf16.gmra.mxu0 %v924
    %v5095 = vpop.f32.mrf.mxu0
    %v5096 = vadd.f32 %v5083, %v5095
    %v5097 = vpop.f32.mrf.mxu0
    %5098 = vdwg.mxu0
    %5099 = vmatpush.bf16.msra.mxu0 %v3574
    %5100 = vmatpush.bf16.msra.mxu0 %v3564
    %5101 = vmatpush.bf16.msra.mxu0 %v3554
    %5102 = vmatpush.bf16.msra.mxu0 %v3544
    %5103 = vmatpush.bf16.msra.mxu0 %v3534
    %5104 = vmatpush.bf16.msra.mxu0 %v3524
    %5105 = vmatpush.bf16.msra.mxu0 %v3514
    %5106 = vmatpush.bf16.msra.mxu0 %v3504
    %5107 = vmatmul.bf16.gmra.mxu0 %v925
    %v5108 = vpop.f32.mrf.mxu0
    %v5109 = vadd.f32 %v5096, %v5108
    %v5110 = vpop.f32.mrf.mxu0
    %5111 = vdwg.mxu0
    %5112 = vmatpush.bf16.msra.mxu0 %v3654
    %5113 = vmatpush.bf16.msra.mxu0 %v3644
    %5114 = vmatpush.bf16.msra.mxu0 %v3634
    %5115 = vmatpush.bf16.msra.mxu0 %v3624
    %5116 = vmatpush.bf16.msra.mxu0 %v3614
    %5117 = vmatpush.bf16.msra.mxu0 %v3604
    %5118 = vmatpush.bf16.msra.mxu0 %v3594
    %5119 = vmatpush.bf16.msra.mxu0 %v3584
    %5120 = vmatmul.bf16.gmra.mxu0 %v926
    %v5121 = vpop.f32.mrf.mxu0
    %v5122 = vadd.f32 %v5109, %v5121
    %v5123 = vpop.f32.mrf.mxu0
    %5124 = vdwg.mxu0
    %5125 = vmatpush.bf16.msra.mxu0 %v3734
    %5126 = vmatpush.bf16.msra.mxu0 %v3724
    %5127 = vmatpush.bf16.msra.mxu0 %v3714
    %5128 = vmatpush.bf16.msra.mxu0 %v3704
    %5129 = vmatpush.bf16.msra.mxu0 %v3694
    %5130 = vmatpush.bf16.msra.mxu0 %v3684
    %5131 = vmatpush.bf16.msra.mxu0 %v3674
    %5132 = vmatpush.bf16.msra.mxu0 %v3664
    %5133 = vmatmul.bf16.gmra.mxu0 %v927
    %v5134 = vpop.f32.mrf.mxu0
    %v5135 = vadd.f32 %v5122, %v5134
    %v5136 = vpop.f32.mrf.mxu0
    %5137 = vdwg.mxu0
    %5138 = vmatpush.bf16.msra.mxu0 %v3814
    %5139 = vmatpush.bf16.msra.mxu0 %v3804
    %5140 = vmatpush.bf16.msra.mxu0 %v3794
    %5141 = vmatpush.bf16.msra.mxu0 %v3784
    %5142 = vmatpush.bf16.msra.mxu0 %v3774
    %5143 = vmatpush.bf16.msra.mxu0 %v3764
    %5144 = vmatpush.bf16.msra.mxu0 %v3754
    %5145 = vmatpush.bf16.msra.mxu0 %v3744
    %5146 = vmatmul.bf16.gmra.mxu0 %v928
    %v5147 = vpop.f32.mrf.mxu0
    %v5148 = vadd.f32 %v5135, %v5147
    %v5149 = vpop.f32.mrf.mxu0
    %5150 = vdwg.mxu0
    %5151 = vmatpush.bf16.msra.mxu0 %v3894
    %5152 = vmatpush.bf16.msra.mxu0 %v3884
    %5153 = vmatpush.bf16.msra.mxu0 %v3874
    %5154 = vmatpush.bf16.msra.mxu0 %v3864
    %5155 = vmatpush.bf16.msra.mxu0 %v3854
    %5156 = vmatpush.bf16.msra.mxu0 %v3844
    %5157 = vmatpush.bf16.msra.mxu0 %v3834
    %5158 = vmatpush.bf16.msra.mxu0 %v3824
    %5159 = vmatmul.bf16.gmra.mxu0 %v929
    %v5160 = vpop.f32.mrf.mxu0
    %v5161 = vadd.f32 %v5148, %v5160
    %v5162 = vpop.f32.mrf.mxu0
    %5163 = vdwg.mxu0
    %5164 = vmatpush.bf16.msra.mxu0 %v3974
    %5165 = vmatpush.bf16.msra.mxu0 %v3964
    %5166 = vmatpush.bf16.msra.mxu0 %v3954
    %5167 = vmatpush.bf16.msra.mxu0 %v3944
    %5168 = vmatpush.bf16.msra.mxu0 %v3934
    %5169 = vmatpush.bf16.msra.mxu0 %v3924
    %5170 = vmatpush.bf16.msra.mxu0 %v3914
    %5171 = vmatpush.bf16.msra.mxu0 %v3904
    %5172 = vmatmul.bf16.gmra.mxu0 %v930
    %v5173 = vpop.f32.mrf.mxu0
    %v5174 = vadd.f32 %v5161, %v5173
    %v5175 = vpop.f32.mrf.mxu0
    %5176 = vdwg.mxu0
    %5177 = vmatpush.bf16.msra.mxu0 %v4054
    %5178 = vmatpush.bf16.msra.mxu0 %v4044
    %5179 = vmatpush.bf16.msra.mxu0 %v4034
    %5180 = vmatpush.bf16.msra.mxu0 %v4024
    %5181 = vmatpush.bf16.msra.mxu0 %v4014
    %5182 = vmatpush.bf16.msra.mxu0 %v4004
    %5183 = vmatpush.bf16.msra.mxu0 %v3994
    %5184 = vmatpush.bf16.msra.mxu0 %v3984
    %5185 = vmatmul.bf16.gmra.mxu0 %v931
    %v5186 = vpop.f32.mrf.mxu0
    %v5187 = vadd.f32 %v5174, %v5186
    %v5188 = vpop.f32.mrf.mxu0
    %5189 = vdwg.mxu0
    %5190 = vmatpush.bf16.msra.mxu0 %v4134
    %5191 = vmatpush.bf16.msra.mxu0 %v4124
    %5192 = vmatpush.bf16.msra.mxu0 %v4114
    %5193 = vmatpush.bf16.msra.mxu0 %v4104
    %5194 = vmatpush.bf16.msra.mxu0 %v4094
    %5195 = vmatpush.bf16.msra.mxu0 %v4084
    %5196 = vmatpush.bf16.msra.mxu0 %v4074
    %5197 = vmatpush.bf16.msra.mxu0 %v4064
    %5198 = vmatmul.bf16.gmra.mxu0 %v932
    %v5199 = vpop.f32.mrf.mxu0
    %v5200 = vadd.f32 %v5187, %v5199
    %v5201 = vpop.f32.mrf.mxu0
    %5202 = vdwg.mxu0
    %5203 = vmatpush.bf16.msra.mxu0 %v3415
    %5204 = vmatpush.bf16.msra.mxu0 %v3405
    %5205 = vmatpush.bf16.msra.mxu0 %v3395
    %5206 = vmatpush.bf16.msra.mxu0 %v3385
    %5207 = vmatpush.bf16.msra.mxu0 %v3375
    %5208 = vmatpush.bf16.msra.mxu0 %v3365
    %5209 = vmatpush.bf16.msra.mxu0 %v3355
    %5210 = vmatpush.bf16.msra.mxu0 %v3345
    %5211 = vmatmul.bf16.gmra.mxu0 %v923
    %v5212 = vpop.f32.mrf.mxu0
    %v5213 = vadd.f32 %v890, %v5212
    %v5214 = vpop.f32.mrf.mxu0
    %5215 = vdwg.mxu0
    %5216 = vmatpush.bf16.msra.mxu0 %v3495
    %5217 = vmatpush.bf16.msra.mxu0 %v3485
    %5218 = vmatpush.bf16.msra.mxu0 %v3475
    %5219 = vmatpush.bf16.msra.mxu0 %v3465
    %5220 = vmatpush.bf16.msra.mxu0 %v3455
    %5221 = vmatpush.bf16.msra.mxu0 %v3445
    %5222 = vmatpush.bf16.msra.mxu0 %v3435
    %5223 = vmatpush.bf16.msra.mxu0 %v3425
    %5224 = vmatmul.bf16.gmra.mxu0 %v924
    %v5225 = vpop.f32.mrf.mxu0
    %v5226 = vadd.f32 %v5213, %v5225
    %v5227 = vpop.f32.mrf.mxu0
    %5228 = vdwg.mxu0
    %5229 = vmatpush.bf16.msra.mxu0 %v3575
    %5230 = vmatpush.bf16.msra.mxu0 %v3565
    %5231 = vmatpush.bf16.msra.mxu0 %v3555
    %5232 = vmatpush.bf16.msra.mxu0 %v3545
    %5233 = vmatpush.bf16.msra.mxu0 %v3535
    %5234 = vmatpush.bf16.msra.mxu0 %v3525
    %5235 = vmatpush.bf16.msra.mxu0 %v3515
    %5236 = vmatpush.bf16.msra.mxu0 %v3505
    %5237 = vmatmul.bf16.gmra.mxu0 %v925
    %v5238 = vpop.f32.mrf.mxu0
    %v5239 = vadd.f32 %v5226, %v5238
    %v5240 = vpop.f32.mrf.mxu0
    %5241 = vdwg.mxu0
    %5242 = vmatpush.bf16.msra.mxu0 %v3655
    %5243 = vmatpush.bf16.msra.mxu0 %v3645
    %5244 = vmatpush.bf16.msra.mxu0 %v3635
    %5245 = vmatpush.bf16.msra.mxu0 %v3625
    %5246 = vmatpush.bf16.msra.mxu0 %v3615
    %5247 = vmatpush.bf16.msra.mxu0 %v3605
    %5248 = vmatpush.bf16.msra.mxu0 %v3595
    %5249 = vmatpush.bf16.msra.mxu0 %v3585
    %5250 = vmatmul.bf16.gmra.mxu0 %v926
    %v5251 = vpop.f32.mrf.mxu0
    %v5252 = vadd.f32 %v5239, %v5251
    %v5253 = vpop.f32.mrf.mxu0
    %5254 = vdwg.mxu0
    %5255 = vmatpush.bf16.msra.mxu0 %v3735
    %5256 = vmatpush.bf16.msra.mxu0 %v3725
    %5257 = vmatpush.bf16.msra.mxu0 %v3715
    %5258 = vmatpush.bf16.msra.mxu0 %v3705
    %5259 = vmatpush.bf16.msra.mxu0 %v3695
    %5260 = vmatpush.bf16.msra.mxu0 %v3685
    %5261 = vmatpush.bf16.msra.mxu0 %v3675
    %5262 = vmatpush.bf16.msra.mxu0 %v3665
    %5263 = vmatmul.bf16.gmra.mxu0 %v927
    %v5264 = vpop.f32.mrf.mxu0
    %v5265 = vadd.f32 %v5252, %v5264
    %v5266 = vpop.f32.mrf.mxu0
    %5267 = vdwg.mxu0
    %5268 = vmatpush.bf16.msra.mxu0 %v3815
    %5269 = vmatpush.bf16.msra.mxu0 %v3805
    %5270 = vmatpush.bf16.msra.mxu0 %v3795
    %5271 = vmatpush.bf16.msra.mxu0 %v3785
    %5272 = vmatpush.bf16.msra.mxu0 %v3775
    %5273 = vmatpush.bf16.msra.mxu0 %v3765
    %5274 = vmatpush.bf16.msra.mxu0 %v3755
    %5275 = vmatpush.bf16.msra.mxu0 %v3745
    %5276 = vmatmul.bf16.gmra.mxu0 %v928
    %v5277 = vpop.f32.mrf.mxu0
    %v5278 = vadd.f32 %v5265, %v5277
    %v5279 = vpop.f32.mrf.mxu0
    %5280 = vdwg.mxu0
    %5281 = vmatpush.bf16.msra.mxu0 %v3895
    %5282 = vmatpush.bf16.msra.mxu0 %v3885
    %5283 = vmatpush.bf16.msra.mxu0 %v3875
    %5284 = vmatpush.bf16.msra.mxu0 %v3865
    %5285 = vmatpush.bf16.msra.mxu0 %v3855
    %5286 = vmatpush.bf16.msra.mxu0 %v3845
    %5287 = vmatpush.bf16.msra.mxu0 %v3835
    %5288 = vmatpush.bf16.msra.mxu0 %v3825
    %5289 = vmatmul.bf16.gmra.mxu0 %v929
    %v5290 = vpop.f32.mrf.mxu0
    %v5291 = vadd.f32 %v5278, %v5290
    %v5292 = vpop.f32.mrf.mxu0
    %5293 = vdwg.mxu0
    %5294 = vmatpush.bf16.msra.mxu0 %v3975
    %5295 = vmatpush.bf16.msra.mxu0 %v3965
    %5296 = vmatpush.bf16.msra.mxu0 %v3955
    %5297 = vmatpush.bf16.msra.mxu0 %v3945
    %5298 = vmatpush.bf16.msra.mxu0 %v3935
    %5299 = vmatpush.bf16.msra.mxu0 %v3925
    %5300 = vmatpush.bf16.msra.mxu0 %v3915
    %5301 = vmatpush.bf16.msra.mxu0 %v3905
    %5302 = vmatmul.bf16.gmra.mxu0 %v930
    %v5303 = vpop.f32.mrf.mxu0
    %v5304 = vadd.f32 %v5291, %v5303
    %v5305 = vpop.f32.mrf.mxu0
    %5306 = vdwg.mxu0
    %5307 = vmatpush.bf16.msra.mxu0 %v4055
    %5308 = vmatpush.bf16.msra.mxu0 %v4045
    %5309 = vmatpush.bf16.msra.mxu0 %v4035
    %5310 = vmatpush.bf16.msra.mxu0 %v4025
    %5311 = vmatpush.bf16.msra.mxu0 %v4015
    %5312 = vmatpush.bf16.msra.mxu0 %v4005
    %5313 = vmatpush.bf16.msra.mxu0 %v3995
    %5314 = vmatpush.bf16.msra.mxu0 %v3985
    %5315 = vmatmul.bf16.gmra.mxu0 %v931
    %v5316 = vpop.f32.mrf.mxu0
    %v5317 = vadd.f32 %v5304, %v5316
    %v5318 = vpop.f32.mrf.mxu0
    %5319 = vdwg.mxu0
    %5320 = vmatpush.bf16.msra.mxu0 %v4135
    %5321 = vmatpush.bf16.msra.mxu0 %v4125
    %5322 = vmatpush.bf16.msra.mxu0 %v4115
    %5323 = vmatpush.bf16.msra.mxu0 %v4105
    %5324 = vmatpush.bf16.msra.mxu0 %v4095
    %5325 = vmatpush.bf16.msra.mxu0 %v4085
    %5326 = vmatpush.bf16.msra.mxu0 %v4075
    %5327 = vmatpush.bf16.msra.mxu0 %v4065
    %5328 = vmatmul.bf16.gmra.mxu0 %v932
    %v5329 = vpop.f32.mrf.mxu0
    %v5330 = vadd.f32 %v5317, %v5329
    %v5331 = vpop.f32.mrf.mxu0
    %5332 = vdwg.mxu0
    %5333 = vmatpush.bf16.msra.mxu0 %v3416
    %5334 = vmatpush.bf16.msra.mxu0 %v3406
    %5335 = vmatpush.bf16.msra.mxu0 %v3396
    %5336 = vmatpush.bf16.msra.mxu0 %v3386
    %5337 = vmatpush.bf16.msra.mxu0 %v3376
    %5338 = vmatpush.bf16.msra.mxu0 %v3366
    %5339 = vmatpush.bf16.msra.mxu0 %v3356
    %5340 = vmatpush.bf16.msra.mxu0 %v3346
    %5341 = vmatmul.bf16.gmra.mxu0 %v923
    %v5342 = vpop.f32.mrf.mxu0
    %v5343 = vadd.f32 %v891, %v5342
    %v5344 = vpop.f32.mrf.mxu0
    %5345 = vdwg.mxu0
    %5346 = vmatpush.bf16.msra.mxu0 %v3496
    %5347 = vmatpush.bf16.msra.mxu0 %v3486
    %5348 = vmatpush.bf16.msra.mxu0 %v3476
    %5349 = vmatpush.bf16.msra.mxu0 %v3466
    %5350 = vmatpush.bf16.msra.mxu0 %v3456
    %5351 = vmatpush.bf16.msra.mxu0 %v3446
    %5352 = vmatpush.bf16.msra.mxu0 %v3436
    %5353 = vmatpush.bf16.msra.mxu0 %v3426
    %5354 = vmatmul.bf16.gmra.mxu0 %v924
    %v5355 = vpop.f32.mrf.mxu0
    %v5356 = vadd.f32 %v5343, %v5355
    %v5357 = vpop.f32.mrf.mxu0
    %5358 = vdwg.mxu0
    %5359 = vmatpush.bf16.msra.mxu0 %v3576
    %5360 = vmatpush.bf16.msra.mxu0 %v3566
    %5361 = vmatpush.bf16.msra.mxu0 %v3556
    %5362 = vmatpush.bf16.msra.mxu0 %v3546
    %5363 = vmatpush.bf16.msra.mxu0 %v3536
    %5364 = vmatpush.bf16.msra.mxu0 %v3526
    %5365 = vmatpush.bf16.msra.mxu0 %v3516
    %5366 = vmatpush.bf16.msra.mxu0 %v3506
    %5367 = vmatmul.bf16.gmra.mxu0 %v925
    %v5368 = vpop.f32.mrf.mxu0
    %v5369 = vadd.f32 %v5356, %v5368
    %v5370 = vpop.f32.mrf.mxu0
    %5371 = vdwg.mxu0
    %5372 = vmatpush.bf16.msra.mxu0 %v3656
    %5373 = vmatpush.bf16.msra.mxu0 %v3646
    %5374 = vmatpush.bf16.msra.mxu0 %v3636
    %5375 = vmatpush.bf16.msra.mxu0 %v3626
    %5376 = vmatpush.bf16.msra.mxu0 %v3616
    %5377 = vmatpush.bf16.msra.mxu0 %v3606
    %5378 = vmatpush.bf16.msra.mxu0 %v3596
    %5379 = vmatpush.bf16.msra.mxu0 %v3586
    %5380 = vmatmul.bf16.gmra.mxu0 %v926
    %v5381 = vpop.f32.mrf.mxu0
    %v5382 = vadd.f32 %v5369, %v5381
    %v5383 = vpop.f32.mrf.mxu0
    %5384 = vdwg.mxu0
    %5385 = vmatpush.bf16.msra.mxu0 %v3736
    %5386 = vmatpush.bf16.msra.mxu0 %v3726
    %5387 = vmatpush.bf16.msra.mxu0 %v3716
    %5388 = vmatpush.bf16.msra.mxu0 %v3706
    %5389 = vmatpush.bf16.msra.mxu0 %v3696
    %5390 = vmatpush.bf16.msra.mxu0 %v3686
    %5391 = vmatpush.bf16.msra.mxu0 %v3676
    %5392 = vmatpush.bf16.msra.mxu0 %v3666
    %5393 = vmatmul.bf16.gmra.mxu0 %v927
    %v5394 = vpop.f32.mrf.mxu0
    %v5395 = vadd.f32 %v5382, %v5394
    %v5396 = vpop.f32.mrf.mxu0
    %5397 = vdwg.mxu0
    %5398 = vmatpush.bf16.msra.mxu0 %v3816
    %5399 = vmatpush.bf16.msra.mxu0 %v3806
    %5400 = vmatpush.bf16.msra.mxu0 %v3796
    %5401 = vmatpush.bf16.msra.mxu0 %v3786
    %5402 = vmatpush.bf16.msra.mxu0 %v3776
    %5403 = vmatpush.bf16.msra.mxu0 %v3766
    %5404 = vmatpush.bf16.msra.mxu0 %v3756
    %5405 = vmatpush.bf16.msra.mxu0 %v3746
    %5406 = vmatmul.bf16.gmra.mxu0 %v928
    %v5407 = vpop.f32.mrf.mxu0
    %v5408 = vadd.f32 %v5395, %v5407
    %v5409 = vpop.f32.mrf.mxu0
    %5410 = vdwg.mxu0
    %5411 = vmatpush.bf16.msra.mxu0 %v3896
    %5412 = vmatpush.bf16.msra.mxu0 %v3886
    %5413 = vmatpush.bf16.msra.mxu0 %v3876
    %5414 = vmatpush.bf16.msra.mxu0 %v3866
    %5415 = vmatpush.bf16.msra.mxu0 %v3856
    %5416 = vmatpush.bf16.msra.mxu0 %v3846
    %5417 = vmatpush.bf16.msra.mxu0 %v3836
    %5418 = vmatpush.bf16.msra.mxu0 %v3826
    %5419 = vmatmul.bf16.gmra.mxu0 %v929
    %v5420 = vpop.f32.mrf.mxu0
    %v5421 = vadd.f32 %v5408, %v5420
    %v5422 = vpop.f32.mrf.mxu0
    %5423 = vdwg.mxu0
    %5424 = vmatpush.bf16.msra.mxu0 %v3976
    %5425 = vmatpush.bf16.msra.mxu0 %v3966
    %5426 = vmatpush.bf16.msra.mxu0 %v3956
    %5427 = vmatpush.bf16.msra.mxu0 %v3946
    %5428 = vmatpush.bf16.msra.mxu0 %v3936
    %5429 = vmatpush.bf16.msra.mxu0 %v3926
    %5430 = vmatpush.bf16.msra.mxu0 %v3916
    %5431 = vmatpush.bf16.msra.mxu0 %v3906
    %5432 = vmatmul.bf16.gmra.mxu0 %v930
    %v5433 = vpop.f32.mrf.mxu0
    %v5434 = vadd.f32 %v5421, %v5433
    %v5435 = vpop.f32.mrf.mxu0
    %5436 = vdwg.mxu0
    %5437 = vmatpush.bf16.msra.mxu0 %v4056
    %5438 = vmatpush.bf16.msra.mxu0 %v4046
    %5439 = vmatpush.bf16.msra.mxu0 %v4036
    %5440 = vmatpush.bf16.msra.mxu0 %v4026
    %5441 = vmatpush.bf16.msra.mxu0 %v4016
    %5442 = vmatpush.bf16.msra.mxu0 %v4006
    %5443 = vmatpush.bf16.msra.mxu0 %v3996
    %5444 = vmatpush.bf16.msra.mxu0 %v3986
    %5445 = vmatmul.bf16.gmra.mxu0 %v931
    %v5446 = vpop.f32.mrf.mxu0
    %v5447 = vadd.f32 %v5434, %v5446
    %v5448 = vpop.f32.mrf.mxu0
    %5449 = vdwg.mxu0
    %5450 = vmatpush.bf16.msra.mxu0 %v4136
    %5451 = vmatpush.bf16.msra.mxu0 %v4126
    %5452 = vmatpush.bf16.msra.mxu0 %v4116
    %5453 = vmatpush.bf16.msra.mxu0 %v4106
    %5454 = vmatpush.bf16.msra.mxu0 %v4096
    %5455 = vmatpush.bf16.msra.mxu0 %v4086
    %5456 = vmatpush.bf16.msra.mxu0 %v4076
    %5457 = vmatpush.bf16.msra.mxu0 %v4066
    %5458 = vmatmul.bf16.gmra.mxu0 %v932
    %v5459 = vpop.f32.mrf.mxu0
    %v5460 = vadd.f32 %v5447, %v5459
    %v5461 = vpop.f32.mrf.mxu0
    %5462 = vdwg.mxu0
    %5463 = vmatpush.bf16.msra.mxu0 %v3417
    %5464 = vmatpush.bf16.msra.mxu0 %v3407
    %5465 = vmatpush.bf16.msra.mxu0 %v3397
    %5466 = vmatpush.bf16.msra.mxu0 %v3387
    %5467 = vmatpush.bf16.msra.mxu0 %v3377
    %5468 = vmatpush.bf16.msra.mxu0 %v3367
    %5469 = vmatpush.bf16.msra.mxu0 %v3357
    %5470 = vmatpush.bf16.msra.mxu0 %v3347
    %5471 = vmatmul.bf16.gmra.mxu0 %v923
    %v5472 = vpop.f32.mrf.mxu0
    %v5473 = vadd.f32 %v892, %v5472
    %v5474 = vpop.f32.mrf.mxu0
    %5475 = vdwg.mxu0
    %5476 = vmatpush.bf16.msra.mxu0 %v3497
    %5477 = vmatpush.bf16.msra.mxu0 %v3487
    %5478 = vmatpush.bf16.msra.mxu0 %v3477
    %5479 = vmatpush.bf16.msra.mxu0 %v3467
    %5480 = vmatpush.bf16.msra.mxu0 %v3457
    %5481 = vmatpush.bf16.msra.mxu0 %v3447
    %5482 = vmatpush.bf16.msra.mxu0 %v3437
    %5483 = vmatpush.bf16.msra.mxu0 %v3427
    %5484 = vmatmul.bf16.gmra.mxu0 %v924
    %v5485 = vpop.f32.mrf.mxu0
    %v5486 = vadd.f32 %v5473, %v5485
    %v5487 = vpop.f32.mrf.mxu0
    %5488 = vdwg.mxu0
    %5489 = vmatpush.bf16.msra.mxu0 %v3577
    %5490 = vmatpush.bf16.msra.mxu0 %v3567
    %5491 = vmatpush.bf16.msra.mxu0 %v3557
    %5492 = vmatpush.bf16.msra.mxu0 %v3547
    %5493 = vmatpush.bf16.msra.mxu0 %v3537
    %5494 = vmatpush.bf16.msra.mxu0 %v3527
    %5495 = vmatpush.bf16.msra.mxu0 %v3517
    %5496 = vmatpush.bf16.msra.mxu0 %v3507
    %5497 = vmatmul.bf16.gmra.mxu0 %v925
    %v5498 = vpop.f32.mrf.mxu0
    %v5499 = vadd.f32 %v5486, %v5498
    %v5500 = vpop.f32.mrf.mxu0
    %5501 = vdwg.mxu0
    %5502 = vmatpush.bf16.msra.mxu0 %v3657
    %5503 = vmatpush.bf16.msra.mxu0 %v3647
    %5504 = vmatpush.bf16.msra.mxu0 %v3637
    %5505 = vmatpush.bf16.msra.mxu0 %v3627
    %5506 = vmatpush.bf16.msra.mxu0 %v3617
    %5507 = vmatpush.bf16.msra.mxu0 %v3607
    %5508 = vmatpush.bf16.msra.mxu0 %v3597
    %5509 = vmatpush.bf16.msra.mxu0 %v3587
    %5510 = vmatmul.bf16.gmra.mxu0 %v926
    %v5511 = vpop.f32.mrf.mxu0
    %v5512 = vadd.f32 %v5499, %v5511
    %v5513 = vpop.f32.mrf.mxu0
    %5514 = vdwg.mxu0
    %5515 = vmatpush.bf16.msra.mxu0 %v3737
    %5516 = vmatpush.bf16.msra.mxu0 %v3727
    %5517 = vmatpush.bf16.msra.mxu0 %v3717
    %5518 = vmatpush.bf16.msra.mxu0 %v3707
    %5519 = vmatpush.bf16.msra.mxu0 %v3697
    %5520 = vmatpush.bf16.msra.mxu0 %v3687
    %5521 = vmatpush.bf16.msra.mxu0 %v3677
    %5522 = vmatpush.bf16.msra.mxu0 %v3667
    %5523 = vmatmul.bf16.gmra.mxu0 %v927
    %v5524 = vpop.f32.mrf.mxu0
    %v5525 = vadd.f32 %v5512, %v5524
    %v5526 = vpop.f32.mrf.mxu0
    %5527 = vdwg.mxu0
    %5528 = vmatpush.bf16.msra.mxu0 %v3817
    %5529 = vmatpush.bf16.msra.mxu0 %v3807
    %5530 = vmatpush.bf16.msra.mxu0 %v3797
    %5531 = vmatpush.bf16.msra.mxu0 %v3787
    %5532 = vmatpush.bf16.msra.mxu0 %v3777
    %5533 = vmatpush.bf16.msra.mxu0 %v3767
    %5534 = vmatpush.bf16.msra.mxu0 %v3757
    %5535 = vmatpush.bf16.msra.mxu0 %v3747
    %5536 = vmatmul.bf16.gmra.mxu0 %v928
    %v5537 = vpop.f32.mrf.mxu0
    %v5538 = vadd.f32 %v5525, %v5537
    %v5539 = vpop.f32.mrf.mxu0
    %5540 = vdwg.mxu0
    %5541 = vmatpush.bf16.msra.mxu0 %v3897
    %5542 = vmatpush.bf16.msra.mxu0 %v3887
    %5543 = vmatpush.bf16.msra.mxu0 %v3877
    %5544 = vmatpush.bf16.msra.mxu0 %v3867
    %5545 = vmatpush.bf16.msra.mxu0 %v3857
    %5546 = vmatpush.bf16.msra.mxu0 %v3847
    %5547 = vmatpush.bf16.msra.mxu0 %v3837
    %5548 = vmatpush.bf16.msra.mxu0 %v3827
    %5549 = vmatmul.bf16.gmra.mxu0 %v929
    %v5550 = vpop.f32.mrf.mxu0
    %v5551 = vadd.f32 %v5538, %v5550
    %v5552 = vpop.f32.mrf.mxu0
    %5553 = vdwg.mxu0
    %5554 = vmatpush.bf16.msra.mxu0 %v3977
    %5555 = vmatpush.bf16.msra.mxu0 %v3967
    %5556 = vmatpush.bf16.msra.mxu0 %v3957
    %5557 = vmatpush.bf16.msra.mxu0 %v3947
    %5558 = vmatpush.bf16.msra.mxu0 %v3937
    %5559 = vmatpush.bf16.msra.mxu0 %v3927
    %5560 = vmatpush.bf16.msra.mxu0 %v3917
    %5561 = vmatpush.bf16.msra.mxu0 %v3907
    %5562 = vmatmul.bf16.gmra.mxu0 %v930
    %v5563 = vpop.f32.mrf.mxu0
    %v5564 = vadd.f32 %v5551, %v5563
    %v5565 = vpop.f32.mrf.mxu0
    %5566 = vdwg.mxu0
    %5567 = vmatpush.bf16.msra.mxu0 %v4057
    %5568 = vmatpush.bf16.msra.mxu0 %v4047
    %5569 = vmatpush.bf16.msra.mxu0 %v4037
    %5570 = vmatpush.bf16.msra.mxu0 %v4027
    %5571 = vmatpush.bf16.msra.mxu0 %v4017
    %5572 = vmatpush.bf16.msra.mxu0 %v4007
    %5573 = vmatpush.bf16.msra.mxu0 %v3997
    %5574 = vmatpush.bf16.msra.mxu0 %v3987
    %5575 = vmatmul.bf16.gmra.mxu0 %v931
    %v5576 = vpop.f32.mrf.mxu0
    %v5577 = vadd.f32 %v5564, %v5576
    %v5578 = vpop.f32.mrf.mxu0
    %5579 = vdwg.mxu0
    %5580 = vmatpush.bf16.msra.mxu0 %v4137
    %5581 = vmatpush.bf16.msra.mxu0 %v4127
    %5582 = vmatpush.bf16.msra.mxu0 %v4117
    %5583 = vmatpush.bf16.msra.mxu0 %v4107
    %5584 = vmatpush.bf16.msra.mxu0 %v4097
    %5585 = vmatpush.bf16.msra.mxu0 %v4087
    %5586 = vmatpush.bf16.msra.mxu0 %v4077
    %5587 = vmatpush.bf16.msra.mxu0 %v4067
    %5588 = vmatmul.bf16.gmra.mxu0 %v932
    %v5589 = vpop.f32.mrf.mxu0
    %v5590 = vadd.f32 %v5577, %v5589
    %v5591 = vpop.f32.mrf.mxu0
    %5592 = vdwg.mxu0
    %5593 = vmatpush.bf16.msra.mxu0 %v3418
    %5594 = vmatpush.bf16.msra.mxu0 %v3408
    %5595 = vmatpush.bf16.msra.mxu0 %v3398
    %5596 = vmatpush.bf16.msra.mxu0 %v3388
    %5597 = vmatpush.bf16.msra.mxu0 %v3378
    %5598 = vmatpush.bf16.msra.mxu0 %v3368
    %5599 = vmatpush.bf16.msra.mxu0 %v3358
    %5600 = vmatpush.bf16.msra.mxu0 %v3348
    %5601 = vmatmul.bf16.gmra.mxu0 %v923
    %v5602 = vpop.f32.mrf.mxu0
    %v5603 = vadd.f32 %v893, %v5602
    %v5604 = vpop.f32.mrf.mxu0
    %5605 = vdwg.mxu0
    %5606 = vmatpush.bf16.msra.mxu0 %v3498
    %5607 = vmatpush.bf16.msra.mxu0 %v3488
    %5608 = vmatpush.bf16.msra.mxu0 %v3478
    %5609 = vmatpush.bf16.msra.mxu0 %v3468
    %5610 = vmatpush.bf16.msra.mxu0 %v3458
    %5611 = vmatpush.bf16.msra.mxu0 %v3448
    %5612 = vmatpush.bf16.msra.mxu0 %v3438
    %5613 = vmatpush.bf16.msra.mxu0 %v3428
    %5614 = vmatmul.bf16.gmra.mxu0 %v924
    %v5615 = vpop.f32.mrf.mxu0
    %v5616 = vadd.f32 %v5603, %v5615
    %v5617 = vpop.f32.mrf.mxu0
    %5618 = vdwg.mxu0
    %5619 = vmatpush.bf16.msra.mxu0 %v3578
    %5620 = vmatpush.bf16.msra.mxu0 %v3568
    %5621 = vmatpush.bf16.msra.mxu0 %v3558
    %5622 = vmatpush.bf16.msra.mxu0 %v3548
    %5623 = vmatpush.bf16.msra.mxu0 %v3538
    %5624 = vmatpush.bf16.msra.mxu0 %v3528
    %5625 = vmatpush.bf16.msra.mxu0 %v3518
    %5626 = vmatpush.bf16.msra.mxu0 %v3508
    %5627 = vmatmul.bf16.gmra.mxu0 %v925
    %v5628 = vpop.f32.mrf.mxu0
    %v5629 = vadd.f32 %v5616, %v5628
    %v5630 = vpop.f32.mrf.mxu0
    %5631 = vdwg.mxu0
    %5632 = vmatpush.bf16.msra.mxu0 %v3658
    %5633 = vmatpush.bf16.msra.mxu0 %v3648
    %5634 = vmatpush.bf16.msra.mxu0 %v3638
    %5635 = vmatpush.bf16.msra.mxu0 %v3628
    %5636 = vmatpush.bf16.msra.mxu0 %v3618
    %5637 = vmatpush.bf16.msra.mxu0 %v3608
    %5638 = vmatpush.bf16.msra.mxu0 %v3598
    %5639 = vmatpush.bf16.msra.mxu0 %v3588
    %5640 = vmatmul.bf16.gmra.mxu0 %v926
    %v5641 = vpop.f32.mrf.mxu0
    %v5642 = vadd.f32 %v5629, %v5641
    %v5643 = vpop.f32.mrf.mxu0
    %5644 = vdwg.mxu0
    %5645 = vmatpush.bf16.msra.mxu0 %v3738
    %5646 = vmatpush.bf16.msra.mxu0 %v3728
    %5647 = vmatpush.bf16.msra.mxu0 %v3718
    %5648 = vmatpush.bf16.msra.mxu0 %v3708
    %5649 = vmatpush.bf16.msra.mxu0 %v3698
    %5650 = vmatpush.bf16.msra.mxu0 %v3688
    %5651 = vmatpush.bf16.msra.mxu0 %v3678
    %5652 = vmatpush.bf16.msra.mxu0 %v3668
    %5653 = vmatmul.bf16.gmra.mxu0 %v927
    %v5654 = vpop.f32.mrf.mxu0
    %v5655 = vadd.f32 %v5642, %v5654
    %v5656 = vpop.f32.mrf.mxu0
    %5657 = vdwg.mxu0
    %5658 = vmatpush.bf16.msra.mxu0 %v3818
    %5659 = vmatpush.bf16.msra.mxu0 %v3808
    %5660 = vmatpush.bf16.msra.mxu0 %v3798
    %5661 = vmatpush.bf16.msra.mxu0 %v3788
    %5662 = vmatpush.bf16.msra.mxu0 %v3778
    %5663 = vmatpush.bf16.msra.mxu0 %v3768
    %5664 = vmatpush.bf16.msra.mxu0 %v3758
    %5665 = vmatpush.bf16.msra.mxu0 %v3748
    %5666 = vmatmul.bf16.gmra.mxu0 %v928
    %v5667 = vpop.f32.mrf.mxu0
    %v5668 = vadd.f32 %v5655, %v5667
    %v5669 = vpop.f32.mrf.mxu0
    %5670 = vdwg.mxu0
    %5671 = vmatpush.bf16.msra.mxu0 %v3898
    %5672 = vmatpush.bf16.msra.mxu0 %v3888
    %5673 = vmatpush.bf16.msra.mxu0 %v3878
    %5674 = vmatpush.bf16.msra.mxu0 %v3868
    %5675 = vmatpush.bf16.msra.mxu0 %v3858
    %5676 = vmatpush.bf16.msra.mxu0 %v3848
    %5677 = vmatpush.bf16.msra.mxu0 %v3838
    %5678 = vmatpush.bf16.msra.mxu0 %v3828
    %5679 = vmatmul.bf16.gmra.mxu0 %v929
    %v5680 = vpop.f32.mrf.mxu0
    %v5681 = vadd.f32 %v5668, %v5680
    %v5682 = vpop.f32.mrf.mxu0
    %5683 = vdwg.mxu0
    %5684 = vmatpush.bf16.msra.mxu0 %v3978
    %5685 = vmatpush.bf16.msra.mxu0 %v3968
    %5686 = vmatpush.bf16.msra.mxu0 %v3958
    %5687 = vmatpush.bf16.msra.mxu0 %v3948
    %5688 = vmatpush.bf16.msra.mxu0 %v3938
    %5689 = vmatpush.bf16.msra.mxu0 %v3928
    %5690 = vmatpush.bf16.msra.mxu0 %v3918
    %5691 = vmatpush.bf16.msra.mxu0 %v3908
    %5692 = vmatmul.bf16.gmra.mxu0 %v930
    %v5693 = vpop.f32.mrf.mxu0
    %v5694 = vadd.f32 %v5681, %v5693
    %v5695 = vpop.f32.mrf.mxu0
    %5696 = vdwg.mxu0
    %5697 = vmatpush.bf16.msra.mxu0 %v4058
    %5698 = vmatpush.bf16.msra.mxu0 %v4048
    %5699 = vmatpush.bf16.msra.mxu0 %v4038
    %5700 = vmatpush.bf16.msra.mxu0 %v4028
    %5701 = vmatpush.bf16.msra.mxu0 %v4018
    %5702 = vmatpush.bf16.msra.mxu0 %v4008
    %5703 = vmatpush.bf16.msra.mxu0 %v3998
    %5704 = vmatpush.bf16.msra.mxu0 %v3988
    %5705 = vmatmul.bf16.gmra.mxu0 %v931
    %v5706 = vpop.f32.mrf.mxu0
    %v5707 = vadd.f32 %v5694, %v5706
    %v5708 = vpop.f32.mrf.mxu0
    %5709 = vdwg.mxu0
    %5710 = vmatpush.bf16.msra.mxu0 %v4138
    %5711 = vmatpush.bf16.msra.mxu0 %v4128
    %5712 = vmatpush.bf16.msra.mxu0 %v4118
    %5713 = vmatpush.bf16.msra.mxu0 %v4108
    %5714 = vmatpush.bf16.msra.mxu0 %v4098
    %5715 = vmatpush.bf16.msra.mxu0 %v4088
    %5716 = vmatpush.bf16.msra.mxu0 %v4078
    %5717 = vmatpush.bf16.msra.mxu0 %v4068
    %5718 = vmatmul.bf16.gmra.mxu0 %v932
    %v5719 = vpop.f32.mrf.mxu0
    %v5720 = vadd.f32 %v5707, %v5719
    %v5721 = vpop.f32.mrf.mxu0
    %5722 = vdwg.mxu0
    %5723 = vmatpush.bf16.msra.mxu0 %v3419
    %5724 = vmatpush.bf16.msra.mxu0 %v3409
    %5725 = vmatpush.bf16.msra.mxu0 %v3399
    %5726 = vmatpush.bf16.msra.mxu0 %v3389
    %5727 = vmatpush.bf16.msra.mxu0 %v3379
    %5728 = vmatpush.bf16.msra.mxu0 %v3369
    %5729 = vmatpush.bf16.msra.mxu0 %v3359
    %5730 = vmatpush.bf16.msra.mxu0 %v3349
    %5731 = vmatmul.bf16.gmra.mxu0 %v923
    %v5732 = vpop.f32.mrf.mxu0
    %v5733 = vadd.f32 %v894, %v5732
    %v5734 = vpop.f32.mrf.mxu0
    %5735 = vdwg.mxu0
    %5736 = vmatpush.bf16.msra.mxu0 %v3499
    %5737 = vmatpush.bf16.msra.mxu0 %v3489
    %5738 = vmatpush.bf16.msra.mxu0 %v3479
    %5739 = vmatpush.bf16.msra.mxu0 %v3469
    %5740 = vmatpush.bf16.msra.mxu0 %v3459
    %5741 = vmatpush.bf16.msra.mxu0 %v3449
    %5742 = vmatpush.bf16.msra.mxu0 %v3439
    %5743 = vmatpush.bf16.msra.mxu0 %v3429
    %5744 = vmatmul.bf16.gmra.mxu0 %v924
    %v5745 = vpop.f32.mrf.mxu0
    %v5746 = vadd.f32 %v5733, %v5745
    %v5747 = vpop.f32.mrf.mxu0
    %5748 = vdwg.mxu0
    %5749 = vmatpush.bf16.msra.mxu0 %v3579
    %5750 = vmatpush.bf16.msra.mxu0 %v3569
    %5751 = vmatpush.bf16.msra.mxu0 %v3559
    %5752 = vmatpush.bf16.msra.mxu0 %v3549
    %5753 = vmatpush.bf16.msra.mxu0 %v3539
    %5754 = vmatpush.bf16.msra.mxu0 %v3529
    %5755 = vmatpush.bf16.msra.mxu0 %v3519
    %5756 = vmatpush.bf16.msra.mxu0 %v3509
    %5757 = vmatmul.bf16.gmra.mxu0 %v925
    %v5758 = vpop.f32.mrf.mxu0
    %v5759 = vadd.f32 %v5746, %v5758
    %v5760 = vpop.f32.mrf.mxu0
    %5761 = vdwg.mxu0
    %5762 = vmatpush.bf16.msra.mxu0 %v3659
    %5763 = vmatpush.bf16.msra.mxu0 %v3649
    %5764 = vmatpush.bf16.msra.mxu0 %v3639
    %5765 = vmatpush.bf16.msra.mxu0 %v3629
    %5766 = vmatpush.bf16.msra.mxu0 %v3619
    %5767 = vmatpush.bf16.msra.mxu0 %v3609
    %5768 = vmatpush.bf16.msra.mxu0 %v3599
    %5769 = vmatpush.bf16.msra.mxu0 %v3589
    %5770 = vmatmul.bf16.gmra.mxu0 %v926
    %v5771 = vpop.f32.mrf.mxu0
    %v5772 = vadd.f32 %v5759, %v5771
    %v5773 = vpop.f32.mrf.mxu0
    %5774 = vdwg.mxu0
    %5775 = vmatpush.bf16.msra.mxu0 %v3739
    %5776 = vmatpush.bf16.msra.mxu0 %v3729
    %5777 = vmatpush.bf16.msra.mxu0 %v3719
    %5778 = vmatpush.bf16.msra.mxu0 %v3709
    %5779 = vmatpush.bf16.msra.mxu0 %v3699
    %5780 = vmatpush.bf16.msra.mxu0 %v3689
    %5781 = vmatpush.bf16.msra.mxu0 %v3679
    %5782 = vmatpush.bf16.msra.mxu0 %v3669
    %5783 = vmatmul.bf16.gmra.mxu0 %v927
    %v5784 = vpop.f32.mrf.mxu0
    %v5785 = vadd.f32 %v5772, %v5784
    %v5786 = vpop.f32.mrf.mxu0
    %5787 = vdwg.mxu0
    %5788 = vmatpush.bf16.msra.mxu0 %v3819
    %5789 = vmatpush.bf16.msra.mxu0 %v3809
    %5790 = vmatpush.bf16.msra.mxu0 %v3799
    %5791 = vmatpush.bf16.msra.mxu0 %v3789
    %5792 = vmatpush.bf16.msra.mxu0 %v3779
    %5793 = vmatpush.bf16.msra.mxu0 %v3769
    %5794 = vmatpush.bf16.msra.mxu0 %v3759
    %5795 = vmatpush.bf16.msra.mxu0 %v3749
    %5796 = vmatmul.bf16.gmra.mxu0 %v928
    %v5797 = vpop.f32.mrf.mxu0
    %v5798 = vadd.f32 %v5785, %v5797
    %v5799 = vpop.f32.mrf.mxu0
    %5800 = vdwg.mxu0
    %5801 = vmatpush.bf16.msra.mxu0 %v3899
    %5802 = vmatpush.bf16.msra.mxu0 %v3889
    %5803 = vmatpush.bf16.msra.mxu0 %v3879
    %5804 = vmatpush.bf16.msra.mxu0 %v3869
    %5805 = vmatpush.bf16.msra.mxu0 %v3859
    %5806 = vmatpush.bf16.msra.mxu0 %v3849
    %5807 = vmatpush.bf16.msra.mxu0 %v3839
    %5808 = vmatpush.bf16.msra.mxu0 %v3829
    %5809 = vmatmul.bf16.gmra.mxu0 %v929
    %v5810 = vpop.f32.mrf.mxu0
    %v5811 = vadd.f32 %v5798, %v5810
    %v5812 = vpop.f32.mrf.mxu0
    %5813 = vdwg.mxu0
    %5814 = vmatpush.bf16.msra.mxu0 %v3979
    %5815 = vmatpush.bf16.msra.mxu0 %v3969
    %5816 = vmatpush.bf16.msra.mxu0 %v3959
    %5817 = vmatpush.bf16.msra.mxu0 %v3949
    %5818 = vmatpush.bf16.msra.mxu0 %v3939
    %5819 = vmatpush.bf16.msra.mxu0 %v3929
    %5820 = vmatpush.bf16.msra.mxu0 %v3919
    %5821 = vmatpush.bf16.msra.mxu0 %v3909
    %5822 = vmatmul.bf16.gmra.mxu0 %v930
    %v5823 = vpop.f32.mrf.mxu0
    %v5824 = vadd.f32 %v5811, %v5823
    %v5825 = vpop.f32.mrf.mxu0
    %5826 = vdwg.mxu0
    %5827 = vmatpush.bf16.msra.mxu0 %v4059
    %5828 = vmatpush.bf16.msra.mxu0 %v4049
    %5829 = vmatpush.bf16.msra.mxu0 %v4039
    %5830 = vmatpush.bf16.msra.mxu0 %v4029
    %5831 = vmatpush.bf16.msra.mxu0 %v4019
    %5832 = vmatpush.bf16.msra.mxu0 %v4009
    %5833 = vmatpush.bf16.msra.mxu0 %v3999
    %5834 = vmatpush.bf16.msra.mxu0 %v3989
    %5835 = vmatmul.bf16.gmra.mxu0 %v931
    %v5836 = vpop.f32.mrf.mxu0
    %v5837 = vadd.f32 %v5824, %v5836
    %v5838 = vpop.f32.mrf.mxu0
    %5839 = vdwg.mxu0
    %5840 = vmatpush.bf16.msra.mxu0 %v4139
    %5841 = vmatpush.bf16.msra.mxu0 %v4129
    %5842 = vmatpush.bf16.msra.mxu0 %v4119
    %5843 = vmatpush.bf16.msra.mxu0 %v4109
    %5844 = vmatpush.bf16.msra.mxu0 %v4099
    %5845 = vmatpush.bf16.msra.mxu0 %v4089
    %5846 = vmatpush.bf16.msra.mxu0 %v4079
    %5847 = vmatpush.bf16.msra.mxu0 %v4069
    %5848 = vmatmul.bf16.gmra.mxu0 %v932
    %v5849 = vpop.f32.mrf.mxu0
    %v5850 = vadd.f32 %v5837, %v5849
    %v5851 = vpop.f32.mrf.mxu0
    %5852 = vdwg.mxu0
    %5853 = vmatpush.bf16.msra.mxu0 %v3420
    %5854 = vmatpush.bf16.msra.mxu0 %v3410
    %5855 = vmatpush.bf16.msra.mxu0 %v3400
    %5856 = vmatpush.bf16.msra.mxu0 %v3390
    %5857 = vmatpush.bf16.msra.mxu0 %v3380
    %5858 = vmatpush.bf16.msra.mxu0 %v3370
    %5859 = vmatpush.bf16.msra.mxu0 %v3360
    %5860 = vmatpush.bf16.msra.mxu0 %v3350
    %5861 = vmatmul.bf16.gmra.mxu0 %v923
    %v5862 = vpop.f32.mrf.mxu0
    %v5863 = vadd.f32 %v895, %v5862
    %v5864 = vpop.f32.mrf.mxu0
    %5865 = vdwg.mxu0
    %5866 = vmatpush.bf16.msra.mxu0 %v3500
    %5867 = vmatpush.bf16.msra.mxu0 %v3490
    %5868 = vmatpush.bf16.msra.mxu0 %v3480
    %5869 = vmatpush.bf16.msra.mxu0 %v3470
    %5870 = vmatpush.bf16.msra.mxu0 %v3460
    %5871 = vmatpush.bf16.msra.mxu0 %v3450
    %5872 = vmatpush.bf16.msra.mxu0 %v3440
    %5873 = vmatpush.bf16.msra.mxu0 %v3430
    %5874 = vmatmul.bf16.gmra.mxu0 %v924
    %v5875 = vpop.f32.mrf.mxu0
    %v5876 = vadd.f32 %v5863, %v5875
    %v5877 = vpop.f32.mrf.mxu0
    %5878 = vdwg.mxu0
    %5879 = vmatpush.bf16.msra.mxu0 %v3580
    %5880 = vmatpush.bf16.msra.mxu0 %v3570
    %5881 = vmatpush.bf16.msra.mxu0 %v3560
    %5882 = vmatpush.bf16.msra.mxu0 %v3550
    %5883 = vmatpush.bf16.msra.mxu0 %v3540
    %5884 = vmatpush.bf16.msra.mxu0 %v3530
    %5885 = vmatpush.bf16.msra.mxu0 %v3520
    %5886 = vmatpush.bf16.msra.mxu0 %v3510
    %5887 = vmatmul.bf16.gmra.mxu0 %v925
    %v5888 = vpop.f32.mrf.mxu0
    %v5889 = vadd.f32 %v5876, %v5888
    %v5890 = vpop.f32.mrf.mxu0
    %5891 = vdwg.mxu0
    %5892 = vmatpush.bf16.msra.mxu0 %v3660
    %5893 = vmatpush.bf16.msra.mxu0 %v3650
    %5894 = vmatpush.bf16.msra.mxu0 %v3640
    %5895 = vmatpush.bf16.msra.mxu0 %v3630
    %5896 = vmatpush.bf16.msra.mxu0 %v3620
    %5897 = vmatpush.bf16.msra.mxu0 %v3610
    %5898 = vmatpush.bf16.msra.mxu0 %v3600
    %5899 = vmatpush.bf16.msra.mxu0 %v3590
    %5900 = vmatmul.bf16.gmra.mxu0 %v926
    %v5901 = vpop.f32.mrf.mxu0
    %v5902 = vadd.f32 %v5889, %v5901
    %v5903 = vpop.f32.mrf.mxu0
    %5904 = vdwg.mxu0
    %5905 = vmatpush.bf16.msra.mxu0 %v3740
    %5906 = vmatpush.bf16.msra.mxu0 %v3730
    %5907 = vmatpush.bf16.msra.mxu0 %v3720
    %5908 = vmatpush.bf16.msra.mxu0 %v3710
    %5909 = vmatpush.bf16.msra.mxu0 %v3700
    %5910 = vmatpush.bf16.msra.mxu0 %v3690
    %5911 = vmatpush.bf16.msra.mxu0 %v3680
    %5912 = vmatpush.bf16.msra.mxu0 %v3670
    %5913 = vmatmul.bf16.gmra.mxu0 %v927
    %v5914 = vpop.f32.mrf.mxu0
    %v5915 = vadd.f32 %v5902, %v5914
    %v5916 = vpop.f32.mrf.mxu0
    %5917 = vdwg.mxu0
    %5918 = vmatpush.bf16.msra.mxu0 %v3820
    %5919 = vmatpush.bf16.msra.mxu0 %v3810
    %5920 = vmatpush.bf16.msra.mxu0 %v3800
    %5921 = vmatpush.bf16.msra.mxu0 %v3790
    %5922 = vmatpush.bf16.msra.mxu0 %v3780
    %5923 = vmatpush.bf16.msra.mxu0 %v3770
    %5924 = vmatpush.bf16.msra.mxu0 %v3760
    %5925 = vmatpush.bf16.msra.mxu0 %v3750
    %5926 = vmatmul.bf16.gmra.mxu0 %v928
    %v5927 = vpop.f32.mrf.mxu0
    %v5928 = vadd.f32 %v5915, %v5927
    %v5929 = vpop.f32.mrf.mxu0
    %5930 = vdwg.mxu0
    %5931 = vmatpush.bf16.msra.mxu0 %v3900
    %5932 = vmatpush.bf16.msra.mxu0 %v3890
    %5933 = vmatpush.bf16.msra.mxu0 %v3880
    %5934 = vmatpush.bf16.msra.mxu0 %v3870
    %5935 = vmatpush.bf16.msra.mxu0 %v3860
    %5936 = vmatpush.bf16.msra.mxu0 %v3850
    %5937 = vmatpush.bf16.msra.mxu0 %v3840
    %5938 = vmatpush.bf16.msra.mxu0 %v3830
    %5939 = vmatmul.bf16.gmra.mxu0 %v929
    %v5940 = vpop.f32.mrf.mxu0
    %v5941 = vadd.f32 %v5928, %v5940
    %v5942 = vpop.f32.mrf.mxu0
    %5943 = vdwg.mxu0
    %5944 = vmatpush.bf16.msra.mxu0 %v3980
    %5945 = vmatpush.bf16.msra.mxu0 %v3970
    %5946 = vmatpush.bf16.msra.mxu0 %v3960
    %5947 = vmatpush.bf16.msra.mxu0 %v3950
    %5948 = vmatpush.bf16.msra.mxu0 %v3940
    %5949 = vmatpush.bf16.msra.mxu0 %v3930
    %5950 = vmatpush.bf16.msra.mxu0 %v3920
    %5951 = vmatpush.bf16.msra.mxu0 %v3910
    %5952 = vmatmul.bf16.gmra.mxu0 %v930
    %v5953 = vpop.f32.mrf.mxu0
    %v5954 = vadd.f32 %v5941, %v5953
    %v5955 = vpop.f32.mrf.mxu0
    %5956 = vdwg.mxu0
    %5957 = vmatpush.bf16.msra.mxu0 %v4060
    %5958 = vmatpush.bf16.msra.mxu0 %v4050
    %5959 = vmatpush.bf16.msra.mxu0 %v4040
    %5960 = vmatpush.bf16.msra.mxu0 %v4030
    %5961 = vmatpush.bf16.msra.mxu0 %v4020
    %5962 = vmatpush.bf16.msra.mxu0 %v4010
    %5963 = vmatpush.bf16.msra.mxu0 %v4000
    %5964 = vmatpush.bf16.msra.mxu0 %v3990
    %5965 = vmatmul.bf16.gmra.mxu0 %v931
    %v5966 = vpop.f32.mrf.mxu0
    %v5967 = vadd.f32 %v5954, %v5966
    %v5968 = vpop.f32.mrf.mxu0
    %5969 = vdwg.mxu0
    %5970 = vmatpush.bf16.msra.mxu0 %v4140
    %5971 = vmatpush.bf16.msra.mxu0 %v4130
    %5972 = vmatpush.bf16.msra.mxu0 %v4120
    %5973 = vmatpush.bf16.msra.mxu0 %v4110
    %5974 = vmatpush.bf16.msra.mxu0 %v4100
    %5975 = vmatpush.bf16.msra.mxu0 %v4090
    %5976 = vmatpush.bf16.msra.mxu0 %v4080
    %5977 = vmatpush.bf16.msra.mxu0 %v4070
    %5978 = vmatmul.bf16.gmra.mxu0 %v932
    %v5979 = vpop.f32.mrf.mxu0
    %v5980 = vadd.f32 %v5967, %v5979
    %v5981 = vpop.f32.mrf.mxu0
    %5982 = vdwg.mxu0
    %5983 = vmatpush.bf16.msra.mxu0 %v3421
    %5984 = vmatpush.bf16.msra.mxu0 %v3411
    %5985 = vmatpush.bf16.msra.mxu0 %v3401
    %5986 = vmatpush.bf16.msra.mxu0 %v3391
    %5987 = vmatpush.bf16.msra.mxu0 %v3381
    %5988 = vmatpush.bf16.msra.mxu0 %v3371
    %5989 = vmatpush.bf16.msra.mxu0 %v3361
    %5990 = vmatpush.bf16.msra.mxu0 %v3351
    %5991 = vmatmul.bf16.gmra.mxu0 %v923
    %v5992 = vpop.f32.mrf.mxu0
    %v5993 = vadd.f32 %v896, %v5992
    %v5994 = vpop.f32.mrf.mxu0
    %5995 = vdwg.mxu0
    %5996 = vmatpush.bf16.msra.mxu0 %v3501
    %5997 = vmatpush.bf16.msra.mxu0 %v3491
    %5998 = vmatpush.bf16.msra.mxu0 %v3481
    %5999 = vmatpush.bf16.msra.mxu0 %v3471
    %6000 = vmatpush.bf16.msra.mxu0 %v3461
    %6001 = vmatpush.bf16.msra.mxu0 %v3451
    %6002 = vmatpush.bf16.msra.mxu0 %v3441
    %6003 = vmatpush.bf16.msra.mxu0 %v3431
    %6004 = vmatmul.bf16.gmra.mxu0 %v924
    %v6005 = vpop.f32.mrf.mxu0
    %v6006 = vadd.f32 %v5993, %v6005
    %v6007 = vpop.f32.mrf.mxu0
    %6008 = vdwg.mxu0
    %6009 = vmatpush.bf16.msra.mxu0 %v3581
    %6010 = vmatpush.bf16.msra.mxu0 %v3571
    %6011 = vmatpush.bf16.msra.mxu0 %v3561
    %6012 = vmatpush.bf16.msra.mxu0 %v3551
    %6013 = vmatpush.bf16.msra.mxu0 %v3541
    %6014 = vmatpush.bf16.msra.mxu0 %v3531
    %6015 = vmatpush.bf16.msra.mxu0 %v3521
    %6016 = vmatpush.bf16.msra.mxu0 %v3511
    %6017 = vmatmul.bf16.gmra.mxu0 %v925
    %v6018 = vpop.f32.mrf.mxu0
    %v6019 = vadd.f32 %v6006, %v6018
    %v6020 = vpop.f32.mrf.mxu0
    %6021 = vdwg.mxu0
    %6022 = vmatpush.bf16.msra.mxu0 %v3661
    %6023 = vmatpush.bf16.msra.mxu0 %v3651
    %6024 = vmatpush.bf16.msra.mxu0 %v3641
    %6025 = vmatpush.bf16.msra.mxu0 %v3631
    %6026 = vmatpush.bf16.msra.mxu0 %v3621
    %6027 = vmatpush.bf16.msra.mxu0 %v3611
    %6028 = vmatpush.bf16.msra.mxu0 %v3601
    %6029 = vmatpush.bf16.msra.mxu0 %v3591
    %6030 = vmatmul.bf16.gmra.mxu0 %v926
    %v6031 = vpop.f32.mrf.mxu0
    %v6032 = vadd.f32 %v6019, %v6031
    %v6033 = vpop.f32.mrf.mxu0
    %6034 = vdwg.mxu0
    %6035 = vmatpush.bf16.msra.mxu0 %v3741
    %6036 = vmatpush.bf16.msra.mxu0 %v3731
    %6037 = vmatpush.bf16.msra.mxu0 %v3721
    %6038 = vmatpush.bf16.msra.mxu0 %v3711
    %6039 = vmatpush.bf16.msra.mxu0 %v3701
    %6040 = vmatpush.bf16.msra.mxu0 %v3691
    %6041 = vmatpush.bf16.msra.mxu0 %v3681
    %6042 = vmatpush.bf16.msra.mxu0 %v3671
    %6043 = vmatmul.bf16.gmra.mxu0 %v927
    %v6044 = vpop.f32.mrf.mxu0
    %v6045 = vadd.f32 %v6032, %v6044
    %v6046 = vpop.f32.mrf.mxu0
    %6047 = vdwg.mxu0
    %6048 = vmatpush.bf16.msra.mxu0 %v3821
    %6049 = vmatpush.bf16.msra.mxu0 %v3811
    %6050 = vmatpush.bf16.msra.mxu0 %v3801
    %6051 = vmatpush.bf16.msra.mxu0 %v3791
    %6052 = vmatpush.bf16.msra.mxu0 %v3781
    %6053 = vmatpush.bf16.msra.mxu0 %v3771
    %6054 = vmatpush.bf16.msra.mxu0 %v3761
    %6055 = vmatpush.bf16.msra.mxu0 %v3751
    %6056 = vmatmul.bf16.gmra.mxu0 %v928
    %v6057 = vpop.f32.mrf.mxu0
    %v6058 = vadd.f32 %v6045, %v6057
    %v6059 = vpop.f32.mrf.mxu0
    %6060 = vdwg.mxu0
    %6061 = vmatpush.bf16.msra.mxu0 %v3901
    %6062 = vmatpush.bf16.msra.mxu0 %v3891
    %6063 = vmatpush.bf16.msra.mxu0 %v3881
    %6064 = vmatpush.bf16.msra.mxu0 %v3871
    %6065 = vmatpush.bf16.msra.mxu0 %v3861
    %6066 = vmatpush.bf16.msra.mxu0 %v3851
    %6067 = vmatpush.bf16.msra.mxu0 %v3841
    %6068 = vmatpush.bf16.msra.mxu0 %v3831
    %6069 = vmatmul.bf16.gmra.mxu0 %v929
    %v6070 = vpop.f32.mrf.mxu0
    %v6071 = vadd.f32 %v6058, %v6070
    %v6072 = vpop.f32.mrf.mxu0
    %6073 = vdwg.mxu0
    %6074 = vmatpush.bf16.msra.mxu0 %v3981
    %6075 = vmatpush.bf16.msra.mxu0 %v3971
    %6076 = vmatpush.bf16.msra.mxu0 %v3961
    %6077 = vmatpush.bf16.msra.mxu0 %v3951
    %6078 = vmatpush.bf16.msra.mxu0 %v3941
    %6079 = vmatpush.bf16.msra.mxu0 %v3931
    %6080 = vmatpush.bf16.msra.mxu0 %v3921
    %6081 = vmatpush.bf16.msra.mxu0 %v3911
    %6082 = vmatmul.bf16.gmra.mxu0 %v930
    %v6083 = vpop.f32.mrf.mxu0
    %v6084 = vadd.f32 %v6071, %v6083
    %v6085 = vpop.f32.mrf.mxu0
    %6086 = vdwg.mxu0
    %6087 = vmatpush.bf16.msra.mxu0 %v4061
    %6088 = vmatpush.bf16.msra.mxu0 %v4051
    %6089 = vmatpush.bf16.msra.mxu0 %v4041
    %6090 = vmatpush.bf16.msra.mxu0 %v4031
    %6091 = vmatpush.bf16.msra.mxu0 %v4021
    %6092 = vmatpush.bf16.msra.mxu0 %v4011
    %6093 = vmatpush.bf16.msra.mxu0 %v4001
    %6094 = vmatpush.bf16.msra.mxu0 %v3991
    %6095 = vmatmul.bf16.gmra.mxu0 %v931
    %v6096 = vpop.f32.mrf.mxu0
    %v6097 = vadd.f32 %v6084, %v6096
    %v6098 = vpop.f32.mrf.mxu0
    %6099 = vdwg.mxu0
    %6100 = vmatpush.bf16.msra.mxu0 %v4141
    %6101 = vmatpush.bf16.msra.mxu0 %v4131
    %6102 = vmatpush.bf16.msra.mxu0 %v4121
    %6103 = vmatpush.bf16.msra.mxu0 %v4111
    %6104 = vmatpush.bf16.msra.mxu0 %v4101
    %6105 = vmatpush.bf16.msra.mxu0 %v4091
    %6106 = vmatpush.bf16.msra.mxu0 %v4081
    %6107 = vmatpush.bf16.msra.mxu0 %v4071
    %6108 = vmatmul.bf16.gmra.mxu0 %v932
    %v6109 = vpop.f32.mrf.mxu0
    %v6110 = vadd.f32 %v6097, %v6109
    %v6111 = vpop.f32.mrf.mxu0
    %6112 = vdwg.mxu0
    %6113 = vmatpush.bf16.msra.mxu0 %v3422
    %6114 = vmatpush.bf16.msra.mxu0 %v3412
    %6115 = vmatpush.bf16.msra.mxu0 %v3402
    %6116 = vmatpush.bf16.msra.mxu0 %v3392
    %6117 = vmatpush.bf16.msra.mxu0 %v3382
    %6118 = vmatpush.bf16.msra.mxu0 %v3372
    %6119 = vmatpush.bf16.msra.mxu0 %v3362
    %6120 = vmatpush.bf16.msra.mxu0 %v3352
    %6121 = vmatmul.bf16.gmra.mxu0 %v923
    %v6122 = vpop.f32.mrf.mxu0
    %v6123 = vadd.f32 %v897, %v6122
    %v6124 = vpop.f32.mrf.mxu0
    %6125 = vdwg.mxu0
    %6126 = vmatpush.bf16.msra.mxu0 %v3502
    %6127 = vmatpush.bf16.msra.mxu0 %v3492
    %6128 = vmatpush.bf16.msra.mxu0 %v3482
    %6129 = vmatpush.bf16.msra.mxu0 %v3472
    %6130 = vmatpush.bf16.msra.mxu0 %v3462
    %6131 = vmatpush.bf16.msra.mxu0 %v3452
    %6132 = vmatpush.bf16.msra.mxu0 %v3442
    %6133 = vmatpush.bf16.msra.mxu0 %v3432
    %6134 = vmatmul.bf16.gmra.mxu0 %v924
    %v6135 = vpop.f32.mrf.mxu0
    %v6136 = vadd.f32 %v6123, %v6135
    %v6137 = vpop.f32.mrf.mxu0
    %6138 = vdwg.mxu0
    %6139 = vmatpush.bf16.msra.mxu0 %v3582
    %6140 = vmatpush.bf16.msra.mxu0 %v3572
    %6141 = vmatpush.bf16.msra.mxu0 %v3562
    %6142 = vmatpush.bf16.msra.mxu0 %v3552
    %6143 = vmatpush.bf16.msra.mxu0 %v3542
    %6144 = vmatpush.bf16.msra.mxu0 %v3532
    %6145 = vmatpush.bf16.msra.mxu0 %v3522
    %6146 = vmatpush.bf16.msra.mxu0 %v3512
    %6147 = vmatmul.bf16.gmra.mxu0 %v925
    %v6148 = vpop.f32.mrf.mxu0
    %v6149 = vadd.f32 %v6136, %v6148
    %v6150 = vpop.f32.mrf.mxu0
    %6151 = vdwg.mxu0
    %6152 = vmatpush.bf16.msra.mxu0 %v3662
    %6153 = vmatpush.bf16.msra.mxu0 %v3652
    %6154 = vmatpush.bf16.msra.mxu0 %v3642
    %6155 = vmatpush.bf16.msra.mxu0 %v3632
    %6156 = vmatpush.bf16.msra.mxu0 %v3622
    %6157 = vmatpush.bf16.msra.mxu0 %v3612
    %6158 = vmatpush.bf16.msra.mxu0 %v3602
    %6159 = vmatpush.bf16.msra.mxu0 %v3592
    %6160 = vmatmul.bf16.gmra.mxu0 %v926
    %v6161 = vpop.f32.mrf.mxu0
    %v6162 = vadd.f32 %v6149, %v6161
    %v6163 = vpop.f32.mrf.mxu0
    %6164 = vdwg.mxu0
    %6165 = vmatpush.bf16.msra.mxu0 %v3742
    %6166 = vmatpush.bf16.msra.mxu0 %v3732
    %6167 = vmatpush.bf16.msra.mxu0 %v3722
    %6168 = vmatpush.bf16.msra.mxu0 %v3712
    %6169 = vmatpush.bf16.msra.mxu0 %v3702
    %6170 = vmatpush.bf16.msra.mxu0 %v3692
    %6171 = vmatpush.bf16.msra.mxu0 %v3682
    %6172 = vmatpush.bf16.msra.mxu0 %v3672
    %6173 = vmatmul.bf16.gmra.mxu0 %v927
    %v6174 = vpop.f32.mrf.mxu0
    %v6175 = vadd.f32 %v6162, %v6174
    %v6176 = vpop.f32.mrf.mxu0
    %6177 = vdwg.mxu0
    %6178 = vmatpush.bf16.msra.mxu0 %v3822
    %6179 = vmatpush.bf16.msra.mxu0 %v3812
    %6180 = vmatpush.bf16.msra.mxu0 %v3802
    %6181 = vmatpush.bf16.msra.mxu0 %v3792
    %6182 = vmatpush.bf16.msra.mxu0 %v3782
    %6183 = vmatpush.bf16.msra.mxu0 %v3772
    %6184 = vmatpush.bf16.msra.mxu0 %v3762
    %6185 = vmatpush.bf16.msra.mxu0 %v3752
    %6186 = vmatmul.bf16.gmra.mxu0 %v928
    %v6187 = vpop.f32.mrf.mxu0
    %v6188 = vadd.f32 %v6175, %v6187
    %v6189 = vpop.f32.mrf.mxu0
    %6190 = vdwg.mxu0
    %6191 = vmatpush.bf16.msra.mxu0 %v3902
    %6192 = vmatpush.bf16.msra.mxu0 %v3892
    %6193 = vmatpush.bf16.msra.mxu0 %v3882
    %6194 = vmatpush.bf16.msra.mxu0 %v3872
    %6195 = vmatpush.bf16.msra.mxu0 %v3862
    %6196 = vmatpush.bf16.msra.mxu0 %v3852
    %6197 = vmatpush.bf16.msra.mxu0 %v3842
    %6198 = vmatpush.bf16.msra.mxu0 %v3832
    %6199 = vmatmul.bf16.gmra.mxu0 %v929
    %v6200 = vpop.f32.mrf.mxu0
    %v6201 = vadd.f32 %v6188, %v6200
    %v6202 = vpop.f32.mrf.mxu0
    %6203 = vdwg.mxu0
    %6204 = vmatpush.bf16.msra.mxu0 %v3982
    %6205 = vmatpush.bf16.msra.mxu0 %v3972
    %6206 = vmatpush.bf16.msra.mxu0 %v3962
    %6207 = vmatpush.bf16.msra.mxu0 %v3952
    %6208 = vmatpush.bf16.msra.mxu0 %v3942
    %6209 = vmatpush.bf16.msra.mxu0 %v3932
    %6210 = vmatpush.bf16.msra.mxu0 %v3922
    %6211 = vmatpush.bf16.msra.mxu0 %v3912
    %6212 = vmatmul.bf16.gmra.mxu0 %v930
    %v6213 = vpop.f32.mrf.mxu0
    %v6214 = vadd.f32 %v6201, %v6213
    %v6215 = vpop.f32.mrf.mxu0
    %6216 = vdwg.mxu0
    %6217 = vmatpush.bf16.msra.mxu0 %v4062
    %6218 = vmatpush.bf16.msra.mxu0 %v4052
    %6219 = vmatpush.bf16.msra.mxu0 %v4042
    %6220 = vmatpush.bf16.msra.mxu0 %v4032
    %6221 = vmatpush.bf16.msra.mxu0 %v4022
    %6222 = vmatpush.bf16.msra.mxu0 %v4012
    %6223 = vmatpush.bf16.msra.mxu0 %v4002
    %6224 = vmatpush.bf16.msra.mxu0 %v3992
    %6225 = vmatmul.bf16.gmra.mxu0 %v931
    %v6226 = vpop.f32.mrf.mxu0
    %v6227 = vadd.f32 %v6214, %v6226
    %v6228 = vpop.f32.mrf.mxu0
    %6229 = vdwg.mxu0
    %6230 = vmatpush.bf16.msra.mxu0 %v4142
    %6231 = vmatpush.bf16.msra.mxu0 %v4132
    %6232 = vmatpush.bf16.msra.mxu0 %v4122
    %6233 = vmatpush.bf16.msra.mxu0 %v4112
    %6234 = vmatpush.bf16.msra.mxu0 %v4102
    %6235 = vmatpush.bf16.msra.mxu0 %v4092
    %6236 = vmatpush.bf16.msra.mxu0 %v4082
    %6237 = vmatpush.bf16.msra.mxu0 %v4072
    %6238 = vmatmul.bf16.gmra.mxu0 %v932
    %v6239 = vpop.f32.mrf.mxu0
    %v6240 = vadd.f32 %v6227, %v6239
    %v6241 = vpop.f32.mrf.mxu0
    %6242 = vdwg.mxu0
    %v6243 = vmax.f32 %v5070, 0.0
    %v6244 = vmax.f32 %v5200, 0.0
    %v6245 = vmax.f32 %v5330, 0.0
    %v6246 = vmax.f32 %v5460, 0.0
    %v6247 = vmax.f32 %v5590, 0.0
    %v6248 = vmax.f32 %v5720, 0.0
    %v6249 = vmax.f32 %v5850, 0.0
    %v6250 = vmax.f32 %v5980, 0.0
    %v6251 = vmax.f32 %v6110, 0.0
    %v6252 = vmax.f32 %v6240, 0.0
    %v6253 = vpack.c.bf16 %v6243, %v6243
    %v6254 = vpack.c.bf16 %v6244, %v6244
    %v6255 = vpack.c.bf16 %v6245, %v6245
    %v6256 = vpack.c.bf16 %v6246, %v6246
    %v6257 = vpack.c.bf16 %v6247, %v6247
    %v6258 = vpack.c.bf16 %v6248, %v6248
    %v6259 = vpack.c.bf16 %v6249, %v6249
    %v6260 = vpack.c.bf16 %v6250, %v6250
    %v6261 = vpack.c.bf16 %v6251, %v6251
    %v6262 = vpack.c.bf16 %v6252, %v6252
    %v6263 = vld [vmem:[#allocation6] sm:$0xf]
    %v6264 = vld [vmem:[#allocation6 + $0x4] sm:$0xf]
    %v6265 = vld [vmem:[#allocation6 + $0x8] sm:$0xf]
    %v6266 = vld [vmem:[#allocation6 + $0xc] sm:$0xf]
    %v6267 = vld [vmem:[#allocation6 + $0x10] sm:$0xf]
    %v6268 = vld [vmem:[#allocation6 + $0x14] sm:$0xf]
    %v6269 = vld [vmem:[#allocation6 + $0x18] sm:$0xf]
    %v6270 = vld [vmem:[#allocation6 + $0x1c] sm:$0xf]
    %v6271 = vld [vmem:[#allocation6 + $0x20] sm:$0xf]
    %v6272 = vld [vmem:[#allocation6 + $0x24] sm:$0xf]
    %v6273 = vld [vmem:[#allocation6 + $0x28] sm:$0xf]
    %v6274 = vld [vmem:[#allocation6 + $0x2c] sm:$0xf]
    %v6275 = vld [vmem:[#allocation6 + $0x30] sm:$0xf]
    %v6276 = vld [vmem:[#allocation6 + $0x34] sm:$0xf]
    %v6277 = vld [vmem:[#allocation6 + $0x38] sm:$0xf]
    %v6278 = vld [vmem:[#allocation6 + $0x3c] sm:$0xf]
    %v6279 = vld [vmem:[#allocation6 + $0x40] sm:$0xf]
    %v6280 = vld [vmem:[#allocation6 + $0x44] sm:$0xf]
    %v6281 = vld [vmem:[#allocation6 + $0x48] sm:$0xf]
    %v6282 = vld [vmem:[#allocation6 + $0x4c] sm:$0xf]
    %v6283 = vld [vmem:[#allocation6 + $0x50] sm:$0xf]
    %v6284 = vld [vmem:[#allocation6 + $0x54] sm:$0xf]
    %v6285 = vld [vmem:[#allocation6 + $0x58] sm:$0xf]
    %v6286 = vld [vmem:[#allocation6 + $0x5c] sm:$0xf]
    %v6287 = vld [vmem:[#allocation6 + $0x60] sm:$0xf]
    %v6288 = vld [vmem:[#allocation6 + $0x64] sm:$0xf]
    %v6289 = vld [vmem:[#allocation6 + $0x68] sm:$0xf]
    %v6290 = vld [vmem:[#allocation6 + $0x6c] sm:$0xf]
    %v6291 = vld [vmem:[#allocation6 + $0x70] sm:$0xf]
    %v6292 = vld [vmem:[#allocation6 + $0x74] sm:$0xf]
    %v6293 = vld [vmem:[#allocation6 + $0x78] sm:$0xf]
    %v6294 = vld [vmem:[#allocation6 + $0x7c] sm:$0xf]
    %v6295 = vld [vmem:[#allocation6 + $0x80] sm:$0xf]
    %v6296 = vld [vmem:[#allocation6 + $0x84] sm:$0xf]
    %v6297 = vld [vmem:[#allocation6 + $0x88] sm:$0xf]
    %v6298 = vld [vmem:[#allocation6 + $0x8c] sm:$0xf]
    %v6299 = vld [vmem:[#allocation6 + $0x90] sm:$0xf]
    %v6300 = vld [vmem:[#allocation6 + $0x94] sm:$0xf]
    %v6301 = vld [vmem:[#allocation6 + $0x98] sm:$0xf]
    %v6302 = vld [vmem:[#allocation6 + $0x9c] sm:$0xf]
    %v6303 = vld [vmem:[#allocation6 + $0xa0] sm:$0xf]
    %v6304 = vld [vmem:[#allocation6 + $0xa4] sm:$0xf]
    %v6305 = vld [vmem:[#allocation6 + $0xa8] sm:$0xf]
    %v6306 = vld [vmem:[#allocation6 + $0xac] sm:$0xf]
    %v6307 = vld [vmem:[#allocation6 + $0xb0] sm:$0xf]
    %v6308 = vld [vmem:[#allocation6 + $0xb4] sm:$0xf]
    %v6309 = vld [vmem:[#allocation6 + $0xb8] sm:$0xf]
    %v6310 = vld [vmem:[#allocation6 + $0xbc] sm:$0xf]
    %v6311 = vld [vmem:[#allocation6 + $0xc0] sm:$0xf]
    %v6312 = vld [vmem:[#allocation6 + $0xc4] sm:$0xf]
    %v6313 = vld [vmem:[#allocation6 + $0xc8] sm:$0xf]
    %v6314 = vld [vmem:[#allocation6 + $0xcc] sm:$0xf]
    %v6315 = vld [vmem:[#allocation6 + $0xd0] sm:$0xf]
    %v6316 = vld [vmem:[#allocation6 + $0xd4] sm:$0xf]
    %v6317 = vld [vmem:[#allocation6 + $0xd8] sm:$0xf]
    %v6318 = vld [vmem:[#allocation6 + $0xdc] sm:$0xf]
    %v6319 = vld [vmem:[#allocation6 + $0xe0] sm:$0xf]
    %v6320 = vld [vmem:[#allocation6 + $0xe4] sm:$0xf]
    %v6321 = vld [vmem:[#allocation6 + $0xe8] sm:$0xf]
    %v6322 = vld [vmem:[#allocation6 + $0xec] sm:$0xf]
    %v6323 = vld [vmem:[#allocation6 + $0xf0] sm:$0xf]
    %v6324 = vld [vmem:[#allocation6 + $0xf4] sm:$0xf]
    %v6325 = vld [vmem:[#allocation6 + $0xf8] sm:$0xf]
    %v6326 = vld [vmem:[#allocation6 + $0xfc] sm:$0xf]
    %v6327 = vld [vmem:[#allocation6 + $0x100] sm:$0xf]
    %v6328 = vld [vmem:[#allocation6 + $0x104] sm:$0xf]
    %v6329 = vld [vmem:[#allocation6 + $0x108] sm:$0xf]
    %v6330 = vld [vmem:[#allocation6 + $0x10c] sm:$0xf]
    %v6331 = vld [vmem:[#allocation6 + $0x110] sm:$0xf]
    %v6332 = vld [vmem:[#allocation6 + $0x114] sm:$0xf]
    %v6333 = vld [vmem:[#allocation6 + $0x118] sm:$0xf]
    %v6334 = vld [vmem:[#allocation6 + $0x11c] sm:$0xf]
    %v6335 = vld [vmem:[#allocation6 + $0x120] sm:$0xf]
    %v6336 = vld [vmem:[#allocation6 + $0x124] sm:$0xf]
    %v6337 = vld [vmem:[#allocation6 + $0x128] sm:$0xf]
    %v6338 = vld [vmem:[#allocation6 + $0x12c] sm:$0xf]
    %v6339 = vld [vmem:[#allocation6 + $0x130] sm:$0xf]
    %v6340 = vld [vmem:[#allocation6 + $0x134] sm:$0xf]
    %v6341 = vld [vmem:[#allocation6 + $0x138] sm:$0xf]
    %v6342 = vld [vmem:[#allocation6 + $0x13c] sm:$0xf]
    %v6343 = vld [vmem:[#allocation6 + $0x140] sm:$0xf]
    %v6344 = vld [vmem:[#allocation6 + $0x144] sm:$0xf]
    %v6345 = vld [vmem:[#allocation6 + $0x148] sm:$0xf]
    %v6346 = vld [vmem:[#allocation6 + $0x14c] sm:$0xf]
    %v6347 = vld [vmem:[#allocation6 + $0x150] sm:$0xf]
    %v6348 = vld [vmem:[#allocation6 + $0x154] sm:$0xf]
    %v6349 = vld [vmem:[#allocation6 + $0x158] sm:$0xf]
    %v6350 = vld [vmem:[#allocation6 + $0x15c] sm:$0xf]
    %v6351 = vld [vmem:[#allocation6 + $0x160] sm:$0xf]
    %v6352 = vld [vmem:[#allocation6 + $0x164] sm:$0xf]
    %v6353 = vld [vmem:[#allocation6 + $0x168] sm:$0xf]
    %v6354 = vld [vmem:[#allocation6 + $0x16c] sm:$0xf]
    %v6355 = vld [vmem:[#allocation6 + $0x170] sm:$0xf]
    %v6356 = vld [vmem:[#allocation6 + $0x174] sm:$0xf]
    %v6357 = vld [vmem:[#allocation6 + $0x178] sm:$0xf]
    %v6358 = vld [vmem:[#allocation6 + $0x17c] sm:$0xf]
    %v6359 = vld [vmem:[#allocation6 + $0x180] sm:$0xf]
    %v6360 = vld [vmem:[#allocation6 + $0x184] sm:$0xf]
    %v6361 = vld [vmem:[#allocation6 + $0x188] sm:$0xf]
    %v6362 = vld [vmem:[#allocation6 + $0x18c] sm:$0xf]
    %v6363 = vld [vmem:[#allocation6 + $0x190] sm:$0xf]
    %v6364 = vld [vmem:[#allocation6 + $0x194] sm:$0xf]
    %v6365 = vld [vmem:[#allocation6 + $0x198] sm:$0xf]
    %v6366 = vld [vmem:[#allocation6 + $0x19c] sm:$0xf]
    %v6367 = vld [vmem:[#allocation6 + $0x1a0] sm:$0xf]
    %v6368 = vld [vmem:[#allocation6 + $0x1a4] sm:$0xf]
    %v6369 = vld [vmem:[#allocation6 + $0x1a8] sm:$0xf]
    %v6370 = vld [vmem:[#allocation6 + $0x1ac] sm:$0xf]
    %v6371 = vld [vmem:[#allocation6 + $0x1b0] sm:$0xf]
    %v6372 = vld [vmem:[#allocation6 + $0x1b4] sm:$0xf]
    %v6373 = vld [vmem:[#allocation6 + $0x1b8] sm:$0xf]
    %v6374 = vld [vmem:[#allocation6 + $0x1bc] sm:$0xf]
    %v6375 = vld [vmem:[#allocation6 + $0x1c0] sm:$0xf]
    %v6376 = vld [vmem:[#allocation6 + $0x1c4] sm:$0xf]
    %v6377 = vld [vmem:[#allocation6 + $0x1c8] sm:$0xf]
    %v6378 = vld [vmem:[#allocation6 + $0x1cc] sm:$0xf]
    %v6379 = vld [vmem:[#allocation6 + $0x1d0] sm:$0xf]
    %v6380 = vld [vmem:[#allocation6 + $0x1d4] sm:$0xf]
    %v6381 = vld [vmem:[#allocation6 + $0x1d8] sm:$0xf]
    %v6382 = vld [vmem:[#allocation6 + $0x1dc] sm:$0xf]
    %v6383 = vld [vmem:[#allocation6 + $0x1e0] sm:$0xf]
    %v6384 = vld [vmem:[#allocation6 + $0x1e4] sm:$0xf]
    %v6385 = vld [vmem:[#allocation6 + $0x1e8] sm:$0xf]
    %v6386 = vld [vmem:[#allocation6 + $0x1ec] sm:$0xf]
    %v6387 = vld [vmem:[#allocation6 + $0x1f0] sm:$0xf]
    %v6388 = vld [vmem:[#allocation6 + $0x1f4] sm:$0xf]
    %v6389 = vld [vmem:[#allocation6 + $0x1f8] sm:$0xf]
    %v6390 = vld [vmem:[#allocation6 + $0x1fc] sm:$0xf]
    %v6391 = vld [vmem:[#allocation6 + $0x200] sm:$0xf]
    %v6392 = vld [vmem:[#allocation6 + $0x204] sm:$0xf]
    %v6393 = vld [vmem:[#allocation6 + $0x208] sm:$0xf]
    %v6394 = vld [vmem:[#allocation6 + $0x20c] sm:$0xf]
    %v6395 = vld [vmem:[#allocation6 + $0x210] sm:$0xf]
    %v6396 = vld [vmem:[#allocation6 + $0x214] sm:$0xf]
    %v6397 = vld [vmem:[#allocation6 + $0x218] sm:$0xf]
    %v6398 = vld [vmem:[#allocation6 + $0x21c] sm:$0xf]
    %v6399 = vld [vmem:[#allocation6 + $0x220] sm:$0xf]
    %v6400 = vld [vmem:[#allocation6 + $0x224] sm:$0xf]
    %v6401 = vld [vmem:[#allocation6 + $0x228] sm:$0xf]
    %v6402 = vld [vmem:[#allocation6 + $0x22c] sm:$0xf]
    %v6403 = vld [vmem:[#allocation6 + $0x230] sm:$0xf]
    %v6404 = vld [vmem:[#allocation6 + $0x234] sm:$0xf]
    %v6405 = vld [vmem:[#allocation6 + $0x238] sm:$0xf]
    %v6406 = vld [vmem:[#allocation6 + $0x23c] sm:$0xf]
    %v6407 = vld [vmem:[#allocation6 + $0x240] sm:$0xf]
    %v6408 = vld [vmem:[#allocation6 + $0x244] sm:$0xf]
    %v6409 = vld [vmem:[#allocation6 + $0x248] sm:$0xf]
    %v6410 = vld [vmem:[#allocation6 + $0x24c] sm:$0xf]
    %v6411 = vld [vmem:[#allocation6 + $0x250] sm:$0xf]
    %v6412 = vld [vmem:[#allocation6 + $0x254] sm:$0xf]
    %v6413 = vld [vmem:[#allocation6 + $0x258] sm:$0xf]
    %v6414 = vld [vmem:[#allocation6 + $0x25c] sm:$0xf]
    %v6415 = vld [vmem:[#allocation6 + $0x260] sm:$0xf]
    %v6416 = vld [vmem:[#allocation6 + $0x264] sm:$0xf]
    %v6417 = vld [vmem:[#allocation6 + $0x268] sm:$0xf]
    %v6418 = vld [vmem:[#allocation6 + $0x26c] sm:$0xf]
    %v6419 = vld [vmem:[#allocation6 + $0x270] sm:$0xf]
    %v6420 = vld [vmem:[#allocation6 + $0x274] sm:$0xf]
    %v6421 = vld [vmem:[#allocation6 + $0x278] sm:$0xf]
    %v6422 = vld [vmem:[#allocation6 + $0x27c] sm:$0xf]
    %v6423 = vld [vmem:[#allocation7] sm:$0x1]
    %v6425 = vperm.slane %v6423, 0
    %v6587 = vunpack.c.l.b16 %v6263
    %v6588 = vunpack.c.l.b16 %v6264
    %v6589 = vunpack.c.l.b16 %v6265
    %v6590 = vunpack.c.l.b16 %v6266
    %v6591 = vunpack.c.l.b16 %v6267
    %v6592 = vunpack.c.l.b16 %v6268
    %v6593 = vunpack.c.l.b16 %v6269
    %v6594 = vunpack.c.l.b16 %v6270
    %v6595 = vunpack.c.l.b16 %v6271
    %v6596 = vunpack.c.l.b16 %v6272
    %v6597 = vunpack.c.l.b16 %v6273
    %v6598 = vunpack.c.l.b16 %v6274
    %v6599 = vunpack.c.l.b16 %v6275
    %v6600 = vunpack.c.l.b16 %v6276
    %v6601 = vunpack.c.l.b16 %v6277
    %v6602 = vunpack.c.l.b16 %v6278
    %v6603 = vunpack.c.l.b16 %v6279
    %v6604 = vunpack.c.l.b16 %v6280
    %v6605 = vunpack.c.l.b16 %v6281
    %v6606 = vunpack.c.l.b16 %v6282
    %v6607 = vunpack.c.l.b16 %v6283
    %v6608 = vunpack.c.l.b16 %v6284
    %v6609 = vunpack.c.l.b16 %v6285
    %v6610 = vunpack.c.l.b16 %v6286
    %v6611 = vunpack.c.l.b16 %v6287
    %v6612 = vunpack.c.l.b16 %v6288
    %v6613 = vunpack.c.l.b16 %v6289
    %v6614 = vunpack.c.l.b16 %v6290
    %v6615 = vunpack.c.l.b16 %v6291
    %v6616 = vunpack.c.l.b16 %v6292
    %v6617 = vunpack.c.l.b16 %v6293
    %v6618 = vunpack.c.l.b16 %v6294
    %v6619 = vunpack.c.l.b16 %v6295
    %v6620 = vunpack.c.l.b16 %v6296
    %v6621 = vunpack.c.l.b16 %v6297
    %v6622 = vunpack.c.l.b16 %v6298
    %v6623 = vunpack.c.l.b16 %v6299
    %v6624 = vunpack.c.l.b16 %v6300
    %v6625 = vunpack.c.l.b16 %v6301
    %v6626 = vunpack.c.l.b16 %v6302
    %v6627 = vunpack.c.l.b16 %v6303
    %v6628 = vunpack.c.l.b16 %v6304
    %v6629 = vunpack.c.l.b16 %v6305
    %v6630 = vunpack.c.l.b16 %v6306
    %v6631 = vunpack.c.l.b16 %v6307
    %v6632 = vunpack.c.l.b16 %v6308
    %v6633 = vunpack.c.l.b16 %v6309
    %v6634 = vunpack.c.l.b16 %v6310
    %v6635 = vunpack.c.l.b16 %v6311
    %v6636 = vunpack.c.l.b16 %v6312
    %v6637 = vunpack.c.l.b16 %v6313
    %v6638 = vunpack.c.l.b16 %v6314
    %v6639 = vunpack.c.l.b16 %v6315
    %v6640 = vunpack.c.l.b16 %v6316
    %v6641 = vunpack.c.l.b16 %v6317
    %v6642 = vunpack.c.l.b16 %v6318
    %v6643 = vunpack.c.l.b16 %v6319
    %v6644 = vunpack.c.l.b16 %v6320
    %v6645 = vunpack.c.l.b16 %v6321
    %v6646 = vunpack.c.l.b16 %v6322
    %v6647 = vunpack.c.l.b16 %v6323
    %v6648 = vunpack.c.l.b16 %v6324
    %v6649 = vunpack.c.l.b16 %v6325
    %v6650 = vunpack.c.l.b16 %v6326
    %v6651 = vunpack.c.l.b16 %v6327
    %v6652 = vunpack.c.l.b16 %v6328
    %v6653 = vunpack.c.l.b16 %v6329
    %v6654 = vunpack.c.l.b16 %v6330
    %v6655 = vunpack.c.l.b16 %v6331
    %v6656 = vunpack.c.l.b16 %v6332
    %v6657 = vunpack.c.l.b16 %v6333
    %v6658 = vunpack.c.l.b16 %v6334
    %v6659 = vunpack.c.l.b16 %v6335
    %v6660 = vunpack.c.l.b16 %v6336
    %v6661 = vunpack.c.l.b16 %v6337
    %v6662 = vunpack.c.l.b16 %v6338
    %v6663 = vunpack.c.l.b16 %v6339
    %v6664 = vunpack.c.l.b16 %v6340
    %v6665 = vunpack.c.l.b16 %v6341
    %v6666 = vunpack.c.l.b16 %v6342
    %v6667 = vunpack.c.l.b16 %v6343
    %v6668 = vunpack.c.l.b16 %v6344
    %v6669 = vunpack.c.l.b16 %v6345
    %v6670 = vunpack.c.l.b16 %v6346
    %v6671 = vunpack.c.l.b16 %v6347
    %v6672 = vunpack.c.l.b16 %v6348
    %v6673 = vunpack.c.l.b16 %v6349
    %v6674 = vunpack.c.l.b16 %v6350
    %v6675 = vunpack.c.l.b16 %v6351
    %v6676 = vunpack.c.l.b16 %v6352
    %v6677 = vunpack.c.l.b16 %v6353
    %v6678 = vunpack.c.l.b16 %v6354
    %v6679 = vunpack.c.l.b16 %v6355
    %v6680 = vunpack.c.l.b16 %v6356
    %v6681 = vunpack.c.l.b16 %v6357
    %v6682 = vunpack.c.l.b16 %v6358
    %v6683 = vunpack.c.l.b16 %v6359
    %v6684 = vunpack.c.l.b16 %v6360
    %v6685 = vunpack.c.l.b16 %v6361
    %v6686 = vunpack.c.l.b16 %v6362
    %v6687 = vunpack.c.l.b16 %v6363
    %v6688 = vunpack.c.l.b16 %v6364
    %v6689 = vunpack.c.l.b16 %v6365
    %v6690 = vunpack.c.l.b16 %v6366
    %v6691 = vunpack.c.l.b16 %v6367
    %v6692 = vunpack.c.l.b16 %v6368
    %v6693 = vunpack.c.l.b16 %v6369
    %v6694 = vunpack.c.l.b16 %v6370
    %v6695 = vunpack.c.l.b16 %v6371
    %v6696 = vunpack.c.l.b16 %v6372
    %v6697 = vunpack.c.l.b16 %v6373
    %v6698 = vunpack.c.l.b16 %v6374
    %v6699 = vunpack.c.l.b16 %v6375
    %v6700 = vunpack.c.l.b16 %v6376
    %v6701 = vunpack.c.l.b16 %v6377
    %v6702 = vunpack.c.l.b16 %v6378
    %v6703 = vunpack.c.l.b16 %v6379
    %v6704 = vunpack.c.l.b16 %v6380
    %v6705 = vunpack.c.l.b16 %v6381
    %v6706 = vunpack.c.l.b16 %v6382
    %v6707 = vunpack.c.l.b16 %v6383
    %v6708 = vunpack.c.l.b16 %v6384
    %v6709 = vunpack.c.l.b16 %v6385
    %v6710 = vunpack.c.l.b16 %v6386
    %v6711 = vunpack.c.l.b16 %v6387
    %v6712 = vunpack.c.l.b16 %v6388
    %v6713 = vunpack.c.l.b16 %v6389
    %v6714 = vunpack.c.l.b16 %v6390
    %v6715 = vunpack.c.l.b16 %v6391
    %v6716 = vunpack.c.l.b16 %v6392
    %v6717 = vunpack.c.l.b16 %v6393
    %v6718 = vunpack.c.l.b16 %v6394
    %v6719 = vunpack.c.l.b16 %v6395
    %v6720 = vunpack.c.l.b16 %v6396
    %v6721 = vunpack.c.l.b16 %v6397
    %v6722 = vunpack.c.l.b16 %v6398
    %v6723 = vunpack.c.l.b16 %v6399
    %v6724 = vunpack.c.l.b16 %v6400
    %v6725 = vunpack.c.l.b16 %v6401
    %v6726 = vunpack.c.l.b16 %v6402
    %v6727 = vunpack.c.l.b16 %v6403
    %v6728 = vunpack.c.l.b16 %v6404
    %v6729 = vunpack.c.l.b16 %v6405
    %v6730 = vunpack.c.l.b16 %v6406
    %v6731 = vunpack.c.l.b16 %v6407
    %v6732 = vunpack.c.l.b16 %v6408
    %v6733 = vunpack.c.l.b16 %v6409
    %v6734 = vunpack.c.l.b16 %v6410
    %v6735 = vunpack.c.l.b16 %v6411
    %v6736 = vunpack.c.l.b16 %v6412
    %v6737 = vunpack.c.l.b16 %v6413
    %v6738 = vunpack.c.l.b16 %v6414
    %v6739 = vunpack.c.l.b16 %v6415
    %v6740 = vunpack.c.l.b16 %v6416
    %v6741 = vunpack.c.l.b16 %v6417
    %v6742 = vunpack.c.l.b16 %v6418
    %v6743 = vunpack.c.l.b16 %v6419
    %v6744 = vunpack.c.l.b16 %v6420
    %v6745 = vunpack.c.l.b16 %v6421
    %v6746 = vunpack.c.l.b16 %v6422
    %v6747 = vpack.c.b16 %v6588, %v6587
    %v6748 = vpack.c.b16 %v6590, %v6589
    %v6749 = vpack.c.b16 %v6592, %v6591
    %v6750 = vpack.c.b16 %v6594, %v6593
    %v6751 = vpack.c.b16 %v6596, %v6595
    %v6752 = vpack.c.b16 %v6598, %v6597
    %v6753 = vpack.c.b16 %v6600, %v6599
    %v6754 = vpack.c.b16 %v6602, %v6601
    %v6755 = vpack.c.b16 %v6604, %v6603
    %v6756 = vpack.c.b16 %v6606, %v6605
    %v6757 = vpack.c.b16 %v6608, %v6607
    %v6758 = vpack.c.b16 %v6610, %v6609
    %v6759 = vpack.c.b16 %v6612, %v6611
    %v6760 = vpack.c.b16 %v6614, %v6613
    %v6761 = vpack.c.b16 %v6616, %v6615
    %v6762 = vpack.c.b16 %v6618, %v6617
    %v6763 = vpack.c.b16 %v6620, %v6619
    %v6764 = vpack.c.b16 %v6622, %v6621
    %v6765 = vpack.c.b16 %v6624, %v6623
    %v6766 = vpack.c.b16 %v6626, %v6625
    %v6767 = vpack.c.b16 %v6628, %v6627
    %v6768 = vpack.c.b16 %v6630, %v6629
    %v6769 = vpack.c.b16 %v6632, %v6631
    %v6770 = vpack.c.b16 %v6634, %v6633
    %v6771 = vpack.c.b16 %v6636, %v6635
    %v6772 = vpack.c.b16 %v6638, %v6637
    %v6773 = vpack.c.b16 %v6640, %v6639
    %v6774 = vpack.c.b16 %v6642, %v6641
    %v6775 = vpack.c.b16 %v6644, %v6643
    %v6776 = vpack.c.b16 %v6646, %v6645
    %v6777 = vpack.c.b16 %v6648, %v6647
    %v6778 = vpack.c.b16 %v6650, %v6649
    %v6779 = vpack.c.b16 %v6652, %v6651
    %v6780 = vpack.c.b16 %v6654, %v6653
    %v6781 = vpack.c.b16 %v6656, %v6655
    %v6782 = vpack.c.b16 %v6658, %v6657
    %v6783 = vpack.c.b16 %v6660, %v6659
    %v6784 = vpack.c.b16 %v6662, %v6661
    %v6785 = vpack.c.b16 %v6664, %v6663
    %v6786 = vpack.c.b16 %v6666, %v6665
    %v6787 = vpack.c.b16 %v6668, %v6667
    %v6788 = vpack.c.b16 %v6670, %v6669
    %v6789 = vpack.c.b16 %v6672, %v6671
    %v6790 = vpack.c.b16 %v6674, %v6673
    %v6791 = vpack.c.b16 %v6676, %v6675
    %v6792 = vpack.c.b16 %v6678, %v6677
    %v6793 = vpack.c.b16 %v6680, %v6679
    %v6794 = vpack.c.b16 %v6682, %v6681
    %v6795 = vpack.c.b16 %v6684, %v6683
    %v6796 = vpack.c.b16 %v6686, %v6685
    %v6797 = vpack.c.b16 %v6688, %v6687
    %v6798 = vpack.c.b16 %v6690, %v6689
    %v6799 = vpack.c.b16 %v6692, %v6691
    %v6800 = vpack.c.b16 %v6694, %v6693
    %v6801 = vpack.c.b16 %v6696, %v6695
    %v6802 = vpack.c.b16 %v6698, %v6697
    %v6803 = vpack.c.b16 %v6700, %v6699
    %v6804 = vpack.c.b16 %v6702, %v6701
    %v6805 = vpack.c.b16 %v6704, %v6703
    %v6806 = vpack.c.b16 %v6706, %v6705
    %v6807 = vpack.c.b16 %v6708, %v6707
    %v6808 = vpack.c.b16 %v6710, %v6709
    %v6809 = vpack.c.b16 %v6712, %v6711
    %v6810 = vpack.c.b16 %v6714, %v6713
    %v6811 = vpack.c.b16 %v6716, %v6715
    %v6812 = vpack.c.b16 %v6718, %v6717
    %v6813 = vpack.c.b16 %v6720, %v6719
    %v6814 = vpack.c.b16 %v6722, %v6721
    %v6815 = vpack.c.b16 %v6724, %v6723
    %v6816 = vpack.c.b16 %v6726, %v6725
    %v6817 = vpack.c.b16 %v6728, %v6727
    %v6818 = vpack.c.b16 %v6730, %v6729
    %v6819 = vpack.c.b16 %v6732, %v6731
    %v6820 = vpack.c.b16 %v6734, %v6733
    %v6821 = vpack.c.b16 %v6736, %v6735
    %v6822 = vpack.c.b16 %v6738, %v6737
    %v6823 = vpack.c.b16 %v6740, %v6739
    %v6824 = vpack.c.b16 %v6742, %v6741
    %v6825 = vpack.c.b16 %v6744, %v6743
    %v6826 = vpack.c.b16 %v6746, %v6745
    %6907 = vmatpush.bf16.msra.mxu0 %v6754
    %6908 = vmatpush.bf16.msra.mxu0 %v6753
    %6909 = vmatpush.bf16.msra.mxu0 %v6752
    %6910 = vmatpush.bf16.msra.mxu0 %v6751
    %6911 = vmatpush.bf16.msra.mxu0 %v6750
    %6912 = vmatpush.bf16.msra.mxu0 %v6749
    %6913 = vmatpush.bf16.msra.mxu0 %v6748
    %6914 = vmatpush.bf16.msra.mxu0 %v6747
    %6915 = vmatmul.bf16.gmra.mxu0 %v6253
    %v6916 = vpop.f32.mrf.mxu0
    %v6917 = vadd.f32 %v6425, %v6916
    %v6918 = vpop.f32.mrf.mxu0
    %6919 = vdwg.mxu0
    %6920 = vmatpush.bf16.msra.mxu0 %v6762
    %6921 = vmatpush.bf16.msra.mxu0 %v6761
    %6922 = vmatpush.bf16.msra.mxu0 %v6760
    %6923 = vmatpush.bf16.msra.mxu0 %v6759
    %6924 = vmatpush.bf16.msra.mxu0 %v6758
    %6925 = vmatpush.bf16.msra.mxu0 %v6757
    %6926 = vmatpush.bf16.msra.mxu0 %v6756
    %6927 = vmatpush.bf16.msra.mxu0 %v6755
    %6928 = vmatmul.bf16.gmra.mxu0 %v6254
    %v6929 = vpop.f32.mrf.mxu0
    %v6930 = vadd.f32 %v6917, %v6929
    %v6931 = vpop.f32.mrf.mxu0
    %6932 = vdwg.mxu0
    %6933 = vmatpush.bf16.msra.mxu0 %v6770
    %6934 = vmatpush.bf16.msra.mxu0 %v6769
    %6935 = vmatpush.bf16.msra.mxu0 %v6768
    %6936 = vmatpush.bf16.msra.mxu0 %v6767
    %6937 = vmatpush.bf16.msra.mxu0 %v6766
    %6938 = vmatpush.bf16.msra.mxu0 %v6765
    %6939 = vmatpush.bf16.msra.mxu0 %v6764
    %6940 = vmatpush.bf16.msra.mxu0 %v6763
    %6941 = vmatmul.bf16.gmra.mxu0 %v6255
    %v6942 = vpop.f32.mrf.mxu0
    %v6943 = vadd.f32 %v6930, %v6942
    %v6944 = vpop.f32.mrf.mxu0
    %6945 = vdwg.mxu0
    %6946 = vmatpush.bf16.msra.mxu0 %v6778
    %6947 = vmatpush.bf16.msra.mxu0 %v6777
    %6948 = vmatpush.bf16.msra.mxu0 %v6776
    %6949 = vmatpush.bf16.msra.mxu0 %v6775
    %6950 = vmatpush.bf16.msra.mxu0 %v6774
    %6951 = vmatpush.bf16.msra.mxu0 %v6773
    %6952 = vmatpush.bf16.msra.mxu0 %v6772
    %6953 = vmatpush.bf16.msra.mxu0 %v6771
    %6954 = vmatmul.bf16.gmra.mxu0 %v6256
    %v6955 = vpop.f32.mrf.mxu0
    %v6956 = vadd.f32 %v6943, %v6955
    %v6957 = vpop.f32.mrf.mxu0
    %6958 = vdwg.mxu0
    %6959 = vmatpush.bf16.msra.mxu0 %v6786
    %6960 = vmatpush.bf16.msra.mxu0 %v6785
    %6961 = vmatpush.bf16.msra.mxu0 %v6784
    %6962 = vmatpush.bf16.msra.mxu0 %v6783
    %6963 = vmatpush.bf16.msra.mxu0 %v6782
    %6964 = vmatpush.bf16.msra.mxu0 %v6781
    %6965 = vmatpush.bf16.msra.mxu0 %v6780
    %6966 = vmatpush.bf16.msra.mxu0 %v6779
    %6967 = vmatmul.bf16.gmra.mxu0 %v6257
    %v6968 = vpop.f32.mrf.mxu0
    %v6969 = vadd.f32 %v6956, %v6968
    %v6970 = vpop.f32.mrf.mxu0
    %6971 = vdwg.mxu0
    %6972 = vmatpush.bf16.msra.mxu0 %v6794
    %6973 = vmatpush.bf16.msra.mxu0 %v6793
    %6974 = vmatpush.bf16.msra.mxu0 %v6792
    %6975 = vmatpush.bf16.msra.mxu0 %v6791
    %6976 = vmatpush.bf16.msra.mxu0 %v6790
    %6977 = vmatpush.bf16.msra.mxu0 %v6789
    %6978 = vmatpush.bf16.msra.mxu0 %v6788
    %6979 = vmatpush.bf16.msra.mxu0 %v6787
    %6980 = vmatmul.bf16.gmra.mxu0 %v6258
    %v6981 = vpop.f32.mrf.mxu0
    %v6982 = vadd.f32 %v6969, %v6981
    %v6983 = vpop.f32.mrf.mxu0
    %6984 = vdwg.mxu0
    %6985 = vmatpush.bf16.msra.mxu0 %v6802
    %6986 = vmatpush.bf16.msra.mxu0 %v6801
    %6987 = vmatpush.bf16.msra.mxu0 %v6800
    %6988 = vmatpush.bf16.msra.mxu0 %v6799
    %6989 = vmatpush.bf16.msra.mxu0 %v6798
    %6990 = vmatpush.bf16.msra.mxu0 %v6797
    %6991 = vmatpush.bf16.msra.mxu0 %v6796
    %6992 = vmatpush.bf16.msra.mxu0 %v6795
    %6993 = vmatmul.bf16.gmra.mxu0 %v6259
    %v6994 = vpop.f32.mrf.mxu0
    %v6995 = vadd.f32 %v6982, %v6994
    %v6996 = vpop.f32.mrf.mxu0
    %6997 = vdwg.mxu0
    %6998 = vmatpush.bf16.msra.mxu0 %v6810
    %6999 = vmatpush.bf16.msra.mxu0 %v6809
    %7000 = vmatpush.bf16.msra.mxu0 %v6808
    %7001 = vmatpush.bf16.msra.mxu0 %v6807
    %7002 = vmatpush.bf16.msra.mxu0 %v6806
    %7003 = vmatpush.bf16.msra.mxu0 %v6805
    %7004 = vmatpush.bf16.msra.mxu0 %v6804
    %7005 = vmatpush.bf16.msra.mxu0 %v6803
    %7006 = vmatmul.bf16.gmra.mxu0 %v6260
    %v7007 = vpop.f32.mrf.mxu0
    %v7008 = vadd.f32 %v6995, %v7007
    %v7009 = vpop.f32.mrf.mxu0
    %7010 = vdwg.mxu0
    %7011 = vmatpush.bf16.msra.mxu0 %v6818
    %7012 = vmatpush.bf16.msra.mxu0 %v6817
    %7013 = vmatpush.bf16.msra.mxu0 %v6816
    %7014 = vmatpush.bf16.msra.mxu0 %v6815
    %7015 = vmatpush.bf16.msra.mxu0 %v6814
    %7016 = vmatpush.bf16.msra.mxu0 %v6813
    %7017 = vmatpush.bf16.msra.mxu0 %v6812
    %7018 = vmatpush.bf16.msra.mxu0 %v6811
    %7019 = vmatmul.bf16.gmra.mxu0 %v6261
    %v7020 = vpop.f32.mrf.mxu0
    %v7021 = vadd.f32 %v7008, %v7020
    %v7022 = vpop.f32.mrf.mxu0
    %7023 = vdwg.mxu0
    %7024 = vmatpush.bf16.msra.mxu0 %v6826
    %7025 = vmatpush.bf16.msra.mxu0 %v6825
    %7026 = vmatpush.bf16.msra.mxu0 %v6824
    %7027 = vmatpush.bf16.msra.mxu0 %v6823
    %7028 = vmatpush.bf16.msra.mxu0 %v6822
    %7029 = vmatpush.bf16.msra.mxu0 %v6821
    %7030 = vmatpush.bf16.msra.mxu0 %v6820
    %7031 = vmatpush.bf16.msra.mxu0 %v6819
    %7032 = vmatmul.bf16.gmra.mxu0 %v6262
    %v7033 = vpop.f32.mrf.mxu0
    %v7034 = vadd.f32 %v7021, %v7033
    %v7035 = vpop.f32.mrf.mxu0
    %7036 = vdwg.mxu0
    %v7037 = vmul.f32 %v7034, %v7034
    %7038 = vadd.xlane.f32.xlu0 %v7037
    %v7039 = vpop.xlane.xlu0 %7038
    %v7040 = vmax.f32 %v7039, 1e-24
    %v7041 = vrsqrt.pop %v7040
    %v7042 = vmul.f32 %v7041, %v7040
    %v7043 = vmul.f32 %v7042, %v7041
    %v7044 = vmul.f32 0.5, %v7043
    %v7045 = vsub.f32 1.5, %v7044
    %v7046 = vmul.f32 %v7041, %v7045
    %vm7047 = vweird.f32 %v7040
    %vm7048 = vweird.f32 %v7041
    %vm7049 = vmor %vm7047, %vm7048
    %v7050 = vsel %vm7049, %v7041, %v7046
    %v7051 = vmul.f32 %v7034, %v7050
    %7052 = vst [vmem:[%s5] sm:$0xff] %v7051
    // Predicated region
    $region38: #{supcon_effnet_forward.3} parent=1 // pred_check
      _
    $region39: #{supcon_effnet_forward.3} parent=1 // pred_check_branch
      %7054 = sbr.rel (0) target = $region41
    $region40: #{supcon_effnet_forward.3} parent=1 // pred_region
      _
    $region41: #{supcon_effnet_forward.3} parent=1 // pred_fallthru
      _
    // Predicated region
    $region42: #{supcon_effnet_forward.3} parent=1 // pred_check
      _
    $region43: #{supcon_effnet_forward.3} parent=1 // pred_check_branch
      %7056 = sbr.rel (0) target = $region45
    $region44: #{supcon_effnet_forward.3} parent=1 // pred_region
      _
    $region45: #{supcon_effnet_forward.3} parent=1 // pred_fallthru
      _
    %7057 = vsyncpa [#allocation3], 1
    %7058 = vsyncpa [#allocation5], 1
    %7059 = vsyncpa [#allocation8], 1

</llo_original>
